<compile_context>
chip_gen: v6e
topology: v6e:2x2x1
jax: 0.10.0
libtpu: 0.0.40
codegen_flags: <defaults>
</compile_context>

<pallas_src>
import jax
import jax.numpy as jnp
from jax.experimental import pallas as pl
from jax.experimental.pallas import tpu as pltpu


# ----------------------------------------------------------------------------
# In-kernel helper: 3x3 conv (pad=1) + folded BN shift + ReLU on a
# column-polyphase image:
#   E[:, j, :] = image[:, 2j,   :]   (even columns)
#   O[:, j, :] = image[:, 2j+1, :]   (odd  columns)
# One MXU matmul with a combined (12*C, 2*Cout) weight matrix produces BOTH
# output column phases at once, packed as (R*Wc, 2*Cout) = [even ch | odd ch].
# ----------------------------------------------------------------------------
def _conv3x3_polyphase_packed(E, O, w_comb, shift):
    R, Wc, C = E.shape
    zrow = jnp.zeros((1, Wc, C), jnp.float32)
    zcol = jnp.zeros((R, 1, C), jnp.float32)

    # Column-shifted phases carry the conv's zero padding at the width edges.
    O_left = jnp.concatenate([zcol, O[:, :-1, :]], axis=1)    # O[j-1], 0 at j=0
    E_right = jnp.concatenate([E[:, 1:, :], zcol], axis=1)    # E[j+1], 0 at j=Wc-1

    def pad_rows(a):  # conv zero padding along H (leading axis -> cheap)
        return jnp.concatenate([zrow, a, zrow], axis=0)       # (R+2, Wc, C)

    taps = (pad_rows(O_left), pad_rows(E), pad_rows(O), pad_rows(E_right))

    # im2col: 12 taps (dy major, column-phase minor) on the lane axis, then
    # ONE MXU matmul with K = 12*C (bf16 inputs, f32 accumulation).
    cols = jnp.concatenate(
        [t[dy:dy + R] for dy in range(3) for t in taps], axis=-1,
    ).reshape(R * Wc, 12 * C)
    acc = jnp.dot(cols.astype(jnp.bfloat16), w_comb,
                  preferred_element_type=jnp.float32)          # (R*Wc, 2*Cout)
    return jnp.maximum(acc + shift, 0.0)


# ----------------------------------------------------------------------------
# Fused kernel: bilinear x2 upsample -> [skip concat] -> conv1+BN+ReLU
#               -> conv2+BN+ReLU.  One batch element per grid step.
# ----------------------------------------------------------------------------
def _make_fused_kernel(has_skip):
    def kernel(*refs):
        if has_skip:
            (x_ref, skip_e_ref, skip_o_ref,
             w1_ref, sh1_ref, w2_ref, sh2_ref, o_ref) = refs
        else:
            (x_ref, w1_ref, sh1_ref, w2_ref, sh2_ref, o_ref) = refs

        x = x_ref[0].astype(jnp.float32)                      # (H, W, Cin)
        H, W, _ = x.shape
        H2 = 2 * H

        # ---- bilinear x2 along H (leading axis: cheap slices) ----
        # out[2k] = 0.25*x[k-1] + 0.75*x[k];  out[2k+1] = 0.75*x[k] + 0.25*x[k+1]
        prev_h = jnp.concatenate([x[:1], x[:-1]], axis=0)
        next_h = jnp.concatenate([x[1:], x[-1:]], axis=0)
        xh = jnp.stack([0.25 * prev_h + 0.75 * x,
                        0.75 * x + 0.25 * next_h], axis=1).reshape(H2, W, -1)

        # ---- bilinear x2 along W, kept in polyphase (even/odd column) form
        #      so the interleaved (2H, 2W, C) image is never materialized ----
        prev_w = jnp.concatenate([xh[:, :1], xh[:, :-1]], axis=1)
        next_w = jnp.concatenate([xh[:, 1:], xh[:, -1:]], axis=1)
        E = 0.25 * prev_w + 0.75 * xh                         # columns 2j
        O = 0.75 * xh + 0.25 * next_w                         # columns 2j+1

        if has_skip:
            E = jnp.concatenate([E, skip_e_ref[0].astype(jnp.float32)], axis=-1)
            O = jnp.concatenate([O, skip_o_ref[0].astype(jnp.float32)], axis=-1)

        # ---- conv1 + folded BN + ReLU (one MXU matmul, both column phases) ----
        y = _conv3x3_polyphase_packed(E, O, w1_ref[...], sh1_ref[...])
        cout = y.shape[-1] // 2

        # ---- conv2 + folded BN + ReLU (still on-chip, still polyphase) ----
        z = _conv3x3_polyphase_packed(
            y[:, :cout].reshape(H2, W, cout),                 # even columns
            y[:, cout:].reshape(H2, W, cout),                 # odd columns
            w2_ref[...], sh2_ref[...])

        # z is already in the packed store layout: lanes = [even ch | odd ch].
        # Interleaving columns is deferred to a free XLA reshape in the wrapper.
        o_ref[...] = z[None].astype(o_ref.dtype)

    return kernel


# ----------------------------------------------------------------------------
# Wrapper-side weight prep: (Cout, Cin, 3, 3) conv weight + per-channel BN
# scale -> (12*Cin, 2*Cout) polyphase MXU weight matrix (bf16).
# Tap order matches the kernel's im2col: dy major, then (O_left, E, O, E_right).
# ----------------------------------------------------------------------------
def _build_combined_weight(w_oihw, scale):
    cout, cin, _, _ = w_oihw.shape
    wf = w_oihw.astype(jnp.float32) * scale.reshape(cout, 1, 1, 1)   # fold BN scale
    zeros = jnp.zeros((cin, cout), jnp.float32)
    blocks = []
    for ky in range(3):
        wk = jnp.transpose(wf[:, :, ky, :], (1, 2, 0))        # (Cin, kx, Cout)
        even = (wk[:, 0], wk[:, 1], wk[:, 2], zeros)          # out col 2j  : {O_left,E,O}
        odd = (zeros, wk[:, 0], wk[:, 1], wk[:, 2])           # out col 2j+1: {E,O,E_right}
        for t in range(4):
            blocks.append(jnp.concatenate([even[t], odd[t]], axis=-1))  # (Cin, 2*Cout)
    return jnp.concatenate(blocks, axis=0).astype(jnp.bfloat16)        # (12*Cin, 2*Cout)


# ----------------------------------------------------------------------------
# Wrapper (non-parametric path of Upsample2DBlock).  NCHW in / NCHW out.
# ----------------------------------------------------------------------------
def upsample2d_block_forward(params, x_nchw, skip_connection_nchw=None, eps=1e-5):
    x = jnp.transpose(x_nchw, (0, 2, 3, 1)).astype(jnp.float32)   # NCHW -> NHWC
    n, h, w, cin = x.shape
    # TODO(synk): generalize (pad W) for widths not divisible by 8.
    assert w % 8 == 0, "fused kernel requires input width divisible by 8"
    h2, w2 = 2 * h, 2 * w

    has_skip = skip_connection_nchw is not None
    skip_e = skip_o = None
    skip_c = 0
    if has_skip:
        skip = jnp.transpose(skip_connection_nchw, (0, 2, 3, 1)).astype(jnp.float32)
        assert skip.shape[1] == h2 and skip.shape[2] == w2
        skip_c = skip.shape[3]
        skip_e = skip[:, :, 0::2, :]       # even columns of the skip (glue)
        skip_o = skip[:, :, 1::2, :]       # odd columns of the skip  (glue)

    c1 = cin + skip_c
    cout = params["conv1_w"].shape[0]

    def fold_bn(bias, bn):
        scale = bn["gamma"] / jnp.sqrt(bn["r_var"] + eps)
        shift = bn["beta"] - bn["r_mean"] * scale + bias * scale
        return scale.astype(jnp.float32), shift.astype(jnp.float32)

    sc1, sh1 = fold_bn(params["conv1_b"], params["bn1"])
    sc2, sh2 = fold_bn(params["conv2_b"], params["bn2"])

    w1_comb = _build_combined_weight(params["conv1_w"], sc1)       # (12*c1,  2*cout)
    w2_comb = _build_combined_weight(params["conv2_w"], sc2)       # (12*cout,2*cout)
    sh1p = jnp.concatenate([sh1, sh1]).reshape(1, 2 * cout)        # even|odd share shift
    sh2p = jnp.concatenate([sh2, sh2]).reshape(1, 2 * cout)

    in_specs = [pl.BlockSpec((1, h, w, cin), lambda i: (i, 0, 0, 0))]
    inputs = [x]
    if has_skip:
        in_specs += [pl.BlockSpec((1, h2, w, skip_c), lambda i: (i, 0, 0, 0)),
                     pl.BlockSpec((1, h2, w, skip_c), lambda i: (i, 0, 0, 0))]
        inputs += [skip_e, skip_o]
    in_specs += [
        pl.BlockSpec((12 * c1, 2 * cout), lambda i: (0, 0)),
        pl.BlockSpec((1, 2 * cout), lambda i: (0, 0)),
        pl.BlockSpec((12 * cout, 2 * cout), lambda i: (0, 0)),
        pl.BlockSpec((1, 2 * cout), lambda i: (0, 0)),
    ]
    inputs += [w1_comb, sh1p, w2_comb, sh2p]

    out = pl.pallas_call(
        _make_fused_kernel(has_skip),
        out_shape=jax.ShapeDtypeStruct((n, h2 * w, 2 * cout), jnp.float32),
        grid_spec=pltpu.PrefetchScalarGridSpec(
            num_scalar_prefetch=0,
            grid=(n,),
            in_specs=in_specs,
            out_specs=pl.BlockSpec((1, h2 * w, 2 * cout), lambda i: (i, 0, 0)),
        ),
        compiler_params=pltpu.CompilerParams(
            dimension_semantics=("parallel",),
            vmem_limit_bytes=32 * 1024 * 1024,
        ),
    )(*inputs)

    # Free XLA reshape: (N, 2H*W, 2*Cout) -> (N, 2H, 2W, Cout) undoes the
    # polyphase (even/odd column) packing.  Then NHWC -> NCHW.
    out = out.reshape(n, h2, w2, cout)
    return jnp.transpose(out, (0, 3, 1, 2))


# ----------------------------------------------------------------------------
# Parameter init (matches the PyTorch module structure; eval-mode BN stats).
# ----------------------------------------------------------------------------
def init_upsample2d_block_params(key, ch_in, ch_out=None, skip_in=0):
    ch_out = ch_in // 2 if ch_out is None else ch_out
    conv1_in = ch_in + skip_in
    conv2_in = ch_out
    ks = jax.random.split(key, 12)

    def bn_params(k0, k1, k2, k3, c):
        return dict(
            gamma=jax.random.uniform(k0, (c,), jnp.float32, 0.8, 1.2),
            beta=0.1 * jax.random.normal(k1, (c,), jnp.float32),
            r_mean=0.1 * jax.random.normal(k2, (c,), jnp.float32),
            r_var=jax.random.uniform(k3, (c,), jnp.float32, 0.5, 1.5),
        )

    return dict(
        conv1_w=0.1 * jax.random.normal(ks[0], (ch_out, conv1_in, 3, 3), jnp.float32),
        conv1_b=0.1 * jax.random.normal(ks[1], (ch_out,), jnp.float32),
        bn1=bn_params(ks[2], ks[3], ks[4], ks[5], ch_out),
        conv2_w=0.1 * jax.random.normal(ks[6], (ch_out, conv2_in, 3, 3), jnp.float32),
        conv2_b=0.1 * jax.random.normal(ks[7], (ch_out,), jnp.float32),
        bn2=bn_params(ks[8], ks[9], ks[10], ks[11], ch_out),
    )


# ----------------------------------------------------------------------------
# Pure-JAX reference (same folded-scale / bf16-weight / bf16-activation
# convention as the kernel) for a numerical self-check.
# ----------------------------------------------------------------------------
def _reference_forward(params, x_nchw, skip_connection_nchw=None, eps=1e-5):
    def up2x_axis1(a):  # (N, H, W, C) -> (N, 2H, W, C), align_corners=False
        prev = jnp.concatenate([a[:, :1], a[:, :-1]], axis=1)
        nxt = jnp.concatenate([a[:, 1:], a[:, -1:]], axis=1)
        out = jnp.stack([0.25 * prev + 0.75 * a, 0.75 * a + 0.25 * nxt], axis=2)
        return out.reshape(a.shape[0], 2 * a.shape[1], a.shape[2], a.shape[3])

    x = jnp.transpose(x_nchw, (0, 2, 3, 1)).astype(jnp.float32)
    x = up2x_axis1(x)
    x = jnp.transpose(x, (0, 2, 1, 3))
    x = up2x_axis1(x)
    x = jnp.transpose(x, (0, 2, 1, 3))
    if skip_connection_nchw is not None:
        skip = jnp.transpose(skip_connection_nchw, (0, 2, 3, 1)).astype(jnp.float32)
        x = jnp.concatenate([x, skip], axis=-1)

    def conv_bn_relu(a, w_oihw, b, bn):
        scale = bn["gamma"] / jnp.sqrt(bn["r_var"] + eps)
        shift = bn["beta"] - bn["r_mean"] * scale + b * scale
        wq = (w_oihw * scale[:, None, None, None]).astype(jnp.bfloat16).astype(jnp.float32)
        aq = a.astype(jnp.bfloat16).astype(jnp.float32)
        y = jax.lax.conv_general_dilated(
            aq, wq, window_strides=(1, 1), padding="SAME",
            dimension_numbers=("NHWC", "OIHW", "NHWC"))
        return jnp.maximum(y + shift, 0.0)

    x = conv_bn_relu(x, params["conv1_w"], params["conv1_b"], params["bn1"])
    x = conv_bn_relu(x, params["conv2_w"], params["conv2_b"], params["bn2"])
    return jnp.transpose(x, (0, 3, 1, 2))


if __name__ == "__main__":
    key = jax.random.PRNGKey(0)
    k_param, k_param_s, k_x, k_skip = jax.random.split(key, 4)

    N, CH_IN, H, W = 2, 8, 16, 16          # small shapes; ch_out = ch_in // 2 = 4
    expected_shape = (N, CH_IN // 2, 2 * H, 2 * W)
    x = jax.random.normal(k_x, (N, CH_IN, H, W), jnp.float32)     # NCHW input

    # ---- no-skip path ----
    params = init_upsample2d_block_params(k_param, CH_IN, ch_out=None, skip_in=0)
    out = jax.block_until_ready(
        upsample2d_block_forward(params, x, skip_connection_nchw=None))
    ref = jax.block_until_ready(
        _reference_forward(params, x, skip_connection_nchw=None))
    assert out.shape == expected_shape, (out.shape, expected_shape)
    assert bool(jnp.all(jnp.isfinite(out)))
    assert bool(jnp.all(out >= 0.0))       # final ReLU
    max_err = float(jnp.max(jnp.abs(out - ref)))
    assert max_err < 2e-2, f"no-skip max abs error vs reference: {max_err}"

    # ---- skip-connection path ----
    SKIP_C = 4
    params_s = init_upsample2d_block_params(k_param_s, CH_IN, ch_out=None,
                                            skip_in=SKIP_C)
    skip = jax.random.normal(k_skip, (N, SKIP_C, 2 * H, 2 * W), jnp.float32)
    out_s = jax.block_until_ready(
        upsample2d_block_forward(params_s, x, skip_connection_nchw=skip))
    ref_s = jax.block_until_ready(
        _reference_forward(params_s, x, skip_connection_nchw=skip))
    assert out_s.shape == expected_shape, (out_s.shape, expected_shape)
    max_err_s = float(jnp.max(jnp.abs(out_s - ref_s)))
    assert max_err_s < 2e-2, f"skip max abs error vs reference: {max_err_s}"

    print("KERNEL_OK")
</pallas_src>

<mosaic_0001>
module attributes {stable_mosaic.version = 11 : i64} {
  func.func @kernel(%arg0: i32, %arg1: memref<1x16x16x8xf32, #tpu.memory_space<vmem>>, %arg2: memref<96x8xbf16, #tpu.memory_space<vmem>>, %arg3: memref<1x8xf32, #tpu.memory_space<vmem>>, %arg4: memref<48x8xbf16, #tpu.memory_space<vmem>>, %arg5: memref<1x8xf32, #tpu.memory_space<vmem>>, %arg6: memref<1x512x8xf32, #tpu.memory_space<vmem>>) attributes {dimension_semantics = [#tpu.dimension_semantics<parallel>], iteration_bounds = array<i64: 2>, scalar_prefetch = 0 : i64, scratch_operands = 0 : i64, tpu.core_type = #tpu.core_type<tc>, window_params = [{transform_indices = @transform_0, window_bounds = array<i64: 1, 16, 16, 8>}, {pipeline_mode = #tpu.pipeline_mode<synchronous>, transform_indices = @transform_1, window_bounds = array<i64: 96, 8>}, {pipeline_mode = #tpu.pipeline_mode<synchronous>, transform_indices = @transform_2, window_bounds = array<i64: 1, 8>}, {pipeline_mode = #tpu.pipeline_mode<synchronous>, transform_indices = @transform_3, window_bounds = array<i64: 48, 8>}, {pipeline_mode = #tpu.pipeline_mode<synchronous>, transform_indices = @transform_4, window_bounds = array<i64: 1, 8>}, {transform_indices = @transform_5, window_bounds = array<i64: 1, 512, 8>}]} {
    %c0 = arith.constant 0 : index
    %c0_0 = arith.constant 0 : index
    %c0_1 = arith.constant 0 : index
    %c0_2 = arith.constant 0 : index
    %0 = vector.load %arg1[%c0, %c0_0, %c0_1, %c0_2] : memref<1x16x16x8xf32, #tpu.memory_space<vmem>>, vector<1x16x16x8xf32>
    %1 = vector.shape_cast %0 : vector<1x16x16x8xf32> to vector<16x16x8xf32>
    %2 = vector.extract_strided_slice %1 {offsets = [0, 0, 0], sizes = [1, 16, 8], strides = [1, 1, 1]} : vector<16x16x8xf32> to vector<1x16x8xf32>
    %3 = vector.extract_strided_slice %1 {offsets = [0, 0, 0], sizes = [15, 16, 8], strides = [1, 1, 1]} : vector<16x16x8xf32> to vector<15x16x8xf32>
    %4 = tpu.concatenate %2, %3 in 0 : vector<1x16x8xf32>, vector<15x16x8xf32> -> vector<16x16x8xf32>
    %5 = vector.extract_strided_slice %1 {offsets = [1, 0, 0], sizes = [15, 16, 8], strides = [1, 1, 1]} : vector<16x16x8xf32> to vector<15x16x8xf32>
    %6 = vector.extract_strided_slice %1 {offsets = [15, 0, 0], sizes = [1, 16, 8], strides = [1, 1, 1]} : vector<16x16x8xf32> to vector<1x16x8xf32>
    %7 = tpu.concatenate %5, %6 in 0 : vector<15x16x8xf32>, vector<1x16x8xf32> -> vector<16x16x8xf32>
    %cst = arith.constant 2.500000e-01 : f32
    %8 = vector.broadcast %cst : f32 to vector<16x16x8xf32>
    %9 = arith.mulf %8, %4 : vector<16x16x8xf32>
    %cst_3 = arith.constant 7.500000e-01 : f32
    %10 = vector.broadcast %cst_3 : f32 to vector<16x16x8xf32>
    %11 = arith.mulf %10, %1 : vector<16x16x8xf32>
    %12 = arith.addf %9, %11 : vector<16x16x8xf32>
    %cst_4 = arith.constant 7.500000e-01 : f32
    %13 = vector.broadcast %cst_4 : f32 to vector<16x16x8xf32>
    %14 = arith.mulf %13, %1 : vector<16x16x8xf32>
    %cst_5 = arith.constant 2.500000e-01 : f32
    %15 = vector.broadcast %cst_5 : f32 to vector<16x16x8xf32>
    %16 = arith.mulf %15, %7 : vector<16x16x8xf32>
    %17 = arith.addf %14, %16 : vector<16x16x8xf32>
    %18 = vector.shape_cast %12 : vector<16x16x8xf32> to vector<16x1x16x8xf32>
    %19 = vector.shape_cast %17 : vector<16x16x8xf32> to vector<16x1x16x8xf32>
    %20 = tpu.concatenate %18, %19 in 1 : vector<16x1x16x8xf32>, vector<16x1x16x8xf32> -> vector<16x2x16x8xf32>
    %21 = vector.shape_cast %20 : vector<16x2x16x8xf32> to vector<32x16x8xf32>
    %22 = vector.extract_strided_slice %21 {offsets = [0, 0, 0], sizes = [32, 1, 8], strides = [1, 1, 1]} : vector<32x16x8xf32> to vector<32x1x8xf32>
    %23 = vector.extract_strided_slice %21 {offsets = [0, 0, 0], sizes = [32, 15, 8], strides = [1, 1, 1]} : vector<32x16x8xf32> to vector<32x15x8xf32>
    %24 = tpu.concatenate %22, %23 in 1 : vector<32x1x8xf32>, vector<32x15x8xf32> -> vector<32x16x8xf32>
    %25 = vector.extract_strided_slice %21 {offsets = [0, 1, 0], sizes = [32, 15, 8], strides = [1, 1, 1]} : vector<32x16x8xf32> to vector<32x15x8xf32>
    %26 = vector.extract_strided_slice %21 {offsets = [0, 15, 0], sizes = [32, 1, 8], strides = [1, 1, 1]} : vector<32x16x8xf32> to vector<32x1x8xf32>
    %27 = tpu.concatenate %25, %26 in 1 : vector<32x15x8xf32>, vector<32x1x8xf32> -> vector<32x16x8xf32>
    %cst_6 = arith.constant 2.500000e-01 : f32
    %28 = vector.broadcast %cst_6 : f32 to vector<32x16x8xf32>
    %29 = arith.mulf %28, %24 : vector<32x16x8xf32>
    %cst_7 = arith.constant 7.500000e-01 : f32
    %30 = vector.broadcast %cst_7 : f32 to vector<32x16x8xf32>
    %31 = arith.mulf %30, %21 : vector<32x16x8xf32>
    %32 = arith.addf %29, %31 : vector<32x16x8xf32>
    %cst_8 = arith.constant 7.500000e-01 : f32
    %33 = vector.broadcast %cst_8 : f32 to vector<32x16x8xf32>
    %34 = arith.mulf %33, %21 : vector<32x16x8xf32>
    %cst_9 = arith.constant 2.500000e-01 : f32
    %35 = vector.broadcast %cst_9 : f32 to vector<32x16x8xf32>
    %36 = arith.mulf %35, %27 : vector<32x16x8xf32>
    %37 = arith.addf %34, %36 : vector<32x16x8xf32>
    %c0_10 = arith.constant 0 : index
    %c0_11 = arith.constant 0 : index
    %38 = vector.load %arg2[%c0_10, %c0_11] : memref<96x8xbf16, #tpu.memory_space<vmem>>, vector<96x8xbf16>
    %c0_12 = arith.constant 0 : index
    %c0_13 = arith.constant 0 : index
    %39 = vector.load %arg3[%c0_12, %c0_13] : memref<1x8xf32, #tpu.memory_space<vmem>>, vector<1x8xf32>
    %cst_14 = arith.constant 0.000000e+00 : f32
    %40 = vector.broadcast %cst_14 : f32 to vector<1x16x8xf32>
    %cst_15 = arith.constant 0.000000e+00 : f32
    %41 = vector.broadcast %cst_15 : f32 to vector<32x1x8xf32>
    %42 = vector.extract_strided_slice %37 {offsets = [0, 0, 0], sizes = [32, 15, 8], strides = [1, 1, 1]} : vector<32x16x8xf32> to vector<32x15x8xf32>
    %43 = tpu.concatenate %41, %42 in 1 : vector<32x1x8xf32>, vector<32x15x8xf32> -> vector<32x16x8xf32>
    %44 = vector.extract_strided_slice %32 {offsets = [0, 1, 0], sizes = [32, 15, 8], strides = [1, 1, 1]} : vector<32x16x8xf32> to vector<32x15x8xf32>
    %45 = tpu.concatenate %44, %41 in 1 : vector<32x15x8xf32>, vector<32x1x8xf32> -> vector<32x16x8xf32>
    %46 = tpu.concatenate %40, %43, %40 in 0 : vector<1x16x8xf32>, vector<32x16x8xf32>, vector<1x16x8xf32> -> vector<34x16x8xf32>
    %47 = tpu.concatenate %40, %32, %40 in 0 : vector<1x16x8xf32>, vector<32x16x8xf32>, vector<1x16x8xf32> -> vector<34x16x8xf32>
    %48 = tpu.concatenate %40, %37, %40 in 0 : vector<1x16x8xf32>, vector<32x16x8xf32>, vector<1x16x8xf32> -> vector<34x16x8xf32>
    %49 = tpu.concatenate %40, %45, %40 in 0 : vector<1x16x8xf32>, vector<32x16x8xf32>, vector<1x16x8xf32> -> vector<34x16x8xf32>
    %50 = vector.extract_strided_slice %46 {offsets = [0, 0, 0], sizes = [32, 16, 8], strides = [1, 1, 1]} : vector<34x16x8xf32> to vector<32x16x8xf32>
    %51 = vector.extract_strided_slice %47 {offsets = [0, 0, 0], sizes = [32, 16, 8], strides = [1, 1, 1]} : vector<34x16x8xf32> to vector<32x16x8xf32>
    %52 = vector.extract_strided_slice %48 {offsets = [0, 0, 0], sizes = [32, 16, 8], strides = [1, 1, 1]} : vector<34x16x8xf32> to vector<32x16x8xf32>
    %53 = vector.extract_strided_slice %49 {offsets = [0, 0, 0], sizes = [32, 16, 8], strides = [1, 1, 1]} : vector<34x16x8xf32> to vector<32x16x8xf32>
    %54 = vector.extract_strided_slice %46 {offsets = [1, 0, 0], sizes = [32, 16, 8], strides = [1, 1, 1]} : vector<34x16x8xf32> to vector<32x16x8xf32>
    %55 = vector.extract_strided_slice %47 {offsets = [1, 0, 0], sizes = [32, 16, 8], strides = [1, 1, 1]} : vector<34x16x8xf32> to vector<32x16x8xf32>
    %56 = vector.extract_strided_slice %48 {offsets = [1, 0, 0], sizes = [32, 16, 8], strides = [1, 1, 1]} : vector<34x16x8xf32> to vector<32x16x8xf32>
    %57 = vector.extract_strided_slice %49 {offsets = [1, 0, 0], sizes = [32, 16, 8], strides = [1, 1, 1]} : vector<34x16x8xf32> to vector<32x16x8xf32>
    %58 = vector.extract_strided_slice %46 {offsets = [2, 0, 0], sizes = [32, 16, 8], strides = [1, 1, 1]} : vector<34x16x8xf32> to vector<32x16x8xf32>
    %59 = vector.extract_strided_slice %47 {offsets = [2, 0, 0], sizes = [32, 16, 8], strides = [1, 1, 1]} : vector<34x16x8xf32> to vector<32x16x8xf32>
    %60 = vector.extract_strided_slice %48 {offsets = [2, 0, 0], sizes = [32, 16, 8], strides = [1, 1, 1]} : vector<34x16x8xf32> to vector<32x16x8xf32>
    %61 = vector.extract_strided_slice %49 {offsets = [2, 0, 0], sizes = [32, 16, 8], strides = [1, 1, 1]} : vector<34x16x8xf32> to vector<32x16x8xf32>
    %62 = tpu.concatenate %50, %51, %52, %53, %54, %55, %56, %57, %58, %59, %60, %61 in 2 : vector<32x16x8xf32>, vector<32x16x8xf32>, vector<32x16x8xf32>, vector<32x16x8xf32>, vector<32x16x8xf32>, vector<32x16x8xf32>, vector<32x16x8xf32>, vector<32x16x8xf32>, vector<32x16x8xf32>, vector<32x16x8xf32>, vector<32x16x8xf32>, vector<32x16x8xf32> -> vector<32x16x96xf32>
    %63 = vector.shape_cast %62 : vector<32x16x96xf32> to vector<512x96xf32>
    %64 = arith.truncf %63 : vector<512x96xf32> to vector<512x96xbf16>
    %cst_16 = arith.constant dense<0.000000e+00> : vector<512x8xf32>
    %65 = tpu.matmul %64, %38, %cst_16 {dimension_numbers = #tpu.dot_dimension_numbers<[1], [0], [0], [1], [0, 0, 1, 1], [], []>} : vector<512x96xbf16>, vector<96x8xbf16>, vector<512x8xf32> -> vector<512x8xf32>
    %66 = vector.broadcast %39 : vector<1x8xf32> to vector<512x8xf32>
    %67 = arith.addf %65, %66 : vector<512x8xf32>
    %cst_17 = arith.constant 0.000000e+00 : f32
    %68 = vector.broadcast %cst_17 : f32 to vector<512x8xf32>
    %69 = arith.maximumf %67, %68 : vector<512x8xf32>
    %70 = vector.extract_strided_slice %69 {offsets = [0, 0], sizes = [512, 4], strides = [1, 1]} : vector<512x8xf32> to vector<512x4xf32>
    %71 = vector.shape_cast %70 : vector<512x4xf32> to vector<32x16x4xf32>
    %72 = vector.extract_strided_slice %69 {offsets = [0, 4], sizes = [512, 4], strides = [1, 1]} : vector<512x8xf32> to vector<512x4xf32>
    %73 = vector.shape_cast %72 : vector<512x4xf32> to vector<32x16x4xf32>
    %c0_18 = arith.constant 0 : index
    %c0_19 = arith.constant 0 : index
    %74 = vector.load %arg4[%c0_18, %c0_19] : memref<48x8xbf16, #tpu.memory_space<vmem>>, vector<48x8xbf16>
    %c0_20 = arith.constant 0 : index
    %c0_21 = arith.constant 0 : index
    %75 = vector.load %arg5[%c0_20, %c0_21] : memref<1x8xf32, #tpu.memory_space<vmem>>, vector<1x8xf32>
    %cst_22 = arith.constant 0.000000e+00 : f32
    %76 = vector.broadcast %cst_22 : f32 to vector<1x16x4xf32>
    %cst_23 = arith.constant 0.000000e+00 : f32
    %77 = vector.broadcast %cst_23 : f32 to vector<32x1x4xf32>
    %78 = vector.extract_strided_slice %73 {offsets = [0, 0, 0], sizes = [32, 15, 4], strides = [1, 1, 1]} : vector<32x16x4xf32> to vector<32x15x4xf32>
    %79 = tpu.concatenate %77, %78 in 1 : vector<32x1x4xf32>, vector<32x15x4xf32> -> vector<32x16x4xf32>
    %80 = vector.extract_strided_slice %71 {offsets = [0, 1, 0], sizes = [32, 15, 4], strides = [1, 1, 1]} : vector<32x16x4xf32> to vector<32x15x4xf32>
    %81 = tpu.concatenate %80, %77 in 1 : vector<32x15x4xf32>, vector<32x1x4xf32> -> vector<32x16x4xf32>
    %82 = tpu.concatenate %76, %79, %76 in 0 : vector<1x16x4xf32>, vector<32x16x4xf32>, vector<1x16x4xf32> -> vector<34x16x4xf32>
    %83 = tpu.concatenate %76, %71, %76 in 0 : vector<1x16x4xf32>, vector<32x16x4xf32>, vector<1x16x4xf32> -> vector<34x16x4xf32>
    %84 = tpu.concatenate %76, %73, %76 in 0 : vector<1x16x4xf32>, vector<32x16x4xf32>, vector<1x16x4xf32> -> vector<34x16x4xf32>
    %85 = tpu.concatenate %76, %81, %76 in 0 : vector<1x16x4xf32>, vector<32x16x4xf32>, vector<1x16x4xf32> -> vector<34x16x4xf32>
    %86 = vector.extract_strided_slice %82 {offsets = [0, 0, 0], sizes = [32, 16, 4], strides = [1, 1, 1]} : vector<34x16x4xf32> to vector<32x16x4xf32>
    %87 = vector.extract_strided_slice %83 {offsets = [0, 0, 0], sizes = [32, 16, 4], strides = [1, 1, 1]} : vector<34x16x4xf32> to vector<32x16x4xf32>
    %88 = vector.extract_strided_slice %84 {offsets = [0, 0, 0], sizes = [32, 16, 4], strides = [1, 1, 1]} : vector<34x16x4xf32> to vector<32x16x4xf32>
    %89 = vector.extract_strided_slice %85 {offsets = [0, 0, 0], sizes = [32, 16, 4], strides = [1, 1, 1]} : vector<34x16x4xf32> to vector<32x16x4xf32>
    %90 = vector.extract_strided_slice %82 {offsets = [1, 0, 0], sizes = [32, 16, 4], strides = [1, 1, 1]} : vector<34x16x4xf32> to vector<32x16x4xf32>
    %91 = vector.extract_strided_slice %83 {offsets = [1, 0, 0], sizes = [32, 16, 4], strides = [1, 1, 1]} : vector<34x16x4xf32> to vector<32x16x4xf32>
    %92 = vector.extract_strided_slice %84 {offsets = [1, 0, 0], sizes = [32, 16, 4], strides = [1, 1, 1]} : vector<34x16x4xf32> to vector<32x16x4xf32>
    %93 = vector.extract_strided_slice %85 {offsets = [1, 0, 0], sizes = [32, 16, 4], strides = [1, 1, 1]} : vector<34x16x4xf32> to vector<32x16x4xf32>
    %94 = vector.extract_strided_slice %82 {offsets = [2, 0, 0], sizes = [32, 16, 4], strides = [1, 1, 1]} : vector<34x16x4xf32> to vector<32x16x4xf32>
    %95 = vector.extract_strided_slice %83 {offsets = [2, 0, 0], sizes = [32, 16, 4], strides = [1, 1, 1]} : vector<34x16x4xf32> to vector<32x16x4xf32>
    %96 = vector.extract_strided_slice %84 {offsets = [2, 0, 0], sizes = [32, 16, 4], strides = [1, 1, 1]} : vector<34x16x4xf32> to vector<32x16x4xf32>
    %97 = vector.extract_strided_slice %85 {offsets = [2, 0, 0], sizes = [32, 16, 4], strides = [1, 1, 1]} : vector<34x16x4xf32> to vector<32x16x4xf32>
    %98 = tpu.concatenate %86, %87, %88, %89, %90, %91, %92, %93, %94, %95, %96, %97 in 2 : vector<32x16x4xf32>, vector<32x16x4xf32>, vector<32x16x4xf32>, vector<32x16x4xf32>, vector<32x16x4xf32>, vector<32x16x4xf32>, vector<32x16x4xf32>, vector<32x16x4xf32>, vector<32x16x4xf32>, vector<32x16x4xf32>, vector<32x16x4xf32>, vector<32x16x4xf32> -> vector<32x16x48xf32>
    %99 = vector.shape_cast %98 : vector<32x16x48xf32> to vector<512x48xf32>
    %100 = arith.truncf %99 : vector<512x48xf32> to vector<512x48xbf16>
    %cst_24 = arith.constant dense<0.000000e+00> : vector<512x8xf32>
    %101 = tpu.matmul %100, %74, %cst_24 {dimension_numbers = #tpu.dot_dimension_numbers<[1], [0], [0], [1], [0, 0, 1, 1], [], []>} : vector<512x48xbf16>, vector<48x8xbf16>, vector<512x8xf32> -> vector<512x8xf32>
    %102 = vector.broadcast %75 : vector<1x8xf32> to vector<512x8xf32>
    %103 = arith.addf %101, %102 : vector<512x8xf32>
    %cst_25 = arith.constant 0.000000e+00 : f32
    %104 = vector.broadcast %cst_25 : f32 to vector<512x8xf32>
    %105 = arith.maximumf %103, %104 : vector<512x8xf32>
    %106 = vector.shape_cast %105 : vector<512x8xf32> to vector<1x512x8xf32>
    %c0_26 = arith.constant 0 : index
    %c0_27 = arith.constant 0 : index
    %c0_28 = arith.constant 0 : index
    %107 = vector.load %arg6[%c0_26, %c0_27, %c0_28] : memref<1x512x8xf32, #tpu.memory_space<vmem>>, vector<1x512x8xf32>
    tpu.vector_store %arg6[%c0_26, %c0_27, %c0_28], %106 {strides = array<i32>} : memref<1x512x8xf32, #tpu.memory_space<vmem>>, vector<1x512x8xf32>,
    return
  }
  func.func @transform_0(%arg0: i32) -> (i32, i32, i32, i32) {
    %c0_i32 = arith.constant 0 : i32
    %c0_i32_0 = arith.constant 0 : i32
    %c0_i32_1 = arith.constant 0 : i32
    %c0_i32_2 = arith.constant 0 : i32
    return %arg0, %c0_i32, %c0_i32_0, %c0_i32_1 : i32, i32, i32, i32
  }
  func.func @transform_1(%arg0: i32) -> (i32, i32) {
    %c0_i32 = arith.constant 0 : i32
    %c0_i32_0 = arith.constant 0 : i32
    %c0_i32_1 = arith.constant 0 : i32
    return %c0_i32, %c0_i32_0 : i32, i32
  }
  func.func @transform_2(%arg0: i32) -> (i32, i32) {
    %c0_i32 = arith.constant 0 : i32
    %c0_i32_0 = arith.constant 0 : i32
    %c0_i32_1 = arith.constant 0 : i32
    return %c0_i32, %c0_i32_0 : i32, i32
  }
  func.func @transform_3(%arg0: i32) -> (i32, i32) {
    %c0_i32 = arith.constant 0 : i32
    %c0_i32_0 = arith.constant 0 : i32
    %c0_i32_1 = arith.constant 0 : i32
    return %c0_i32, %c0_i32_0 : i32, i32
  }
  func.func @transform_4(%arg0: i32) -> (i32, i32) {
    %c0_i32 = arith.constant 0 : i32
    %c0_i32_0 = arith.constant 0 : i32
    %c0_i32_1 = arith.constant 0 : i32
    return %c0_i32, %c0_i32_0 : i32, i32
  }
  func.func @transform_5(%arg0: i32) -> (i32, i32, i32) {
    %c0_i32 = arith.constant 0 : i32
    %c0_i32_0 = arith.constant 0 : i32
    %c0_i32_1 = arith.constant 0 : i32
    return %arg0, %c0_i32, %c0_i32_0 : i32, i32, i32
  }
}

</mosaic_0001>

<llo_original>
// kernel: tpu_custom_call.1
$region0: #{tpu_custom_call.1}
  #allocation0 [shape = 'u32[]', space=smem, size = 0x4, offset = 0x4, fixed_abs, tag = 'smem constant byte address 0x4 - core index']
  #allocation1 [shape = 'u32[144,128]{1,0:T(1,128)}', space=vmem, size = 0x12000, scoped, tag = 'internal scratch']
  %s0 = inlined_call_operand.vmem [shape: f32[2,16,16,8], index: 0, kind: input, shape index: {}]
  %s1 = inlined_call_operand.vmem [shape: bf16[96,8], index: 1, kind: input, shape index: {}]
  %s2 = inlined_call_operand.vmem [shape: f32[1,8], index: 2, kind: input, shape index: {}]
  %s3 = inlined_call_operand.vmem [shape: bf16[48,8], index: 3, kind: input, shape index: {}]
  %s4 = inlined_call_operand.vmem [shape: f32[1,8], index: 4, kind: input, shape index: {}]
  %s5 = inlined_call_operand.vmem [shape: f32[2,512,8], index: 5, kind: output, shape index: {}]
  %s6 = sld [smem:[#allocation0]]
  $region53: #{tpu_custom_call.1} parent=0
    _
  %s8 = ssub.s32 1, %s6
  %s9 = scalar_select 0, %s8, %s6
  loop: start=0, step=1, limit=4
  $region2: #{tpu_custom_call.1} parent=0 // loop_pre_header
    _
  $region3: #{tpu_custom_call.1} parent=0 // loop_header
    %s11 = sphi 0, %s15
    %p12 = scmp.ge.s32.totalorder %s11, 4
    %s21 = sphi 0, %s23
    %s24 = sphi 0, %s21
    %s25 = sphi 0, %s24
    %s41 = sphi 0, %s25
    %s45 = sphi 0, %s45
    %s47 = sphi 0, %s45
    %s48 = sphi 0, %s47
    %s62 = sphi 0, %s48
    %s66 = sphi 0, %s66
    %s68 = sphi 0, %s66
    %s69 = sphi 0, %s68
    %s83 = sphi 0, %s69
    %s87 = sphi 0, %s87
    %s89 = sphi 0, %s87
    %s90 = sphi 0, %s89
    %s104 = sphi 0, %s90
    %s108 = sphi 0, %s108
    %s110 = sphi 0, %s108
    %s111 = sphi 0, %s110
    %s125 = sphi 0, %s111
    %s131 = sphi 0, %s133
    %s134 = sphi 0, %s131
    %s135 = sphi 0, %s134
    %s151 = sphi 0, %s135
  $region4: #{tpu_custom_call.1} parent=0 // loop_header_branch
    %14 = sbr.rel (%p12) target = $region8
  $region5: #{tpu_custom_call.1} parent=0 // loop_body
    %s16 = ssub.s32 %s11, 1
    %s17 = ssub.s32 %s11, 2
    %s18 = sadd.s32 %s11, 1
    %s19 = ssub.s32 %s11, %s18
    %p20 = scmp.eq.s32.totalorder %s19, 0
    %s22 = sadd.s32 %s21, 1
    %s23 = scalar_select %p20, %s21, %s22
    %p26 = pneg %p20
    %p27 = scmp.eq.s32.totalorder %s11, 1
    %p28 = por %p26, %p27
    %p29 = scmp.ne.s32.totalorder %s21, %s24
    %p30 = scmp.eq.s32.totalorder %s11, 0
    %p31 = por %p29, %p30
    %p32 = scmp.ne.s32.totalorder %s21, %s24
    %p33 = scmp.eq.s32.totalorder %s16, 1
    %p34 = por %p32, %p33
    %p35 = scmp.ne.s32.totalorder %s24, %s25
    %p36 = scmp.eq.s32.totalorder %s16, 0
    %p37 = por %p35, %p36
    %p38 = scmp.ne.s32.totalorder %s24, %s25
    %p39 = scmp.eq.s32.totalorder %s17, 1
    %p40 = por %p38, %p39
    %p42 = scmp.ne.s32.totalorder %s25, %s41
    %p43 = scmp.eq.s32.totalorder %s17, 0
    %p44 = por %p42, %p43
    %s46 = sadd.s32 %s45, 1
    %p49 = scmp.eq.s32.totalorder %s11, 1
    %p50 = scmp.ne.s32.totalorder %s45, %s47
    %p51 = scmp.eq.s32.totalorder %s11, 0
    %p52 = por %p50, %p51
    %p53 = scmp.ne.s32.totalorder %s45, %s47
    %p54 = scmp.eq.s32.totalorder %s16, 1
    %p55 = por %p53, %p54
    %p56 = scmp.ne.s32.totalorder %s47, %s48
    %p57 = scmp.eq.s32.totalorder %s16, 0
    %p58 = por %p56, %p57
    %p59 = scmp.ne.s32.totalorder %s47, %s48
    %p60 = scmp.eq.s32.totalorder %s17, 1
    %p61 = por %p59, %p60
    %p63 = scmp.ne.s32.totalorder %s48, %s62
    %p64 = scmp.eq.s32.totalorder %s17, 0
    %p65 = por %p63, %p64
    %s67 = sadd.s32 %s66, 1
    %p70 = scmp.eq.s32.totalorder %s11, 1
    %p71 = scmp.ne.s32.totalorder %s66, %s68
    %p72 = scmp.eq.s32.totalorder %s11, 0
    %p73 = por %p71, %p72
    %p74 = scmp.ne.s32.totalorder %s66, %s68
    %p75 = scmp.eq.s32.totalorder %s16, 1
    %p76 = por %p74, %p75
    %p77 = scmp.ne.s32.totalorder %s68, %s69
    %p78 = scmp.eq.s32.totalorder %s16, 0
    %p79 = por %p77, %p78
    %p80 = scmp.ne.s32.totalorder %s68, %s69
    %p81 = scmp.eq.s32.totalorder %s17, 1
    %p82 = por %p80, %p81
    %p84 = scmp.ne.s32.totalorder %s69, %s83
    %p85 = scmp.eq.s32.totalorder %s17, 0
    %p86 = por %p84, %p85
    %s88 = sadd.s32 %s87, 1
    %p91 = scmp.eq.s32.totalorder %s11, 1
    %p92 = scmp.ne.s32.totalorder %s87, %s89
    %p93 = scmp.eq.s32.totalorder %s11, 0
    %p94 = por %p92, %p93
    %p95 = scmp.ne.s32.totalorder %s87, %s89
    %p96 = scmp.eq.s32.totalorder %s16, 1
    %p97 = por %p95, %p96
    %p98 = scmp.ne.s32.totalorder %s89, %s90
    %p99 = scmp.eq.s32.totalorder %s16, 0
    %p100 = por %p98, %p99
    %p101 = scmp.ne.s32.totalorder %s89, %s90
    %p102 = scmp.eq.s32.totalorder %s17, 1
    %p103 = por %p101, %p102
    %p105 = scmp.ne.s32.totalorder %s90, %s104
    %p106 = scmp.eq.s32.totalorder %s17, 0
    %p107 = por %p105, %p106
    %s109 = sadd.s32 %s108, 1
    %p112 = scmp.eq.s32.totalorder %s11, 1
    %p113 = scmp.ne.s32.totalorder %s108, %s110
    %p114 = scmp.eq.s32.totalorder %s11, 0
    %p115 = por %p113, %p114
    %p116 = scmp.ne.s32.totalorder %s108, %s110
    %p117 = scmp.eq.s32.totalorder %s16, 1
    %p118 = por %p116, %p117
    %p119 = scmp.ne.s32.totalorder %s110, %s111
    %p120 = scmp.eq.s32.totalorder %s16, 0
    %p121 = por %p119, %p120
    %p122 = scmp.ne.s32.totalorder %s110, %s111
    %p123 = scmp.eq.s32.totalorder %s17, 1
    %p124 = por %p122, %p123
    %p126 = scmp.ne.s32.totalorder %s111, %s125
    %p127 = scmp.eq.s32.totalorder %s17, 0
    %p128 = por %p126, %p127
    %s129 = ssub.s32 %s11, %s18
    %p130 = scmp.eq.s32.totalorder %s129, 0
    %s132 = sadd.s32 %s131, 1
    %s133 = scalar_select %p130, %s131, %s132
    %p136 = pneg %p130
    %p137 = scmp.eq.s32.totalorder %s11, 1
    %p138 = por %p136, %p137
    %p139 = scmp.ne.s32.totalorder %s131, %s134
    %p140 = scmp.eq.s32.totalorder %s11, 0
    %p141 = por %p139, %p140
    %p142 = scmp.ne.s32.totalorder %s131, %s134
    %p143 = scmp.eq.s32.totalorder %s16, 1
    %p144 = por %p142, %p143
    %p145 = scmp.ne.s32.totalorder %s134, %s135
    %p146 = scmp.eq.s32.totalorder %s16, 0
    %p147 = por %p145, %p146
    %p148 = scmp.ne.s32.totalorder %s134, %s135
    %p149 = scmp.eq.s32.totalorder %s17, 1
    %p150 = por %p148, %p149
    %p152 = scmp.ne.s32.totalorder %s135, %s151
    %p153 = scmp.eq.s32.totalorder %s17, 0
    %p154 = por %p152, %p153
    %p155 = scmp.le.s32.totalorder 1, %s11
    %p156 = scmp.lt.s32.totalorder %s11, 3
    %p157 = pnand %p155, %p156
    %p158 = pneg %p157
    // Predicated region
    $region9: #{tpu_custom_call.1} parent=5 // pred_check
      _
    $region10: #{tpu_custom_call.1} parent=5 // pred_check_branch
      %160 = sbr.rel (%p157) target = $region12
    $region11: #{tpu_custom_call.1} parent=5 // pred_region
      %s161 = ssub.s32 %s11, 1
      // Predicated region
      $region13: #{tpu_custom_call.1} parent=11 // pred_check
        %p162 = pneg %p58
      $region14: #{tpu_custom_call.1} parent=11 // pred_check_branch
        %164 = sbr.rel (%p162) target = $region16
      $region15: #{tpu_custom_call.1} parent=11 // pred_region
        _
      $region16: #{tpu_custom_call.1} parent=11 // pred_fallthru
        _
      // Predicated region
      $region17: #{tpu_custom_call.1} parent=11 // pred_check
        %p165 = pneg %p79
      $region18: #{tpu_custom_call.1} parent=11 // pred_check_branch
        %167 = sbr.rel (%p165) target = $region20
      $region19: #{tpu_custom_call.1} parent=11 // pred_region
        _
      $region20: #{tpu_custom_call.1} parent=11 // pred_fallthru
        _
      // Predicated region
      $region21: #{tpu_custom_call.1} parent=11 // pred_check
        %p168 = pneg %p100
      $region22: #{tpu_custom_call.1} parent=11 // pred_check_branch
        %170 = sbr.rel (%p168) target = $region24
      $region23: #{tpu_custom_call.1} parent=11 // pred_region
        _
      $region24: #{tpu_custom_call.1} parent=11 // pred_fallthru
        _
      // Predicated region
      $region25: #{tpu_custom_call.1} parent=11 // pred_check
        %p171 = pneg %p121
      $region26: #{tpu_custom_call.1} parent=11 // pred_check_branch
        %173 = sbr.rel (%p171) target = $region28
      $region27: #{tpu_custom_call.1} parent=11 // pred_region
        _
      $region28: #{tpu_custom_call.1} parent=11 // pred_fallthru
        _
    $region12: #{tpu_custom_call.1} parent=5 // pred_fallthru
      _
    %p174 = scmp.lt.s32.totalorder %s11, 2
    // Predicated region
    $region29: #{tpu_custom_call.1} parent=5 // pred_check
      %p175 = pneg %p174
    $region30: #{tpu_custom_call.1} parent=5 // pred_check_branch
      %177 = sbr.rel (%p175) target = $region32
    $region31: #{tpu_custom_call.1} parent=5 // pred_region
      // Predicated region
      $region33: #{tpu_custom_call.1} parent=31 // pred_check
        %p178 = pneg %p31
      $region34: #{tpu_custom_call.1} parent=31 // pred_check_branch
        %180 = sbr.rel (%p178) target = $region36
      $region35: #{tpu_custom_call.1} parent=31 // pred_region
        %p181 = scmp.lt.s32.totalorder %s11, 1
        %s182 = scalar_select %p181, %s11, 1
        %s183 = smul.addr %s182, 32
        %s184 = smul.addr %s183, 8
        %s185 = scalar_lea.vmem %s0, %s184
      $region36: #{tpu_custom_call.1} parent=31 // pred_fallthru
        _
    $region32: #{tpu_custom_call.1} parent=5 // pred_fallthru
      _
    %p186 = scmp.le.s32.totalorder 1, %s11
    %p187 = scmp.lt.s32.totalorder %s11, 3
    %p188 = pnand %p186, %p187
    %p189 = pneg %p188
    // Predicated region
    $region37: #{tpu_custom_call.1} parent=5 // pred_check
      _
    $region38: #{tpu_custom_call.1} parent=5 // pred_check_branch
      %191 = sbr.rel (%p188) target = $region40
    $region39: #{tpu_custom_call.1} parent=5 // pred_region
      %s192 = ssub.s32 %s11, 1
      %p193 = scmp.lt.s32.totalorder %s16, 1
      %s194 = scalar_select %p193, %s16, 1
      %s195 = smul.addr %s194, 32
      %s196 = smul.addr %s195, 8
      %s197 = scalar_lea.vmem %s0, %s196
      %p198 = pneg %p37
      %p199 = pneg %p34
      %p200 = pneg %p58
      %p201 = pneg %p55
      %p202 = pneg %p79
      %p203 = pneg %p76
      %p204 = pneg %p100
      %p205 = pneg %p97
      %p206 = pneg %p121
      %p207 = pneg %p118
      %p208 = pneg %p147
      %p209 = pneg %p144
      %p210 = scmp.lt.s32.totalorder %s16, 1
      %s211 = scalar_select %p210, %s16, 1
      %s212 = smul.addr %s211, 64
      %s213 = smul.addr %s212, 8
      %s214 = scalar_lea.vmem %s5, %s213
      %p215 = scmp.lt.s32.totalorder %s16, 1
      %s216 = scalar_select %p215, %s16, 1
      %s217 = smul.addr %s216, 32
      %s218 = smul.addr %s217, 8
      %s219 = scalar_lea.vmem %s0, %s218
      %p220 = scmp.lt.s32.totalorder %s16, 1
      %s221 = scalar_select %p220, %s16, 1
      %s222 = smul.addr %s221, 64
      %s223 = smul.addr %s222, 8
      %s224 = scalar_lea.vmem %s5, %s223
      %v226 = vld [vmem:[%s219] sm:$0xff]
      %v227 = vld [vmem:[%s219 + $0x8] sm:$0xff]
      %v228 = vld [vmem:[%s219 + $0x10] sm:$0xff]
      %v229 = vld [vmem:[%s219 + $0x18] sm:$0xff]
      %v230 = vld [vmem:[%s219 + $0x20] sm:$0xff]
      %v231 = vld [vmem:[%s219 + $0x28] sm:$0xff]
      %v232 = vld [vmem:[%s219 + $0x30] sm:$0xff]
      %v233 = vld [vmem:[%s219 + $0x38] sm:$0xff]
      %v234 = vld [vmem:[%s219 + $0x40] sm:$0xff]
      %v235 = vld [vmem:[%s219 + $0x48] sm:$0xff]
      %v236 = vld [vmem:[%s219 + $0x50] sm:$0xff]
      %v237 = vld [vmem:[%s219 + $0x58] sm:$0xff]
      %v238 = vld [vmem:[%s219 + $0x60] sm:$0xff]
      %v239 = vld [vmem:[%s219 + $0x68] sm:$0xff]
      %v240 = vld [vmem:[%s219 + $0x70] sm:$0xff]
      %v241 = vld [vmem:[%s219 + $0x78] sm:$0xff]
      %v242 = vld [vmem:[%s219 + $0x80] sm:$0xff]
      %v243 = vld [vmem:[%s219 + $0x88] sm:$0xff]
      %v244 = vld [vmem:[%s219 + $0x90] sm:$0xff]
      %v245 = vld [vmem:[%s219 + $0x98] sm:$0xff]
      %v246 = vld [vmem:[%s219 + $0xa0] sm:$0xff]
      %v247 = vld [vmem:[%s219 + $0xa8] sm:$0xff]
      %v248 = vld [vmem:[%s219 + $0xb0] sm:$0xff]
      %v249 = vld [vmem:[%s219 + $0xb8] sm:$0xff]
      %v250 = vld [vmem:[%s219 + $0xc0] sm:$0xff]
      %v251 = vld [vmem:[%s219 + $0xc8] sm:$0xff]
      %v252 = vld [vmem:[%s219 + $0xd0] sm:$0xff]
      %v253 = vld [vmem:[%s219 + $0xd8] sm:$0xff]
      %v254 = vld [vmem:[%s219 + $0xe0] sm:$0xff]
      %v255 = vld [vmem:[%s219 + $0xe8] sm:$0xff]
      %v256 = vld [vmem:[%s219 + $0xf0] sm:$0xff]
      %v257 = vld [vmem:[%s219 + $0xf8] sm:$0xff]
      %v258 = vmul.f32 %v226, 0.25
      %v259 = vmul.f32 %v227, 0.25
      %v260 = vmul.f32 %v228, 0.25
      %v261 = vmul.f32 %v229, 0.25
      %v262 = vmul.f32 %v230, 0.25
      %v263 = vmul.f32 %v231, 0.25
      %v264 = vmul.f32 %v232, 0.25
      %v265 = vmul.f32 %v233, 0.25
      %v266 = vmul.f32 %v234, 0.25
      %v267 = vmul.f32 %v235, 0.25
      %v268 = vmul.f32 %v236, 0.25
      %v269 = vmul.f32 %v237, 0.25
      %v270 = vmul.f32 %v238, 0.25
      %v271 = vmul.f32 %v239, 0.25
      %v272 = vmul.f32 %v240, 0.25
      %v273 = vmul.f32 %v241, 0.25
      %v274 = vmul.f32 %v242, 0.25
      %v275 = vmul.f32 %v243, 0.25
      %v276 = vmul.f32 %v244, 0.25
      %v277 = vmul.f32 %v245, 0.25
      %v278 = vmul.f32 %v246, 0.25
      %v279 = vmul.f32 %v247, 0.25
      %v280 = vmul.f32 %v248, 0.25
      %v281 = vmul.f32 %v249, 0.25
      %v282 = vmul.f32 %v250, 0.25
      %v283 = vmul.f32 %v251, 0.25
      %v284 = vmul.f32 %v252, 0.25
      %v285 = vmul.f32 %v253, 0.25
      %v286 = vmul.f32 %v254, 0.25
      %v287 = vmul.f32 %v255, 0.25
      %v288 = vmul.f32 %v226, 0.75
      %v289 = vmul.f32 %v227, 0.75
      %v290 = vmul.f32 %v228, 0.75
      %v291 = vmul.f32 %v229, 0.75
      %v292 = vmul.f32 %v230, 0.75
      %v293 = vmul.f32 %v231, 0.75
      %v294 = vmul.f32 %v232, 0.75
      %v295 = vmul.f32 %v233, 0.75
      %v296 = vmul.f32 %v234, 0.75
      %v297 = vmul.f32 %v235, 0.75
      %v298 = vmul.f32 %v236, 0.75
      %v299 = vmul.f32 %v237, 0.75
      %v300 = vmul.f32 %v238, 0.75
      %v301 = vmul.f32 %v239, 0.75
      %v302 = vmul.f32 %v240, 0.75
      %v303 = vmul.f32 %v241, 0.75
      %v304 = vmul.f32 %v242, 0.75
      %v305 = vmul.f32 %v243, 0.75
      %v306 = vmul.f32 %v244, 0.75
      %v307 = vmul.f32 %v245, 0.75
      %v308 = vmul.f32 %v246, 0.75
      %v309 = vmul.f32 %v247, 0.75
      %v310 = vmul.f32 %v248, 0.75
      %v311 = vmul.f32 %v249, 0.75
      %v312 = vmul.f32 %v250, 0.75
      %v313 = vmul.f32 %v251, 0.75
      %v314 = vmul.f32 %v252, 0.75
      %v315 = vmul.f32 %v253, 0.75
      %v316 = vmul.f32 %v254, 0.75
      %v317 = vmul.f32 %v255, 0.75
      %v318 = vmul.f32 %v256, 0.75
      %v319 = vmul.f32 %v257, 0.75
      %v320 = vadd.f32 %v258, %v288
      %v321 = vadd.f32 %v259, %v289
      %v322 = vadd.f32 %v258, %v290
      %v323 = vadd.f32 %v259, %v291
      %v324 = vadd.f32 %v260, %v292
      %v325 = vadd.f32 %v261, %v293
      %v326 = vadd.f32 %v262, %v294
      %v327 = vadd.f32 %v263, %v295
      %v328 = vadd.f32 %v264, %v296
      %v329 = vadd.f32 %v265, %v297
      %v330 = vadd.f32 %v266, %v298
      %v331 = vadd.f32 %v267, %v299
      %v332 = vadd.f32 %v268, %v300
      %v333 = vadd.f32 %v269, %v301
      %v334 = vadd.f32 %v270, %v302
      %v335 = vadd.f32 %v271, %v303
      %v336 = vadd.f32 %v272, %v304
      %v337 = vadd.f32 %v273, %v305
      %v338 = vadd.f32 %v274, %v306
      %v339 = vadd.f32 %v275, %v307
      %v340 = vadd.f32 %v276, %v308
      %v341 = vadd.f32 %v277, %v309
      %v342 = vadd.f32 %v278, %v310
      %v343 = vadd.f32 %v279, %v311
      %v344 = vadd.f32 %v280, %v312
      %v345 = vadd.f32 %v281, %v313
      %v346 = vadd.f32 %v282, %v314
      %v347 = vadd.f32 %v283, %v315
      %v348 = vadd.f32 %v284, %v316
      %v349 = vadd.f32 %v285, %v317
      %v350 = vadd.f32 %v286, %v318
      %v351 = vadd.f32 %v287, %v319
      %v352 = vmul.f32 %v256, 0.25
      %v353 = vmul.f32 %v257, 0.25
      %v354 = vadd.f32 %v288, %v260
      %v355 = vadd.f32 %v289, %v261
      %v356 = vadd.f32 %v290, %v262
      %v357 = vadd.f32 %v291, %v263
      %v358 = vadd.f32 %v292, %v264
      %v359 = vadd.f32 %v293, %v265
      %v360 = vadd.f32 %v294, %v266
      %v361 = vadd.f32 %v295, %v267
      %v362 = vadd.f32 %v296, %v268
      %v363 = vadd.f32 %v297, %v269
      %v364 = vadd.f32 %v298, %v270
      %v365 = vadd.f32 %v299, %v271
      %v366 = vadd.f32 %v300, %v272
      %v367 = vadd.f32 %v301, %v273
      %v368 = vadd.f32 %v302, %v274
      %v369 = vadd.f32 %v303, %v275
      %v370 = vadd.f32 %v304, %v276
      %v371 = vadd.f32 %v305, %v277
      %v372 = vadd.f32 %v306, %v278
      %v373 = vadd.f32 %v307, %v279
      %v374 = vadd.f32 %v308, %v280
      %v375 = vadd.f32 %v309, %v281
      %v376 = vadd.f32 %v310, %v282
      %v377 = vadd.f32 %v311, %v283
      %v378 = vadd.f32 %v312, %v284
      %v379 = vadd.f32 %v313, %v285
      %v380 = vadd.f32 %v314, %v286
      %v381 = vadd.f32 %v315, %v287
      %v382 = vadd.f32 %v316, %v352
      %v383 = vadd.f32 %v317, %v353
      %v384 = vadd.f32 %v318, %v352
      %v385 = vadd.f32 %v319, %v353
      %vm450 = vcmask 1040384
      %v451 = vrot.slane %v320, 7
      %v452 = vrot.slane %v321, 7
      %v453 = vsel %vm450, %v451, %v452
      %v454 = vrot.slane %v354, 7
      %v455 = vrot.slane %v355, 7
      %v456 = vsel %vm450, %v454, %v455
      %v457 = vrot.slane %v322, 7
      %v458 = vrot.slane %v323, 7
      %v459 = vsel %vm450, %v457, %v458
      %v460 = vrot.slane %v356, 7
      %v461 = vrot.slane %v357, 7
      %v462 = vsel %vm450, %v460, %v461
      %v463 = vrot.slane %v324, 7
      %v464 = vrot.slane %v325, 7
      %v465 = vsel %vm450, %v463, %v464
      %v466 = vrot.slane %v358, 7
      %v467 = vrot.slane %v359, 7
      %v468 = vsel %vm450, %v466, %v467
      %v469 = vrot.slane %v326, 7
      %v470 = vrot.slane %v327, 7
      %v471 = vsel %vm450, %v469, %v470
      %v472 = vrot.slane %v360, 7
      %v473 = vrot.slane %v361, 7
      %v474 = vsel %vm450, %v472, %v473
      %v475 = vrot.slane %v328, 7
      %v476 = vrot.slane %v329, 7
      %v477 = vsel %vm450, %v475, %v476
      %v478 = vrot.slane %v362, 7
      %v479 = vrot.slane %v363, 7
      %v480 = vsel %vm450, %v478, %v479
      %v481 = vrot.slane %v330, 7
      %v482 = vrot.slane %v331, 7
      %v483 = vsel %vm450, %v481, %v482
      %v484 = vrot.slane %v364, 7
      %v485 = vrot.slane %v365, 7
      %v486 = vsel %vm450, %v484, %v485
      %v487 = vrot.slane %v332, 7
      %v488 = vrot.slane %v333, 7
      %v489 = vsel %vm450, %v487, %v488
      %v490 = vrot.slane %v366, 7
      %v491 = vrot.slane %v367, 7
      %v492 = vsel %vm450, %v490, %v491
      %v493 = vrot.slane %v334, 7
      %v494 = vrot.slane %v335, 7
      %v495 = vsel %vm450, %v493, %v494
      %v496 = vrot.slane %v368, 7
      %v497 = vrot.slane %v369, 7
      %v498 = vsel %vm450, %v496, %v497
      %v499 = vrot.slane %v336, 7
      %v500 = vrot.slane %v337, 7
      %v501 = vsel %vm450, %v499, %v500
      %v502 = vrot.slane %v370, 7
      %v503 = vrot.slane %v371, 7
      %v504 = vsel %vm450, %v502, %v503
      %v505 = vrot.slane %v338, 7
      %v506 = vrot.slane %v339, 7
      %v507 = vsel %vm450, %v505, %v506
      %v508 = vrot.slane %v372, 7
      %v509 = vrot.slane %v373, 7
      %v510 = vsel %vm450, %v508, %v509
      %v511 = vrot.slane %v340, 7
      %v512 = vrot.slane %v341, 7
      %v513 = vsel %vm450, %v511, %v512
      %v514 = vrot.slane %v374, 7
      %v515 = vrot.slane %v375, 7
      %v516 = vsel %vm450, %v514, %v515
      %v517 = vrot.slane %v342, 7
      %v518 = vrot.slane %v343, 7
      %v519 = vsel %vm450, %v517, %v518
      %v520 = vrot.slane %v376, 7
      %v521 = vrot.slane %v377, 7
      %v522 = vsel %vm450, %v520, %v521
      %v523 = vrot.slane %v344, 7
      %v524 = vrot.slane %v345, 7
      %v525 = vsel %vm450, %v523, %v524
      %v526 = vrot.slane %v378, 7
      %v527 = vrot.slane %v379, 7
      %v528 = vsel %vm450, %v526, %v527
      %v529 = vrot.slane %v346, 7
      %v530 = vrot.slane %v347, 7
      %v531 = vsel %vm450, %v529, %v530
      %v532 = vrot.slane %v380, 7
      %v533 = vrot.slane %v381, 7
      %v534 = vsel %vm450, %v532, %v533
      %v535 = vrot.slane %v348, 7
      %v536 = vrot.slane %v349, 7
      %v537 = vsel %vm450, %v535, %v536
      %v538 = vrot.slane %v382, 7
      %v539 = vrot.slane %v383, 7
      %v540 = vsel %vm450, %v538, %v539
      %v541 = vrot.slane %v350, 7
      %v542 = vrot.slane %v351, 7
      %v543 = vsel %vm450, %v541, %v542
      %v544 = vrot.slane %v384, 7
      %v545 = vrot.slane %v385, 7
      %v546 = vsel %vm450, %v544, %v545
      %v611 = vsel %vm450, %v320, %v451
      %v612 = vsel %vm450, %v354, %v454
      %v613 = vsel %vm450, %v322, %v457
      %v614 = vsel %vm450, %v356, %v460
      %v615 = vsel %vm450, %v324, %v463
      %v616 = vsel %vm450, %v358, %v466
      %v617 = vsel %vm450, %v326, %v469
      %v618 = vsel %vm450, %v360, %v472
      %v619 = vsel %vm450, %v328, %v475
      %v620 = vsel %vm450, %v362, %v478
      %v621 = vsel %vm450, %v330, %v481
      %v622 = vsel %vm450, %v364, %v484
      %v623 = vsel %vm450, %v332, %v487
      %v624 = vsel %vm450, %v366, %v490
      %v625 = vsel %vm450, %v334, %v493
      %v626 = vsel %vm450, %v368, %v496
      %v627 = vsel %vm450, %v336, %v499
      %v628 = vsel %vm450, %v370, %v502
      %v629 = vsel %vm450, %v338, %v505
      %v630 = vsel %vm450, %v372, %v508
      %v631 = vsel %vm450, %v340, %v511
      %v632 = vsel %vm450, %v374, %v514
      %v633 = vsel %vm450, %v342, %v517
      %v634 = vsel %vm450, %v376, %v520
      %v635 = vsel %vm450, %v344, %v523
      %v636 = vsel %vm450, %v378, %v526
      %v637 = vsel %vm450, %v346, %v529
      %v638 = vsel %vm450, %v380, %v532
      %v639 = vsel %vm450, %v348, %v535
      %v640 = vsel %vm450, %v382, %v538
      %v641 = vsel %vm450, %v350, %v541
      %v642 = vsel %vm450, %v384, %v544
      %vm643 = vcmask 1046528
      %v644 = vrot.slane %v320, 1
      %v645 = vrot.slane %v321, 1
      %v646 = vsel %vm643, %v644, %v645
      %v647 = vrot.slane %v354, 1
      %v648 = vrot.slane %v355, 1
      %v649 = vsel %vm643, %v647, %v648
      %v650 = vrot.slane %v322, 1
      %v651 = vrot.slane %v323, 1
      %v652 = vsel %vm643, %v650, %v651
      %v653 = vrot.slane %v356, 1
      %v654 = vrot.slane %v357, 1
      %v655 = vsel %vm643, %v653, %v654
      %v656 = vrot.slane %v324, 1
      %v657 = vrot.slane %v325, 1
      %v658 = vsel %vm643, %v656, %v657
      %v659 = vrot.slane %v358, 1
      %v660 = vrot.slane %v359, 1
      %v661 = vsel %vm643, %v659, %v660
      %v662 = vrot.slane %v326, 1
      %v663 = vrot.slane %v327, 1
      %v664 = vsel %vm643, %v662, %v663
      %v665 = vrot.slane %v360, 1
      %v666 = vrot.slane %v361, 1
      %v667 = vsel %vm643, %v665, %v666
      %v668 = vrot.slane %v328, 1
      %v669 = vrot.slane %v329, 1
      %v670 = vsel %vm643, %v668, %v669
      %v671 = vrot.slane %v362, 1
      %v672 = vrot.slane %v363, 1
      %v673 = vsel %vm643, %v671, %v672
      %v674 = vrot.slane %v330, 1
      %v675 = vrot.slane %v331, 1
      %v676 = vsel %vm643, %v674, %v675
      %v677 = vrot.slane %v364, 1
      %v678 = vrot.slane %v365, 1
      %v679 = vsel %vm643, %v677, %v678
      %v680 = vrot.slane %v332, 1
      %v681 = vrot.slane %v333, 1
      %v682 = vsel %vm643, %v680, %v681
      %v683 = vrot.slane %v366, 1
      %v684 = vrot.slane %v367, 1
      %v685 = vsel %vm643, %v683, %v684
      %v686 = vrot.slane %v334, 1
      %v687 = vrot.slane %v335, 1
      %v688 = vsel %vm643, %v686, %v687
      %v689 = vrot.slane %v368, 1
      %v690 = vrot.slane %v369, 1
      %v691 = vsel %vm643, %v689, %v690
      %v692 = vrot.slane %v336, 1
      %v693 = vrot.slane %v337, 1
      %v694 = vsel %vm643, %v692, %v693
      %v695 = vrot.slane %v370, 1
      %v696 = vrot.slane %v371, 1
      %v697 = vsel %vm643, %v695, %v696
      %v698 = vrot.slane %v338, 1
      %v699 = vrot.slane %v339, 1
      %v700 = vsel %vm643, %v698, %v699
      %v701 = vrot.slane %v372, 1
      %v702 = vrot.slane %v373, 1
      %v703 = vsel %vm643, %v701, %v702
      %v704 = vrot.slane %v340, 1
      %v705 = vrot.slane %v341, 1
      %v706 = vsel %vm643, %v704, %v705
      %v707 = vrot.slane %v374, 1
      %v708 = vrot.slane %v375, 1
      %v709 = vsel %vm643, %v707, %v708
      %v710 = vrot.slane %v342, 1
      %v711 = vrot.slane %v343, 1
      %v712 = vsel %vm643, %v710, %v711
      %v713 = vrot.slane %v376, 1
      %v714 = vrot.slane %v377, 1
      %v715 = vsel %vm643, %v713, %v714
      %v716 = vrot.slane %v344, 1
      %v717 = vrot.slane %v345, 1
      %v718 = vsel %vm643, %v716, %v717
      %v719 = vrot.slane %v378, 1
      %v720 = vrot.slane %v379, 1
      %v721 = vsel %vm643, %v719, %v720
      %v722 = vrot.slane %v346, 1
      %v723 = vrot.slane %v347, 1
      %v724 = vsel %vm643, %v722, %v723
      %v725 = vrot.slane %v380, 1
      %v726 = vrot.slane %v381, 1
      %v727 = vsel %vm643, %v725, %v726
      %v728 = vrot.slane %v348, 1
      %v729 = vrot.slane %v349, 1
      %v730 = vsel %vm643, %v728, %v729
      %v731 = vrot.slane %v382, 1
      %v732 = vrot.slane %v383, 1
      %v733 = vsel %vm643, %v731, %v732
      %v734 = vrot.slane %v350, 1
      %v735 = vrot.slane %v351, 1
      %v736 = vsel %vm643, %v734, %v735
      %v737 = vrot.slane %v384, 1
      %v738 = vrot.slane %v385, 1
      %v739 = vsel %vm643, %v737, %v738
      %v804 = vsel %vm643, %v645, %v321
      %v805 = vsel %vm643, %v648, %v355
      %v806 = vsel %vm643, %v651, %v323
      %v807 = vsel %vm643, %v654, %v357
      %v808 = vsel %vm643, %v657, %v325
      %v809 = vsel %vm643, %v660, %v359
      %v810 = vsel %vm643, %v663, %v327
      %v811 = vsel %vm643, %v666, %v361
      %v812 = vsel %vm643, %v669, %v329
      %v813 = vsel %vm643, %v672, %v363
      %v814 = vsel %vm643, %v675, %v331
      %v815 = vsel %vm643, %v678, %v365
      %v816 = vsel %vm643, %v681, %v333
      %v817 = vsel %vm643, %v684, %v367
      %v818 = vsel %vm643, %v687, %v335
      %v819 = vsel %vm643, %v690, %v369
      %v820 = vsel %vm643, %v693, %v337
      %v821 = vsel %vm643, %v696, %v371
      %v822 = vsel %vm643, %v699, %v339
      %v823 = vsel %vm643, %v702, %v373
      %v824 = vsel %vm643, %v705, %v341
      %v825 = vsel %vm643, %v708, %v375
      %v826 = vsel %vm643, %v711, %v343
      %v827 = vsel %vm643, %v714, %v377
      %v828 = vsel %vm643, %v717, %v345
      %v829 = vsel %vm643, %v720, %v379
      %v830 = vsel %vm643, %v723, %v347
      %v831 = vsel %vm643, %v726, %v381
      %v832 = vsel %vm643, %v729, %v349
      %v833 = vsel %vm643, %v732, %v383
      %v834 = vsel %vm643, %v735, %v351
      %v835 = vsel %vm643, %v738, %v385
      %v836 = vmul.f32 %v611, 0.25
      %v837 = vmul.f32 %v453, 0.25
      %v838 = vmul.f32 %v612, 0.25
      %v839 = vmul.f32 %v456, 0.25
      %v840 = vmul.f32 %v613, 0.25
      %v841 = vmul.f32 %v459, 0.25
      %v842 = vmul.f32 %v614, 0.25
      %v843 = vmul.f32 %v462, 0.25
      %v844 = vmul.f32 %v615, 0.25
      %v845 = vmul.f32 %v465, 0.25
      %v846 = vmul.f32 %v616, 0.25
      %v847 = vmul.f32 %v468, 0.25
      %v848 = vmul.f32 %v617, 0.25
      %v849 = vmul.f32 %v471, 0.25
      %v850 = vmul.f32 %v618, 0.25
      %v851 = vmul.f32 %v474, 0.25
      %v852 = vmul.f32 %v619, 0.25
      %v853 = vmul.f32 %v477, 0.25
      %v854 = vmul.f32 %v620, 0.25
      %v855 = vmul.f32 %v480, 0.25
      %v856 = vmul.f32 %v621, 0.25
      %v857 = vmul.f32 %v483, 0.25
      %v858 = vmul.f32 %v622, 0.25
      %v859 = vmul.f32 %v486, 0.25
      %v860 = vmul.f32 %v623, 0.25
      %v861 = vmul.f32 %v489, 0.25
      %v862 = vmul.f32 %v624, 0.25
      %v863 = vmul.f32 %v492, 0.25
      %v864 = vmul.f32 %v625, 0.25
      %v865 = vmul.f32 %v495, 0.25
      %v866 = vmul.f32 %v626, 0.25
      %v867 = vmul.f32 %v498, 0.25
      %v868 = vmul.f32 %v627, 0.25
      %v869 = vmul.f32 %v501, 0.25
      %v870 = vmul.f32 %v628, 0.25
      %v871 = vmul.f32 %v504, 0.25
      %v872 = vmul.f32 %v629, 0.25
      %v873 = vmul.f32 %v507, 0.25
      %v874 = vmul.f32 %v630, 0.25
      %v875 = vmul.f32 %v510, 0.25
      %v876 = vmul.f32 %v631, 0.25
      %v877 = vmul.f32 %v513, 0.25
      %v878 = vmul.f32 %v632, 0.25
      %v879 = vmul.f32 %v516, 0.25
      %v880 = vmul.f32 %v633, 0.25
      %v881 = vmul.f32 %v519, 0.25
      %v882 = vmul.f32 %v634, 0.25
      %v883 = vmul.f32 %v522, 0.25
      %v884 = vmul.f32 %v635, 0.25
      %v885 = vmul.f32 %v525, 0.25
      %v886 = vmul.f32 %v636, 0.25
      %v887 = vmul.f32 %v528, 0.25
      %v888 = vmul.f32 %v637, 0.25
      %v889 = vmul.f32 %v531, 0.25
      %v890 = vmul.f32 %v638, 0.25
      %v891 = vmul.f32 %v534, 0.25
      %v892 = vmul.f32 %v639, 0.25
      %v893 = vmul.f32 %v537, 0.25
      %v894 = vmul.f32 %v640, 0.25
      %v895 = vmul.f32 %v540, 0.25
      %v896 = vmul.f32 %v641, 0.25
      %v897 = vmul.f32 %v543, 0.25
      %v898 = vmul.f32 %v642, 0.25
      %v899 = vmul.f32 %v546, 0.25
      %v900 = vmul.f32 %v320, 0.75
      %v901 = vmul.f32 %v321, 0.75
      %v902 = vmul.f32 %v354, 0.75
      %v903 = vmul.f32 %v355, 0.75
      %v904 = vmul.f32 %v322, 0.75
      %v905 = vmul.f32 %v323, 0.75
      %v906 = vmul.f32 %v356, 0.75
      %v907 = vmul.f32 %v357, 0.75
      %v908 = vmul.f32 %v324, 0.75
      %v909 = vmul.f32 %v325, 0.75
      %v910 = vmul.f32 %v358, 0.75
      %v911 = vmul.f32 %v359, 0.75
      %v912 = vmul.f32 %v326, 0.75
      %v913 = vmul.f32 %v327, 0.75
      %v914 = vmul.f32 %v360, 0.75
      %v915 = vmul.f32 %v361, 0.75
      %v916 = vmul.f32 %v328, 0.75
      %v917 = vmul.f32 %v329, 0.75
      %v918 = vmul.f32 %v362, 0.75
      %v919 = vmul.f32 %v363, 0.75
      %v920 = vmul.f32 %v330, 0.75
      %v921 = vmul.f32 %v331, 0.75
      %v922 = vmul.f32 %v364, 0.75
      %v923 = vmul.f32 %v365, 0.75
      %v924 = vmul.f32 %v332, 0.75
      %v925 = vmul.f32 %v333, 0.75
      %v926 = vmul.f32 %v366, 0.75
      %v927 = vmul.f32 %v367, 0.75
      %v928 = vmul.f32 %v334, 0.75
      %v929 = vmul.f32 %v335, 0.75
      %v930 = vmul.f32 %v368, 0.75
      %v931 = vmul.f32 %v369, 0.75
      %v932 = vmul.f32 %v336, 0.75
      %v933 = vmul.f32 %v337, 0.75
      %v934 = vmul.f32 %v370, 0.75
      %v935 = vmul.f32 %v371, 0.75
      %v936 = vmul.f32 %v338, 0.75
      %v937 = vmul.f32 %v339, 0.75
      %v938 = vmul.f32 %v372, 0.75
      %v939 = vmul.f32 %v373, 0.75
      %v940 = vmul.f32 %v340, 0.75
      %v941 = vmul.f32 %v341, 0.75
      %v942 = vmul.f32 %v374, 0.75
      %v943 = vmul.f32 %v375, 0.75
      %v944 = vmul.f32 %v342, 0.75
      %v945 = vmul.f32 %v343, 0.75
      %v946 = vmul.f32 %v376, 0.75
      %v947 = vmul.f32 %v377, 0.75
      %v948 = vmul.f32 %v344, 0.75
      %v949 = vmul.f32 %v345, 0.75
      %v950 = vmul.f32 %v378, 0.75
      %v951 = vmul.f32 %v379, 0.75
      %v952 = vmul.f32 %v346, 0.75
      %v953 = vmul.f32 %v347, 0.75
      %v954 = vmul.f32 %v380, 0.75
      %v955 = vmul.f32 %v381, 0.75
      %v956 = vmul.f32 %v348, 0.75
      %v957 = vmul.f32 %v349, 0.75
      %v958 = vmul.f32 %v382, 0.75
      %v959 = vmul.f32 %v383, 0.75
      %v960 = vmul.f32 %v350, 0.75
      %v961 = vmul.f32 %v351, 0.75
      %v962 = vmul.f32 %v384, 0.75
      %v963 = vmul.f32 %v385, 0.75
      %v964 = vadd.f32 %v836, %v900
      %v965 = vadd.f32 %v837, %v901
      %v966 = vadd.f32 %v838, %v902
      %v967 = vadd.f32 %v839, %v903
      %v968 = vadd.f32 %v840, %v904
      %v969 = vadd.f32 %v841, %v905
      %v970 = vadd.f32 %v842, %v906
      %v971 = vadd.f32 %v843, %v907
      %v972 = vadd.f32 %v844, %v908
      %v973 = vadd.f32 %v845, %v909
      %v974 = vadd.f32 %v846, %v910
      %v975 = vadd.f32 %v847, %v911
      %v976 = vadd.f32 %v848, %v912
      %v977 = vadd.f32 %v849, %v913
      %v978 = vadd.f32 %v850, %v914
      %v979 = vadd.f32 %v851, %v915
      %v980 = vadd.f32 %v852, %v916
      %v981 = vadd.f32 %v853, %v917
      %v982 = vadd.f32 %v854, %v918
      %v983 = vadd.f32 %v855, %v919
      %v984 = vadd.f32 %v856, %v920
      %v985 = vadd.f32 %v857, %v921
      %v986 = vadd.f32 %v858, %v922
      %v987 = vadd.f32 %v859, %v923
      %v988 = vadd.f32 %v860, %v924
      %v989 = vadd.f32 %v861, %v925
      %v990 = vadd.f32 %v862, %v926
      %v991 = vadd.f32 %v863, %v927
      %v992 = vadd.f32 %v864, %v928
      %v993 = vadd.f32 %v865, %v929
      %v994 = vadd.f32 %v866, %v930
      %v995 = vadd.f32 %v867, %v931
      %v996 = vadd.f32 %v868, %v932
      %v997 = vadd.f32 %v869, %v933
      %v998 = vadd.f32 %v870, %v934
      %v999 = vadd.f32 %v871, %v935
      %v1000 = vadd.f32 %v872, %v936
      %v1001 = vadd.f32 %v873, %v937
      %v1002 = vadd.f32 %v874, %v938
      %v1003 = vadd.f32 %v875, %v939
      %v1004 = vadd.f32 %v876, %v940
      %v1005 = vadd.f32 %v877, %v941
      %v1006 = vadd.f32 %v878, %v942
      %v1007 = vadd.f32 %v879, %v943
      %v1008 = vadd.f32 %v880, %v944
      %v1009 = vadd.f32 %v881, %v945
      %v1010 = vadd.f32 %v882, %v946
      %v1011 = vadd.f32 %v883, %v947
      %v1012 = vadd.f32 %v884, %v948
      %v1013 = vadd.f32 %v885, %v949
      %v1014 = vadd.f32 %v886, %v950
      %v1015 = vadd.f32 %v887, %v951
      %v1016 = vadd.f32 %v888, %v952
      %v1017 = vadd.f32 %v889, %v953
      %v1018 = vadd.f32 %v890, %v954
      %v1019 = vadd.f32 %v891, %v955
      %v1020 = vadd.f32 %v892, %v956
      %v1021 = vadd.f32 %v893, %v957
      %v1022 = vadd.f32 %v894, %v958
      %v1023 = vadd.f32 %v895, %v959
      %v1024 = vadd.f32 %v896, %v960
      %v1025 = vadd.f32 %v897, %v961
      %v1026 = vadd.f32 %v898, %v962
      %v1027 = vadd.f32 %v899, %v963
      %v1028 = vmul.f32 %v646, 0.25
      %v1029 = vmul.f32 %v804, 0.25
      %v1030 = vmul.f32 %v649, 0.25
      %v1031 = vmul.f32 %v805, 0.25
      %v1032 = vmul.f32 %v652, 0.25
      %v1033 = vmul.f32 %v806, 0.25
      %v1034 = vmul.f32 %v655, 0.25
      %v1035 = vmul.f32 %v807, 0.25
      %v1036 = vmul.f32 %v658, 0.25
      %v1037 = vmul.f32 %v808, 0.25
      %v1038 = vmul.f32 %v661, 0.25
      %v1039 = vmul.f32 %v809, 0.25
      %v1040 = vmul.f32 %v664, 0.25
      %v1041 = vmul.f32 %v810, 0.25
      %v1042 = vmul.f32 %v667, 0.25
      %v1043 = vmul.f32 %v811, 0.25
      %v1044 = vmul.f32 %v670, 0.25
      %v1045 = vmul.f32 %v812, 0.25
      %v1046 = vmul.f32 %v673, 0.25
      %v1047 = vmul.f32 %v813, 0.25
      %v1048 = vmul.f32 %v676, 0.25
      %v1049 = vmul.f32 %v814, 0.25
      %v1050 = vmul.f32 %v679, 0.25
      %v1051 = vmul.f32 %v815, 0.25
      %v1052 = vmul.f32 %v682, 0.25
      %v1053 = vmul.f32 %v816, 0.25
      %v1054 = vmul.f32 %v685, 0.25
      %v1055 = vmul.f32 %v817, 0.25
      %v1056 = vmul.f32 %v688, 0.25
      %v1057 = vmul.f32 %v818, 0.25
      %v1058 = vmul.f32 %v691, 0.25
      %v1059 = vmul.f32 %v819, 0.25
      %v1060 = vmul.f32 %v694, 0.25
      %v1061 = vmul.f32 %v820, 0.25
      %v1062 = vmul.f32 %v697, 0.25
      %v1063 = vmul.f32 %v821, 0.25
      %v1064 = vmul.f32 %v700, 0.25
      %v1065 = vmul.f32 %v822, 0.25
      %v1066 = vmul.f32 %v703, 0.25
      %v1067 = vmul.f32 %v823, 0.25
      %v1068 = vmul.f32 %v706, 0.25
      %v1069 = vmul.f32 %v824, 0.25
      %v1070 = vmul.f32 %v709, 0.25
      %v1071 = vmul.f32 %v825, 0.25
      %v1072 = vmul.f32 %v712, 0.25
      %v1073 = vmul.f32 %v826, 0.25
      %v1074 = vmul.f32 %v715, 0.25
      %v1075 = vmul.f32 %v827, 0.25
      %v1076 = vmul.f32 %v718, 0.25
      %v1077 = vmul.f32 %v828, 0.25
      %v1078 = vmul.f32 %v721, 0.25
      %v1079 = vmul.f32 %v829, 0.25
      %v1080 = vmul.f32 %v724, 0.25
      %v1081 = vmul.f32 %v830, 0.25
      %v1082 = vmul.f32 %v727, 0.25
      %v1083 = vmul.f32 %v831, 0.25
      %v1084 = vmul.f32 %v730, 0.25
      %v1085 = vmul.f32 %v832, 0.25
      %v1086 = vmul.f32 %v733, 0.25
      %v1087 = vmul.f32 %v833, 0.25
      %v1088 = vmul.f32 %v736, 0.25
      %v1089 = vmul.f32 %v834, 0.25
      %v1090 = vmul.f32 %v739, 0.25
      %v1091 = vmul.f32 %v835, 0.25
      %v1092 = vadd.f32 %v900, %v1028
      %v1093 = vadd.f32 %v901, %v1029
      %v1094 = vadd.f32 %v902, %v1030
      %v1095 = vadd.f32 %v903, %v1031
      %v1096 = vadd.f32 %v904, %v1032
      %v1097 = vadd.f32 %v905, %v1033
      %v1098 = vadd.f32 %v906, %v1034
      %v1099 = vadd.f32 %v907, %v1035
      %v1100 = vadd.f32 %v908, %v1036
      %v1101 = vadd.f32 %v909, %v1037
      %v1102 = vadd.f32 %v910, %v1038
      %v1103 = vadd.f32 %v911, %v1039
      %v1104 = vadd.f32 %v912, %v1040
      %v1105 = vadd.f32 %v913, %v1041
      %v1106 = vadd.f32 %v914, %v1042
      %v1107 = vadd.f32 %v915, %v1043
      %v1108 = vadd.f32 %v916, %v1044
      %v1109 = vadd.f32 %v917, %v1045
      %v1110 = vadd.f32 %v918, %v1046
      %v1111 = vadd.f32 %v919, %v1047
      %v1112 = vadd.f32 %v920, %v1048
      %v1113 = vadd.f32 %v921, %v1049
      %v1114 = vadd.f32 %v922, %v1050
      %v1115 = vadd.f32 %v923, %v1051
      %v1116 = vadd.f32 %v924, %v1052
      %v1117 = vadd.f32 %v925, %v1053
      %v1118 = vadd.f32 %v926, %v1054
      %v1119 = vadd.f32 %v927, %v1055
      %v1120 = vadd.f32 %v928, %v1056
      %v1121 = vadd.f32 %v929, %v1057
      %v1122 = vadd.f32 %v930, %v1058
      %v1123 = vadd.f32 %v931, %v1059
      %v1124 = vadd.f32 %v932, %v1060
      %v1125 = vadd.f32 %v933, %v1061
      %v1126 = vadd.f32 %v934, %v1062
      %v1127 = vadd.f32 %v935, %v1063
      %v1128 = vadd.f32 %v936, %v1064
      %v1129 = vadd.f32 %v937, %v1065
      %v1130 = vadd.f32 %v938, %v1066
      %v1131 = vadd.f32 %v939, %v1067
      %v1132 = vadd.f32 %v940, %v1068
      %v1133 = vadd.f32 %v941, %v1069
      %v1134 = vadd.f32 %v942, %v1070
      %v1135 = vadd.f32 %v943, %v1071
      %v1136 = vadd.f32 %v944, %v1072
      %v1137 = vadd.f32 %v945, %v1073
      %v1138 = vadd.f32 %v946, %v1074
      %v1139 = vadd.f32 %v947, %v1075
      %v1140 = vadd.f32 %v948, %v1076
      %v1141 = vadd.f32 %v949, %v1077
      %v1142 = vadd.f32 %v950, %v1078
      %v1143 = vadd.f32 %v951, %v1079
      %v1144 = vadd.f32 %v952, %v1080
      %v1145 = vadd.f32 %v953, %v1081
      %v1146 = vadd.f32 %v954, %v1082
      %v1147 = vadd.f32 %v955, %v1083
      %v1148 = vadd.f32 %v956, %v1084
      %v1149 = vadd.f32 %v957, %v1085
      %v1150 = vadd.f32 %v958, %v1086
      %v1151 = vadd.f32 %v959, %v1087
      %v1152 = vadd.f32 %v960, %v1088
      %v1153 = vadd.f32 %v961, %v1089
      %v1154 = vadd.f32 %v962, %v1090
      %v1155 = vadd.f32 %v963, %v1091
      %v1156 = vld [vmem:[%s1] sm:$0xf]
      %v1157 = vld [vmem:[%s1 + $0x4] sm:$0xf]
      %v1158 = vld [vmem:[%s1 + $0x8] sm:$0xf]
      %v1159 = vld [vmem:[%s1 + $0xc] sm:$0xf]
      %v1160 = vld [vmem:[%s1 + $0x10] sm:$0xf]
      %v1161 = vld [vmem:[%s1 + $0x14] sm:$0xf]
      %v1162 = vld [vmem:[%s1 + $0x18] sm:$0xf]
      %v1163 = vld [vmem:[%s1 + $0x1c] sm:$0xf]
      %v1164 = vld [vmem:[%s1 + $0x20] sm:$0xf]
      %v1165 = vld [vmem:[%s1 + $0x24] sm:$0xf]
      %v1166 = vld [vmem:[%s1 + $0x28] sm:$0xf]
      %v1167 = vld [vmem:[%s1 + $0x2c] sm:$0xf]
      %v1168 = vld [vmem:[%s2] sm:$0x1]
      %v1233 = vrot.slane %v1092, 7
      %v1234 = vrot.slane %v1093, 7
      %v1235 = vsel %vm450, %v1233, %v1234
      %v1236 = vrot.slane %v1094, 7
      %v1237 = vrot.slane %v1095, 7
      %v1238 = vsel %vm450, %v1236, %v1237
      %v1239 = vrot.slane %v1096, 7
      %v1240 = vrot.slane %v1097, 7
      %v1241 = vsel %vm450, %v1239, %v1240
      %v1242 = vrot.slane %v1098, 7
      %v1243 = vrot.slane %v1099, 7
      %v1244 = vsel %vm450, %v1242, %v1243
      %v1245 = vrot.slane %v1100, 7
      %v1246 = vrot.slane %v1101, 7
      %v1247 = vsel %vm450, %v1245, %v1246
      %v1248 = vrot.slane %v1102, 7
      %v1249 = vrot.slane %v1103, 7
      %v1250 = vsel %vm450, %v1248, %v1249
      %v1251 = vrot.slane %v1104, 7
      %v1252 = vrot.slane %v1105, 7
      %v1253 = vsel %vm450, %v1251, %v1252
      %v1254 = vrot.slane %v1106, 7
      %v1255 = vrot.slane %v1107, 7
      %v1256 = vsel %vm450, %v1254, %v1255
      %v1257 = vrot.slane %v1108, 7
      %v1258 = vrot.slane %v1109, 7
      %v1259 = vsel %vm450, %v1257, %v1258
      %v1260 = vrot.slane %v1110, 7
      %v1261 = vrot.slane %v1111, 7
      %v1262 = vsel %vm450, %v1260, %v1261
      %v1263 = vrot.slane %v1112, 7
      %v1264 = vrot.slane %v1113, 7
      %v1265 = vsel %vm450, %v1263, %v1264
      %v1266 = vrot.slane %v1114, 7
      %v1267 = vrot.slane %v1115, 7
      %v1268 = vsel %vm450, %v1266, %v1267
      %v1269 = vrot.slane %v1116, 7
      %v1270 = vrot.slane %v1117, 7
      %v1271 = vsel %vm450, %v1269, %v1270
      %v1272 = vrot.slane %v1118, 7
      %v1273 = vrot.slane %v1119, 7
      %v1274 = vsel %vm450, %v1272, %v1273
      %v1275 = vrot.slane %v1120, 7
      %v1276 = vrot.slane %v1121, 7
      %v1277 = vsel %vm450, %v1275, %v1276
      %v1278 = vrot.slane %v1122, 7
      %v1279 = vrot.slane %v1123, 7
      %v1280 = vsel %vm450, %v1278, %v1279
      %v1281 = vrot.slane %v1124, 7
      %v1282 = vrot.slane %v1125, 7
      %v1283 = vsel %vm450, %v1281, %v1282
      %v1284 = vrot.slane %v1126, 7
      %v1285 = vrot.slane %v1127, 7
      %v1286 = vsel %vm450, %v1284, %v1285
      %v1287 = vrot.slane %v1128, 7
      %v1288 = vrot.slane %v1129, 7
      %v1289 = vsel %vm450, %v1287, %v1288
      %v1290 = vrot.slane %v1130, 7
      %v1291 = vrot.slane %v1131, 7
      %v1292 = vsel %vm450, %v1290, %v1291
      %v1293 = vrot.slane %v1132, 7
      %v1294 = vrot.slane %v1133, 7
      %v1295 = vsel %vm450, %v1293, %v1294
      %v1296 = vrot.slane %v1134, 7
      %v1297 = vrot.slane %v1135, 7
      %v1298 = vsel %vm450, %v1296, %v1297
      %v1299 = vrot.slane %v1136, 7
      %v1300 = vrot.slane %v1137, 7
      %v1301 = vsel %vm450, %v1299, %v1300
      %v1302 = vrot.slane %v1138, 7
      %v1303 = vrot.slane %v1139, 7
      %v1304 = vsel %vm450, %v1302, %v1303
      %v1305 = vrot.slane %v1140, 7
      %v1306 = vrot.slane %v1141, 7
      %v1307 = vsel %vm450, %v1305, %v1306
      %v1308 = vrot.slane %v1142, 7
      %v1309 = vrot.slane %v1143, 7
      %v1310 = vsel %vm450, %v1308, %v1309
      %v1311 = vrot.slane %v1144, 7
      %v1312 = vrot.slane %v1145, 7
      %v1313 = vsel %vm450, %v1311, %v1312
      %v1314 = vrot.slane %v1146, 7
      %v1315 = vrot.slane %v1147, 7
      %v1316 = vsel %vm450, %v1314, %v1315
      %v1317 = vrot.slane %v1148, 7
      %v1318 = vrot.slane %v1149, 7
      %v1319 = vsel %vm450, %v1317, %v1318
      %v1320 = vrot.slane %v1150, 7
      %v1321 = vrot.slane %v1151, 7
      %v1322 = vsel %vm450, %v1320, %v1321
      %v1323 = vrot.slane %v1152, 7
      %v1324 = vrot.slane %v1153, 7
      %v1325 = vsel %vm450, %v1323, %v1324
      %v1326 = vrot.slane %v1154, 7
      %v1327 = vrot.slane %v1155, 7
      %v1328 = vsel %vm450, %v1326, %v1327
      %v1392 = vsel %vm450, 0.0, %v1233
      %v1393 = vsel %vm450, 0.0, %v1236
      %v1394 = vsel %vm450, 0.0, %v1239
      %v1395 = vsel %vm450, 0.0, %v1242
      %v1396 = vsel %vm450, 0.0, %v1245
      %v1397 = vsel %vm450, 0.0, %v1248
      %v1398 = vsel %vm450, 0.0, %v1251
      %v1399 = vsel %vm450, 0.0, %v1254
      %v1400 = vsel %vm450, 0.0, %v1257
      %v1401 = vsel %vm450, 0.0, %v1260
      %v1402 = vsel %vm450, 0.0, %v1263
      %v1403 = vsel %vm450, 0.0, %v1266
      %v1404 = vsel %vm450, 0.0, %v1269
      %v1405 = vsel %vm450, 0.0, %v1272
      %v1406 = vsel %vm450, 0.0, %v1275
      %v1407 = vsel %vm450, 0.0, %v1278
      %v1408 = vsel %vm450, 0.0, %v1281
      %v1409 = vsel %vm450, 0.0, %v1284
      %v1410 = vsel %vm450, 0.0, %v1287
      %v1411 = vsel %vm450, 0.0, %v1290
      %v1412 = vsel %vm450, 0.0, %v1293
      %v1413 = vsel %vm450, 0.0, %v1296
      %v1414 = vsel %vm450, 0.0, %v1299
      %v1415 = vsel %vm450, 0.0, %v1302
      %v1416 = vsel %vm450, 0.0, %v1305
      %v1417 = vsel %vm450, 0.0, %v1308
      %v1418 = vsel %vm450, 0.0, %v1311
      %v1419 = vsel %vm450, 0.0, %v1314
      %v1420 = vsel %vm450, 0.0, %v1317
      %v1421 = vsel %vm450, 0.0, %v1320
      %v1422 = vsel %vm450, 0.0, %v1323
      %v1423 = vsel %vm450, 0.0, %v1326
      %v1488 = vrot.slane %v964, 1
      %v1489 = vrot.slane %v965, 1
      %v1490 = vsel %vm643, %v1488, %v1489
      %v1491 = vrot.slane %v966, 1
      %v1492 = vrot.slane %v967, 1
      %v1493 = vsel %vm643, %v1491, %v1492
      %v1494 = vrot.slane %v968, 1
      %v1495 = vrot.slane %v969, 1
      %v1496 = vsel %vm643, %v1494, %v1495
      %v1497 = vrot.slane %v970, 1
      %v1498 = vrot.slane %v971, 1
      %v1499 = vsel %vm643, %v1497, %v1498
      %v1500 = vrot.slane %v972, 1
      %v1501 = vrot.slane %v973, 1
      %v1502 = vsel %vm643, %v1500, %v1501
      %v1503 = vrot.slane %v974, 1
      %v1504 = vrot.slane %v975, 1
      %v1505 = vsel %vm643, %v1503, %v1504
      %v1506 = vrot.slane %v976, 1
      %v1507 = vrot.slane %v977, 1
      %v1508 = vsel %vm643, %v1506, %v1507
      %v1509 = vrot.slane %v978, 1
      %v1510 = vrot.slane %v979, 1
      %v1511 = vsel %vm643, %v1509, %v1510
      %v1512 = vrot.slane %v980, 1
      %v1513 = vrot.slane %v981, 1
      %v1514 = vsel %vm643, %v1512, %v1513
      %v1515 = vrot.slane %v982, 1
      %v1516 = vrot.slane %v983, 1
      %v1517 = vsel %vm643, %v1515, %v1516
      %v1518 = vrot.slane %v984, 1
      %v1519 = vrot.slane %v985, 1
      %v1520 = vsel %vm643, %v1518, %v1519
      %v1521 = vrot.slane %v986, 1
      %v1522 = vrot.slane %v987, 1
      %v1523 = vsel %vm643, %v1521, %v1522
      %v1524 = vrot.slane %v988, 1
      %v1525 = vrot.slane %v989, 1
      %v1526 = vsel %vm643, %v1524, %v1525
      %v1527 = vrot.slane %v990, 1
      %v1528 = vrot.slane %v991, 1
      %v1529 = vsel %vm643, %v1527, %v1528
      %v1530 = vrot.slane %v992, 1
      %v1531 = vrot.slane %v993, 1
      %v1532 = vsel %vm643, %v1530, %v1531
      %v1533 = vrot.slane %v994, 1
      %v1534 = vrot.slane %v995, 1
      %v1535 = vsel %vm643, %v1533, %v1534
      %v1536 = vrot.slane %v996, 1
      %v1537 = vrot.slane %v997, 1
      %v1538 = vsel %vm643, %v1536, %v1537
      %v1539 = vrot.slane %v998, 1
      %v1540 = vrot.slane %v999, 1
      %v1541 = vsel %vm643, %v1539, %v1540
      %v1542 = vrot.slane %v1000, 1
      %v1543 = vrot.slane %v1001, 1
      %v1544 = vsel %vm643, %v1542, %v1543
      %v1545 = vrot.slane %v1002, 1
      %v1546 = vrot.slane %v1003, 1
      %v1547 = vsel %vm643, %v1545, %v1546
      %v1548 = vrot.slane %v1004, 1
      %v1549 = vrot.slane %v1005, 1
      %v1550 = vsel %vm643, %v1548, %v1549
      %v1551 = vrot.slane %v1006, 1
      %v1552 = vrot.slane %v1007, 1
      %v1553 = vsel %vm643, %v1551, %v1552
      %v1554 = vrot.slane %v1008, 1
      %v1555 = vrot.slane %v1009, 1
      %v1556 = vsel %vm643, %v1554, %v1555
      %v1557 = vrot.slane %v1010, 1
      %v1558 = vrot.slane %v1011, 1
      %v1559 = vsel %vm643, %v1557, %v1558
      %v1560 = vrot.slane %v1012, 1
      %v1561 = vrot.slane %v1013, 1
      %v1562 = vsel %vm643, %v1560, %v1561
      %v1563 = vrot.slane %v1014, 1
      %v1564 = vrot.slane %v1015, 1
      %v1565 = vsel %vm643, %v1563, %v1564
      %v1566 = vrot.slane %v1016, 1
      %v1567 = vrot.slane %v1017, 1
      %v1568 = vsel %vm643, %v1566, %v1567
      %v1569 = vrot.slane %v1018, 1
      %v1570 = vrot.slane %v1019, 1
      %v1571 = vsel %vm643, %v1569, %v1570
      %v1572 = vrot.slane %v1020, 1
      %v1573 = vrot.slane %v1021, 1
      %v1574 = vsel %vm643, %v1572, %v1573
      %v1575 = vrot.slane %v1022, 1
      %v1576 = vrot.slane %v1023, 1
      %v1577 = vsel %vm643, %v1575, %v1576
      %v1578 = vrot.slane %v1024, 1
      %v1579 = vrot.slane %v1025, 1
      %v1580 = vsel %vm643, %v1578, %v1579
      %v1581 = vrot.slane %v1026, 1
      %v1582 = vrot.slane %v1027, 1
      %v1583 = vsel %vm643, %v1581, %v1582
      %v1616 = vsel %vm643, %v1489, 0.0
      %v1617 = vsel %vm643, %v1492, 0.0
      %v1618 = vsel %vm643, %v1495, 0.0
      %v1619 = vsel %vm643, %v1498, 0.0
      %v1620 = vsel %vm643, %v1501, 0.0
      %v1621 = vsel %vm643, %v1504, 0.0
      %v1622 = vsel %vm643, %v1507, 0.0
      %v1623 = vsel %vm643, %v1510, 0.0
      %v1624 = vsel %vm643, %v1513, 0.0
      %v1625 = vsel %vm643, %v1516, 0.0
      %v1626 = vsel %vm643, %v1519, 0.0
      %v1627 = vsel %vm643, %v1522, 0.0
      %v1628 = vsel %vm643, %v1525, 0.0
      %v1629 = vsel %vm643, %v1528, 0.0
      %v1630 = vsel %vm643, %v1531, 0.0
      %v1631 = vsel %vm643, %v1534, 0.0
      %v1632 = vsel %vm643, %v1537, 0.0
      %v1633 = vsel %vm643, %v1540, 0.0
      %v1634 = vsel %vm643, %v1543, 0.0
      %v1635 = vsel %vm643, %v1546, 0.0
      %v1636 = vsel %vm643, %v1549, 0.0
      %v1637 = vsel %vm643, %v1552, 0.0
      %v1638 = vsel %vm643, %v1555, 0.0
      %v1639 = vsel %vm643, %v1558, 0.0
      %v1640 = vsel %vm643, %v1561, 0.0
      %v1641 = vsel %vm643, %v1564, 0.0
      %v1642 = vsel %vm643, %v1567, 0.0
      %v1643 = vsel %vm643, %v1570, 0.0
      %v1644 = vsel %vm643, %v1573, 0.0
      %v1645 = vsel %vm643, %v1576, 0.0
      %v1646 = vsel %vm643, %v1579, 0.0
      %v1647 = vsel %vm643, %v1582, 0.0
      %1649 = vrot.lane.b32.xlu0 0.0, 8
      %v1650 = vpop.permute.xlu0 %1649
      %1651 = vrot.lane.b32.xlu0 %v964, 8
      %v1652 = vpop.permute.xlu0 %1651
      %1653 = vrot.lane.b32.xlu0 %v965, 8
      %v1654 = vpop.permute.xlu0 %1653
      %1655 = vrot.lane.b32.xlu0 %v966, 8
      %v1656 = vpop.permute.xlu0 %1655
      %1657 = vrot.lane.b32.xlu0 %v967, 8
      %v1658 = vpop.permute.xlu0 %1657
      %1659 = vrot.lane.b32.xlu0 %v968, 8
      %v1660 = vpop.permute.xlu0 %1659
      %1661 = vrot.lane.b32.xlu0 %v969, 8
      %v1662 = vpop.permute.xlu0 %1661
      %1663 = vrot.lane.b32.xlu0 %v970, 8
      %v1664 = vpop.permute.xlu0 %1663
      %1665 = vrot.lane.b32.xlu0 %v971, 8
      %v1666 = vpop.permute.xlu0 %1665
      %1667 = vrot.lane.b32.xlu0 %v972, 8
      %v1668 = vpop.permute.xlu0 %1667
      %1669 = vrot.lane.b32.xlu0 %v973, 8
      %v1670 = vpop.permute.xlu0 %1669
      %1671 = vrot.lane.b32.xlu0 %v974, 8
      %v1672 = vpop.permute.xlu0 %1671
      %1673 = vrot.lane.b32.xlu0 %v975, 8
      %v1674 = vpop.permute.xlu0 %1673
      %1675 = vrot.lane.b32.xlu0 %v976, 8
      %v1676 = vpop.permute.xlu0 %1675
      %1677 = vrot.lane.b32.xlu0 %v977, 8
      %v1678 = vpop.permute.xlu0 %1677
      %1679 = vrot.lane.b32.xlu0 %v978, 8
      %v1680 = vpop.permute.xlu0 %1679
      %1681 = vrot.lane.b32.xlu0 %v979, 8
      %v1682 = vpop.permute.xlu0 %1681
      %1683 = vrot.lane.b32.xlu0 %v980, 8
      %v1684 = vpop.permute.xlu0 %1683
      %1685 = vrot.lane.b32.xlu0 %v981, 8
      %v1686 = vpop.permute.xlu0 %1685
      %1687 = vrot.lane.b32.xlu0 %v982, 8
      %v1688 = vpop.permute.xlu0 %1687
      %1689 = vrot.lane.b32.xlu0 %v983, 8
      %v1690 = vpop.permute.xlu0 %1689
      %1691 = vrot.lane.b32.xlu0 %v984, 8
      %v1692 = vpop.permute.xlu0 %1691
      %1693 = vrot.lane.b32.xlu0 %v985, 8
      %v1694 = vpop.permute.xlu0 %1693
      %1695 = vrot.lane.b32.xlu0 %v986, 8
      %v1696 = vpop.permute.xlu0 %1695
      %1697 = vrot.lane.b32.xlu0 %v987, 8
      %v1698 = vpop.permute.xlu0 %1697
      %1699 = vrot.lane.b32.xlu0 %v988, 8
      %v1700 = vpop.permute.xlu0 %1699
      %1701 = vrot.lane.b32.xlu0 %v989, 8
      %v1702 = vpop.permute.xlu0 %1701
      %1703 = vrot.lane.b32.xlu0 %v990, 8
      %v1704 = vpop.permute.xlu0 %1703
      %1705 = vrot.lane.b32.xlu0 %v991, 8
      %v1706 = vpop.permute.xlu0 %1705
      %1707 = vrot.lane.b32.xlu0 %v992, 8
      %v1708 = vpop.permute.xlu0 %1707
      %1709 = vrot.lane.b32.xlu0 %v993, 8
      %v1710 = vpop.permute.xlu0 %1709
      %1711 = vrot.lane.b32.xlu0 %v994, 8
      %v1712 = vpop.permute.xlu0 %1711
      %1713 = vrot.lane.b32.xlu0 %v995, 8
      %v1714 = vpop.permute.xlu0 %1713
      %1715 = vrot.lane.b32.xlu0 %v996, 8
      %v1716 = vpop.permute.xlu0 %1715
      %1717 = vrot.lane.b32.xlu0 %v997, 8
      %v1718 = vpop.permute.xlu0 %1717
      %1719 = vrot.lane.b32.xlu0 %v998, 8
      %v1720 = vpop.permute.xlu0 %1719
      %1721 = vrot.lane.b32.xlu0 %v999, 8
      %v1722 = vpop.permute.xlu0 %1721
      %1723 = vrot.lane.b32.xlu0 %v1000, 8
      %v1724 = vpop.permute.xlu0 %1723
      %1725 = vrot.lane.b32.xlu0 %v1001, 8
      %v1726 = vpop.permute.xlu0 %1725
      %1727 = vrot.lane.b32.xlu0 %v1002, 8
      %v1728 = vpop.permute.xlu0 %1727
      %1729 = vrot.lane.b32.xlu0 %v1003, 8
      %v1730 = vpop.permute.xlu0 %1729
      %1731 = vrot.lane.b32.xlu0 %v1004, 8
      %v1732 = vpop.permute.xlu0 %1731
      %1733 = vrot.lane.b32.xlu0 %v1005, 8
      %v1734 = vpop.permute.xlu0 %1733
      %1735 = vrot.lane.b32.xlu0 %v1006, 8
      %v1736 = vpop.permute.xlu0 %1735
      %1737 = vrot.lane.b32.xlu0 %v1007, 8
      %v1738 = vpop.permute.xlu0 %1737
      %1739 = vrot.lane.b32.xlu0 %v1008, 8
      %v1740 = vpop.permute.xlu0 %1739
      %1741 = vrot.lane.b32.xlu0 %v1009, 8
      %v1742 = vpop.permute.xlu0 %1741
      %1743 = vrot.lane.b32.xlu0 %v1010, 8
      %v1744 = vpop.permute.xlu0 %1743
      %1745 = vrot.lane.b32.xlu0 %v1011, 8
      %v1746 = vpop.permute.xlu0 %1745
      %1747 = vrot.lane.b32.xlu0 %v1012, 8
      %v1748 = vpop.permute.xlu0 %1747
      %1749 = vrot.lane.b32.xlu0 %v1013, 8
      %v1750 = vpop.permute.xlu0 %1749
      %1751 = vrot.lane.b32.xlu0 %v1014, 8
      %v1752 = vpop.permute.xlu0 %1751
      %1753 = vrot.lane.b32.xlu0 %v1015, 8
      %v1754 = vpop.permute.xlu0 %1753
      %1755 = vrot.lane.b32.xlu0 %v1016, 8
      %v1756 = vpop.permute.xlu0 %1755
      %1757 = vrot.lane.b32.xlu0 %v1017, 8
      %v1758 = vpop.permute.xlu0 %1757
      %1759 = vrot.lane.b32.xlu0 %v1018, 8
      %v1760 = vpop.permute.xlu0 %1759
      %1761 = vrot.lane.b32.xlu0 %v1019, 8
      %v1762 = vpop.permute.xlu0 %1761
      %1763 = vrot.lane.b32.xlu0 %v1020, 8
      %v1764 = vpop.permute.xlu0 %1763
      %1765 = vrot.lane.b32.xlu0 %v1021, 8
      %v1766 = vpop.permute.xlu0 %1765
      %1767 = vrot.lane.b32.xlu0 %v1022, 8
      %v1768 = vpop.permute.xlu0 %1767
      %1769 = vrot.lane.b32.xlu0 %v1023, 8
      %v1770 = vpop.permute.xlu0 %1769
      %1771 = vrot.lane.b32.xlu0 %v1024, 8
      %v1772 = vpop.permute.xlu0 %1771
      %1773 = vrot.lane.b32.xlu0 %v1025, 8
      %v1774 = vpop.permute.xlu0 %1773
      %1838 = vrot.lane.b32.xlu0 0.0, 16
      %v1839 = vpop.permute.xlu0 %1838
      %1840 = vrot.lane.b32.xlu0 %v1092, 16
      %v1841 = vpop.permute.xlu0 %1840
      %1842 = vrot.lane.b32.xlu0 %v1093, 16
      %v1843 = vpop.permute.xlu0 %1842
      %1844 = vrot.lane.b32.xlu0 %v1094, 16
      %v1845 = vpop.permute.xlu0 %1844
      %1846 = vrot.lane.b32.xlu0 %v1095, 16
      %v1847 = vpop.permute.xlu0 %1846
      %1848 = vrot.lane.b32.xlu0 %v1096, 16
      %v1849 = vpop.permute.xlu0 %1848
      %1850 = vrot.lane.b32.xlu0 %v1097, 16
      %v1851 = vpop.permute.xlu0 %1850
      %1852 = vrot.lane.b32.xlu0 %v1098, 16
      %v1853 = vpop.permute.xlu0 %1852
      %1854 = vrot.lane.b32.xlu0 %v1099, 16
      %v1855 = vpop.permute.xlu0 %1854
      %1856 = vrot.lane.b32.xlu0 %v1100, 16
      %v1857 = vpop.permute.xlu0 %1856
      %1858 = vrot.lane.b32.xlu0 %v1101, 16
      %v1859 = vpop.permute.xlu0 %1858
      %1860 = vrot.lane.b32.xlu0 %v1102, 16
      %v1861 = vpop.permute.xlu0 %1860
      %1862 = vrot.lane.b32.xlu0 %v1103, 16
      %v1863 = vpop.permute.xlu0 %1862
      %1864 = vrot.lane.b32.xlu0 %v1104, 16
      %v1865 = vpop.permute.xlu0 %1864
      %1866 = vrot.lane.b32.xlu0 %v1105, 16
      %v1867 = vpop.permute.xlu0 %1866
      %1868 = vrot.lane.b32.xlu0 %v1106, 16
      %v1869 = vpop.permute.xlu0 %1868
      %1870 = vrot.lane.b32.xlu0 %v1107, 16
      %v1871 = vpop.permute.xlu0 %1870
      %1872 = vrot.lane.b32.xlu0 %v1108, 16
      %v1873 = vpop.permute.xlu0 %1872
      %1874 = vrot.lane.b32.xlu0 %v1109, 16
      %v1875 = vpop.permute.xlu0 %1874
      %1876 = vrot.lane.b32.xlu0 %v1110, 16
      %v1877 = vpop.permute.xlu0 %1876
      %1878 = vrot.lane.b32.xlu0 %v1111, 16
      %v1879 = vpop.permute.xlu0 %1878
      %1880 = vrot.lane.b32.xlu0 %v1112, 16
      %v1881 = vpop.permute.xlu0 %1880
      %1882 = vrot.lane.b32.xlu0 %v1113, 16
      %v1883 = vpop.permute.xlu0 %1882
      %1884 = vrot.lane.b32.xlu0 %v1114, 16
      %v1885 = vpop.permute.xlu0 %1884
      %1886 = vrot.lane.b32.xlu0 %v1115, 16
      %v1887 = vpop.permute.xlu0 %1886
      %1888 = vrot.lane.b32.xlu0 %v1116, 16
      %v1889 = vpop.permute.xlu0 %1888
      %1890 = vrot.lane.b32.xlu0 %v1117, 16
      %v1891 = vpop.permute.xlu0 %1890
      %1892 = vrot.lane.b32.xlu0 %v1118, 16
      %v1893 = vpop.permute.xlu0 %1892
      %1894 = vrot.lane.b32.xlu0 %v1119, 16
      %v1895 = vpop.permute.xlu0 %1894
      %1896 = vrot.lane.b32.xlu0 %v1120, 16
      %v1897 = vpop.permute.xlu0 %1896
      %1898 = vrot.lane.b32.xlu0 %v1121, 16
      %v1899 = vpop.permute.xlu0 %1898
      %1900 = vrot.lane.b32.xlu0 %v1122, 16
      %v1901 = vpop.permute.xlu0 %1900
      %1902 = vrot.lane.b32.xlu0 %v1123, 16
      %v1903 = vpop.permute.xlu0 %1902
      %1904 = vrot.lane.b32.xlu0 %v1124, 16
      %v1905 = vpop.permute.xlu0 %1904
      %1906 = vrot.lane.b32.xlu0 %v1125, 16
      %v1907 = vpop.permute.xlu0 %1906
      %1908 = vrot.lane.b32.xlu0 %v1126, 16
      %v1909 = vpop.permute.xlu0 %1908
      %1910 = vrot.lane.b32.xlu0 %v1127, 16
      %v1911 = vpop.permute.xlu0 %1910
      %1912 = vrot.lane.b32.xlu0 %v1128, 16
      %v1913 = vpop.permute.xlu0 %1912
      %1914 = vrot.lane.b32.xlu0 %v1129, 16
      %v1915 = vpop.permute.xlu0 %1914
      %1916 = vrot.lane.b32.xlu0 %v1130, 16
      %v1917 = vpop.permute.xlu0 %1916
      %1918 = vrot.lane.b32.xlu0 %v1131, 16
      %v1919 = vpop.permute.xlu0 %1918
      %1920 = vrot.lane.b32.xlu0 %v1132, 16
      %v1921 = vpop.permute.xlu0 %1920
      %1922 = vrot.lane.b32.xlu0 %v1133, 16
      %v1923 = vpop.permute.xlu0 %1922
      %1924 = vrot.lane.b32.xlu0 %v1134, 16
      %v1925 = vpop.permute.xlu0 %1924
      %1926 = vrot.lane.b32.xlu0 %v1135, 16
      %v1927 = vpop.permute.xlu0 %1926
      %1928 = vrot.lane.b32.xlu0 %v1136, 16
      %v1929 = vpop.permute.xlu0 %1928
      %1930 = vrot.lane.b32.xlu0 %v1137, 16
      %v1931 = vpop.permute.xlu0 %1930
      %1932 = vrot.lane.b32.xlu0 %v1138, 16
      %v1933 = vpop.permute.xlu0 %1932
      %1934 = vrot.lane.b32.xlu0 %v1139, 16
      %v1935 = vpop.permute.xlu0 %1934
      %1936 = vrot.lane.b32.xlu0 %v1140, 16
      %v1937 = vpop.permute.xlu0 %1936
      %1938 = vrot.lane.b32.xlu0 %v1141, 16
      %v1939 = vpop.permute.xlu0 %1938
      %1940 = vrot.lane.b32.xlu0 %v1142, 16
      %v1941 = vpop.permute.xlu0 %1940
      %1942 = vrot.lane.b32.xlu0 %v1143, 16
      %v1943 = vpop.permute.xlu0 %1942
      %1944 = vrot.lane.b32.xlu0 %v1144, 16
      %v1945 = vpop.permute.xlu0 %1944
      %1946 = vrot.lane.b32.xlu0 %v1145, 16
      %v1947 = vpop.permute.xlu0 %1946
      %1948 = vrot.lane.b32.xlu0 %v1146, 16
      %v1949 = vpop.permute.xlu0 %1948
      %1950 = vrot.lane.b32.xlu0 %v1147, 16
      %v1951 = vpop.permute.xlu0 %1950
      %1952 = vrot.lane.b32.xlu0 %v1148, 16
      %v1953 = vpop.permute.xlu0 %1952
      %1954 = vrot.lane.b32.xlu0 %v1149, 16
      %v1955 = vpop.permute.xlu0 %1954
      %1956 = vrot.lane.b32.xlu0 %v1150, 16
      %v1957 = vpop.permute.xlu0 %1956
      %1958 = vrot.lane.b32.xlu0 %v1151, 16
      %v1959 = vpop.permute.xlu0 %1958
      %1960 = vrot.lane.b32.xlu0 %v1152, 16
      %v1961 = vpop.permute.xlu0 %1960
      %1962 = vrot.lane.b32.xlu0 %v1153, 16
      %v1963 = vpop.permute.xlu0 %1962
      %2058 = vrot.lane.b32.xlu0 0.0, 24
      %v2059 = vpop.permute.xlu0 %2058
      %2060 = vrot.lane.b32.xlu0 %v1490, 24
      %v2061 = vpop.permute.xlu0 %2060
      %2062 = vrot.lane.b32.xlu0 %v1616, 24
      %v2063 = vpop.permute.xlu0 %2062
      %2064 = vrot.lane.b32.xlu0 %v1493, 24
      %v2065 = vpop.permute.xlu0 %2064
      %2066 = vrot.lane.b32.xlu0 %v1617, 24
      %v2067 = vpop.permute.xlu0 %2066
      %2068 = vrot.lane.b32.xlu0 %v1496, 24
      %v2069 = vpop.permute.xlu0 %2068
      %2070 = vrot.lane.b32.xlu0 %v1618, 24
      %v2071 = vpop.permute.xlu0 %2070
      %2072 = vrot.lane.b32.xlu0 %v1499, 24
      %v2073 = vpop.permute.xlu0 %2072
      %2074 = vrot.lane.b32.xlu0 %v1619, 24
      %v2075 = vpop.permute.xlu0 %2074
      %2076 = vrot.lane.b32.xlu0 %v1502, 24
      %v2077 = vpop.permute.xlu0 %2076
      %2078 = vrot.lane.b32.xlu0 %v1620, 24
      %v2079 = vpop.permute.xlu0 %2078
      %2080 = vrot.lane.b32.xlu0 %v1505, 24
      %v2081 = vpop.permute.xlu0 %2080
      %2082 = vrot.lane.b32.xlu0 %v1621, 24
      %v2083 = vpop.permute.xlu0 %2082
      %2084 = vrot.lane.b32.xlu0 %v1508, 24
      %v2085 = vpop.permute.xlu0 %2084
      %2086 = vrot.lane.b32.xlu0 %v1622, 24
      %v2087 = vpop.permute.xlu0 %2086
      %2088 = vrot.lane.b32.xlu0 %v1511, 24
      %v2089 = vpop.permute.xlu0 %2088
      %2090 = vrot.lane.b32.xlu0 %v1623, 24
      %v2091 = vpop.permute.xlu0 %2090
      %2092 = vrot.lane.b32.xlu0 %v1514, 24
      %v2093 = vpop.permute.xlu0 %2092
      %2094 = vrot.lane.b32.xlu0 %v1624, 24
      %v2095 = vpop.permute.xlu0 %2094
      %2096 = vrot.lane.b32.xlu0 %v1517, 24
      %v2097 = vpop.permute.xlu0 %2096
      %2098 = vrot.lane.b32.xlu0 %v1625, 24
      %v2099 = vpop.permute.xlu0 %2098
      %2100 = vrot.lane.b32.xlu0 %v1520, 24
      %v2101 = vpop.permute.xlu0 %2100
      %2102 = vrot.lane.b32.xlu0 %v1626, 24
      %v2103 = vpop.permute.xlu0 %2102
      %2104 = vrot.lane.b32.xlu0 %v1523, 24
      %v2105 = vpop.permute.xlu0 %2104
      %2106 = vrot.lane.b32.xlu0 %v1627, 24
      %v2107 = vpop.permute.xlu0 %2106
      %2108 = vrot.lane.b32.xlu0 %v1526, 24
      %v2109 = vpop.permute.xlu0 %2108
      %2110 = vrot.lane.b32.xlu0 %v1628, 24
      %v2111 = vpop.permute.xlu0 %2110
      %2112 = vrot.lane.b32.xlu0 %v1529, 24
      %v2113 = vpop.permute.xlu0 %2112
      %2114 = vrot.lane.b32.xlu0 %v1629, 24
      %v2115 = vpop.permute.xlu0 %2114
      %2116 = vrot.lane.b32.xlu0 %v1532, 24
      %v2117 = vpop.permute.xlu0 %2116
      %2118 = vrot.lane.b32.xlu0 %v1630, 24
      %v2119 = vpop.permute.xlu0 %2118
      %2120 = vrot.lane.b32.xlu0 %v1535, 24
      %v2121 = vpop.permute.xlu0 %2120
      %2122 = vrot.lane.b32.xlu0 %v1631, 24
      %v2123 = vpop.permute.xlu0 %2122
      %2124 = vrot.lane.b32.xlu0 %v1538, 24
      %v2125 = vpop.permute.xlu0 %2124
      %2126 = vrot.lane.b32.xlu0 %v1632, 24
      %v2127 = vpop.permute.xlu0 %2126
      %2128 = vrot.lane.b32.xlu0 %v1541, 24
      %v2129 = vpop.permute.xlu0 %2128
      %2130 = vrot.lane.b32.xlu0 %v1633, 24
      %v2131 = vpop.permute.xlu0 %2130
      %2132 = vrot.lane.b32.xlu0 %v1544, 24
      %v2133 = vpop.permute.xlu0 %2132
      %2134 = vrot.lane.b32.xlu0 %v1634, 24
      %v2135 = vpop.permute.xlu0 %2134
      %2136 = vrot.lane.b32.xlu0 %v1547, 24
      %v2137 = vpop.permute.xlu0 %2136
      %2138 = vrot.lane.b32.xlu0 %v1635, 24
      %v2139 = vpop.permute.xlu0 %2138
      %2140 = vrot.lane.b32.xlu0 %v1550, 24
      %v2141 = vpop.permute.xlu0 %2140
      %2142 = vrot.lane.b32.xlu0 %v1636, 24
      %v2143 = vpop.permute.xlu0 %2142
      %2144 = vrot.lane.b32.xlu0 %v1553, 24
      %v2145 = vpop.permute.xlu0 %2144
      %2146 = vrot.lane.b32.xlu0 %v1637, 24
      %v2147 = vpop.permute.xlu0 %2146
      %2148 = vrot.lane.b32.xlu0 %v1556, 24
      %v2149 = vpop.permute.xlu0 %2148
      %2150 = vrot.lane.b32.xlu0 %v1638, 24
      %v2151 = vpop.permute.xlu0 %2150
      %2152 = vrot.lane.b32.xlu0 %v1559, 24
      %v2153 = vpop.permute.xlu0 %2152
      %2154 = vrot.lane.b32.xlu0 %v1639, 24
      %v2155 = vpop.permute.xlu0 %2154
      %2156 = vrot.lane.b32.xlu0 %v1562, 24
      %v2157 = vpop.permute.xlu0 %2156
      %2158 = vrot.lane.b32.xlu0 %v1640, 24
      %v2159 = vpop.permute.xlu0 %2158
      %2160 = vrot.lane.b32.xlu0 %v1565, 24
      %v2161 = vpop.permute.xlu0 %2160
      %2162 = vrot.lane.b32.xlu0 %v1641, 24
      %v2163 = vpop.permute.xlu0 %2162
      %2164 = vrot.lane.b32.xlu0 %v1568, 24
      %v2165 = vpop.permute.xlu0 %2164
      %2166 = vrot.lane.b32.xlu0 %v1642, 24
      %v2167 = vpop.permute.xlu0 %2166
      %2168 = vrot.lane.b32.xlu0 %v1571, 24
      %v2169 = vpop.permute.xlu0 %2168
      %2170 = vrot.lane.b32.xlu0 %v1643, 24
      %v2171 = vpop.permute.xlu0 %2170
      %2172 = vrot.lane.b32.xlu0 %v1574, 24
      %v2173 = vpop.permute.xlu0 %2172
      %2174 = vrot.lane.b32.xlu0 %v1644, 24
      %v2175 = vpop.permute.xlu0 %2174
      %2176 = vrot.lane.b32.xlu0 %v1577, 24
      %v2177 = vpop.permute.xlu0 %2176
      %2178 = vrot.lane.b32.xlu0 %v1645, 24
      %v2179 = vpop.permute.xlu0 %2178
      %2180 = vrot.lane.b32.xlu0 %v1580, 24
      %v2181 = vpop.permute.xlu0 %2180
      %2182 = vrot.lane.b32.xlu0 %v1646, 24
      %v2183 = vpop.permute.xlu0 %2182
      %2279 = vrot.lane.b32.xlu0 %v1392, 32
      %v2280 = vpop.permute.xlu0 %2279
      %2281 = vrot.lane.b32.xlu0 %v1235, 32
      %v2282 = vpop.permute.xlu0 %2281
      %2283 = vrot.lane.b32.xlu0 %v1393, 32
      %v2284 = vpop.permute.xlu0 %2283
      %2285 = vrot.lane.b32.xlu0 %v1238, 32
      %v2286 = vpop.permute.xlu0 %2285
      %2287 = vrot.lane.b32.xlu0 %v1394, 32
      %v2288 = vpop.permute.xlu0 %2287
      %2289 = vrot.lane.b32.xlu0 %v1241, 32
      %v2290 = vpop.permute.xlu0 %2289
      %2291 = vrot.lane.b32.xlu0 %v1395, 32
      %v2292 = vpop.permute.xlu0 %2291
      %2293 = vrot.lane.b32.xlu0 %v1244, 32
      %v2294 = vpop.permute.xlu0 %2293
      %2295 = vrot.lane.b32.xlu0 %v1396, 32
      %v2296 = vpop.permute.xlu0 %2295
      %2297 = vrot.lane.b32.xlu0 %v1247, 32
      %v2298 = vpop.permute.xlu0 %2297
      %2299 = vrot.lane.b32.xlu0 %v1397, 32
      %v2300 = vpop.permute.xlu0 %2299
      %2301 = vrot.lane.b32.xlu0 %v1250, 32
      %v2302 = vpop.permute.xlu0 %2301
      %2303 = vrot.lane.b32.xlu0 %v1398, 32
      %v2304 = vpop.permute.xlu0 %2303
      %2305 = vrot.lane.b32.xlu0 %v1253, 32
      %v2306 = vpop.permute.xlu0 %2305
      %2307 = vrot.lane.b32.xlu0 %v1399, 32
      %v2308 = vpop.permute.xlu0 %2307
      %2309 = vrot.lane.b32.xlu0 %v1256, 32
      %v2310 = vpop.permute.xlu0 %2309
      %2311 = vrot.lane.b32.xlu0 %v1400, 32
      %v2312 = vpop.permute.xlu0 %2311
      %2313 = vrot.lane.b32.xlu0 %v1259, 32
      %v2314 = vpop.permute.xlu0 %2313
      %2315 = vrot.lane.b32.xlu0 %v1401, 32
      %v2316 = vpop.permute.xlu0 %2315
      %2317 = vrot.lane.b32.xlu0 %v1262, 32
      %v2318 = vpop.permute.xlu0 %2317
      %2319 = vrot.lane.b32.xlu0 %v1402, 32
      %v2320 = vpop.permute.xlu0 %2319
      %2321 = vrot.lane.b32.xlu0 %v1265, 32
      %v2322 = vpop.permute.xlu0 %2321
      %2323 = vrot.lane.b32.xlu0 %v1403, 32
      %v2324 = vpop.permute.xlu0 %2323
      %2325 = vrot.lane.b32.xlu0 %v1268, 32
      %v2326 = vpop.permute.xlu0 %2325
      %2327 = vrot.lane.b32.xlu0 %v1404, 32
      %v2328 = vpop.permute.xlu0 %2327
      %2329 = vrot.lane.b32.xlu0 %v1271, 32
      %v2330 = vpop.permute.xlu0 %2329
      %2331 = vrot.lane.b32.xlu0 %v1405, 32
      %v2332 = vpop.permute.xlu0 %2331
      %2333 = vrot.lane.b32.xlu0 %v1274, 32
      %v2334 = vpop.permute.xlu0 %2333
      %2335 = vrot.lane.b32.xlu0 %v1406, 32
      %v2336 = vpop.permute.xlu0 %2335
      %2337 = vrot.lane.b32.xlu0 %v1277, 32
      %v2338 = vpop.permute.xlu0 %2337
      %2339 = vrot.lane.b32.xlu0 %v1407, 32
      %v2340 = vpop.permute.xlu0 %2339
      %2341 = vrot.lane.b32.xlu0 %v1280, 32
      %v2342 = vpop.permute.xlu0 %2341
      %2343 = vrot.lane.b32.xlu0 %v1408, 32
      %v2344 = vpop.permute.xlu0 %2343
      %2345 = vrot.lane.b32.xlu0 %v1283, 32
      %v2346 = vpop.permute.xlu0 %2345
      %2347 = vrot.lane.b32.xlu0 %v1409, 32
      %v2348 = vpop.permute.xlu0 %2347
      %2349 = vrot.lane.b32.xlu0 %v1286, 32
      %v2350 = vpop.permute.xlu0 %2349
      %2351 = vrot.lane.b32.xlu0 %v1410, 32
      %v2352 = vpop.permute.xlu0 %2351
      %2353 = vrot.lane.b32.xlu0 %v1289, 32
      %v2354 = vpop.permute.xlu0 %2353
      %2355 = vrot.lane.b32.xlu0 %v1411, 32
      %v2356 = vpop.permute.xlu0 %2355
      %2357 = vrot.lane.b32.xlu0 %v1292, 32
      %v2358 = vpop.permute.xlu0 %2357
      %2359 = vrot.lane.b32.xlu0 %v1412, 32
      %v2360 = vpop.permute.xlu0 %2359
      %2361 = vrot.lane.b32.xlu0 %v1295, 32
      %v2362 = vpop.permute.xlu0 %2361
      %2363 = vrot.lane.b32.xlu0 %v1413, 32
      %v2364 = vpop.permute.xlu0 %2363
      %2365 = vrot.lane.b32.xlu0 %v1298, 32
      %v2366 = vpop.permute.xlu0 %2365
      %2367 = vrot.lane.b32.xlu0 %v1414, 32
      %v2368 = vpop.permute.xlu0 %2367
      %2369 = vrot.lane.b32.xlu0 %v1301, 32
      %v2370 = vpop.permute.xlu0 %2369
      %2371 = vrot.lane.b32.xlu0 %v1415, 32
      %v2372 = vpop.permute.xlu0 %2371
      %2373 = vrot.lane.b32.xlu0 %v1304, 32
      %v2374 = vpop.permute.xlu0 %2373
      %2375 = vrot.lane.b32.xlu0 %v1416, 32
      %v2376 = vpop.permute.xlu0 %2375
      %2377 = vrot.lane.b32.xlu0 %v1307, 32
      %v2378 = vpop.permute.xlu0 %2377
      %2379 = vrot.lane.b32.xlu0 %v1417, 32
      %v2380 = vpop.permute.xlu0 %2379
      %2381 = vrot.lane.b32.xlu0 %v1310, 32
      %v2382 = vpop.permute.xlu0 %2381
      %2383 = vrot.lane.b32.xlu0 %v1418, 32
      %v2384 = vpop.permute.xlu0 %2383
      %2385 = vrot.lane.b32.xlu0 %v1313, 32
      %v2386 = vpop.permute.xlu0 %2385
      %2387 = vrot.lane.b32.xlu0 %v1419, 32
      %v2388 = vpop.permute.xlu0 %2387
      %2389 = vrot.lane.b32.xlu0 %v1316, 32
      %v2390 = vpop.permute.xlu0 %2389
      %2391 = vrot.lane.b32.xlu0 %v1420, 32
      %v2392 = vpop.permute.xlu0 %2391
      %2393 = vrot.lane.b32.xlu0 %v1319, 32
      %v2394 = vpop.permute.xlu0 %2393
      %2395 = vrot.lane.b32.xlu0 %v1421, 32
      %v2396 = vpop.permute.xlu0 %2395
      %2397 = vrot.lane.b32.xlu0 %v1322, 32
      %v2398 = vpop.permute.xlu0 %2397
      %2399 = vrot.lane.b32.xlu0 %v1422, 32
      %v2400 = vpop.permute.xlu0 %2399
      %2401 = vrot.lane.b32.xlu0 %v1325, 32
      %v2402 = vpop.permute.xlu0 %2401
      %2403 = vrot.lane.b32.xlu0 %v1423, 32
      %v2404 = vpop.permute.xlu0 %2403
      %2405 = vrot.lane.b32.xlu0 %v1328, 32
      %v2406 = vpop.permute.xlu0 %2405
      %2471 = vrot.lane.b32.xlu0 %v964, 40
      %v2472 = vpop.permute.xlu0 %2471
      %2473 = vrot.lane.b32.xlu0 %v965, 40
      %v2474 = vpop.permute.xlu0 %2473
      %2475 = vrot.lane.b32.xlu0 %v966, 40
      %v2476 = vpop.permute.xlu0 %2475
      %2477 = vrot.lane.b32.xlu0 %v967, 40
      %v2478 = vpop.permute.xlu0 %2477
      %2479 = vrot.lane.b32.xlu0 %v968, 40
      %v2480 = vpop.permute.xlu0 %2479
      %2481 = vrot.lane.b32.xlu0 %v969, 40
      %v2482 = vpop.permute.xlu0 %2481
      %2483 = vrot.lane.b32.xlu0 %v970, 40
      %v2484 = vpop.permute.xlu0 %2483
      %2485 = vrot.lane.b32.xlu0 %v971, 40
      %v2486 = vpop.permute.xlu0 %2485
      %2487 = vrot.lane.b32.xlu0 %v972, 40
      %v2488 = vpop.permute.xlu0 %2487
      %2489 = vrot.lane.b32.xlu0 %v973, 40
      %v2490 = vpop.permute.xlu0 %2489
      %2491 = vrot.lane.b32.xlu0 %v974, 40
      %v2492 = vpop.permute.xlu0 %2491
      %2493 = vrot.lane.b32.xlu0 %v975, 40
      %v2494 = vpop.permute.xlu0 %2493
      %2495 = vrot.lane.b32.xlu0 %v976, 40
      %v2496 = vpop.permute.xlu0 %2495
      %2497 = vrot.lane.b32.xlu0 %v977, 40
      %v2498 = vpop.permute.xlu0 %2497
      %2499 = vrot.lane.b32.xlu0 %v978, 40
      %v2500 = vpop.permute.xlu0 %2499
      %2501 = vrot.lane.b32.xlu0 %v979, 40
      %v2502 = vpop.permute.xlu0 %2501
      %2503 = vrot.lane.b32.xlu0 %v980, 40
      %v2504 = vpop.permute.xlu0 %2503
      %2505 = vrot.lane.b32.xlu0 %v981, 40
      %v2506 = vpop.permute.xlu0 %2505
      %2507 = vrot.lane.b32.xlu0 %v982, 40
      %v2508 = vpop.permute.xlu0 %2507
      %2509 = vrot.lane.b32.xlu0 %v983, 40
      %v2510 = vpop.permute.xlu0 %2509
      %2511 = vrot.lane.b32.xlu0 %v984, 40
      %v2512 = vpop.permute.xlu0 %2511
      %2513 = vrot.lane.b32.xlu0 %v985, 40
      %v2514 = vpop.permute.xlu0 %2513
      %2515 = vrot.lane.b32.xlu0 %v986, 40
      %v2516 = vpop.permute.xlu0 %2515
      %2517 = vrot.lane.b32.xlu0 %v987, 40
      %v2518 = vpop.permute.xlu0 %2517
      %2519 = vrot.lane.b32.xlu0 %v988, 40
      %v2520 = vpop.permute.xlu0 %2519
      %2521 = vrot.lane.b32.xlu0 %v989, 40
      %v2522 = vpop.permute.xlu0 %2521
      %2523 = vrot.lane.b32.xlu0 %v990, 40
      %v2524 = vpop.permute.xlu0 %2523
      %2525 = vrot.lane.b32.xlu0 %v991, 40
      %v2526 = vpop.permute.xlu0 %2525
      %2527 = vrot.lane.b32.xlu0 %v992, 40
      %v2528 = vpop.permute.xlu0 %2527
      %2529 = vrot.lane.b32.xlu0 %v993, 40
      %v2530 = vpop.permute.xlu0 %2529
      %2531 = vrot.lane.b32.xlu0 %v994, 40
      %v2532 = vpop.permute.xlu0 %2531
      %2533 = vrot.lane.b32.xlu0 %v995, 40
      %v2534 = vpop.permute.xlu0 %2533
      %2535 = vrot.lane.b32.xlu0 %v996, 40
      %v2536 = vpop.permute.xlu0 %2535
      %2537 = vrot.lane.b32.xlu0 %v997, 40
      %v2538 = vpop.permute.xlu0 %2537
      %2539 = vrot.lane.b32.xlu0 %v998, 40
      %v2540 = vpop.permute.xlu0 %2539
      %2541 = vrot.lane.b32.xlu0 %v999, 40
      %v2542 = vpop.permute.xlu0 %2541
      %2543 = vrot.lane.b32.xlu0 %v1000, 40
      %v2544 = vpop.permute.xlu0 %2543
      %2545 = vrot.lane.b32.xlu0 %v1001, 40
      %v2546 = vpop.permute.xlu0 %2545
      %2547 = vrot.lane.b32.xlu0 %v1002, 40
      %v2548 = vpop.permute.xlu0 %2547
      %2549 = vrot.lane.b32.xlu0 %v1003, 40
      %v2550 = vpop.permute.xlu0 %2549
      %2551 = vrot.lane.b32.xlu0 %v1004, 40
      %v2552 = vpop.permute.xlu0 %2551
      %2553 = vrot.lane.b32.xlu0 %v1005, 40
      %v2554 = vpop.permute.xlu0 %2553
      %2555 = vrot.lane.b32.xlu0 %v1006, 40
      %v2556 = vpop.permute.xlu0 %2555
      %2557 = vrot.lane.b32.xlu0 %v1007, 40
      %v2558 = vpop.permute.xlu0 %2557
      %2559 = vrot.lane.b32.xlu0 %v1008, 40
      %v2560 = vpop.permute.xlu0 %2559
      %2561 = vrot.lane.b32.xlu0 %v1009, 40
      %v2562 = vpop.permute.xlu0 %2561
      %2563 = vrot.lane.b32.xlu0 %v1010, 40
      %v2564 = vpop.permute.xlu0 %2563
      %2565 = vrot.lane.b32.xlu0 %v1011, 40
      %v2566 = vpop.permute.xlu0 %2565
      %2567 = vrot.lane.b32.xlu0 %v1012, 40
      %v2568 = vpop.permute.xlu0 %2567
      %2569 = vrot.lane.b32.xlu0 %v1013, 40
      %v2570 = vpop.permute.xlu0 %2569
      %2571 = vrot.lane.b32.xlu0 %v1014, 40
      %v2572 = vpop.permute.xlu0 %2571
      %2573 = vrot.lane.b32.xlu0 %v1015, 40
      %v2574 = vpop.permute.xlu0 %2573
      %2575 = vrot.lane.b32.xlu0 %v1016, 40
      %v2576 = vpop.permute.xlu0 %2575
      %2577 = vrot.lane.b32.xlu0 %v1017, 40
      %v2578 = vpop.permute.xlu0 %2577
      %2579 = vrot.lane.b32.xlu0 %v1018, 40
      %v2580 = vpop.permute.xlu0 %2579
      %2581 = vrot.lane.b32.xlu0 %v1019, 40
      %v2582 = vpop.permute.xlu0 %2581
      %2583 = vrot.lane.b32.xlu0 %v1020, 40
      %v2584 = vpop.permute.xlu0 %2583
      %2585 = vrot.lane.b32.xlu0 %v1021, 40
      %v2586 = vpop.permute.xlu0 %2585
      %2587 = vrot.lane.b32.xlu0 %v1022, 40
      %v2588 = vpop.permute.xlu0 %2587
      %2589 = vrot.lane.b32.xlu0 %v1023, 40
      %v2590 = vpop.permute.xlu0 %2589
      %2591 = vrot.lane.b32.xlu0 %v1024, 40
      %v2592 = vpop.permute.xlu0 %2591
      %2593 = vrot.lane.b32.xlu0 %v1025, 40
      %v2594 = vpop.permute.xlu0 %2593
      %2595 = vrot.lane.b32.xlu0 %v1026, 40
      %v2596 = vpop.permute.xlu0 %2595
      %2597 = vrot.lane.b32.xlu0 %v1027, 40
      %v2598 = vpop.permute.xlu0 %2597
      %2663 = vrot.lane.b32.xlu0 %v1092, 48
      %v2664 = vpop.permute.xlu0 %2663
      %2665 = vrot.lane.b32.xlu0 %v1093, 48
      %v2666 = vpop.permute.xlu0 %2665
      %2667 = vrot.lane.b32.xlu0 %v1094, 48
      %v2668 = vpop.permute.xlu0 %2667
      %2669 = vrot.lane.b32.xlu0 %v1095, 48
      %v2670 = vpop.permute.xlu0 %2669
      %2671 = vrot.lane.b32.xlu0 %v1096, 48
      %v2672 = vpop.permute.xlu0 %2671
      %2673 = vrot.lane.b32.xlu0 %v1097, 48
      %v2674 = vpop.permute.xlu0 %2673
      %2675 = vrot.lane.b32.xlu0 %v1098, 48
      %v2676 = vpop.permute.xlu0 %2675
      %2677 = vrot.lane.b32.xlu0 %v1099, 48
      %v2678 = vpop.permute.xlu0 %2677
      %2679 = vrot.lane.b32.xlu0 %v1100, 48
      %v2680 = vpop.permute.xlu0 %2679
      %2681 = vrot.lane.b32.xlu0 %v1101, 48
      %v2682 = vpop.permute.xlu0 %2681
      %2683 = vrot.lane.b32.xlu0 %v1102, 48
      %v2684 = vpop.permute.xlu0 %2683
      %2685 = vrot.lane.b32.xlu0 %v1103, 48
      %v2686 = vpop.permute.xlu0 %2685
      %2687 = vrot.lane.b32.xlu0 %v1104, 48
      %v2688 = vpop.permute.xlu0 %2687
      %2689 = vrot.lane.b32.xlu0 %v1105, 48
      %v2690 = vpop.permute.xlu0 %2689
      %2691 = vrot.lane.b32.xlu0 %v1106, 48
      %v2692 = vpop.permute.xlu0 %2691
      %2693 = vrot.lane.b32.xlu0 %v1107, 48
      %v2694 = vpop.permute.xlu0 %2693
      %2695 = vrot.lane.b32.xlu0 %v1108, 48
      %v2696 = vpop.permute.xlu0 %2695
      %2697 = vrot.lane.b32.xlu0 %v1109, 48
      %v2698 = vpop.permute.xlu0 %2697
      %2699 = vrot.lane.b32.xlu0 %v1110, 48
      %v2700 = vpop.permute.xlu0 %2699
      %2701 = vrot.lane.b32.xlu0 %v1111, 48
      %v2702 = vpop.permute.xlu0 %2701
      %2703 = vrot.lane.b32.xlu0 %v1112, 48
      %v2704 = vpop.permute.xlu0 %2703
      %2705 = vrot.lane.b32.xlu0 %v1113, 48
      %v2706 = vpop.permute.xlu0 %2705
      %2707 = vrot.lane.b32.xlu0 %v1114, 48
      %v2708 = vpop.permute.xlu0 %2707
      %2709 = vrot.lane.b32.xlu0 %v1115, 48
      %v2710 = vpop.permute.xlu0 %2709
      %2711 = vrot.lane.b32.xlu0 %v1116, 48
      %v2712 = vpop.permute.xlu0 %2711
      %2713 = vrot.lane.b32.xlu0 %v1117, 48
      %v2714 = vpop.permute.xlu0 %2713
      %2715 = vrot.lane.b32.xlu0 %v1118, 48
      %v2716 = vpop.permute.xlu0 %2715
      %2717 = vrot.lane.b32.xlu0 %v1119, 48
      %v2718 = vpop.permute.xlu0 %2717
      %2719 = vrot.lane.b32.xlu0 %v1120, 48
      %v2720 = vpop.permute.xlu0 %2719
      %2721 = vrot.lane.b32.xlu0 %v1121, 48
      %v2722 = vpop.permute.xlu0 %2721
      %2723 = vrot.lane.b32.xlu0 %v1122, 48
      %v2724 = vpop.permute.xlu0 %2723
      %2725 = vrot.lane.b32.xlu0 %v1123, 48
      %v2726 = vpop.permute.xlu0 %2725
      %2727 = vrot.lane.b32.xlu0 %v1124, 48
      %v2728 = vpop.permute.xlu0 %2727
      %2729 = vrot.lane.b32.xlu0 %v1125, 48
      %v2730 = vpop.permute.xlu0 %2729
      %2731 = vrot.lane.b32.xlu0 %v1126, 48
      %v2732 = vpop.permute.xlu0 %2731
      %2733 = vrot.lane.b32.xlu0 %v1127, 48
      %v2734 = vpop.permute.xlu0 %2733
      %2735 = vrot.lane.b32.xlu0 %v1128, 48
      %v2736 = vpop.permute.xlu0 %2735
      %2737 = vrot.lane.b32.xlu0 %v1129, 48
      %v2738 = vpop.permute.xlu0 %2737
      %2739 = vrot.lane.b32.xlu0 %v1130, 48
      %v2740 = vpop.permute.xlu0 %2739
      %2741 = vrot.lane.b32.xlu0 %v1131, 48
      %v2742 = vpop.permute.xlu0 %2741
      %2743 = vrot.lane.b32.xlu0 %v1132, 48
      %v2744 = vpop.permute.xlu0 %2743
      %2745 = vrot.lane.b32.xlu0 %v1133, 48
      %v2746 = vpop.permute.xlu0 %2745
      %2747 = vrot.lane.b32.xlu0 %v1134, 48
      %v2748 = vpop.permute.xlu0 %2747
      %2749 = vrot.lane.b32.xlu0 %v1135, 48
      %v2750 = vpop.permute.xlu0 %2749
      %2751 = vrot.lane.b32.xlu0 %v1136, 48
      %v2752 = vpop.permute.xlu0 %2751
      %2753 = vrot.lane.b32.xlu0 %v1137, 48
      %v2754 = vpop.permute.xlu0 %2753
      %2755 = vrot.lane.b32.xlu0 %v1138, 48
      %v2756 = vpop.permute.xlu0 %2755
      %2757 = vrot.lane.b32.xlu0 %v1139, 48
      %v2758 = vpop.permute.xlu0 %2757
      %2759 = vrot.lane.b32.xlu0 %v1140, 48
      %v2760 = vpop.permute.xlu0 %2759
      %2761 = vrot.lane.b32.xlu0 %v1141, 48
      %v2762 = vpop.permute.xlu0 %2761
      %2763 = vrot.lane.b32.xlu0 %v1142, 48
      %v2764 = vpop.permute.xlu0 %2763
      %2765 = vrot.lane.b32.xlu0 %v1143, 48
      %v2766 = vpop.permute.xlu0 %2765
      %2767 = vrot.lane.b32.xlu0 %v1144, 48
      %v2768 = vpop.permute.xlu0 %2767
      %2769 = vrot.lane.b32.xlu0 %v1145, 48
      %v2770 = vpop.permute.xlu0 %2769
      %2771 = vrot.lane.b32.xlu0 %v1146, 48
      %v2772 = vpop.permute.xlu0 %2771
      %2773 = vrot.lane.b32.xlu0 %v1147, 48
      %v2774 = vpop.permute.xlu0 %2773
      %2775 = vrot.lane.b32.xlu0 %v1148, 48
      %v2776 = vpop.permute.xlu0 %2775
      %2777 = vrot.lane.b32.xlu0 %v1149, 48
      %v2778 = vpop.permute.xlu0 %2777
      %2779 = vrot.lane.b32.xlu0 %v1150, 48
      %v2780 = vpop.permute.xlu0 %2779
      %2781 = vrot.lane.b32.xlu0 %v1151, 48
      %v2782 = vpop.permute.xlu0 %2781
      %2783 = vrot.lane.b32.xlu0 %v1152, 48
      %v2784 = vpop.permute.xlu0 %2783
      %2785 = vrot.lane.b32.xlu0 %v1153, 48
      %v2786 = vpop.permute.xlu0 %2785
      %2787 = vrot.lane.b32.xlu0 %v1154, 48
      %v2788 = vpop.permute.xlu0 %2787
      %2789 = vrot.lane.b32.xlu0 %v1155, 48
      %v2790 = vpop.permute.xlu0 %2789
      %2856 = vrot.lane.b32.xlu0 %v1490, 56
      %v2857 = vpop.permute.xlu0 %2856
      %2858 = vrot.lane.b32.xlu0 %v1616, 56
      %v2859 = vpop.permute.xlu0 %2858
      %2860 = vrot.lane.b32.xlu0 %v1493, 56
      %v2861 = vpop.permute.xlu0 %2860
      %2862 = vrot.lane.b32.xlu0 %v1617, 56
      %v2863 = vpop.permute.xlu0 %2862
      %2864 = vrot.lane.b32.xlu0 %v1496, 56
      %v2865 = vpop.permute.xlu0 %2864
      %2866 = vrot.lane.b32.xlu0 %v1618, 56
      %v2867 = vpop.permute.xlu0 %2866
      %2868 = vrot.lane.b32.xlu0 %v1499, 56
      %v2869 = vpop.permute.xlu0 %2868
      %2870 = vrot.lane.b32.xlu0 %v1619, 56
      %v2871 = vpop.permute.xlu0 %2870
      %2872 = vrot.lane.b32.xlu0 %v1502, 56
      %v2873 = vpop.permute.xlu0 %2872
      %2874 = vrot.lane.b32.xlu0 %v1620, 56
      %v2875 = vpop.permute.xlu0 %2874
      %2876 = vrot.lane.b32.xlu0 %v1505, 56
      %v2877 = vpop.permute.xlu0 %2876
      %2878 = vrot.lane.b32.xlu0 %v1621, 56
      %v2879 = vpop.permute.xlu0 %2878
      %2880 = vrot.lane.b32.xlu0 %v1508, 56
      %v2881 = vpop.permute.xlu0 %2880
      %2882 = vrot.lane.b32.xlu0 %v1622, 56
      %v2883 = vpop.permute.xlu0 %2882
      %2884 = vrot.lane.b32.xlu0 %v1511, 56
      %v2885 = vpop.permute.xlu0 %2884
      %2886 = vrot.lane.b32.xlu0 %v1623, 56
      %v2887 = vpop.permute.xlu0 %2886
      %2888 = vrot.lane.b32.xlu0 %v1514, 56
      %v2889 = vpop.permute.xlu0 %2888
      %2890 = vrot.lane.b32.xlu0 %v1624, 56
      %v2891 = vpop.permute.xlu0 %2890
      %2892 = vrot.lane.b32.xlu0 %v1517, 56
      %v2893 = vpop.permute.xlu0 %2892
      %2894 = vrot.lane.b32.xlu0 %v1625, 56
      %v2895 = vpop.permute.xlu0 %2894
      %2896 = vrot.lane.b32.xlu0 %v1520, 56
      %v2897 = vpop.permute.xlu0 %2896
      %2898 = vrot.lane.b32.xlu0 %v1626, 56
      %v2899 = vpop.permute.xlu0 %2898
      %2900 = vrot.lane.b32.xlu0 %v1523, 56
      %v2901 = vpop.permute.xlu0 %2900
      %2902 = vrot.lane.b32.xlu0 %v1627, 56
      %v2903 = vpop.permute.xlu0 %2902
      %2904 = vrot.lane.b32.xlu0 %v1526, 56
      %v2905 = vpop.permute.xlu0 %2904
      %2906 = vrot.lane.b32.xlu0 %v1628, 56
      %v2907 = vpop.permute.xlu0 %2906
      %2908 = vrot.lane.b32.xlu0 %v1529, 56
      %v2909 = vpop.permute.xlu0 %2908
      %2910 = vrot.lane.b32.xlu0 %v1629, 56
      %v2911 = vpop.permute.xlu0 %2910
      %2912 = vrot.lane.b32.xlu0 %v1532, 56
      %v2913 = vpop.permute.xlu0 %2912
      %2914 = vrot.lane.b32.xlu0 %v1630, 56
      %v2915 = vpop.permute.xlu0 %2914
      %2916 = vrot.lane.b32.xlu0 %v1535, 56
      %v2917 = vpop.permute.xlu0 %2916
      %2918 = vrot.lane.b32.xlu0 %v1631, 56
      %v2919 = vpop.permute.xlu0 %2918
      %2920 = vrot.lane.b32.xlu0 %v1538, 56
      %v2921 = vpop.permute.xlu0 %2920
      %2922 = vrot.lane.b32.xlu0 %v1632, 56
      %v2923 = vpop.permute.xlu0 %2922
      %2924 = vrot.lane.b32.xlu0 %v1541, 56
      %v2925 = vpop.permute.xlu0 %2924
      %2926 = vrot.lane.b32.xlu0 %v1633, 56
      %v2927 = vpop.permute.xlu0 %2926
      %2928 = vrot.lane.b32.xlu0 %v1544, 56
      %v2929 = vpop.permute.xlu0 %2928
      %2930 = vrot.lane.b32.xlu0 %v1634, 56
      %v2931 = vpop.permute.xlu0 %2930
      %2932 = vrot.lane.b32.xlu0 %v1547, 56
      %v2933 = vpop.permute.xlu0 %2932
      %2934 = vrot.lane.b32.xlu0 %v1635, 56
      %v2935 = vpop.permute.xlu0 %2934
      %2936 = vrot.lane.b32.xlu0 %v1550, 56
      %v2937 = vpop.permute.xlu0 %2936
      %2938 = vrot.lane.b32.xlu0 %v1636, 56
      %v2939 = vpop.permute.xlu0 %2938
      %2940 = vrot.lane.b32.xlu0 %v1553, 56
      %v2941 = vpop.permute.xlu0 %2940
      %2942 = vrot.lane.b32.xlu0 %v1637, 56
      %v2943 = vpop.permute.xlu0 %2942
      %2944 = vrot.lane.b32.xlu0 %v1556, 56
      %v2945 = vpop.permute.xlu0 %2944
      %2946 = vrot.lane.b32.xlu0 %v1638, 56
      %v2947 = vpop.permute.xlu0 %2946
      %2948 = vrot.lane.b32.xlu0 %v1559, 56
      %v2949 = vpop.permute.xlu0 %2948
      %2950 = vrot.lane.b32.xlu0 %v1639, 56
      %v2951 = vpop.permute.xlu0 %2950
      %2952 = vrot.lane.b32.xlu0 %v1562, 56
      %v2953 = vpop.permute.xlu0 %2952
      %2954 = vrot.lane.b32.xlu0 %v1640, 56
      %v2955 = vpop.permute.xlu0 %2954
      %2956 = vrot.lane.b32.xlu0 %v1565, 56
      %v2957 = vpop.permute.xlu0 %2956
      %2958 = vrot.lane.b32.xlu0 %v1641, 56
      %v2959 = vpop.permute.xlu0 %2958
      %2960 = vrot.lane.b32.xlu0 %v1568, 56
      %v2961 = vpop.permute.xlu0 %2960
      %2962 = vrot.lane.b32.xlu0 %v1642, 56
      %v2963 = vpop.permute.xlu0 %2962
      %2964 = vrot.lane.b32.xlu0 %v1571, 56
      %v2965 = vpop.permute.xlu0 %2964
      %2966 = vrot.lane.b32.xlu0 %v1643, 56
      %v2967 = vpop.permute.xlu0 %2966
      %2968 = vrot.lane.b32.xlu0 %v1574, 56
      %v2969 = vpop.permute.xlu0 %2968
      %2970 = vrot.lane.b32.xlu0 %v1644, 56
      %v2971 = vpop.permute.xlu0 %2970
      %2972 = vrot.lane.b32.xlu0 %v1577, 56
      %v2973 = vpop.permute.xlu0 %2972
      %2974 = vrot.lane.b32.xlu0 %v1645, 56
      %v2975 = vpop.permute.xlu0 %2974
      %2976 = vrot.lane.b32.xlu0 %v1580, 56
      %v2977 = vpop.permute.xlu0 %2976
      %2978 = vrot.lane.b32.xlu0 %v1646, 56
      %v2979 = vpop.permute.xlu0 %2978
      %2980 = vrot.lane.b32.xlu0 %v1583, 56
      %v2981 = vpop.permute.xlu0 %2980
      %2982 = vrot.lane.b32.xlu0 %v1647, 56
      %v2983 = vpop.permute.xlu0 %2982
      %3048 = vrot.lane.b32.xlu0 %v1393, 64
      %v3049 = vpop.permute.xlu0 %3048
      %3050 = vrot.lane.b32.xlu0 %v1238, 64
      %v3051 = vpop.permute.xlu0 %3050
      %3052 = vrot.lane.b32.xlu0 %v1394, 64
      %v3053 = vpop.permute.xlu0 %3052
      %3054 = vrot.lane.b32.xlu0 %v1241, 64
      %v3055 = vpop.permute.xlu0 %3054
      %3056 = vrot.lane.b32.xlu0 %v1395, 64
      %v3057 = vpop.permute.xlu0 %3056
      %3058 = vrot.lane.b32.xlu0 %v1244, 64
      %v3059 = vpop.permute.xlu0 %3058
      %3060 = vrot.lane.b32.xlu0 %v1396, 64
      %v3061 = vpop.permute.xlu0 %3060
      %3062 = vrot.lane.b32.xlu0 %v1247, 64
      %v3063 = vpop.permute.xlu0 %3062
      %3064 = vrot.lane.b32.xlu0 %v1397, 64
      %v3065 = vpop.permute.xlu0 %3064
      %3066 = vrot.lane.b32.xlu0 %v1250, 64
      %v3067 = vpop.permute.xlu0 %3066
      %3068 = vrot.lane.b32.xlu0 %v1398, 64
      %v3069 = vpop.permute.xlu0 %3068
      %3070 = vrot.lane.b32.xlu0 %v1253, 64
      %v3071 = vpop.permute.xlu0 %3070
      %3072 = vrot.lane.b32.xlu0 %v1399, 64
      %v3073 = vpop.permute.xlu0 %3072
      %3074 = vrot.lane.b32.xlu0 %v1256, 64
      %v3075 = vpop.permute.xlu0 %3074
      %3076 = vrot.lane.b32.xlu0 %v1400, 64
      %v3077 = vpop.permute.xlu0 %3076
      %3078 = vrot.lane.b32.xlu0 %v1259, 64
      %v3079 = vpop.permute.xlu0 %3078
      %3080 = vrot.lane.b32.xlu0 %v1401, 64
      %v3081 = vpop.permute.xlu0 %3080
      %3082 = vrot.lane.b32.xlu0 %v1262, 64
      %v3083 = vpop.permute.xlu0 %3082
      %3084 = vrot.lane.b32.xlu0 %v1402, 64
      %v3085 = vpop.permute.xlu0 %3084
      %3086 = vrot.lane.b32.xlu0 %v1265, 64
      %v3087 = vpop.permute.xlu0 %3086
      %3088 = vrot.lane.b32.xlu0 %v1403, 64
      %v3089 = vpop.permute.xlu0 %3088
      %3090 = vrot.lane.b32.xlu0 %v1268, 64
      %v3091 = vpop.permute.xlu0 %3090
      %3092 = vrot.lane.b32.xlu0 %v1404, 64
      %v3093 = vpop.permute.xlu0 %3092
      %3094 = vrot.lane.b32.xlu0 %v1271, 64
      %v3095 = vpop.permute.xlu0 %3094
      %3096 = vrot.lane.b32.xlu0 %v1405, 64
      %v3097 = vpop.permute.xlu0 %3096
      %3098 = vrot.lane.b32.xlu0 %v1274, 64
      %v3099 = vpop.permute.xlu0 %3098
      %3100 = vrot.lane.b32.xlu0 %v1406, 64
      %v3101 = vpop.permute.xlu0 %3100
      %3102 = vrot.lane.b32.xlu0 %v1277, 64
      %v3103 = vpop.permute.xlu0 %3102
      %3104 = vrot.lane.b32.xlu0 %v1407, 64
      %v3105 = vpop.permute.xlu0 %3104
      %3106 = vrot.lane.b32.xlu0 %v1280, 64
      %v3107 = vpop.permute.xlu0 %3106
      %3108 = vrot.lane.b32.xlu0 %v1408, 64
      %v3109 = vpop.permute.xlu0 %3108
      %3110 = vrot.lane.b32.xlu0 %v1283, 64
      %v3111 = vpop.permute.xlu0 %3110
      %3112 = vrot.lane.b32.xlu0 %v1409, 64
      %v3113 = vpop.permute.xlu0 %3112
      %3114 = vrot.lane.b32.xlu0 %v1286, 64
      %v3115 = vpop.permute.xlu0 %3114
      %3116 = vrot.lane.b32.xlu0 %v1410, 64
      %v3117 = vpop.permute.xlu0 %3116
      %3118 = vrot.lane.b32.xlu0 %v1289, 64
      %v3119 = vpop.permute.xlu0 %3118
      %3120 = vrot.lane.b32.xlu0 %v1411, 64
      %v3121 = vpop.permute.xlu0 %3120
      %3122 = vrot.lane.b32.xlu0 %v1292, 64
      %v3123 = vpop.permute.xlu0 %3122
      %3124 = vrot.lane.b32.xlu0 %v1412, 64
      %v3125 = vpop.permute.xlu0 %3124
      %3126 = vrot.lane.b32.xlu0 %v1295, 64
      %v3127 = vpop.permute.xlu0 %3126
      %3128 = vrot.lane.b32.xlu0 %v1413, 64
      %v3129 = vpop.permute.xlu0 %3128
      %3130 = vrot.lane.b32.xlu0 %v1298, 64
      %v3131 = vpop.permute.xlu0 %3130
      %3132 = vrot.lane.b32.xlu0 %v1414, 64
      %v3133 = vpop.permute.xlu0 %3132
      %3134 = vrot.lane.b32.xlu0 %v1301, 64
      %v3135 = vpop.permute.xlu0 %3134
      %3136 = vrot.lane.b32.xlu0 %v1415, 64
      %v3137 = vpop.permute.xlu0 %3136
      %3138 = vrot.lane.b32.xlu0 %v1304, 64
      %v3139 = vpop.permute.xlu0 %3138
      %3140 = vrot.lane.b32.xlu0 %v1416, 64
      %v3141 = vpop.permute.xlu0 %3140
      %3142 = vrot.lane.b32.xlu0 %v1307, 64
      %v3143 = vpop.permute.xlu0 %3142
      %3144 = vrot.lane.b32.xlu0 %v1417, 64
      %v3145 = vpop.permute.xlu0 %3144
      %3146 = vrot.lane.b32.xlu0 %v1310, 64
      %v3147 = vpop.permute.xlu0 %3146
      %3148 = vrot.lane.b32.xlu0 %v1418, 64
      %v3149 = vpop.permute.xlu0 %3148
      %3150 = vrot.lane.b32.xlu0 %v1313, 64
      %v3151 = vpop.permute.xlu0 %3150
      %3152 = vrot.lane.b32.xlu0 %v1419, 64
      %v3153 = vpop.permute.xlu0 %3152
      %3154 = vrot.lane.b32.xlu0 %v1316, 64
      %v3155 = vpop.permute.xlu0 %3154
      %3156 = vrot.lane.b32.xlu0 %v1420, 64
      %v3157 = vpop.permute.xlu0 %3156
      %3158 = vrot.lane.b32.xlu0 %v1319, 64
      %v3159 = vpop.permute.xlu0 %3158
      %3160 = vrot.lane.b32.xlu0 %v1421, 64
      %v3161 = vpop.permute.xlu0 %3160
      %3162 = vrot.lane.b32.xlu0 %v1322, 64
      %v3163 = vpop.permute.xlu0 %3162
      %3164 = vrot.lane.b32.xlu0 %v1422, 64
      %v3165 = vpop.permute.xlu0 %3164
      %3166 = vrot.lane.b32.xlu0 %v1325, 64
      %v3167 = vpop.permute.xlu0 %3166
      %3168 = vrot.lane.b32.xlu0 %v1423, 64
      %v3169 = vpop.permute.xlu0 %3168
      %3170 = vrot.lane.b32.xlu0 %v1328, 64
      %v3171 = vpop.permute.xlu0 %3170
      %3172 = vrot.lane.b32.xlu0 0.0, 64
      %v3173 = vpop.permute.xlu0 %3172
      %3237 = vrot.lane.b32.xlu0 %v966, 72
      %v3238 = vpop.permute.xlu0 %3237
      %3239 = vrot.lane.b32.xlu0 %v967, 72
      %v3240 = vpop.permute.xlu0 %3239
      %3241 = vrot.lane.b32.xlu0 %v968, 72
      %v3242 = vpop.permute.xlu0 %3241
      %3243 = vrot.lane.b32.xlu0 %v969, 72
      %v3244 = vpop.permute.xlu0 %3243
      %3245 = vrot.lane.b32.xlu0 %v970, 72
      %v3246 = vpop.permute.xlu0 %3245
      %3247 = vrot.lane.b32.xlu0 %v971, 72
      %v3248 = vpop.permute.xlu0 %3247
      %3249 = vrot.lane.b32.xlu0 %v972, 72
      %v3250 = vpop.permute.xlu0 %3249
      %3251 = vrot.lane.b32.xlu0 %v973, 72
      %v3252 = vpop.permute.xlu0 %3251
      %3253 = vrot.lane.b32.xlu0 %v974, 72
      %v3254 = vpop.permute.xlu0 %3253
      %3255 = vrot.lane.b32.xlu0 %v975, 72
      %v3256 = vpop.permute.xlu0 %3255
      %3257 = vrot.lane.b32.xlu0 %v976, 72
      %v3258 = vpop.permute.xlu0 %3257
      %3259 = vrot.lane.b32.xlu0 %v977, 72
      %v3260 = vpop.permute.xlu0 %3259
      %3261 = vrot.lane.b32.xlu0 %v978, 72
      %v3262 = vpop.permute.xlu0 %3261
      %3263 = vrot.lane.b32.xlu0 %v979, 72
      %v3264 = vpop.permute.xlu0 %3263
      %3265 = vrot.lane.b32.xlu0 %v980, 72
      %v3266 = vpop.permute.xlu0 %3265
      %3267 = vrot.lane.b32.xlu0 %v981, 72
      %v3268 = vpop.permute.xlu0 %3267
      %3269 = vrot.lane.b32.xlu0 %v982, 72
      %v3270 = vpop.permute.xlu0 %3269
      %3271 = vrot.lane.b32.xlu0 %v983, 72
      %v3272 = vpop.permute.xlu0 %3271
      %3273 = vrot.lane.b32.xlu0 %v984, 72
      %v3274 = vpop.permute.xlu0 %3273
      %3275 = vrot.lane.b32.xlu0 %v985, 72
      %v3276 = vpop.permute.xlu0 %3275
      %3277 = vrot.lane.b32.xlu0 %v986, 72
      %v3278 = vpop.permute.xlu0 %3277
      %3279 = vrot.lane.b32.xlu0 %v987, 72
      %v3280 = vpop.permute.xlu0 %3279
      %3281 = vrot.lane.b32.xlu0 %v988, 72
      %v3282 = vpop.permute.xlu0 %3281
      %3283 = vrot.lane.b32.xlu0 %v989, 72
      %v3284 = vpop.permute.xlu0 %3283
      %3285 = vrot.lane.b32.xlu0 %v990, 72
      %v3286 = vpop.permute.xlu0 %3285
      %3287 = vrot.lane.b32.xlu0 %v991, 72
      %v3288 = vpop.permute.xlu0 %3287
      %3289 = vrot.lane.b32.xlu0 %v992, 72
      %v3290 = vpop.permute.xlu0 %3289
      %3291 = vrot.lane.b32.xlu0 %v993, 72
      %v3292 = vpop.permute.xlu0 %3291
      %3293 = vrot.lane.b32.xlu0 %v994, 72
      %v3294 = vpop.permute.xlu0 %3293
      %3295 = vrot.lane.b32.xlu0 %v995, 72
      %v3296 = vpop.permute.xlu0 %3295
      %3297 = vrot.lane.b32.xlu0 %v996, 72
      %v3298 = vpop.permute.xlu0 %3297
      %3299 = vrot.lane.b32.xlu0 %v997, 72
      %v3300 = vpop.permute.xlu0 %3299
      %3301 = vrot.lane.b32.xlu0 %v998, 72
      %v3302 = vpop.permute.xlu0 %3301
      %3303 = vrot.lane.b32.xlu0 %v999, 72
      %v3304 = vpop.permute.xlu0 %3303
      %3305 = vrot.lane.b32.xlu0 %v1000, 72
      %v3306 = vpop.permute.xlu0 %3305
      %3307 = vrot.lane.b32.xlu0 %v1001, 72
      %v3308 = vpop.permute.xlu0 %3307
      %3309 = vrot.lane.b32.xlu0 %v1002, 72
      %v3310 = vpop.permute.xlu0 %3309
      %3311 = vrot.lane.b32.xlu0 %v1003, 72
      %v3312 = vpop.permute.xlu0 %3311
      %3313 = vrot.lane.b32.xlu0 %v1004, 72
      %v3314 = vpop.permute.xlu0 %3313
      %3315 = vrot.lane.b32.xlu0 %v1005, 72
      %v3316 = vpop.permute.xlu0 %3315
      %3317 = vrot.lane.b32.xlu0 %v1006, 72
      %v3318 = vpop.permute.xlu0 %3317
      %3319 = vrot.lane.b32.xlu0 %v1007, 72
      %v3320 = vpop.permute.xlu0 %3319
      %3321 = vrot.lane.b32.xlu0 %v1008, 72
      %v3322 = vpop.permute.xlu0 %3321
      %3323 = vrot.lane.b32.xlu0 %v1009, 72
      %v3324 = vpop.permute.xlu0 %3323
      %3325 = vrot.lane.b32.xlu0 %v1010, 72
      %v3326 = vpop.permute.xlu0 %3325
      %3327 = vrot.lane.b32.xlu0 %v1011, 72
      %v3328 = vpop.permute.xlu0 %3327
      %3329 = vrot.lane.b32.xlu0 %v1012, 72
      %v3330 = vpop.permute.xlu0 %3329
      %3331 = vrot.lane.b32.xlu0 %v1013, 72
      %v3332 = vpop.permute.xlu0 %3331
      %3333 = vrot.lane.b32.xlu0 %v1014, 72
      %v3334 = vpop.permute.xlu0 %3333
      %3335 = vrot.lane.b32.xlu0 %v1015, 72
      %v3336 = vpop.permute.xlu0 %3335
      %3337 = vrot.lane.b32.xlu0 %v1016, 72
      %v3338 = vpop.permute.xlu0 %3337
      %3339 = vrot.lane.b32.xlu0 %v1017, 72
      %v3340 = vpop.permute.xlu0 %3339
      %3341 = vrot.lane.b32.xlu0 %v1018, 72
      %v3342 = vpop.permute.xlu0 %3341
      %3343 = vrot.lane.b32.xlu0 %v1019, 72
      %v3344 = vpop.permute.xlu0 %3343
      %3345 = vrot.lane.b32.xlu0 %v1020, 72
      %v3346 = vpop.permute.xlu0 %3345
      %3347 = vrot.lane.b32.xlu0 %v1021, 72
      %v3348 = vpop.permute.xlu0 %3347
      %3349 = vrot.lane.b32.xlu0 %v1022, 72
      %v3350 = vpop.permute.xlu0 %3349
      %3351 = vrot.lane.b32.xlu0 %v1023, 72
      %v3352 = vpop.permute.xlu0 %3351
      %3353 = vrot.lane.b32.xlu0 %v1024, 72
      %v3354 = vpop.permute.xlu0 %3353
      %3355 = vrot.lane.b32.xlu0 %v1025, 72
      %v3356 = vpop.permute.xlu0 %3355
      %3357 = vrot.lane.b32.xlu0 %v1026, 72
      %v3358 = vpop.permute.xlu0 %3357
      %3359 = vrot.lane.b32.xlu0 %v1027, 72
      %v3360 = vpop.permute.xlu0 %3359
      %3361 = vrot.lane.b32.xlu0 0.0, 72
      %v3362 = vpop.permute.xlu0 %3361
      %3426 = vrot.lane.b32.xlu0 %v1094, 80
      %v3427 = vpop.permute.xlu0 %3426
      %3428 = vrot.lane.b32.xlu0 %v1095, 80
      %v3429 = vpop.permute.xlu0 %3428
      %3430 = vrot.lane.b32.xlu0 %v1096, 80
      %v3431 = vpop.permute.xlu0 %3430
      %3432 = vrot.lane.b32.xlu0 %v1097, 80
      %v3433 = vpop.permute.xlu0 %3432
      %3434 = vrot.lane.b32.xlu0 %v1098, 80
      %v3435 = vpop.permute.xlu0 %3434
      %3436 = vrot.lane.b32.xlu0 %v1099, 80
      %v3437 = vpop.permute.xlu0 %3436
      %3438 = vrot.lane.b32.xlu0 %v1100, 80
      %v3439 = vpop.permute.xlu0 %3438
      %3440 = vrot.lane.b32.xlu0 %v1101, 80
      %v3441 = vpop.permute.xlu0 %3440
      %3442 = vrot.lane.b32.xlu0 %v1102, 80
      %v3443 = vpop.permute.xlu0 %3442
      %3444 = vrot.lane.b32.xlu0 %v1103, 80
      %v3445 = vpop.permute.xlu0 %3444
      %3446 = vrot.lane.b32.xlu0 %v1104, 80
      %v3447 = vpop.permute.xlu0 %3446
      %3448 = vrot.lane.b32.xlu0 %v1105, 80
      %v3449 = vpop.permute.xlu0 %3448
      %3450 = vrot.lane.b32.xlu0 %v1106, 80
      %v3451 = vpop.permute.xlu0 %3450
      %3452 = vrot.lane.b32.xlu0 %v1107, 80
      %v3453 = vpop.permute.xlu0 %3452
      %3454 = vrot.lane.b32.xlu0 %v1108, 80
      %v3455 = vpop.permute.xlu0 %3454
      %3456 = vrot.lane.b32.xlu0 %v1109, 80
      %v3457 = vpop.permute.xlu0 %3456
      %3458 = vrot.lane.b32.xlu0 %v1110, 80
      %v3459 = vpop.permute.xlu0 %3458
      %3460 = vrot.lane.b32.xlu0 %v1111, 80
      %v3461 = vpop.permute.xlu0 %3460
      %3462 = vrot.lane.b32.xlu0 %v1112, 80
      %v3463 = vpop.permute.xlu0 %3462
      %3464 = vrot.lane.b32.xlu0 %v1113, 80
      %v3465 = vpop.permute.xlu0 %3464
      %3466 = vrot.lane.b32.xlu0 %v1114, 80
      %v3467 = vpop.permute.xlu0 %3466
      %3468 = vrot.lane.b32.xlu0 %v1115, 80
      %v3469 = vpop.permute.xlu0 %3468
      %3470 = vrot.lane.b32.xlu0 %v1116, 80
      %v3471 = vpop.permute.xlu0 %3470
      %3472 = vrot.lane.b32.xlu0 %v1117, 80
      %v3473 = vpop.permute.xlu0 %3472
      %3474 = vrot.lane.b32.xlu0 %v1118, 80
      %v3475 = vpop.permute.xlu0 %3474
      %3476 = vrot.lane.b32.xlu0 %v1119, 80
      %v3477 = vpop.permute.xlu0 %3476
      %3478 = vrot.lane.b32.xlu0 %v1120, 80
      %v3479 = vpop.permute.xlu0 %3478
      %3480 = vrot.lane.b32.xlu0 %v1121, 80
      %v3481 = vpop.permute.xlu0 %3480
      %3482 = vrot.lane.b32.xlu0 %v1122, 80
      %v3483 = vpop.permute.xlu0 %3482
      %3484 = vrot.lane.b32.xlu0 %v1123, 80
      %v3485 = vpop.permute.xlu0 %3484
      %3486 = vrot.lane.b32.xlu0 %v1124, 80
      %v3487 = vpop.permute.xlu0 %3486
      %3488 = vrot.lane.b32.xlu0 %v1125, 80
      %v3489 = vpop.permute.xlu0 %3488
      %3490 = vrot.lane.b32.xlu0 %v1126, 80
      %v3491 = vpop.permute.xlu0 %3490
      %3492 = vrot.lane.b32.xlu0 %v1127, 80
      %v3493 = vpop.permute.xlu0 %3492
      %3494 = vrot.lane.b32.xlu0 %v1128, 80
      %v3495 = vpop.permute.xlu0 %3494
      %3496 = vrot.lane.b32.xlu0 %v1129, 80
      %v3497 = vpop.permute.xlu0 %3496
      %3498 = vrot.lane.b32.xlu0 %v1130, 80
      %v3499 = vpop.permute.xlu0 %3498
      %3500 = vrot.lane.b32.xlu0 %v1131, 80
      %v3501 = vpop.permute.xlu0 %3500
      %3502 = vrot.lane.b32.xlu0 %v1132, 80
      %v3503 = vpop.permute.xlu0 %3502
      %3504 = vrot.lane.b32.xlu0 %v1133, 80
      %v3505 = vpop.permute.xlu0 %3504
      %3506 = vrot.lane.b32.xlu0 %v1134, 80
      %v3507 = vpop.permute.xlu0 %3506
      %3508 = vrot.lane.b32.xlu0 %v1135, 80
      %v3509 = vpop.permute.xlu0 %3508
      %3510 = vrot.lane.b32.xlu0 %v1136, 80
      %v3511 = vpop.permute.xlu0 %3510
      %3512 = vrot.lane.b32.xlu0 %v1137, 80
      %v3513 = vpop.permute.xlu0 %3512
      %3514 = vrot.lane.b32.xlu0 %v1138, 80
      %v3515 = vpop.permute.xlu0 %3514
      %3516 = vrot.lane.b32.xlu0 %v1139, 80
      %v3517 = vpop.permute.xlu0 %3516
      %3518 = vrot.lane.b32.xlu0 %v1140, 80
      %v3519 = vpop.permute.xlu0 %3518
      %3520 = vrot.lane.b32.xlu0 %v1141, 80
      %v3521 = vpop.permute.xlu0 %3520
      %3522 = vrot.lane.b32.xlu0 %v1142, 80
      %v3523 = vpop.permute.xlu0 %3522
      %3524 = vrot.lane.b32.xlu0 %v1143, 80
      %v3525 = vpop.permute.xlu0 %3524
      %3526 = vrot.lane.b32.xlu0 %v1144, 80
      %v3527 = vpop.permute.xlu0 %3526
      %3528 = vrot.lane.b32.xlu0 %v1145, 80
      %v3529 = vpop.permute.xlu0 %3528
      %3530 = vrot.lane.b32.xlu0 %v1146, 80
      %v3531 = vpop.permute.xlu0 %3530
      %3532 = vrot.lane.b32.xlu0 %v1147, 80
      %v3533 = vpop.permute.xlu0 %3532
      %3534 = vrot.lane.b32.xlu0 %v1148, 80
      %v3535 = vpop.permute.xlu0 %3534
      %3536 = vrot.lane.b32.xlu0 %v1149, 80
      %v3537 = vpop.permute.xlu0 %3536
      %3538 = vrot.lane.b32.xlu0 %v1150, 80
      %v3539 = vpop.permute.xlu0 %3538
      %3540 = vrot.lane.b32.xlu0 %v1151, 80
      %v3541 = vpop.permute.xlu0 %3540
      %3542 = vrot.lane.b32.xlu0 %v1152, 80
      %v3543 = vpop.permute.xlu0 %3542
      %3544 = vrot.lane.b32.xlu0 %v1153, 80
      %v3545 = vpop.permute.xlu0 %3544
      %3546 = vrot.lane.b32.xlu0 %v1154, 80
      %v3547 = vpop.permute.xlu0 %3546
      %3548 = vrot.lane.b32.xlu0 %v1155, 80
      %v3549 = vpop.permute.xlu0 %3548
      %3550 = vrot.lane.b32.xlu0 0.0, 80
      %v3551 = vpop.permute.xlu0 %3550
      %3615 = vrot.lane.b32.xlu0 %v1493, 88
      %v3616 = vpop.permute.xlu0 %3615
      %3617 = vrot.lane.b32.xlu0 %v1617, 88
      %v3618 = vpop.permute.xlu0 %3617
      %3619 = vrot.lane.b32.xlu0 %v1496, 88
      %v3620 = vpop.permute.xlu0 %3619
      %3621 = vrot.lane.b32.xlu0 %v1618, 88
      %v3622 = vpop.permute.xlu0 %3621
      %3623 = vrot.lane.b32.xlu0 %v1499, 88
      %v3624 = vpop.permute.xlu0 %3623
      %3625 = vrot.lane.b32.xlu0 %v1619, 88
      %v3626 = vpop.permute.xlu0 %3625
      %3627 = vrot.lane.b32.xlu0 %v1502, 88
      %v3628 = vpop.permute.xlu0 %3627
      %3629 = vrot.lane.b32.xlu0 %v1620, 88
      %v3630 = vpop.permute.xlu0 %3629
      %3631 = vrot.lane.b32.xlu0 %v1505, 88
      %v3632 = vpop.permute.xlu0 %3631
      %3633 = vrot.lane.b32.xlu0 %v1621, 88
      %v3634 = vpop.permute.xlu0 %3633
      %3635 = vrot.lane.b32.xlu0 %v1508, 88
      %v3636 = vpop.permute.xlu0 %3635
      %3637 = vrot.lane.b32.xlu0 %v1622, 88
      %v3638 = vpop.permute.xlu0 %3637
      %3639 = vrot.lane.b32.xlu0 %v1511, 88
      %v3640 = vpop.permute.xlu0 %3639
      %3641 = vrot.lane.b32.xlu0 %v1623, 88
      %v3642 = vpop.permute.xlu0 %3641
      %3643 = vrot.lane.b32.xlu0 %v1514, 88
      %v3644 = vpop.permute.xlu0 %3643
      %3645 = vrot.lane.b32.xlu0 %v1624, 88
      %v3646 = vpop.permute.xlu0 %3645
      %3647 = vrot.lane.b32.xlu0 %v1517, 88
      %v3648 = vpop.permute.xlu0 %3647
      %3649 = vrot.lane.b32.xlu0 %v1625, 88
      %v3650 = vpop.permute.xlu0 %3649
      %3651 = vrot.lane.b32.xlu0 %v1520, 88
      %v3652 = vpop.permute.xlu0 %3651
      %3653 = vrot.lane.b32.xlu0 %v1626, 88
      %v3654 = vpop.permute.xlu0 %3653
      %3655 = vrot.lane.b32.xlu0 %v1523, 88
      %v3656 = vpop.permute.xlu0 %3655
      %3657 = vrot.lane.b32.xlu0 %v1627, 88
      %v3658 = vpop.permute.xlu0 %3657
      %3659 = vrot.lane.b32.xlu0 %v1526, 88
      %v3660 = vpop.permute.xlu0 %3659
      %3661 = vrot.lane.b32.xlu0 %v1628, 88
      %v3662 = vpop.permute.xlu0 %3661
      %3663 = vrot.lane.b32.xlu0 %v1529, 88
      %v3664 = vpop.permute.xlu0 %3663
      %3665 = vrot.lane.b32.xlu0 %v1629, 88
      %v3666 = vpop.permute.xlu0 %3665
      %3667 = vrot.lane.b32.xlu0 %v1532, 88
      %v3668 = vpop.permute.xlu0 %3667
      %3669 = vrot.lane.b32.xlu0 %v1630, 88
      %v3670 = vpop.permute.xlu0 %3669
      %3671 = vrot.lane.b32.xlu0 %v1535, 88
      %v3672 = vpop.permute.xlu0 %3671
      %3673 = vrot.lane.b32.xlu0 %v1631, 88
      %v3674 = vpop.permute.xlu0 %3673
      %3675 = vrot.lane.b32.xlu0 %v1538, 88
      %v3676 = vpop.permute.xlu0 %3675
      %3677 = vrot.lane.b32.xlu0 %v1632, 88
      %v3678 = vpop.permute.xlu0 %3677
      %3679 = vrot.lane.b32.xlu0 %v1541, 88
      %v3680 = vpop.permute.xlu0 %3679
      %3681 = vrot.lane.b32.xlu0 %v1633, 88
      %v3682 = vpop.permute.xlu0 %3681
      %3683 = vrot.lane.b32.xlu0 %v1544, 88
      %v3684 = vpop.permute.xlu0 %3683
      %3685 = vrot.lane.b32.xlu0 %v1634, 88
      %v3686 = vpop.permute.xlu0 %3685
      %3687 = vrot.lane.b32.xlu0 %v1547, 88
      %v3688 = vpop.permute.xlu0 %3687
      %3689 = vrot.lane.b32.xlu0 %v1635, 88
      %v3690 = vpop.permute.xlu0 %3689
      %3691 = vrot.lane.b32.xlu0 %v1550, 88
      %v3692 = vpop.permute.xlu0 %3691
      %3693 = vrot.lane.b32.xlu0 %v1636, 88
      %v3694 = vpop.permute.xlu0 %3693
      %3695 = vrot.lane.b32.xlu0 %v1553, 88
      %v3696 = vpop.permute.xlu0 %3695
      %3697 = vrot.lane.b32.xlu0 %v1637, 88
      %v3698 = vpop.permute.xlu0 %3697
      %3699 = vrot.lane.b32.xlu0 %v1556, 88
      %v3700 = vpop.permute.xlu0 %3699
      %3701 = vrot.lane.b32.xlu0 %v1638, 88
      %v3702 = vpop.permute.xlu0 %3701
      %3703 = vrot.lane.b32.xlu0 %v1559, 88
      %v3704 = vpop.permute.xlu0 %3703
      %3705 = vrot.lane.b32.xlu0 %v1639, 88
      %v3706 = vpop.permute.xlu0 %3705
      %3707 = vrot.lane.b32.xlu0 %v1562, 88
      %v3708 = vpop.permute.xlu0 %3707
      %3709 = vrot.lane.b32.xlu0 %v1640, 88
      %v3710 = vpop.permute.xlu0 %3709
      %3711 = vrot.lane.b32.xlu0 %v1565, 88
      %v3712 = vpop.permute.xlu0 %3711
      %3713 = vrot.lane.b32.xlu0 %v1641, 88
      %v3714 = vpop.permute.xlu0 %3713
      %3715 = vrot.lane.b32.xlu0 %v1568, 88
      %v3716 = vpop.permute.xlu0 %3715
      %3717 = vrot.lane.b32.xlu0 %v1642, 88
      %v3718 = vpop.permute.xlu0 %3717
      %3719 = vrot.lane.b32.xlu0 %v1571, 88
      %v3720 = vpop.permute.xlu0 %3719
      %3721 = vrot.lane.b32.xlu0 %v1643, 88
      %v3722 = vpop.permute.xlu0 %3721
      %3723 = vrot.lane.b32.xlu0 %v1574, 88
      %v3724 = vpop.permute.xlu0 %3723
      %3725 = vrot.lane.b32.xlu0 %v1644, 88
      %v3726 = vpop.permute.xlu0 %3725
      %3727 = vrot.lane.b32.xlu0 %v1577, 88
      %v3728 = vpop.permute.xlu0 %3727
      %3729 = vrot.lane.b32.xlu0 %v1645, 88
      %v3730 = vpop.permute.xlu0 %3729
      %3731 = vrot.lane.b32.xlu0 %v1580, 88
      %v3732 = vpop.permute.xlu0 %3731
      %3733 = vrot.lane.b32.xlu0 %v1646, 88
      %v3734 = vpop.permute.xlu0 %3733
      %3735 = vrot.lane.b32.xlu0 %v1583, 88
      %v3736 = vpop.permute.xlu0 %3735
      %3737 = vrot.lane.b32.xlu0 %v1647, 88
      %v3738 = vpop.permute.xlu0 %3737
      %3739 = vrot.lane.b32.xlu0 0.0, 88
      %v3740 = vpop.permute.xlu0 %3739
      %vm3804 = vcmask 64512
      %v3805 = vsel %vm3804, 0.0, %v1650
      %v3806 = vsel %vm3804, %v1392, %v1652
      %v3807 = vsel %vm3804, %v1235, %v1654
      %v3808 = vsel %vm3804, %v1393, %v1656
      %v3809 = vsel %vm3804, %v1238, %v1658
      %v3810 = vsel %vm3804, %v1394, %v1660
      %v3811 = vsel %vm3804, %v1241, %v1662
      %v3812 = vsel %vm3804, %v1395, %v1664
      %v3813 = vsel %vm3804, %v1244, %v1666
      %v3814 = vsel %vm3804, %v1396, %v1668
      %v3815 = vsel %vm3804, %v1247, %v1670
      %v3816 = vsel %vm3804, %v1397, %v1672
      %v3817 = vsel %vm3804, %v1250, %v1674
      %v3818 = vsel %vm3804, %v1398, %v1676
      %v3819 = vsel %vm3804, %v1253, %v1678
      %v3820 = vsel %vm3804, %v1399, %v1680
      %v3821 = vsel %vm3804, %v1256, %v1682
      %v3822 = vsel %vm3804, %v1400, %v1684
      %v3823 = vsel %vm3804, %v1259, %v1686
      %v3824 = vsel %vm3804, %v1401, %v1688
      %v3825 = vsel %vm3804, %v1262, %v1690
      %v3826 = vsel %vm3804, %v1402, %v1692
      %v3827 = vsel %vm3804, %v1265, %v1694
      %v3828 = vsel %vm3804, %v1403, %v1696
      %v3829 = vsel %vm3804, %v1268, %v1698
      %v3830 = vsel %vm3804, %v1404, %v1700
      %v3831 = vsel %vm3804, %v1271, %v1702
      %v3832 = vsel %vm3804, %v1405, %v1704
      %v3833 = vsel %vm3804, %v1274, %v1706
      %v3834 = vsel %vm3804, %v1406, %v1708
      %v3835 = vsel %vm3804, %v1277, %v1710
      %v3836 = vsel %vm3804, %v1407, %v1712
      %v3837 = vsel %vm3804, %v1280, %v1714
      %v3838 = vsel %vm3804, %v1408, %v1716
      %v3839 = vsel %vm3804, %v1283, %v1718
      %v3840 = vsel %vm3804, %v1409, %v1720
      %v3841 = vsel %vm3804, %v1286, %v1722
      %v3842 = vsel %vm3804, %v1410, %v1724
      %v3843 = vsel %vm3804, %v1289, %v1726
      %v3844 = vsel %vm3804, %v1411, %v1728
      %v3845 = vsel %vm3804, %v1292, %v1730
      %v3846 = vsel %vm3804, %v1412, %v1732
      %v3847 = vsel %vm3804, %v1295, %v1734
      %v3848 = vsel %vm3804, %v1413, %v1736
      %v3849 = vsel %vm3804, %v1298, %v1738
      %v3850 = vsel %vm3804, %v1414, %v1740
      %v3851 = vsel %vm3804, %v1301, %v1742
      %v3852 = vsel %vm3804, %v1415, %v1744
      %v3853 = vsel %vm3804, %v1304, %v1746
      %v3854 = vsel %vm3804, %v1416, %v1748
      %v3855 = vsel %vm3804, %v1307, %v1750
      %v3856 = vsel %vm3804, %v1417, %v1752
      %v3857 = vsel %vm3804, %v1310, %v1754
      %v3858 = vsel %vm3804, %v1418, %v1756
      %v3859 = vsel %vm3804, %v1313, %v1758
      %v3860 = vsel %vm3804, %v1419, %v1760
      %v3861 = vsel %vm3804, %v1316, %v1762
      %v3862 = vsel %vm3804, %v1420, %v1764
      %v3863 = vsel %vm3804, %v1319, %v1766
      %v3864 = vsel %vm3804, %v1421, %v1768
      %v3865 = vsel %vm3804, %v1322, %v1770
      %v3866 = vsel %vm3804, %v1422, %v1772
      %v3867 = vsel %vm3804, %v1325, %v1774
      %vm3868 = vcmask 130048
      %v3869 = vsel %vm3868, %v3805, %v1839
      %v3870 = vsel %vm3868, %v3806, %v1841
      %v3871 = vsel %vm3868, %v3807, %v1843
      %v3872 = vsel %vm3868, %v3808, %v1845
      %v3873 = vsel %vm3868, %v3809, %v1847
      %v3874 = vsel %vm3868, %v3810, %v1849
      %v3875 = vsel %vm3868, %v3811, %v1851
      %v3876 = vsel %vm3868, %v3812, %v1853
      %v3877 = vsel %vm3868, %v3813, %v1855
      %v3878 = vsel %vm3868, %v3814, %v1857
      %v3879 = vsel %vm3868, %v3815, %v1859
      %v3880 = vsel %vm3868, %v3816, %v1861
      %v3881 = vsel %vm3868, %v3817, %v1863
      %v3882 = vsel %vm3868, %v3818, %v1865
      %v3883 = vsel %vm3868, %v3819, %v1867
      %v3884 = vsel %vm3868, %v3820, %v1869
      %v3885 = vsel %vm3868, %v3821, %v1871
      %v3886 = vsel %vm3868, %v3822, %v1873
      %v3887 = vsel %vm3868, %v3823, %v1875
      %v3888 = vsel %vm3868, %v3824, %v1877
      %v3889 = vsel %vm3868, %v3825, %v1879
      %v3890 = vsel %vm3868, %v3826, %v1881
      %v3891 = vsel %vm3868, %v3827, %v1883
      %v3892 = vsel %vm3868, %v3828, %v1885
      %v3893 = vsel %vm3868, %v3829, %v1887
      %v3894 = vsel %vm3868, %v3830, %v1889
      %v3895 = vsel %vm3868, %v3831, %v1891
      %v3896 = vsel %vm3868, %v3832, %v1893
      %v3897 = vsel %vm3868, %v3833, %v1895
      %v3898 = vsel %vm3868, %v3834, %v1897
      %v3899 = vsel %vm3868, %v3835, %v1899
      %v3900 = vsel %vm3868, %v3836, %v1901
      %v3901 = vsel %vm3868, %v3837, %v1903
      %v3902 = vsel %vm3868, %v3838, %v1905
      %v3903 = vsel %vm3868, %v3839, %v1907
      %v3904 = vsel %vm3868, %v3840, %v1909
      %v3905 = vsel %vm3868, %v3841, %v1911
      %v3906 = vsel %vm3868, %v3842, %v1913
      %v3907 = vsel %vm3868, %v3843, %v1915
      %v3908 = vsel %vm3868, %v3844, %v1917
      %v3909 = vsel %vm3868, %v3845, %v1919
      %v3910 = vsel %vm3868, %v3846, %v1921
      %v3911 = vsel %vm3868, %v3847, %v1923
      %v3912 = vsel %vm3868, %v3848, %v1925
      %v3913 = vsel %vm3868, %v3849, %v1927
      %v3914 = vsel %vm3868, %v3850, %v1929
      %v3915 = vsel %vm3868, %v3851, %v1931
      %v3916 = vsel %vm3868, %v3852, %v1933
      %v3917 = vsel %vm3868, %v3853, %v1935
      %v3918 = vsel %vm3868, %v3854, %v1937
      %v3919 = vsel %vm3868, %v3855, %v1939
      %v3920 = vsel %vm3868, %v3856, %v1941
      %v3921 = vsel %vm3868, %v3857, %v1943
      %v3922 = vsel %vm3868, %v3858, %v1945
      %v3923 = vsel %vm3868, %v3859, %v1947
      %v3924 = vsel %vm3868, %v3860, %v1949
      %v3925 = vsel %vm3868, %v3861, %v1951
      %v3926 = vsel %vm3868, %v3862, %v1953
      %v3927 = vsel %vm3868, %v3863, %v1955
      %v3928 = vsel %vm3868, %v3864, %v1957
      %v3929 = vsel %vm3868, %v3865, %v1959
      %v3930 = vsel %vm3868, %v3866, %v1961
      %v3931 = vsel %vm3868, %v3867, %v1963
      %vm3932 = vcmask 195584
      %v3933 = vsel %vm3932, %v3869, %v2059
      %v3934 = vsel %vm3932, %v3870, %v2061
      %v3935 = vsel %vm3932, %v3871, %v2063
      %v3936 = vsel %vm3932, %v3872, %v2065
      %v3937 = vsel %vm3932, %v3873, %v2067
      %v3938 = vsel %vm3932, %v3874, %v2069
      %v3939 = vsel %vm3932, %v3875, %v2071
      %v3940 = vsel %vm3932, %v3876, %v2073
      %v3941 = vsel %vm3932, %v3877, %v2075
      %v3942 = vsel %vm3932, %v3878, %v2077
      %v3943 = vsel %vm3932, %v3879, %v2079
      %v3944 = vsel %vm3932, %v3880, %v2081
      %v3945 = vsel %vm3932, %v3881, %v2083
      %v3946 = vsel %vm3932, %v3882, %v2085
      %v3947 = vsel %vm3932, %v3883, %v2087
      %v3948 = vsel %vm3932, %v3884, %v2089
      %v3949 = vsel %vm3932, %v3885, %v2091
      %v3950 = vsel %vm3932, %v3886, %v2093
      %v3951 = vsel %vm3932, %v3887, %v2095
      %v3952 = vsel %vm3932, %v3888, %v2097
      %v3953 = vsel %vm3932, %v3889, %v2099
      %v3954 = vsel %vm3932, %v3890, %v2101
      %v3955 = vsel %vm3932, %v3891, %v2103
      %v3956 = vsel %vm3932, %v3892, %v2105
      %v3957 = vsel %vm3932, %v3893, %v2107
      %v3958 = vsel %vm3932, %v3894, %v2109
      %v3959 = vsel %vm3932, %v3895, %v2111
      %v3960 = vsel %vm3932, %v3896, %v2113
      %v3961 = vsel %vm3932, %v3897, %v2115
      %v3962 = vsel %vm3932, %v3898, %v2117
      %v3963 = vsel %vm3932, %v3899, %v2119
      %v3964 = vsel %vm3932, %v3900, %v2121
      %v3965 = vsel %vm3932, %v3901, %v2123
      %v3966 = vsel %vm3932, %v3902, %v2125
      %v3967 = vsel %vm3932, %v3903, %v2127
      %v3968 = vsel %vm3932, %v3904, %v2129
      %v3969 = vsel %vm3932, %v3905, %v2131
      %v3970 = vsel %vm3932, %v3906, %v2133
      %v3971 = vsel %vm3932, %v3907, %v2135
      %v3972 = vsel %vm3932, %v3908, %v2137
      %v3973 = vsel %vm3932, %v3909, %v2139
      %v3974 = vsel %vm3932, %v3910, %v2141
      %v3975 = vsel %vm3932, %v3911, %v2143
      %v3976 = vsel %vm3932, %v3912, %v2145
      %v3977 = vsel %vm3932, %v3913, %v2147
      %v3978 = vsel %vm3932, %v3914, %v2149
      %v3979 = vsel %vm3932, %v3915, %v2151
      %v3980 = vsel %vm3932, %v3916, %v2153
      %v3981 = vsel %vm3932, %v3917, %v2155
      %v3982 = vsel %vm3932, %v3918, %v2157
      %v3983 = vsel %vm3932, %v3919, %v2159
      %v3984 = vsel %vm3932, %v3920, %v2161
      %v3985 = vsel %vm3932, %v3921, %v2163
      %v3986 = vsel %vm3932, %v3922, %v2165
      %v3987 = vsel %vm3932, %v3923, %v2167
      %v3988 = vsel %vm3932, %v3924, %v2169
      %v3989 = vsel %vm3932, %v3925, %v2171
      %v3990 = vsel %vm3932, %v3926, %v2173
      %v3991 = vsel %vm3932, %v3927, %v2175
      %v3992 = vsel %vm3932, %v3928, %v2177
      %v3993 = vsel %vm3932, %v3929, %v2179
      %v3994 = vsel %vm3932, %v3930, %v2181
      %v3995 = vsel %vm3932, %v3931, %v2183
      %vm3996 = vcmask 261120
      %v3997 = vsel %vm3996, %v3933, %v2280
      %v3998 = vsel %vm3996, %v3933, %v2282
      %v3999 = vsel %vm3996, %v3934, %v2284
      %v4000 = vsel %vm3996, %v3935, %v2286
      %v4001 = vsel %vm3996, %v3936, %v2288
      %v4002 = vsel %vm3996, %v3937, %v2290
      %v4003 = vsel %vm3996, %v3938, %v2292
      %v4004 = vsel %vm3996, %v3939, %v2294
      %v4005 = vsel %vm3996, %v3940, %v2296
      %v4006 = vsel %vm3996, %v3941, %v2298
      %v4007 = vsel %vm3996, %v3942, %v2300
      %v4008 = vsel %vm3996, %v3943, %v2302
      %v4009 = vsel %vm3996, %v3944, %v2304
      %v4010 = vsel %vm3996, %v3945, %v2306
      %v4011 = vsel %vm3996, %v3946, %v2308
      %v4012 = vsel %vm3996, %v3947, %v2310
      %v4013 = vsel %vm3996, %v3948, %v2312
      %v4014 = vsel %vm3996, %v3949, %v2314
      %v4015 = vsel %vm3996, %v3950, %v2316
      %v4016 = vsel %vm3996, %v3951, %v2318
      %v4017 = vsel %vm3996, %v3952, %v2320
      %v4018 = vsel %vm3996, %v3953, %v2322
      %v4019 = vsel %vm3996, %v3954, %v2324
      %v4020 = vsel %vm3996, %v3955, %v2326
      %v4021 = vsel %vm3996, %v3956, %v2328
      %v4022 = vsel %vm3996, %v3957, %v2330
      %v4023 = vsel %vm3996, %v3958, %v2332
      %v4024 = vsel %vm3996, %v3959, %v2334
      %v4025 = vsel %vm3996, %v3960, %v2336
      %v4026 = vsel %vm3996, %v3961, %v2338
      %v4027 = vsel %vm3996, %v3962, %v2340
      %v4028 = vsel %vm3996, %v3963, %v2342
      %v4029 = vsel %vm3996, %v3964, %v2344
      %v4030 = vsel %vm3996, %v3965, %v2346
      %v4031 = vsel %vm3996, %v3966, %v2348
      %v4032 = vsel %vm3996, %v3967, %v2350
      %v4033 = vsel %vm3996, %v3968, %v2352
      %v4034 = vsel %vm3996, %v3969, %v2354
      %v4035 = vsel %vm3996, %v3970, %v2356
      %v4036 = vsel %vm3996, %v3971, %v2358
      %v4037 = vsel %vm3996, %v3972, %v2360
      %v4038 = vsel %vm3996, %v3973, %v2362
      %v4039 = vsel %vm3996, %v3974, %v2364
      %v4040 = vsel %vm3996, %v3975, %v2366
      %v4041 = vsel %vm3996, %v3976, %v2368
      %v4042 = vsel %vm3996, %v3977, %v2370
      %v4043 = vsel %vm3996, %v3978, %v2372
      %v4044 = vsel %vm3996, %v3979, %v2374
      %v4045 = vsel %vm3996, %v3980, %v2376
      %v4046 = vsel %vm3996, %v3981, %v2378
      %v4047 = vsel %vm3996, %v3982, %v2380
      %v4048 = vsel %vm3996, %v3983, %v2382
      %v4049 = vsel %vm3996, %v3984, %v2384
      %v4050 = vsel %vm3996, %v3985, %v2386
      %v4051 = vsel %vm3996, %v3986, %v2388
      %v4052 = vsel %vm3996, %v3987, %v2390
      %v4053 = vsel %vm3996, %v3988, %v2392
      %v4054 = vsel %vm3996, %v3989, %v2394
      %v4055 = vsel %vm3996, %v3990, %v2396
      %v4056 = vsel %vm3996, %v3991, %v2398
      %v4057 = vsel %vm3996, %v3992, %v2400
      %v4058 = vsel %vm3996, %v3993, %v2402
      %v4059 = vsel %vm3996, %v3994, %v2404
      %v4060 = vsel %vm3996, %v3995, %v2406
      %vm4061 = vcmask 326656
      %v4062 = vsel %vm4061, %v3997, %v2472
      %v4063 = vsel %vm4061, %v3998, %v2474
      %v4064 = vsel %vm4061, %v3999, %v2476
      %v4065 = vsel %vm4061, %v4000, %v2478
      %v4066 = vsel %vm4061, %v4001, %v2480
      %v4067 = vsel %vm4061, %v4002, %v2482
      %v4068 = vsel %vm4061, %v4003, %v2484
      %v4069 = vsel %vm4061, %v4004, %v2486
      %v4070 = vsel %vm4061, %v4005, %v2488
      %v4071 = vsel %vm4061, %v4006, %v2490
      %v4072 = vsel %vm4061, %v4007, %v2492
      %v4073 = vsel %vm4061, %v4008, %v2494
      %v4074 = vsel %vm4061, %v4009, %v2496
      %v4075 = vsel %vm4061, %v4010, %v2498
      %v4076 = vsel %vm4061, %v4011, %v2500
      %v4077 = vsel %vm4061, %v4012, %v2502
      %v4078 = vsel %vm4061, %v4013, %v2504
      %v4079 = vsel %vm4061, %v4014, %v2506
      %v4080 = vsel %vm4061, %v4015, %v2508
      %v4081 = vsel %vm4061, %v4016, %v2510
      %v4082 = vsel %vm4061, %v4017, %v2512
      %v4083 = vsel %vm4061, %v4018, %v2514
      %v4084 = vsel %vm4061, %v4019, %v2516
      %v4085 = vsel %vm4061, %v4020, %v2518
      %v4086 = vsel %vm4061, %v4021, %v2520
      %v4087 = vsel %vm4061, %v4022, %v2522
      %v4088 = vsel %vm4061, %v4023, %v2524
      %v4089 = vsel %vm4061, %v4024, %v2526
      %v4090 = vsel %vm4061, %v4025, %v2528
      %v4091 = vsel %vm4061, %v4026, %v2530
      %v4092 = vsel %vm4061, %v4027, %v2532
      %v4093 = vsel %vm4061, %v4028, %v2534
      %v4094 = vsel %vm4061, %v4029, %v2536
      %v4095 = vsel %vm4061, %v4030, %v2538
      %v4096 = vsel %vm4061, %v4031, %v2540
      %v4097 = vsel %vm4061, %v4032, %v2542
      %v4098 = vsel %vm4061, %v4033, %v2544
      %v4099 = vsel %vm4061, %v4034, %v2546
      %v4100 = vsel %vm4061, %v4035, %v2548
      %v4101 = vsel %vm4061, %v4036, %v2550
      %v4102 = vsel %vm4061, %v4037, %v2552
      %v4103 = vsel %vm4061, %v4038, %v2554
      %v4104 = vsel %vm4061, %v4039, %v2556
      %v4105 = vsel %vm4061, %v4040, %v2558
      %v4106 = vsel %vm4061, %v4041, %v2560
      %v4107 = vsel %vm4061, %v4042, %v2562
      %v4108 = vsel %vm4061, %v4043, %v2564
      %v4109 = vsel %vm4061, %v4044, %v2566
      %v4110 = vsel %vm4061, %v4045, %v2568
      %v4111 = vsel %vm4061, %v4046, %v2570
      %v4112 = vsel %vm4061, %v4047, %v2572
      %v4113 = vsel %vm4061, %v4048, %v2574
      %v4114 = vsel %vm4061, %v4049, %v2576
      %v4115 = vsel %vm4061, %v4050, %v2578
      %v4116 = vsel %vm4061, %v4051, %v2580
      %v4117 = vsel %vm4061, %v4052, %v2582
      %v4118 = vsel %vm4061, %v4053, %v2584
      %v4119 = vsel %vm4061, %v4054, %v2586
      %v4120 = vsel %vm4061, %v4055, %v2588
      %v4121 = vsel %vm4061, %v4056, %v2590
      %v4122 = vsel %vm4061, %v4057, %v2592
      %v4123 = vsel %vm4061, %v4058, %v2594
      %v4124 = vsel %vm4061, %v4059, %v2596
      %v4125 = vsel %vm4061, %v4060, %v2598
      %vm4126 = vcmask 392192
      %v4127 = vsel %vm4126, %v4062, %v2664
      %v4128 = vsel %vm4126, %v4063, %v2666
      %v4129 = vsel %vm4126, %v4064, %v2668
      %v4130 = vsel %vm4126, %v4065, %v2670
      %v4131 = vsel %vm4126, %v4066, %v2672
      %v4132 = vsel %vm4126, %v4067, %v2674
      %v4133 = vsel %vm4126, %v4068, %v2676
      %v4134 = vsel %vm4126, %v4069, %v2678
      %v4135 = vsel %vm4126, %v4070, %v2680
      %v4136 = vsel %vm4126, %v4071, %v2682
      %v4137 = vsel %vm4126, %v4072, %v2684
      %v4138 = vsel %vm4126, %v4073, %v2686
      %v4139 = vsel %vm4126, %v4074, %v2688
      %v4140 = vsel %vm4126, %v4075, %v2690
      %v4141 = vsel %vm4126, %v4076, %v2692
      %v4142 = vsel %vm4126, %v4077, %v2694
      %v4143 = vsel %vm4126, %v4078, %v2696
      %v4144 = vsel %vm4126, %v4079, %v2698
      %v4145 = vsel %vm4126, %v4080, %v2700
      %v4146 = vsel %vm4126, %v4081, %v2702
      %v4147 = vsel %vm4126, %v4082, %v2704
      %v4148 = vsel %vm4126, %v4083, %v2706
      %v4149 = vsel %vm4126, %v4084, %v2708
      %v4150 = vsel %vm4126, %v4085, %v2710
      %v4151 = vsel %vm4126, %v4086, %v2712
      %v4152 = vsel %vm4126, %v4087, %v2714
      %v4153 = vsel %vm4126, %v4088, %v2716
      %v4154 = vsel %vm4126, %v4089, %v2718
      %v4155 = vsel %vm4126, %v4090, %v2720
      %v4156 = vsel %vm4126, %v4091, %v2722
      %v4157 = vsel %vm4126, %v4092, %v2724
      %v4158 = vsel %vm4126, %v4093, %v2726
      %v4159 = vsel %vm4126, %v4094, %v2728
      %v4160 = vsel %vm4126, %v4095, %v2730
      %v4161 = vsel %vm4126, %v4096, %v2732
      %v4162 = vsel %vm4126, %v4097, %v2734
      %v4163 = vsel %vm4126, %v4098, %v2736
      %v4164 = vsel %vm4126, %v4099, %v2738
      %v4165 = vsel %vm4126, %v4100, %v2740
      %v4166 = vsel %vm4126, %v4101, %v2742
      %v4167 = vsel %vm4126, %v4102, %v2744
      %v4168 = vsel %vm4126, %v4103, %v2746
      %v4169 = vsel %vm4126, %v4104, %v2748
      %v4170 = vsel %vm4126, %v4105, %v2750
      %v4171 = vsel %vm4126, %v4106, %v2752
      %v4172 = vsel %vm4126, %v4107, %v2754
      %v4173 = vsel %vm4126, %v4108, %v2756
      %v4174 = vsel %vm4126, %v4109, %v2758
      %v4175 = vsel %vm4126, %v4110, %v2760
      %v4176 = vsel %vm4126, %v4111, %v2762
      %v4177 = vsel %vm4126, %v4112, %v2764
      %v4178 = vsel %vm4126, %v4113, %v2766
      %v4179 = vsel %vm4126, %v4114, %v2768
      %v4180 = vsel %vm4126, %v4115, %v2770
      %v4181 = vsel %vm4126, %v4116, %v2772
      %v4182 = vsel %vm4126, %v4117, %v2774
      %v4183 = vsel %vm4126, %v4118, %v2776
      %v4184 = vsel %vm4126, %v4119, %v2778
      %v4185 = vsel %vm4126, %v4120, %v2780
      %v4186 = vsel %vm4126, %v4121, %v2782
      %v4187 = vsel %vm4126, %v4122, %v2784
      %v4188 = vsel %vm4126, %v4123, %v2786
      %v4189 = vsel %vm4126, %v4124, %v2788
      %v4190 = vsel %vm4126, %v4125, %v2790
      %vm4191 = vcmask 457728
      %v4192 = vsel %vm4191, %v4127, %v2857
      %v4193 = vsel %vm4191, %v4128, %v2859
      %v4194 = vsel %vm4191, %v4129, %v2861
      %v4195 = vsel %vm4191, %v4130, %v2863
      %v4196 = vsel %vm4191, %v4131, %v2865
      %v4197 = vsel %vm4191, %v4132, %v2867
      %v4198 = vsel %vm4191, %v4133, %v2869
      %v4199 = vsel %vm4191, %v4134, %v2871
      %v4200 = vsel %vm4191, %v4135, %v2873
      %v4201 = vsel %vm4191, %v4136, %v2875
      %v4202 = vsel %vm4191, %v4137, %v2877
      %v4203 = vsel %vm4191, %v4138, %v2879
      %v4204 = vsel %vm4191, %v4139, %v2881
      %v4205 = vsel %vm4191, %v4140, %v2883
      %v4206 = vsel %vm4191, %v4141, %v2885
      %v4207 = vsel %vm4191, %v4142, %v2887
      %v4208 = vsel %vm4191, %v4143, %v2889
      %v4209 = vsel %vm4191, %v4144, %v2891
      %v4210 = vsel %vm4191, %v4145, %v2893
      %v4211 = vsel %vm4191, %v4146, %v2895
      %v4212 = vsel %vm4191, %v4147, %v2897
      %v4213 = vsel %vm4191, %v4148, %v2899
      %v4214 = vsel %vm4191, %v4149, %v2901
      %v4215 = vsel %vm4191, %v4150, %v2903
      %v4216 = vsel %vm4191, %v4151, %v2905
      %v4217 = vsel %vm4191, %v4152, %v2907
      %v4218 = vsel %vm4191, %v4153, %v2909
      %v4219 = vsel %vm4191, %v4154, %v2911
      %v4220 = vsel %vm4191, %v4155, %v2913
      %v4221 = vsel %vm4191, %v4156, %v2915
      %v4222 = vsel %vm4191, %v4157, %v2917
      %v4223 = vsel %vm4191, %v4158, %v2919
      %v4224 = vsel %vm4191, %v4159, %v2921
      %v4225 = vsel %vm4191, %v4160, %v2923
      %v4226 = vsel %vm4191, %v4161, %v2925
      %v4227 = vsel %vm4191, %v4162, %v2927
      %v4228 = vsel %vm4191, %v4163, %v2929
      %v4229 = vsel %vm4191, %v4164, %v2931
      %v4230 = vsel %vm4191, %v4165, %v2933
      %v4231 = vsel %vm4191, %v4166, %v2935
      %v4232 = vsel %vm4191, %v4167, %v2937
      %v4233 = vsel %vm4191, %v4168, %v2939
      %v4234 = vsel %vm4191, %v4169, %v2941
      %v4235 = vsel %vm4191, %v4170, %v2943
      %v4236 = vsel %vm4191, %v4171, %v2945
      %v4237 = vsel %vm4191, %v4172, %v2947
      %v4238 = vsel %vm4191, %v4173, %v2949
      %v4239 = vsel %vm4191, %v4174, %v2951
      %v4240 = vsel %vm4191, %v4175, %v2953
      %v4241 = vsel %vm4191, %v4176, %v2955
      %v4242 = vsel %vm4191, %v4177, %v2957
      %v4243 = vsel %vm4191, %v4178, %v2959
      %v4244 = vsel %vm4191, %v4179, %v2961
      %v4245 = vsel %vm4191, %v4180, %v2963
      %v4246 = vsel %vm4191, %v4181, %v2965
      %v4247 = vsel %vm4191, %v4182, %v2967
      %v4248 = vsel %vm4191, %v4183, %v2969
      %v4249 = vsel %vm4191, %v4184, %v2971
      %v4250 = vsel %vm4191, %v4185, %v2973
      %v4251 = vsel %vm4191, %v4186, %v2975
      %v4252 = vsel %vm4191, %v4187, %v2977
      %v4253 = vsel %vm4191, %v4188, %v2979
      %v4254 = vsel %vm4191, %v4189, %v2981
      %v4255 = vsel %vm4191, %v4190, %v2983
      %vm4256 = vcmask 523264
      %v4257 = vsel %vm4256, %v4192, %v3049
      %v4258 = vsel %vm4256, %v4193, %v3051
      %v4259 = vsel %vm4256, %v4194, %v3053
      %v4260 = vsel %vm4256, %v4195, %v3055
      %v4261 = vsel %vm4256, %v4196, %v3057
      %v4262 = vsel %vm4256, %v4197, %v3059
      %v4263 = vsel %vm4256, %v4198, %v3061
      %v4264 = vsel %vm4256, %v4199, %v3063
      %v4265 = vsel %vm4256, %v4200, %v3065
      %v4266 = vsel %vm4256, %v4201, %v3067
      %v4267 = vsel %vm4256, %v4202, %v3069
      %v4268 = vsel %vm4256, %v4203, %v3071
      %v4269 = vsel %vm4256, %v4204, %v3073
      %v4270 = vsel %vm4256, %v4205, %v3075
      %v4271 = vsel %vm4256, %v4206, %v3077
      %v4272 = vsel %vm4256, %v4207, %v3079
      %v4273 = vsel %vm4256, %v4208, %v3081
      %v4274 = vsel %vm4256, %v4209, %v3083
      %v4275 = vsel %vm4256, %v4210, %v3085
      %v4276 = vsel %vm4256, %v4211, %v3087
      %v4277 = vsel %vm4256, %v4212, %v3089
      %v4278 = vsel %vm4256, %v4213, %v3091
      %v4279 = vsel %vm4256, %v4214, %v3093
      %v4280 = vsel %vm4256, %v4215, %v3095
      %v4281 = vsel %vm4256, %v4216, %v3097
      %v4282 = vsel %vm4256, %v4217, %v3099
      %v4283 = vsel %vm4256, %v4218, %v3101
      %v4284 = vsel %vm4256, %v4219, %v3103
      %v4285 = vsel %vm4256, %v4220, %v3105
      %v4286 = vsel %vm4256, %v4221, %v3107
      %v4287 = vsel %vm4256, %v4222, %v3109
      %v4288 = vsel %vm4256, %v4223, %v3111
      %v4289 = vsel %vm4256, %v4224, %v3113
      %v4290 = vsel %vm4256, %v4225, %v3115
      %v4291 = vsel %vm4256, %v4226, %v3117
      %v4292 = vsel %vm4256, %v4227, %v3119
      %v4293 = vsel %vm4256, %v4228, %v3121
      %v4294 = vsel %vm4256, %v4229, %v3123
      %v4295 = vsel %vm4256, %v4230, %v3125
      %v4296 = vsel %vm4256, %v4231, %v3127
      %v4297 = vsel %vm4256, %v4232, %v3129
      %v4298 = vsel %vm4256, %v4233, %v3131
      %v4299 = vsel %vm4256, %v4234, %v3133
      %v4300 = vsel %vm4256, %v4235, %v3135
      %v4301 = vsel %vm4256, %v4236, %v3137
      %v4302 = vsel %vm4256, %v4237, %v3139
      %v4303 = vsel %vm4256, %v4238, %v3141
      %v4304 = vsel %vm4256, %v4239, %v3143
      %v4305 = vsel %vm4256, %v4240, %v3145
      %v4306 = vsel %vm4256, %v4241, %v3147
      %v4307 = vsel %vm4256, %v4242, %v3149
      %v4308 = vsel %vm4256, %v4243, %v3151
      %v4309 = vsel %vm4256, %v4244, %v3153
      %v4310 = vsel %vm4256, %v4245, %v3155
      %v4311 = vsel %vm4256, %v4246, %v3157
      %v4312 = vsel %vm4256, %v4247, %v3159
      %v4313 = vsel %vm4256, %v4248, %v3161
      %v4314 = vsel %vm4256, %v4249, %v3163
      %v4315 = vsel %vm4256, %v4250, %v3165
      %v4316 = vsel %vm4256, %v4251, %v3167
      %v4317 = vsel %vm4256, %v4252, %v3169
      %v4318 = vsel %vm4256, %v4253, %v3171
      %v4319 = vsel %vm4256, %v4254, %v3173
      %v4320 = vsel %vm4256, %v4255, %v3173
      %vm4321 = vcmask 588800
      %v4322 = vsel %vm4321, %v4257, %v3238
      %v4323 = vsel %vm4321, %v4258, %v3240
      %v4324 = vsel %vm4321, %v4259, %v3242
      %v4325 = vsel %vm4321, %v4260, %v3244
      %v4326 = vsel %vm4321, %v4261, %v3246
      %v4327 = vsel %vm4321, %v4262, %v3248
      %v4328 = vsel %vm4321, %v4263, %v3250
      %v4329 = vsel %vm4321, %v4264, %v3252
      %v4330 = vsel %vm4321, %v4265, %v3254
      %v4331 = vsel %vm4321, %v4266, %v3256
      %v4332 = vsel %vm4321, %v4267, %v3258
      %v4333 = vsel %vm4321, %v4268, %v3260
      %v4334 = vsel %vm4321, %v4269, %v3262
      %v4335 = vsel %vm4321, %v4270, %v3264
      %v4336 = vsel %vm4321, %v4271, %v3266
      %v4337 = vsel %vm4321, %v4272, %v3268
      %v4338 = vsel %vm4321, %v4273, %v3270
      %v4339 = vsel %vm4321, %v4274, %v3272
      %v4340 = vsel %vm4321, %v4275, %v3274
      %v4341 = vsel %vm4321, %v4276, %v3276
      %v4342 = vsel %vm4321, %v4277, %v3278
      %v4343 = vsel %vm4321, %v4278, %v3280
      %v4344 = vsel %vm4321, %v4279, %v3282
      %v4345 = vsel %vm4321, %v4280, %v3284
      %v4346 = vsel %vm4321, %v4281, %v3286
      %v4347 = vsel %vm4321, %v4282, %v3288
      %v4348 = vsel %vm4321, %v4283, %v3290
      %v4349 = vsel %vm4321, %v4284, %v3292
      %v4350 = vsel %vm4321, %v4285, %v3294
      %v4351 = vsel %vm4321, %v4286, %v3296
      %v4352 = vsel %vm4321, %v4287, %v3298
      %v4353 = vsel %vm4321, %v4288, %v3300
      %v4354 = vsel %vm4321, %v4289, %v3302
      %v4355 = vsel %vm4321, %v4290, %v3304
      %v4356 = vsel %vm4321, %v4291, %v3306
      %v4357 = vsel %vm4321, %v4292, %v3308
      %v4358 = vsel %vm4321, %v4293, %v3310
      %v4359 = vsel %vm4321, %v4294, %v3312
      %v4360 = vsel %vm4321, %v4295, %v3314
      %v4361 = vsel %vm4321, %v4296, %v3316
      %v4362 = vsel %vm4321, %v4297, %v3318
      %v4363 = vsel %vm4321, %v4298, %v3320
      %v4364 = vsel %vm4321, %v4299, %v3322
      %v4365 = vsel %vm4321, %v4300, %v3324
      %v4366 = vsel %vm4321, %v4301, %v3326
      %v4367 = vsel %vm4321, %v4302, %v3328
      %v4368 = vsel %vm4321, %v4303, %v3330
      %v4369 = vsel %vm4321, %v4304, %v3332
      %v4370 = vsel %vm4321, %v4305, %v3334
      %v4371 = vsel %vm4321, %v4306, %v3336
      %v4372 = vsel %vm4321, %v4307, %v3338
      %v4373 = vsel %vm4321, %v4308, %v3340
      %v4374 = vsel %vm4321, %v4309, %v3342
      %v4375 = vsel %vm4321, %v4310, %v3344
      %v4376 = vsel %vm4321, %v4311, %v3346
      %v4377 = vsel %vm4321, %v4312, %v3348
      %v4378 = vsel %vm4321, %v4313, %v3350
      %v4379 = vsel %vm4321, %v4314, %v3352
      %v4380 = vsel %vm4321, %v4315, %v3354
      %v4381 = vsel %vm4321, %v4316, %v3356
      %v4382 = vsel %vm4321, %v4317, %v3358
      %v4383 = vsel %vm4321, %v4318, %v3360
      %v4384 = vsel %vm4321, %v4319, %v3362
      %v4385 = vsel %vm4321, %v4320, %v3362
      %vm4386 = vcmask 654336
      %v4387 = vsel %vm4386, %v4322, %v3427
      %v4388 = vsel %vm4386, %v4323, %v3429
      %v4389 = vsel %vm4386, %v4324, %v3431
      %v4390 = vsel %vm4386, %v4325, %v3433
      %v4391 = vsel %vm4386, %v4326, %v3435
      %v4392 = vsel %vm4386, %v4327, %v3437
      %v4393 = vsel %vm4386, %v4328, %v3439
      %v4394 = vsel %vm4386, %v4329, %v3441
      %v4395 = vsel %vm4386, %v4330, %v3443
      %v4396 = vsel %vm4386, %v4331, %v3445
      %v4397 = vsel %vm4386, %v4332, %v3447
      %v4398 = vsel %vm4386, %v4333, %v3449
      %v4399 = vsel %vm4386, %v4334, %v3451
      %v4400 = vsel %vm4386, %v4335, %v3453
      %v4401 = vsel %vm4386, %v4336, %v3455
      %v4402 = vsel %vm4386, %v4337, %v3457
      %v4403 = vsel %vm4386, %v4338, %v3459
      %v4404 = vsel %vm4386, %v4339, %v3461
      %v4405 = vsel %vm4386, %v4340, %v3463
      %v4406 = vsel %vm4386, %v4341, %v3465
      %v4407 = vsel %vm4386, %v4342, %v3467
      %v4408 = vsel %vm4386, %v4343, %v3469
      %v4409 = vsel %vm4386, %v4344, %v3471
      %v4410 = vsel %vm4386, %v4345, %v3473
      %v4411 = vsel %vm4386, %v4346, %v3475
      %v4412 = vsel %vm4386, %v4347, %v3477
      %v4413 = vsel %vm4386, %v4348, %v3479
      %v4414 = vsel %vm4386, %v4349, %v3481
      %v4415 = vsel %vm4386, %v4350, %v3483
      %v4416 = vsel %vm4386, %v4351, %v3485
      %v4417 = vsel %vm4386, %v4352, %v3487
      %v4418 = vsel %vm4386, %v4353, %v3489
      %v4419 = vsel %vm4386, %v4354, %v3491
      %v4420 = vsel %vm4386, %v4355, %v3493
      %v4421 = vsel %vm4386, %v4356, %v3495
      %v4422 = vsel %vm4386, %v4357, %v3497
      %v4423 = vsel %vm4386, %v4358, %v3499
      %v4424 = vsel %vm4386, %v4359, %v3501
      %v4425 = vsel %vm4386, %v4360, %v3503
      %v4426 = vsel %vm4386, %v4361, %v3505
      %v4427 = vsel %vm4386, %v4362, %v3507
      %v4428 = vsel %vm4386, %v4363, %v3509
      %v4429 = vsel %vm4386, %v4364, %v3511
      %v4430 = vsel %vm4386, %v4365, %v3513
      %v4431 = vsel %vm4386, %v4366, %v3515
      %v4432 = vsel %vm4386, %v4367, %v3517
      %v4433 = vsel %vm4386, %v4368, %v3519
      %v4434 = vsel %vm4386, %v4369, %v3521
      %v4435 = vsel %vm4386, %v4370, %v3523
      %v4436 = vsel %vm4386, %v4371, %v3525
      %v4437 = vsel %vm4386, %v4372, %v3527
      %v4438 = vsel %vm4386, %v4373, %v3529
      %v4439 = vsel %vm4386, %v4374, %v3531
      %v4440 = vsel %vm4386, %v4375, %v3533
      %v4441 = vsel %vm4386, %v4376, %v3535
      %v4442 = vsel %vm4386, %v4377, %v3537
      %v4443 = vsel %vm4386, %v4378, %v3539
      %v4444 = vsel %vm4386, %v4379, %v3541
      %v4445 = vsel %vm4386, %v4380, %v3543
      %v4446 = vsel %vm4386, %v4381, %v3545
      %v4447 = vsel %vm4386, %v4382, %v3547
      %v4448 = vsel %vm4386, %v4383, %v3549
      %v4449 = vsel %vm4386, %v4384, %v3551
      %v4450 = vsel %vm4386, %v4385, %v3551
      %vm4451 = vcmask 719872
      %v4452 = vsel %vm4451, %v4387, %v3616
      %v4453 = vsel %vm4451, %v4388, %v3618
      %v4454 = vsel %vm4451, %v4389, %v3620
      %v4455 = vsel %vm4451, %v4390, %v3622
      %v4456 = vsel %vm4451, %v4391, %v3624
      %v4457 = vsel %vm4451, %v4392, %v3626
      %v4458 = vsel %vm4451, %v4393, %v3628
      %v4459 = vsel %vm4451, %v4394, %v3630
      %v4460 = vsel %vm4451, %v4395, %v3632
      %v4461 = vsel %vm4451, %v4396, %v3634
      %v4462 = vsel %vm4451, %v4397, %v3636
      %v4463 = vsel %vm4451, %v4398, %v3638
      %v4464 = vsel %vm4451, %v4399, %v3640
      %v4465 = vsel %vm4451, %v4400, %v3642
      %v4466 = vsel %vm4451, %v4401, %v3644
      %v4467 = vsel %vm4451, %v4402, %v3646
      %v4468 = vsel %vm4451, %v4403, %v3648
      %v4469 = vsel %vm4451, %v4404, %v3650
      %v4470 = vsel %vm4451, %v4405, %v3652
      %v4471 = vsel %vm4451, %v4406, %v3654
      %v4472 = vsel %vm4451, %v4407, %v3656
      %v4473 = vsel %vm4451, %v4408, %v3658
      %v4474 = vsel %vm4451, %v4409, %v3660
      %v4475 = vsel %vm4451, %v4410, %v3662
      %v4476 = vsel %vm4451, %v4411, %v3664
      %v4477 = vsel %vm4451, %v4412, %v3666
      %v4478 = vsel %vm4451, %v4413, %v3668
      %v4479 = vsel %vm4451, %v4414, %v3670
      %v4480 = vsel %vm4451, %v4415, %v3672
      %v4481 = vsel %vm4451, %v4416, %v3674
      %v4482 = vsel %vm4451, %v4417, %v3676
      %v4483 = vsel %vm4451, %v4418, %v3678
      %v4484 = vsel %vm4451, %v4419, %v3680
      %v4485 = vsel %vm4451, %v4420, %v3682
      %v4486 = vsel %vm4451, %v4421, %v3684
      %v4487 = vsel %vm4451, %v4422, %v3686
      %v4488 = vsel %vm4451, %v4423, %v3688
      %v4489 = vsel %vm4451, %v4424, %v3690
      %v4490 = vsel %vm4451, %v4425, %v3692
      %v4491 = vsel %vm4451, %v4426, %v3694
      %v4492 = vsel %vm4451, %v4427, %v3696
      %v4493 = vsel %vm4451, %v4428, %v3698
      %v4494 = vsel %vm4451, %v4429, %v3700
      %v4495 = vsel %vm4451, %v4430, %v3702
      %v4496 = vsel %vm4451, %v4431, %v3704
      %v4497 = vsel %vm4451, %v4432, %v3706
      %v4498 = vsel %vm4451, %v4433, %v3708
      %v4499 = vsel %vm4451, %v4434, %v3710
      %v4500 = vsel %vm4451, %v4435, %v3712
      %v4501 = vsel %vm4451, %v4436, %v3714
      %v4502 = vsel %vm4451, %v4437, %v3716
      %v4503 = vsel %vm4451, %v4438, %v3718
      %v4504 = vsel %vm4451, %v4439, %v3720
      %v4505 = vsel %vm4451, %v4440, %v3722
      %v4506 = vsel %vm4451, %v4441, %v3724
      %v4507 = vsel %vm4451, %v4442, %v3726
      %v4508 = vsel %vm4451, %v4443, %v3728
      %v4509 = vsel %vm4451, %v4444, %v3730
      %v4510 = vsel %vm4451, %v4445, %v3732
      %v4511 = vsel %vm4451, %v4446, %v3734
      %v4512 = vsel %vm4451, %v4447, %v3736
      %v4513 = vsel %vm4451, %v4448, %v3738
      %v4514 = vsel %vm4451, %v4449, %v3740
      %v4515 = vsel %vm4451, %v4450, %v3740
      %v4516 = vpack.c.bf16 %v4453, %v4452
      %v4517 = vpack.c.bf16 %v4455, %v4454
      %v4518 = vpack.c.bf16 %v4457, %v4456
      %v4519 = vpack.c.bf16 %v4459, %v4458
      %v4520 = vpack.c.bf16 %v4461, %v4460
      %v4521 = vpack.c.bf16 %v4463, %v4462
      %v4522 = vpack.c.bf16 %v4465, %v4464
      %v4523 = vpack.c.bf16 %v4467, %v4466
      %v4524 = vpack.c.bf16 %v4469, %v4468
      %v4525 = vpack.c.bf16 %v4471, %v4470
      %v4526 = vpack.c.bf16 %v4473, %v4472
      %v4527 = vpack.c.bf16 %v4475, %v4474
      %v4528 = vpack.c.bf16 %v4477, %v4476
      %v4529 = vpack.c.bf16 %v4479, %v4478
      %v4530 = vpack.c.bf16 %v4481, %v4480
      %v4531 = vpack.c.bf16 %v4483, %v4482
      %v4532 = vpack.c.bf16 %v4485, %v4484
      %v4533 = vpack.c.bf16 %v4487, %v4486
      %v4534 = vpack.c.bf16 %v4489, %v4488
      %v4535 = vpack.c.bf16 %v4491, %v4490
      %v4536 = vpack.c.bf16 %v4493, %v4492
      %v4537 = vpack.c.bf16 %v4495, %v4494
      %v4538 = vpack.c.bf16 %v4497, %v4496
      %v4539 = vpack.c.bf16 %v4499, %v4498
      %v4540 = vpack.c.bf16 %v4501, %v4500
      %v4541 = vpack.c.bf16 %v4503, %v4502
      %v4542 = vpack.c.bf16 %v4505, %v4504
      %v4543 = vpack.c.bf16 %v4507, %v4506
      %v4544 = vpack.c.bf16 %v4509, %v4508
      %v4545 = vpack.c.bf16 %v4511, %v4510
      %v4546 = vpack.c.bf16 %v4513, %v4512
      %v4547 = vpack.c.bf16 %v4515, %v4514
      %v4549 = vlaneseq
      %v4550 = vshrl.u32 %v4549, 7
      %v4551 = vsub.s32 0, %v4550
      %v4552 = vrot.slane %v1168, %v4551
      %v4566 = vunpack.c.l.b16 %v1156
      %v4567 = vunpack.c.l.b16 %v1157
      %v4568 = vunpack.c.l.b16 %v1158
      %v4569 = vunpack.c.l.b16 %v1159
      %v4570 = vunpack.c.l.b16 %v1160
      %v4571 = vunpack.c.l.b16 %v1161
      %v4572 = vunpack.c.l.b16 %v1162
      %v4573 = vunpack.c.l.b16 %v1163
      %v4574 = vunpack.c.l.b16 %v1164
      %v4575 = vunpack.c.l.b16 %v1165
      %v4576 = vunpack.c.l.b16 %v1166
      %v4577 = vunpack.c.l.b16 %v1167
      %v4578 = vpack.c.b16 %v4567, %v4566
      %v4579 = vpack.c.b16 %v4569, %v4568
      %v4580 = vpack.c.b16 %v4571, %v4570
      %v4581 = vpack.c.b16 %v4573, %v4572
      %v4582 = vpack.c.b16 %v4575, %v4574
      %v4583 = vpack.c.b16 %v4577, %v4576
      %vm4590 = vcmask 785408
      %v4592 = vsel %vm4590, %v4516, 0
      %v4595 = vsel %vm4590, %v4517, 0
      %v4598 = vsel %vm4590, %v4518, 0
      %v4601 = vsel %vm4590, %v4519, 0
      %v4604 = vsel %vm4590, %v4520, 0
      %v4607 = vsel %vm4590, %v4521, 0
      %v4610 = vsel %vm4590, %v4522, 0
      %v4613 = vsel %vm4590, %v4523, 0
      %v4616 = vsel %vm4590, %v4524, 0
      %v4619 = vsel %vm4590, %v4525, 0
      %v4622 = vsel %vm4590, %v4526, 0
      %v4625 = vsel %vm4590, %v4527, 0
      %v4628 = vsel %vm4590, %v4528, 0
      %v4631 = vsel %vm4590, %v4529, 0
      %v4634 = vsel %vm4590, %v4530, 0
      %v4637 = vsel %vm4590, %v4531, 0
      %v4640 = vsel %vm4590, %v4532, 0
      %v4643 = vsel %vm4590, %v4533, 0
      %v4646 = vsel %vm4590, %v4534, 0
      %v4649 = vsel %vm4590, %v4535, 0
      %v4652 = vsel %vm4590, %v4536, 0
      %v4655 = vsel %vm4590, %v4537, 0
      %v4658 = vsel %vm4590, %v4538, 0
      %v4661 = vsel %vm4590, %v4539, 0
      %v4664 = vsel %vm4590, %v4540, 0
      %v4667 = vsel %vm4590, %v4541, 0
      %v4670 = vsel %vm4590, %v4542, 0
      %v4673 = vsel %vm4590, %v4543, 0
      %v4676 = vsel %vm4590, %v4544, 0
      %v4679 = vsel %vm4590, %v4545, 0
      %v4682 = vsel %vm4590, %v4546, 0
      %v4685 = vsel %vm4590, %v4547, 0
      %4687 = vmatprep.subr.bf16.mxu0 0
      %4688 = vmatpush1.bf16.msra.mxu0 0
      %4689 = vmatprep.subr.bf16.mxu0 0
      %4690 = vmatpush1.bf16.msra.mxu0 0
      %4691 = vmatprep.subr.bf16.mxu0 0
      %4692 = vmatpush1.bf16.msra.mxu0 %v4583
      %4693 = vmatprep.subr.bf16.mxu0 0
      %4694 = vmatpush1.bf16.msra.mxu0 %v4582
      %4695 = vmatprep.subr.bf16.mxu0 0
      %4696 = vmatpush1.bf16.msra.mxu0 %v4581
      %4697 = vmatprep.subr.bf16.mxu0 0
      %4698 = vmatpush1.bf16.msra.mxu0 %v4580
      %4699 = vmatprep.subr.bf16.mxu0 0
      %4700 = vmatpush1.bf16.msra.mxu0 %v4579
      %4701 = vmatprep.subr.bf16.mxu0 0
      %4702 = vmatpush1.bf16.msra.mxu0 %v4578
      %4703 = vmatprep.subr.bf16.mxu0 0
      %4704 = vmatpush2.bf16.msra.mxu0 0
      %4705 = vmatprep.subr.bf16.mxu0 0
      %4706 = vmatpush2.bf16.msra.mxu0 0
      %4707 = vmatprep.subr.bf16.mxu0 0
      %4708 = vmatpush2.bf16.msra.mxu0 0
      %4709 = vmatprep.subr.bf16.mxu0 0
      %4710 = vmatpush2.bf16.msra.mxu0 0
      %4711 = vmatprep.subr.bf16.mxu0 0
      %4712 = vmatpush2.bf16.msra.mxu0 0
      %4713 = vmatprep.subr.bf16.mxu0 0
      %4714 = vmatpush2.bf16.msra.mxu0 0
      %4715 = vmatprep.subr.bf16.mxu0 0
      %4716 = vmatpush2.bf16.msra.mxu0 0
      %4717 = vmatprep.subr.bf16.mxu0 0
      %4718 = vmatpush2.bf16.msra.mxu0 0
      %4719 = vmatprep.mubr.bf16.mxu0 0
      %4720 = vmatmul.mubr.bf16.gmra.mxu0 %v4592
      %v4721 = vpop.f32.mrf.mxu0
      %v4722 = vadd.f32 %v4552, %v4721
      %v4723 = vpop.f32.mrf.mxu0
      %v4724 = vpop.f32.mrf.mxu0
      %v4725 = vadd.f32 %v4552, %v4724
      %v4726 = vpop.f32.mrf.mxu0
      %4727 = vmatprep.mubr.bf16.mxu0 0
      %4728 = vmatmul.mubr.bf16.gmra.mxu0 %v4595
      %v4729 = vpop.f32.mrf.mxu0
      %v4730 = vadd.f32 %v4552, %v4729
      %v4731 = vpop.f32.mrf.mxu0
      %v4732 = vpop.f32.mrf.mxu0
      %v4733 = vadd.f32 %v4552, %v4732
      %v4734 = vpop.f32.mrf.mxu0
      %4735 = vmatprep.mubr.bf16.mxu0 0
      %4736 = vmatmul.mubr.bf16.gmra.mxu0 %v4598
      %v4737 = vpop.f32.mrf.mxu0
      %v4738 = vadd.f32 %v4552, %v4737
      %v4739 = vpop.f32.mrf.mxu0
      %v4740 = vpop.f32.mrf.mxu0
      %v4741 = vadd.f32 %v4552, %v4740
      %v4742 = vpop.f32.mrf.mxu0
      %4743 = vmatprep.mubr.bf16.mxu0 0
      %4744 = vmatmul.mubr.bf16.gmra.mxu0 %v4601
      %v4745 = vpop.f32.mrf.mxu0
      %v4746 = vadd.f32 %v4552, %v4745
      %v4747 = vpop.f32.mrf.mxu0
      %v4748 = vpop.f32.mrf.mxu0
      %v4749 = vadd.f32 %v4552, %v4748
      %v4750 = vpop.f32.mrf.mxu0
      %4751 = vmatprep.mubr.bf16.mxu0 0
      %4752 = vmatmul.mubr.bf16.gmra.mxu0 %v4604
      %v4753 = vpop.f32.mrf.mxu0
      %v4754 = vadd.f32 %v4552, %v4753
      %v4755 = vpop.f32.mrf.mxu0
      %v4756 = vpop.f32.mrf.mxu0
      %v4757 = vadd.f32 %v4552, %v4756
      %v4758 = vpop.f32.mrf.mxu0
      %4759 = vmatprep.mubr.bf16.mxu0 0
      %4760 = vmatmul.mubr.bf16.gmra.mxu0 %v4607
      %v4761 = vpop.f32.mrf.mxu0
      %v4762 = vadd.f32 %v4552, %v4761
      %v4763 = vpop.f32.mrf.mxu0
      %v4764 = vpop.f32.mrf.mxu0
      %v4765 = vadd.f32 %v4552, %v4764
      %v4766 = vpop.f32.mrf.mxu0
      %4767 = vmatprep.mubr.bf16.mxu0 0
      %4768 = vmatmul.mubr.bf16.gmra.mxu0 %v4610
      %v4769 = vpop.f32.mrf.mxu0
      %v4770 = vadd.f32 %v4552, %v4769
      %v4771 = vpop.f32.mrf.mxu0
      %v4772 = vpop.f32.mrf.mxu0
      %v4773 = vadd.f32 %v4552, %v4772
      %v4774 = vpop.f32.mrf.mxu0
      %4775 = vmatprep.mubr.bf16.mxu0 0
      %4776 = vmatmul.mubr.bf16.gmra.mxu0 %v4613
      %v4777 = vpop.f32.mrf.mxu0
      %v4778 = vadd.f32 %v4552, %v4777
      %v4779 = vpop.f32.mrf.mxu0
      %v4780 = vpop.f32.mrf.mxu0
      %v4781 = vadd.f32 %v4552, %v4780
      %v4782 = vpop.f32.mrf.mxu0
      %4783 = vmatprep.mubr.bf16.mxu0 0
      %4784 = vmatmul.mubr.bf16.gmra.mxu0 %v4616
      %v4785 = vpop.f32.mrf.mxu0
      %v4786 = vadd.f32 %v4552, %v4785
      %v4787 = vpop.f32.mrf.mxu0
      %v4788 = vpop.f32.mrf.mxu0
      %v4789 = vadd.f32 %v4552, %v4788
      %v4790 = vpop.f32.mrf.mxu0
      %4791 = vmatprep.mubr.bf16.mxu0 0
      %4792 = vmatmul.mubr.bf16.gmra.mxu0 %v4619
      %v4793 = vpop.f32.mrf.mxu0
      %v4794 = vadd.f32 %v4552, %v4793
      %v4795 = vpop.f32.mrf.mxu0
      %v4796 = vpop.f32.mrf.mxu0
      %v4797 = vadd.f32 %v4552, %v4796
      %v4798 = vpop.f32.mrf.mxu0
      %4799 = vmatprep.mubr.bf16.mxu0 0
      %4800 = vmatmul.mubr.bf16.gmra.mxu0 %v4622
      %v4801 = vpop.f32.mrf.mxu0
      %v4802 = vadd.f32 %v4552, %v4801
      %v4803 = vpop.f32.mrf.mxu0
      %v4804 = vpop.f32.mrf.mxu0
      %v4805 = vadd.f32 %v4552, %v4804
      %v4806 = vpop.f32.mrf.mxu0
      %4807 = vmatprep.mubr.bf16.mxu0 0
      %4808 = vmatmul.mubr.bf16.gmra.mxu0 %v4625
      %v4809 = vpop.f32.mrf.mxu0
      %v4810 = vadd.f32 %v4552, %v4809
      %v4811 = vpop.f32.mrf.mxu0
      %v4812 = vpop.f32.mrf.mxu0
      %v4813 = vadd.f32 %v4552, %v4812
      %v4814 = vpop.f32.mrf.mxu0
      %4815 = vmatprep.mubr.bf16.mxu0 0
      %4816 = vmatmul.mubr.bf16.gmra.mxu0 %v4628
      %v4817 = vpop.f32.mrf.mxu0
      %v4818 = vadd.f32 %v4552, %v4817
      %v4819 = vpop.f32.mrf.mxu0
      %v4820 = vpop.f32.mrf.mxu0
      %v4821 = vadd.f32 %v4552, %v4820
      %v4822 = vpop.f32.mrf.mxu0
      %4823 = vmatprep.mubr.bf16.mxu0 0
      %4824 = vmatmul.mubr.bf16.gmra.mxu0 %v4631
      %v4825 = vpop.f32.mrf.mxu0
      %v4826 = vadd.f32 %v4552, %v4825
      %v4827 = vpop.f32.mrf.mxu0
      %v4828 = vpop.f32.mrf.mxu0
      %v4829 = vadd.f32 %v4552, %v4828
      %v4830 = vpop.f32.mrf.mxu0
      %4831 = vmatprep.mubr.bf16.mxu0 0
      %4832 = vmatmul.mubr.bf16.gmra.mxu0 %v4634
      %v4833 = vpop.f32.mrf.mxu0
      %v4834 = vadd.f32 %v4552, %v4833
      %v4835 = vpop.f32.mrf.mxu0
      %v4836 = vpop.f32.mrf.mxu0
      %v4837 = vadd.f32 %v4552, %v4836
      %v4838 = vpop.f32.mrf.mxu0
      %4839 = vmatprep.mubr.bf16.mxu0 0
      %4840 = vmatmul.mubr.bf16.gmra.mxu0 %v4637
      %v4841 = vpop.f32.mrf.mxu0
      %v4842 = vadd.f32 %v4552, %v4841
      %v4843 = vpop.f32.mrf.mxu0
      %v4844 = vpop.f32.mrf.mxu0
      %v4845 = vadd.f32 %v4552, %v4844
      %v4846 = vpop.f32.mrf.mxu0
      %4847 = vmatprep.mubr.bf16.mxu0 0
      %4848 = vmatmul.mubr.bf16.gmra.mxu0 %v4640
      %v4849 = vpop.f32.mrf.mxu0
      %v4850 = vadd.f32 %v4552, %v4849
      %v4851 = vpop.f32.mrf.mxu0
      %v4852 = vpop.f32.mrf.mxu0
      %v4853 = vadd.f32 %v4552, %v4852
      %v4854 = vpop.f32.mrf.mxu0
      %4855 = vmatprep.mubr.bf16.mxu0 0
      %4856 = vmatmul.mubr.bf16.gmra.mxu0 %v4643
      %v4857 = vpop.f32.mrf.mxu0
      %v4858 = vadd.f32 %v4552, %v4857
      %v4859 = vpop.f32.mrf.mxu0
      %v4860 = vpop.f32.mrf.mxu0
      %v4861 = vadd.f32 %v4552, %v4860
      %v4862 = vpop.f32.mrf.mxu0
      %4863 = vmatprep.mubr.bf16.mxu0 0
      %4864 = vmatmul.mubr.bf16.gmra.mxu0 %v4646
      %v4865 = vpop.f32.mrf.mxu0
      %v4866 = vadd.f32 %v4552, %v4865
      %v4867 = vpop.f32.mrf.mxu0
      %v4868 = vpop.f32.mrf.mxu0
      %v4869 = vadd.f32 %v4552, %v4868
      %v4870 = vpop.f32.mrf.mxu0
      %4871 = vmatprep.mubr.bf16.mxu0 0
      %4872 = vmatmul.mubr.bf16.gmra.mxu0 %v4649
      %v4873 = vpop.f32.mrf.mxu0
      %v4874 = vadd.f32 %v4552, %v4873
      %v4875 = vpop.f32.mrf.mxu0
      %v4876 = vpop.f32.mrf.mxu0
      %v4877 = vadd.f32 %v4552, %v4876
      %v4878 = vpop.f32.mrf.mxu0
      %4879 = vmatprep.mubr.bf16.mxu0 0
      %4880 = vmatmul.mubr.bf16.gmra.mxu0 %v4652
      %v4881 = vpop.f32.mrf.mxu0
      %v4882 = vadd.f32 %v4552, %v4881
      %v4883 = vpop.f32.mrf.mxu0
      %v4884 = vpop.f32.mrf.mxu0
      %v4885 = vadd.f32 %v4552, %v4884
      %v4886 = vpop.f32.mrf.mxu0
      %4887 = vmatprep.mubr.bf16.mxu0 0
      %4888 = vmatmul.mubr.bf16.gmra.mxu0 %v4655
      %v4889 = vpop.f32.mrf.mxu0
      %v4890 = vadd.f32 %v4552, %v4889
      %v4891 = vpop.f32.mrf.mxu0
      %v4892 = vpop.f32.mrf.mxu0
      %v4893 = vadd.f32 %v4552, %v4892
      %v4894 = vpop.f32.mrf.mxu0
      %4895 = vmatprep.mubr.bf16.mxu0 0
      %4896 = vmatmul.mubr.bf16.gmra.mxu0 %v4658
      %v4897 = vpop.f32.mrf.mxu0
      %v4898 = vadd.f32 %v4552, %v4897
      %v4899 = vpop.f32.mrf.mxu0
      %v4900 = vpop.f32.mrf.mxu0
      %v4901 = vadd.f32 %v4552, %v4900
      %v4902 = vpop.f32.mrf.mxu0
      %4903 = vmatprep.mubr.bf16.mxu0 0
      %4904 = vmatmul.mubr.bf16.gmra.mxu0 %v4661
      %v4905 = vpop.f32.mrf.mxu0
      %v4906 = vadd.f32 %v4552, %v4905
      %v4907 = vpop.f32.mrf.mxu0
      %v4908 = vpop.f32.mrf.mxu0
      %v4909 = vadd.f32 %v4552, %v4908
      %v4910 = vpop.f32.mrf.mxu0
      %4911 = vmatprep.mubr.bf16.mxu0 0
      %4912 = vmatmul.mubr.bf16.gmra.mxu0 %v4664
      %v4913 = vpop.f32.mrf.mxu0
      %v4914 = vadd.f32 %v4552, %v4913
      %v4915 = vpop.f32.mrf.mxu0
      %v4916 = vpop.f32.mrf.mxu0
      %v4917 = vadd.f32 %v4552, %v4916
      %v4918 = vpop.f32.mrf.mxu0
      %4919 = vmatprep.mubr.bf16.mxu0 0
      %4920 = vmatmul.mubr.bf16.gmra.mxu0 %v4667
      %v4921 = vpop.f32.mrf.mxu0
      %v4922 = vadd.f32 %v4552, %v4921
      %v4923 = vpop.f32.mrf.mxu0
      %v4924 = vpop.f32.mrf.mxu0
      %v4925 = vadd.f32 %v4552, %v4924
      %v4926 = vpop.f32.mrf.mxu0
      %4927 = vmatprep.mubr.bf16.mxu0 0
      %4928 = vmatmul.mubr.bf16.gmra.mxu0 %v4670
      %v4929 = vpop.f32.mrf.mxu0
      %v4930 = vadd.f32 %v4552, %v4929
      %v4931 = vpop.f32.mrf.mxu0
      %v4932 = vpop.f32.mrf.mxu0
      %v4933 = vadd.f32 %v4552, %v4932
      %v4934 = vpop.f32.mrf.mxu0
      %4935 = vmatprep.mubr.bf16.mxu0 0
      %4936 = vmatmul.mubr.bf16.gmra.mxu0 %v4673
      %v4937 = vpop.f32.mrf.mxu0
      %v4938 = vadd.f32 %v4552, %v4937
      %v4939 = vpop.f32.mrf.mxu0
      %v4940 = vpop.f32.mrf.mxu0
      %v4941 = vadd.f32 %v4552, %v4940
      %v4942 = vpop.f32.mrf.mxu0
      %4943 = vmatprep.mubr.bf16.mxu0 0
      %4944 = vmatmul.mubr.bf16.gmra.mxu0 %v4676
      %v4945 = vpop.f32.mrf.mxu0
      %v4946 = vadd.f32 %v4552, %v4945
      %v4947 = vpop.f32.mrf.mxu0
      %v4948 = vpop.f32.mrf.mxu0
      %v4949 = vadd.f32 %v4552, %v4948
      %v4950 = vpop.f32.mrf.mxu0
      %4951 = vmatprep.mubr.bf16.mxu0 0
      %4952 = vmatmul.mubr.bf16.gmra.mxu0 %v4679
      %v4953 = vpop.f32.mrf.mxu0
      %v4954 = vadd.f32 %v4552, %v4953
      %v4955 = vpop.f32.mrf.mxu0
      %v4956 = vpop.f32.mrf.mxu0
      %v4957 = vadd.f32 %v4552, %v4956
      %v4958 = vpop.f32.mrf.mxu0
      %4959 = vmatprep.mubr.bf16.mxu0 0
      %4960 = vmatmul.mubr.bf16.gmra.mxu0 %v4682
      %v4961 = vpop.f32.mrf.mxu0
      %v4962 = vadd.f32 %v4552, %v4961
      %v4963 = vpop.f32.mrf.mxu0
      %v4964 = vpop.f32.mrf.mxu0
      %v4965 = vadd.f32 %v4552, %v4964
      %v4966 = vpop.f32.mrf.mxu0
      %4967 = vmatprep.mubr.bf16.mxu0 0
      %4968 = vmatmul.mubr.bf16.gmra.mxu0 %v4685
      %v4969 = vpop.f32.mrf.mxu0
      %v4970 = vadd.f32 %v4552, %v4969
      %v4971 = vpop.f32.mrf.mxu0
      %v4972 = vpop.f32.mrf.mxu0
      %v4973 = vadd.f32 %v4552, %v4972
      %v4974 = vpop.f32.mrf.mxu0
      %4975 = vdwg.mxu0
      %v4976 = vmax.f32 %v4722, 0.0
      %v4977 = vmax.f32 %v4725, 0.0
      %v4978 = vmax.f32 %v4730, 0.0
      %v4979 = vmax.f32 %v4733, 0.0
      %v4980 = vmax.f32 %v4738, 0.0
      %v4981 = vmax.f32 %v4741, 0.0
      %v4982 = vmax.f32 %v4746, 0.0
      %v4983 = vmax.f32 %v4749, 0.0
      %v4984 = vmax.f32 %v4754, 0.0
      %v4985 = vmax.f32 %v4757, 0.0
      %v4986 = vmax.f32 %v4762, 0.0
      %v4987 = vmax.f32 %v4765, 0.0
      %v4988 = vmax.f32 %v4770, 0.0
      %v4989 = vmax.f32 %v4773, 0.0
      %v4990 = vmax.f32 %v4778, 0.0
      %v4991 = vmax.f32 %v4781, 0.0
      %v4992 = vmax.f32 %v4786, 0.0
      %v4993 = vmax.f32 %v4789, 0.0
      %v4994 = vmax.f32 %v4794, 0.0
      %v4995 = vmax.f32 %v4797, 0.0
      %v4996 = vmax.f32 %v4802, 0.0
      %v4997 = vmax.f32 %v4805, 0.0
      %v4998 = vmax.f32 %v4810, 0.0
      %v4999 = vmax.f32 %v4813, 0.0
      %v5000 = vmax.f32 %v4818, 0.0
      %v5001 = vmax.f32 %v4821, 0.0
      %v5002 = vmax.f32 %v4826, 0.0
      %v5003 = vmax.f32 %v4829, 0.0
      %v5004 = vmax.f32 %v4834, 0.0
      %v5005 = vmax.f32 %v4837, 0.0
      %v5006 = vmax.f32 %v4842, 0.0
      %v5007 = vmax.f32 %v4845, 0.0
      %v5008 = vmax.f32 %v4850, 0.0
      %v5009 = vmax.f32 %v4853, 0.0
      %v5010 = vmax.f32 %v4858, 0.0
      %v5011 = vmax.f32 %v4861, 0.0
      %v5012 = vmax.f32 %v4866, 0.0
      %v5013 = vmax.f32 %v4869, 0.0
      %v5014 = vmax.f32 %v4874, 0.0
      %v5015 = vmax.f32 %v4877, 0.0
      %v5016 = vmax.f32 %v4882, 0.0
      %v5017 = vmax.f32 %v4885, 0.0
      %v5018 = vmax.f32 %v4890, 0.0
      %v5019 = vmax.f32 %v4893, 0.0
      %v5020 = vmax.f32 %v4898, 0.0
      %v5021 = vmax.f32 %v4901, 0.0
      %v5022 = vmax.f32 %v4906, 0.0
      %v5023 = vmax.f32 %v4909, 0.0
      %v5024 = vmax.f32 %v4914, 0.0
      %v5025 = vmax.f32 %v4917, 0.0
      %v5026 = vmax.f32 %v4922, 0.0
      %v5027 = vmax.f32 %v4925, 0.0
      %v5028 = vmax.f32 %v4930, 0.0
      %v5029 = vmax.f32 %v4933, 0.0
      %v5030 = vmax.f32 %v4938, 0.0
      %v5031 = vmax.f32 %v4941, 0.0
      %v5032 = vmax.f32 %v4946, 0.0
      %v5033 = vmax.f32 %v4949, 0.0
      %v5034 = vmax.f32 %v4954, 0.0
      %v5035 = vmax.f32 %v4957, 0.0
      %v5036 = vmax.f32 %v4962, 0.0
      %v5037 = vmax.f32 %v4965, 0.0
      %v5038 = vmax.f32 %v4970, 0.0
      %v5039 = vmax.f32 %v4973, 0.0
      %v5040 = vld [vmem:[%s3] sm:$0xf]
      %v5041 = vld [vmem:[%s3 + $0x4] sm:$0xf]
      %v5042 = vld [vmem:[%s3 + $0x8] sm:$0xf]
      %v5043 = vld [vmem:[%s3 + $0xc] sm:$0xf]
      %v5044 = vld [vmem:[%s3 + $0x10] sm:$0xf]
      %v5045 = vld [vmem:[%s3 + $0x14] sm:$0xf]
      %v5046 = vld [vmem:[%s4] sm:$0x1]
      %v5111 = vrot.slane %v4976, 7
      %v5112 = vrot.slane %v4977, 7
      %v5113 = vsel %vm450, %v5111, %v5112
      %v5114 = vrot.slane %v4978, 7
      %v5115 = vrot.slane %v4979, 7
      %v5116 = vsel %vm450, %v5114, %v5115
      %v5117 = vrot.slane %v4980, 7
      %v5118 = vrot.slane %v4981, 7
      %v5119 = vsel %vm450, %v5117, %v5118
      %v5120 = vrot.slane %v4982, 7
      %v5121 = vrot.slane %v4983, 7
      %v5122 = vsel %vm450, %v5120, %v5121
      %v5123 = vrot.slane %v4984, 7
      %v5124 = vrot.slane %v4985, 7
      %v5125 = vsel %vm450, %v5123, %v5124
      %v5126 = vrot.slane %v4986, 7
      %v5127 = vrot.slane %v4987, 7
      %v5128 = vsel %vm450, %v5126, %v5127
      %v5129 = vrot.slane %v4988, 7
      %v5130 = vrot.slane %v4989, 7
      %v5131 = vsel %vm450, %v5129, %v5130
      %v5132 = vrot.slane %v4990, 7
      %v5133 = vrot.slane %v4991, 7
      %v5134 = vsel %vm450, %v5132, %v5133
      %v5135 = vrot.slane %v4992, 7
      %v5136 = vrot.slane %v4993, 7
      %v5137 = vsel %vm450, %v5135, %v5136
      %v5138 = vrot.slane %v4994, 7
      %v5139 = vrot.slane %v4995, 7
      %v5140 = vsel %vm450, %v5138, %v5139
      %v5141 = vrot.slane %v4996, 7
      %v5142 = vrot.slane %v4997, 7
      %v5143 = vsel %vm450, %v5141, %v5142
      %v5144 = vrot.slane %v4998, 7
      %v5145 = vrot.slane %v4999, 7
      %v5146 = vsel %vm450, %v5144, %v5145
      %v5147 = vrot.slane %v5000, 7
      %v5148 = vrot.slane %v5001, 7
      %v5149 = vsel %vm450, %v5147, %v5148
      %v5150 = vrot.slane %v5002, 7
      %v5151 = vrot.slane %v5003, 7
      %v5152 = vsel %vm450, %v5150, %v5151
      %v5153 = vrot.slane %v5004, 7
      %v5154 = vrot.slane %v5005, 7
      %v5155 = vsel %vm450, %v5153, %v5154
      %v5156 = vrot.slane %v5006, 7
      %v5157 = vrot.slane %v5007, 7
      %v5158 = vsel %vm450, %v5156, %v5157
      %v5159 = vrot.slane %v5008, 7
      %v5160 = vrot.slane %v5009, 7
      %v5161 = vsel %vm450, %v5159, %v5160
      %v5162 = vrot.slane %v5010, 7
      %v5163 = vrot.slane %v5011, 7
      %v5164 = vsel %vm450, %v5162, %v5163
      %v5165 = vrot.slane %v5012, 7
      %v5166 = vrot.slane %v5013, 7
      %v5167 = vsel %vm450, %v5165, %v5166
      %v5168 = vrot.slane %v5014, 7
      %v5169 = vrot.slane %v5015, 7
      %v5170 = vsel %vm450, %v5168, %v5169
      %v5171 = vrot.slane %v5016, 7
      %v5172 = vrot.slane %v5017, 7
      %v5173 = vsel %vm450, %v5171, %v5172
      %v5174 = vrot.slane %v5018, 7
      %v5175 = vrot.slane %v5019, 7
      %v5176 = vsel %vm450, %v5174, %v5175
      %v5177 = vrot.slane %v5020, 7
      %v5178 = vrot.slane %v5021, 7
      %v5179 = vsel %vm450, %v5177, %v5178
      %v5180 = vrot.slane %v5022, 7
      %v5181 = vrot.slane %v5023, 7
      %v5182 = vsel %vm450, %v5180, %v5181
      %v5183 = vrot.slane %v5024, 7
      %v5184 = vrot.slane %v5025, 7
      %v5185 = vsel %vm450, %v5183, %v5184
      %v5186 = vrot.slane %v5026, 7
      %v5187 = vrot.slane %v5027, 7
      %v5188 = vsel %vm450, %v5186, %v5187
      %v5189 = vrot.slane %v5028, 7
      %v5190 = vrot.slane %v5029, 7
      %v5191 = vsel %vm450, %v5189, %v5190
      %v5192 = vrot.slane %v5030, 7
      %v5193 = vrot.slane %v5031, 7
      %v5194 = vsel %vm450, %v5192, %v5193
      %v5195 = vrot.slane %v5032, 7
      %v5196 = vrot.slane %v5033, 7
      %v5197 = vsel %vm450, %v5195, %v5196
      %v5198 = vrot.slane %v5034, 7
      %v5199 = vrot.slane %v5035, 7
      %v5200 = vsel %vm450, %v5198, %v5199
      %v5201 = vrot.slane %v5036, 7
      %v5202 = vrot.slane %v5037, 7
      %v5203 = vsel %vm450, %v5201, %v5202
      %v5204 = vrot.slane %v5038, 7
      %v5205 = vrot.slane %v5039, 7
      %v5206 = vsel %vm450, %v5204, %v5205
      %5207 = vrot.lane.b32.xlu0 %v5111, 124
      %v5208 = vpop.permute.xlu0 %5207
      %5209 = vrot.lane.b32.xlu0 %v5113, 124
      %v5210 = vpop.permute.xlu0 %5209
      %5211 = vrot.lane.b32.xlu0 %v5114, 124
      %v5212 = vpop.permute.xlu0 %5211
      %5213 = vrot.lane.b32.xlu0 %v5116, 124
      %v5214 = vpop.permute.xlu0 %5213
      %5215 = vrot.lane.b32.xlu0 %v5117, 124
      %v5216 = vpop.permute.xlu0 %5215
      %5217 = vrot.lane.b32.xlu0 %v5119, 124
      %v5218 = vpop.permute.xlu0 %5217
      %5219 = vrot.lane.b32.xlu0 %v5120, 124
      %v5220 = vpop.permute.xlu0 %5219
      %5221 = vrot.lane.b32.xlu0 %v5122, 124
      %v5222 = vpop.permute.xlu0 %5221
      %5223 = vrot.lane.b32.xlu0 %v5123, 124
      %v5224 = vpop.permute.xlu0 %5223
      %5225 = vrot.lane.b32.xlu0 %v5125, 124
      %v5226 = vpop.permute.xlu0 %5225
      %5227 = vrot.lane.b32.xlu0 %v5126, 124
      %v5228 = vpop.permute.xlu0 %5227
      %5229 = vrot.lane.b32.xlu0 %v5128, 124
      %v5230 = vpop.permute.xlu0 %5229
      %5231 = vrot.lane.b32.xlu0 %v5129, 124
      %v5232 = vpop.permute.xlu0 %5231
      %5233 = vrot.lane.b32.xlu0 %v5131, 124
      %v5234 = vpop.permute.xlu0 %5233
      %5235 = vrot.lane.b32.xlu0 %v5132, 124
      %v5236 = vpop.permute.xlu0 %5235
      %5237 = vrot.lane.b32.xlu0 %v5134, 124
      %v5238 = vpop.permute.xlu0 %5237
      %5239 = vrot.lane.b32.xlu0 %v5135, 124
      %v5240 = vpop.permute.xlu0 %5239
      %5241 = vrot.lane.b32.xlu0 %v5137, 124
      %v5242 = vpop.permute.xlu0 %5241
      %5243 = vrot.lane.b32.xlu0 %v5138, 124
      %v5244 = vpop.permute.xlu0 %5243
      %5245 = vrot.lane.b32.xlu0 %v5140, 124
      %v5246 = vpop.permute.xlu0 %5245
      %5247 = vrot.lane.b32.xlu0 %v5141, 124
      %v5248 = vpop.permute.xlu0 %5247
      %5249 = vrot.lane.b32.xlu0 %v5143, 124
      %v5250 = vpop.permute.xlu0 %5249
      %5251 = vrot.lane.b32.xlu0 %v5144, 124
      %v5252 = vpop.permute.xlu0 %5251
      %5253 = vrot.lane.b32.xlu0 %v5146, 124
      %v5254 = vpop.permute.xlu0 %5253
      %5255 = vrot.lane.b32.xlu0 %v5147, 124
      %v5256 = vpop.permute.xlu0 %5255
      %5257 = vrot.lane.b32.xlu0 %v5149, 124
      %v5258 = vpop.permute.xlu0 %5257
      %5259 = vrot.lane.b32.xlu0 %v5150, 124
      %v5260 = vpop.permute.xlu0 %5259
      %5261 = vrot.lane.b32.xlu0 %v5152, 124
      %v5262 = vpop.permute.xlu0 %5261
      %5263 = vrot.lane.b32.xlu0 %v5153, 124
      %v5264 = vpop.permute.xlu0 %5263
      %5265 = vrot.lane.b32.xlu0 %v5155, 124
      %v5266 = vpop.permute.xlu0 %5265
      %5267 = vrot.lane.b32.xlu0 %v5156, 124
      %v5268 = vpop.permute.xlu0 %5267
      %5269 = vrot.lane.b32.xlu0 %v5158, 124
      %v5270 = vpop.permute.xlu0 %5269
      %5271 = vrot.lane.b32.xlu0 %v5159, 124
      %v5272 = vpop.permute.xlu0 %5271
      %5273 = vrot.lane.b32.xlu0 %v5161, 124
      %v5274 = vpop.permute.xlu0 %5273
      %5275 = vrot.lane.b32.xlu0 %v5162, 124
      %v5276 = vpop.permute.xlu0 %5275
      %5277 = vrot.lane.b32.xlu0 %v5164, 124
      %v5278 = vpop.permute.xlu0 %5277
      %5279 = vrot.lane.b32.xlu0 %v5165, 124
      %v5280 = vpop.permute.xlu0 %5279
      %5281 = vrot.lane.b32.xlu0 %v5167, 124
      %v5282 = vpop.permute.xlu0 %5281
      %5283 = vrot.lane.b32.xlu0 %v5168, 124
      %v5284 = vpop.permute.xlu0 %5283
      %5285 = vrot.lane.b32.xlu0 %v5170, 124
      %v5286 = vpop.permute.xlu0 %5285
      %5287 = vrot.lane.b32.xlu0 %v5171, 124
      %v5288 = vpop.permute.xlu0 %5287
      %5289 = vrot.lane.b32.xlu0 %v5173, 124
      %v5290 = vpop.permute.xlu0 %5289
      %5291 = vrot.lane.b32.xlu0 %v5174, 124
      %v5292 = vpop.permute.xlu0 %5291
      %5293 = vrot.lane.b32.xlu0 %v5176, 124
      %v5294 = vpop.permute.xlu0 %5293
      %5295 = vrot.lane.b32.xlu0 %v5177, 124
      %v5296 = vpop.permute.xlu0 %5295
      %5297 = vrot.lane.b32.xlu0 %v5179, 124
      %v5298 = vpop.permute.xlu0 %5297
      %5299 = vrot.lane.b32.xlu0 %v5180, 124
      %v5300 = vpop.permute.xlu0 %5299
      %5301 = vrot.lane.b32.xlu0 %v5182, 124
      %v5302 = vpop.permute.xlu0 %5301
      %5303 = vrot.lane.b32.xlu0 %v5183, 124
      %v5304 = vpop.permute.xlu0 %5303
      %5305 = vrot.lane.b32.xlu0 %v5185, 124
      %v5306 = vpop.permute.xlu0 %5305
      %5307 = vrot.lane.b32.xlu0 %v5186, 124
      %v5308 = vpop.permute.xlu0 %5307
      %5309 = vrot.lane.b32.xlu0 %v5188, 124
      %v5310 = vpop.permute.xlu0 %5309
      %5311 = vrot.lane.b32.xlu0 %v5189, 124
      %v5312 = vpop.permute.xlu0 %5311
      %5313 = vrot.lane.b32.xlu0 %v5191, 124
      %v5314 = vpop.permute.xlu0 %5313
      %5315 = vrot.lane.b32.xlu0 %v5192, 124
      %v5316 = vpop.permute.xlu0 %5315
      %5317 = vrot.lane.b32.xlu0 %v5194, 124
      %v5318 = vpop.permute.xlu0 %5317
      %5319 = vrot.lane.b32.xlu0 %v5195, 124
      %v5320 = vpop.permute.xlu0 %5319
      %5321 = vrot.lane.b32.xlu0 %v5197, 124
      %v5322 = vpop.permute.xlu0 %5321
      %5323 = vrot.lane.b32.xlu0 %v5198, 124
      %v5324 = vpop.permute.xlu0 %5323
      %5325 = vrot.lane.b32.xlu0 %v5200, 124
      %v5326 = vpop.permute.xlu0 %5325
      %5327 = vrot.lane.b32.xlu0 %v5201, 124
      %v5328 = vpop.permute.xlu0 %5327
      %5329 = vrot.lane.b32.xlu0 %v5203, 124
      %v5330 = vpop.permute.xlu0 %5329
      %5331 = vrot.lane.b32.xlu0 %v5204, 124
      %v5332 = vpop.permute.xlu0 %5331
      %5333 = vrot.lane.b32.xlu0 %v5206, 124
      %v5334 = vpop.permute.xlu0 %5333
      %v5398 = vsel %vm450, 0.0, %v5208
      %v5399 = vsel %vm450, 0.0, %v5212
      %v5400 = vsel %vm450, 0.0, %v5216
      %v5401 = vsel %vm450, 0.0, %v5220
      %v5402 = vsel %vm450, 0.0, %v5224
      %v5403 = vsel %vm450, 0.0, %v5228
      %v5404 = vsel %vm450, 0.0, %v5232
      %v5405 = vsel %vm450, 0.0, %v5236
      %v5406 = vsel %vm450, 0.0, %v5240
      %v5407 = vsel %vm450, 0.0, %v5244
      %v5408 = vsel %vm450, 0.0, %v5248
      %v5409 = vsel %vm450, 0.0, %v5252
      %v5410 = vsel %vm450, 0.0, %v5256
      %v5411 = vsel %vm450, 0.0, %v5260
      %v5412 = vsel %vm450, 0.0, %v5264
      %v5413 = vsel %vm450, 0.0, %v5268
      %v5414 = vsel %vm450, 0.0, %v5272
      %v5415 = vsel %vm450, 0.0, %v5276
      %v5416 = vsel %vm450, 0.0, %v5280
      %v5417 = vsel %vm450, 0.0, %v5284
      %v5418 = vsel %vm450, 0.0, %v5288
      %v5419 = vsel %vm450, 0.0, %v5292
      %v5420 = vsel %vm450, 0.0, %v5296
      %v5421 = vsel %vm450, 0.0, %v5300
      %v5422 = vsel %vm450, 0.0, %v5304
      %v5423 = vsel %vm450, 0.0, %v5308
      %v5424 = vsel %vm450, 0.0, %v5312
      %v5425 = vsel %vm450, 0.0, %v5316
      %v5426 = vsel %vm450, 0.0, %v5320
      %v5427 = vsel %vm450, 0.0, %v5324
      %v5428 = vsel %vm450, 0.0, %v5328
      %v5429 = vsel %vm450, 0.0, %v5332
      %v5430 = vrot.slane %v4976, 1
      %v5431 = vrot.slane %v4977, 1
      %v5432 = vsel %vm643, %v5430, %v5431
      %v5433 = vrot.slane %v4978, 1
      %v5434 = vrot.slane %v4979, 1
      %v5435 = vsel %vm643, %v5433, %v5434
      %v5436 = vrot.slane %v4980, 1
      %v5437 = vrot.slane %v4981, 1
      %v5438 = vsel %vm643, %v5436, %v5437
      %v5439 = vrot.slane %v4982, 1
      %v5440 = vrot.slane %v4983, 1
      %v5441 = vsel %vm643, %v5439, %v5440
      %v5442 = vrot.slane %v4984, 1
      %v5443 = vrot.slane %v4985, 1
      %v5444 = vsel %vm643, %v5442, %v5443
      %v5445 = vrot.slane %v4986, 1
      %v5446 = vrot.slane %v4987, 1
      %v5447 = vsel %vm643, %v5445, %v5446
      %v5448 = vrot.slane %v4988, 1
      %v5449 = vrot.slane %v4989, 1
      %v5450 = vsel %vm643, %v5448, %v5449
      %v5451 = vrot.slane %v4990, 1
      %v5452 = vrot.slane %v4991, 1
      %v5453 = vsel %vm643, %v5451, %v5452
      %v5454 = vrot.slane %v4992, 1
      %v5455 = vrot.slane %v4993, 1
      %v5456 = vsel %vm643, %v5454, %v5455
      %v5457 = vrot.slane %v4994, 1
      %v5458 = vrot.slane %v4995, 1
      %v5459 = vsel %vm643, %v5457, %v5458
      %v5460 = vrot.slane %v4996, 1
      %v5461 = vrot.slane %v4997, 1
      %v5462 = vsel %vm643, %v5460, %v5461
      %v5463 = vrot.slane %v4998, 1
      %v5464 = vrot.slane %v4999, 1
      %v5465 = vsel %vm643, %v5463, %v5464
      %v5466 = vrot.slane %v5000, 1
      %v5467 = vrot.slane %v5001, 1
      %v5468 = vsel %vm643, %v5466, %v5467
      %v5469 = vrot.slane %v5002, 1
      %v5470 = vrot.slane %v5003, 1
      %v5471 = vsel %vm643, %v5469, %v5470
      %v5472 = vrot.slane %v5004, 1
      %v5473 = vrot.slane %v5005, 1
      %v5474 = vsel %vm643, %v5472, %v5473
      %v5475 = vrot.slane %v5006, 1
      %v5476 = vrot.slane %v5007, 1
      %v5477 = vsel %vm643, %v5475, %v5476
      %v5478 = vrot.slane %v5008, 1
      %v5479 = vrot.slane %v5009, 1
      %v5480 = vsel %vm643, %v5478, %v5479
      %v5481 = vrot.slane %v5010, 1
      %v5482 = vrot.slane %v5011, 1
      %v5483 = vsel %vm643, %v5481, %v5482
      %v5484 = vrot.slane %v5012, 1
      %v5485 = vrot.slane %v5013, 1
      %v5486 = vsel %vm643, %v5484, %v5485
      %v5487 = vrot.slane %v5014, 1
      %v5488 = vrot.slane %v5015, 1
      %v5489 = vsel %vm643, %v5487, %v5488
      %v5490 = vrot.slane %v5016, 1
      %v5491 = vrot.slane %v5017, 1
      %v5492 = vsel %vm643, %v5490, %v5491
      %v5493 = vrot.slane %v5018, 1
      %v5494 = vrot.slane %v5019, 1
      %v5495 = vsel %vm643, %v5493, %v5494
      %v5496 = vrot.slane %v5020, 1
      %v5497 = vrot.slane %v5021, 1
      %v5498 = vsel %vm643, %v5496, %v5497
      %v5499 = vrot.slane %v5022, 1
      %v5500 = vrot.slane %v5023, 1
      %v5501 = vsel %vm643, %v5499, %v5500
      %v5502 = vrot.slane %v5024, 1
      %v5503 = vrot.slane %v5025, 1
      %v5504 = vsel %vm643, %v5502, %v5503
      %v5505 = vrot.slane %v5026, 1
      %v5506 = vrot.slane %v5027, 1
      %v5507 = vsel %vm643, %v5505, %v5506
      %v5508 = vrot.slane %v5028, 1
      %v5509 = vrot.slane %v5029, 1
      %v5510 = vsel %vm643, %v5508, %v5509
      %v5511 = vrot.slane %v5030, 1
      %v5512 = vrot.slane %v5031, 1
      %v5513 = vsel %vm643, %v5511, %v5512
      %v5514 = vrot.slane %v5032, 1
      %v5515 = vrot.slane %v5033, 1
      %v5516 = vsel %vm643, %v5514, %v5515
      %v5517 = vrot.slane %v5034, 1
      %v5518 = vrot.slane %v5035, 1
      %v5519 = vsel %vm643, %v5517, %v5518
      %v5520 = vrot.slane %v5036, 1
      %v5521 = vrot.slane %v5037, 1
      %v5522 = vsel %vm643, %v5520, %v5521
      %v5523 = vrot.slane %v5038, 1
      %v5524 = vrot.slane %v5039, 1
      %v5525 = vsel %vm643, %v5523, %v5524
      %v5558 = vsel %vm643, %v5431, 0.0
      %v5559 = vsel %vm643, %v5434, 0.0
      %v5560 = vsel %vm643, %v5437, 0.0
      %v5561 = vsel %vm643, %v5440, 0.0
      %v5562 = vsel %vm643, %v5443, 0.0
      %v5563 = vsel %vm643, %v5446, 0.0
      %v5564 = vsel %vm643, %v5449, 0.0
      %v5565 = vsel %vm643, %v5452, 0.0
      %v5566 = vsel %vm643, %v5455, 0.0
      %v5567 = vsel %vm643, %v5458, 0.0
      %v5568 = vsel %vm643, %v5461, 0.0
      %v5569 = vsel %vm643, %v5464, 0.0
      %v5570 = vsel %vm643, %v5467, 0.0
      %v5571 = vsel %vm643, %v5470, 0.0
      %v5572 = vsel %vm643, %v5473, 0.0
      %v5573 = vsel %vm643, %v5476, 0.0
      %v5574 = vsel %vm643, %v5479, 0.0
      %v5575 = vsel %vm643, %v5482, 0.0
      %v5576 = vsel %vm643, %v5485, 0.0
      %v5577 = vsel %vm643, %v5488, 0.0
      %v5578 = vsel %vm643, %v5491, 0.0
      %v5579 = vsel %vm643, %v5494, 0.0
      %v5580 = vsel %vm643, %v5497, 0.0
      %v5581 = vsel %vm643, %v5500, 0.0
      %v5582 = vsel %vm643, %v5503, 0.0
      %v5583 = vsel %vm643, %v5506, 0.0
      %v5584 = vsel %vm643, %v5509, 0.0
      %v5585 = vsel %vm643, %v5512, 0.0
      %v5586 = vsel %vm643, %v5515, 0.0
      %v5587 = vsel %vm643, %v5518, 0.0
      %v5588 = vsel %vm643, %v5521, 0.0
      %v5589 = vsel %vm643, %v5524, 0.0
      %5590 = vrot.lane.b32.xlu0 %v4976, 124
      %v5591 = vpop.permute.xlu0 %5590
      %5592 = vrot.lane.b32.xlu0 %v4977, 124
      %v5593 = vpop.permute.xlu0 %5592
      %5594 = vrot.lane.b32.xlu0 %v4978, 124
      %v5595 = vpop.permute.xlu0 %5594
      %5596 = vrot.lane.b32.xlu0 %v4979, 124
      %v5597 = vpop.permute.xlu0 %5596
      %5598 = vrot.lane.b32.xlu0 %v4980, 124
      %v5599 = vpop.permute.xlu0 %5598
      %5600 = vrot.lane.b32.xlu0 %v4981, 124
      %v5601 = vpop.permute.xlu0 %5600
      %5602 = vrot.lane.b32.xlu0 %v4982, 124
      %v5603 = vpop.permute.xlu0 %5602
      %5604 = vrot.lane.b32.xlu0 %v4983, 124
      %v5605 = vpop.permute.xlu0 %5604
      %5606 = vrot.lane.b32.xlu0 %v4984, 124
      %v5607 = vpop.permute.xlu0 %5606
      %5608 = vrot.lane.b32.xlu0 %v4985, 124
      %v5609 = vpop.permute.xlu0 %5608
      %5610 = vrot.lane.b32.xlu0 %v4986, 124
      %v5611 = vpop.permute.xlu0 %5610
      %5612 = vrot.lane.b32.xlu0 %v4987, 124
      %v5613 = vpop.permute.xlu0 %5612
      %5614 = vrot.lane.b32.xlu0 %v4988, 124
      %v5615 = vpop.permute.xlu0 %5614
      %5616 = vrot.lane.b32.xlu0 %v4989, 124
      %v5617 = vpop.permute.xlu0 %5616
      %5618 = vrot.lane.b32.xlu0 %v4990, 124
      %v5619 = vpop.permute.xlu0 %5618
      %5620 = vrot.lane.b32.xlu0 %v4991, 124
      %v5621 = vpop.permute.xlu0 %5620
      %5622 = vrot.lane.b32.xlu0 %v4992, 124
      %v5623 = vpop.permute.xlu0 %5622
      %5624 = vrot.lane.b32.xlu0 %v4993, 124
      %v5625 = vpop.permute.xlu0 %5624
      %5626 = vrot.lane.b32.xlu0 %v4994, 124
      %v5627 = vpop.permute.xlu0 %5626
      %5628 = vrot.lane.b32.xlu0 %v4995, 124
      %v5629 = vpop.permute.xlu0 %5628
      %5630 = vrot.lane.b32.xlu0 %v4996, 124
      %v5631 = vpop.permute.xlu0 %5630
      %5632 = vrot.lane.b32.xlu0 %v4997, 124
      %v5633 = vpop.permute.xlu0 %5632
      %5634 = vrot.lane.b32.xlu0 %v4998, 124
      %v5635 = vpop.permute.xlu0 %5634
      %5636 = vrot.lane.b32.xlu0 %v4999, 124
      %v5637 = vpop.permute.xlu0 %5636
      %5638 = vrot.lane.b32.xlu0 %v5000, 124
      %v5639 = vpop.permute.xlu0 %5638
      %5640 = vrot.lane.b32.xlu0 %v5001, 124
      %v5641 = vpop.permute.xlu0 %5640
      %5642 = vrot.lane.b32.xlu0 %v5002, 124
      %v5643 = vpop.permute.xlu0 %5642
      %5644 = vrot.lane.b32.xlu0 %v5003, 124
      %v5645 = vpop.permute.xlu0 %5644
      %5646 = vrot.lane.b32.xlu0 %v5004, 124
      %v5647 = vpop.permute.xlu0 %5646
      %5648 = vrot.lane.b32.xlu0 %v5005, 124
      %v5649 = vpop.permute.xlu0 %5648
      %5650 = vrot.lane.b32.xlu0 %v5006, 124
      %v5651 = vpop.permute.xlu0 %5650
      %5652 = vrot.lane.b32.xlu0 %v5007, 124
      %v5653 = vpop.permute.xlu0 %5652
      %5654 = vrot.lane.b32.xlu0 %v5008, 124
      %v5655 = vpop.permute.xlu0 %5654
      %5656 = vrot.lane.b32.xlu0 %v5009, 124
      %v5657 = vpop.permute.xlu0 %5656
      %5658 = vrot.lane.b32.xlu0 %v5010, 124
      %v5659 = vpop.permute.xlu0 %5658
      %5660 = vrot.lane.b32.xlu0 %v5011, 124
      %v5661 = vpop.permute.xlu0 %5660
      %5662 = vrot.lane.b32.xlu0 %v5012, 124
      %v5663 = vpop.permute.xlu0 %5662
      %5664 = vrot.lane.b32.xlu0 %v5013, 124
      %v5665 = vpop.permute.xlu0 %5664
      %5666 = vrot.lane.b32.xlu0 %v5014, 124
      %v5667 = vpop.permute.xlu0 %5666
      %5668 = vrot.lane.b32.xlu0 %v5015, 124
      %v5669 = vpop.permute.xlu0 %5668
      %5670 = vrot.lane.b32.xlu0 %v5016, 124
      %v5671 = vpop.permute.xlu0 %5670
      %5672 = vrot.lane.b32.xlu0 %v5017, 124
      %v5673 = vpop.permute.xlu0 %5672
      %5674 = vrot.lane.b32.xlu0 %v5018, 124
      %v5675 = vpop.permute.xlu0 %5674
      %5676 = vrot.lane.b32.xlu0 %v5019, 124
      %v5677 = vpop.permute.xlu0 %5676
      %5678 = vrot.lane.b32.xlu0 %v5020, 124
      %v5679 = vpop.permute.xlu0 %5678
      %5680 = vrot.lane.b32.xlu0 %v5021, 124
      %v5681 = vpop.permute.xlu0 %5680
      %5682 = vrot.lane.b32.xlu0 %v5022, 124
      %v5683 = vpop.permute.xlu0 %5682
      %5684 = vrot.lane.b32.xlu0 %v5023, 124
      %v5685 = vpop.permute.xlu0 %5684
      %5686 = vrot.lane.b32.xlu0 %v5024, 124
      %v5687 = vpop.permute.xlu0 %5686
      %5688 = vrot.lane.b32.xlu0 %v5025, 124
      %v5689 = vpop.permute.xlu0 %5688
      %5690 = vrot.lane.b32.xlu0 %v5026, 124
      %v5691 = vpop.permute.xlu0 %5690
      %5692 = vrot.lane.b32.xlu0 %v5027, 124
      %v5693 = vpop.permute.xlu0 %5692
      %5694 = vrot.lane.b32.xlu0 %v5028, 124
      %v5695 = vpop.permute.xlu0 %5694
      %5696 = vrot.lane.b32.xlu0 %v5029, 124
      %v5697 = vpop.permute.xlu0 %5696
      %5698 = vrot.lane.b32.xlu0 %v5030, 124
      %v5699 = vpop.permute.xlu0 %5698
      %5700 = vrot.lane.b32.xlu0 %v5031, 124
      %v5701 = vpop.permute.xlu0 %5700
      %5702 = vrot.lane.b32.xlu0 %v5032, 124
      %v5703 = vpop.permute.xlu0 %5702
      %5704 = vrot.lane.b32.xlu0 %v5033, 124
      %v5705 = vpop.permute.xlu0 %5704
      %5706 = vrot.lane.b32.xlu0 %v5034, 124
      %v5707 = vpop.permute.xlu0 %5706
      %5708 = vrot.lane.b32.xlu0 %v5035, 124
      %v5709 = vpop.permute.xlu0 %5708
      %5710 = vrot.lane.b32.xlu0 %v5036, 124
      %v5711 = vpop.permute.xlu0 %5710
      %5712 = vrot.lane.b32.xlu0 %v5037, 124
      %v5713 = vpop.permute.xlu0 %5712
      %5714 = vrot.lane.b32.xlu0 %v5038, 124
      %v5715 = vpop.permute.xlu0 %5714
      %5716 = vrot.lane.b32.xlu0 %v5039, 124
      %v5717 = vpop.permute.xlu0 %5716
      %5718 = vrot.lane.b32.xlu0 0.0, 4
      %v5719 = vpop.permute.xlu0 %5718
      %5720 = vrot.lane.b32.xlu0 %v4976, 4
      %v5721 = vpop.permute.xlu0 %5720
      %5722 = vrot.lane.b32.xlu0 %v4977, 4
      %v5723 = vpop.permute.xlu0 %5722
      %5724 = vrot.lane.b32.xlu0 %v4978, 4
      %v5725 = vpop.permute.xlu0 %5724
      %5726 = vrot.lane.b32.xlu0 %v4979, 4
      %v5727 = vpop.permute.xlu0 %5726
      %5728 = vrot.lane.b32.xlu0 %v4980, 4
      %v5729 = vpop.permute.xlu0 %5728
      %5730 = vrot.lane.b32.xlu0 %v4981, 4
      %v5731 = vpop.permute.xlu0 %5730
      %5732 = vrot.lane.b32.xlu0 %v4982, 4
      %v5733 = vpop.permute.xlu0 %5732
      %5734 = vrot.lane.b32.xlu0 %v4983, 4
      %v5735 = vpop.permute.xlu0 %5734
      %5736 = vrot.lane.b32.xlu0 %v4984, 4
      %v5737 = vpop.permute.xlu0 %5736
      %5738 = vrot.lane.b32.xlu0 %v4985, 4
      %v5739 = vpop.permute.xlu0 %5738
      %5740 = vrot.lane.b32.xlu0 %v4986, 4
      %v5741 = vpop.permute.xlu0 %5740
      %5742 = vrot.lane.b32.xlu0 %v4987, 4
      %v5743 = vpop.permute.xlu0 %5742
      %5744 = vrot.lane.b32.xlu0 %v4988, 4
      %v5745 = vpop.permute.xlu0 %5744
      %5746 = vrot.lane.b32.xlu0 %v4989, 4
      %v5747 = vpop.permute.xlu0 %5746
      %5748 = vrot.lane.b32.xlu0 %v4990, 4
      %v5749 = vpop.permute.xlu0 %5748
      %5750 = vrot.lane.b32.xlu0 %v4991, 4
      %v5751 = vpop.permute.xlu0 %5750
      %5752 = vrot.lane.b32.xlu0 %v4992, 4
      %v5753 = vpop.permute.xlu0 %5752
      %5754 = vrot.lane.b32.xlu0 %v4993, 4
      %v5755 = vpop.permute.xlu0 %5754
      %5756 = vrot.lane.b32.xlu0 %v4994, 4
      %v5757 = vpop.permute.xlu0 %5756
      %5758 = vrot.lane.b32.xlu0 %v4995, 4
      %v5759 = vpop.permute.xlu0 %5758
      %5760 = vrot.lane.b32.xlu0 %v4996, 4
      %v5761 = vpop.permute.xlu0 %5760
      %5762 = vrot.lane.b32.xlu0 %v4997, 4
      %v5763 = vpop.permute.xlu0 %5762
      %5764 = vrot.lane.b32.xlu0 %v4998, 4
      %v5765 = vpop.permute.xlu0 %5764
      %5766 = vrot.lane.b32.xlu0 %v4999, 4
      %v5767 = vpop.permute.xlu0 %5766
      %5768 = vrot.lane.b32.xlu0 %v5000, 4
      %v5769 = vpop.permute.xlu0 %5768
      %5770 = vrot.lane.b32.xlu0 %v5001, 4
      %v5771 = vpop.permute.xlu0 %5770
      %5772 = vrot.lane.b32.xlu0 %v5002, 4
      %v5773 = vpop.permute.xlu0 %5772
      %5774 = vrot.lane.b32.xlu0 %v5003, 4
      %v5775 = vpop.permute.xlu0 %5774
      %5776 = vrot.lane.b32.xlu0 %v5004, 4
      %v5777 = vpop.permute.xlu0 %5776
      %5778 = vrot.lane.b32.xlu0 %v5005, 4
      %v5779 = vpop.permute.xlu0 %5778
      %5780 = vrot.lane.b32.xlu0 %v5006, 4
      %v5781 = vpop.permute.xlu0 %5780
      %5782 = vrot.lane.b32.xlu0 %v5007, 4
      %v5783 = vpop.permute.xlu0 %5782
      %5784 = vrot.lane.b32.xlu0 %v5008, 4
      %v5785 = vpop.permute.xlu0 %5784
      %5786 = vrot.lane.b32.xlu0 %v5009, 4
      %v5787 = vpop.permute.xlu0 %5786
      %5788 = vrot.lane.b32.xlu0 %v5010, 4
      %v5789 = vpop.permute.xlu0 %5788
      %5790 = vrot.lane.b32.xlu0 %v5011, 4
      %v5791 = vpop.permute.xlu0 %5790
      %5792 = vrot.lane.b32.xlu0 %v5012, 4
      %v5793 = vpop.permute.xlu0 %5792
      %5794 = vrot.lane.b32.xlu0 %v5013, 4
      %v5795 = vpop.permute.xlu0 %5794
      %5796 = vrot.lane.b32.xlu0 %v5014, 4
      %v5797 = vpop.permute.xlu0 %5796
      %5798 = vrot.lane.b32.xlu0 %v5015, 4
      %v5799 = vpop.permute.xlu0 %5798
      %5800 = vrot.lane.b32.xlu0 %v5016, 4
      %v5801 = vpop.permute.xlu0 %5800
      %5802 = vrot.lane.b32.xlu0 %v5017, 4
      %v5803 = vpop.permute.xlu0 %5802
      %5804 = vrot.lane.b32.xlu0 %v5018, 4
      %v5805 = vpop.permute.xlu0 %5804
      %5806 = vrot.lane.b32.xlu0 %v5019, 4
      %v5807 = vpop.permute.xlu0 %5806
      %5808 = vrot.lane.b32.xlu0 %v5020, 4
      %v5809 = vpop.permute.xlu0 %5808
      %5810 = vrot.lane.b32.xlu0 %v5021, 4
      %v5811 = vpop.permute.xlu0 %5810
      %5812 = vrot.lane.b32.xlu0 %v5022, 4
      %v5813 = vpop.permute.xlu0 %5812
      %5814 = vrot.lane.b32.xlu0 %v5023, 4
      %v5815 = vpop.permute.xlu0 %5814
      %5816 = vrot.lane.b32.xlu0 %v5024, 4
      %v5817 = vpop.permute.xlu0 %5816
      %5818 = vrot.lane.b32.xlu0 %v5025, 4
      %v5819 = vpop.permute.xlu0 %5818
      %5820 = vrot.lane.b32.xlu0 %v5026, 4
      %v5821 = vpop.permute.xlu0 %5820
      %5822 = vrot.lane.b32.xlu0 %v5027, 4
      %v5823 = vpop.permute.xlu0 %5822
      %5824 = vrot.lane.b32.xlu0 %v5028, 4
      %v5825 = vpop.permute.xlu0 %5824
      %5826 = vrot.lane.b32.xlu0 %v5029, 4
      %v5827 = vpop.permute.xlu0 %5826
      %5828 = vrot.lane.b32.xlu0 %v5030, 4
      %v5829 = vpop.permute.xlu0 %5828
      %5830 = vrot.lane.b32.xlu0 %v5031, 4
      %v5831 = vpop.permute.xlu0 %5830
      %5832 = vrot.lane.b32.xlu0 %v5032, 4
      %v5833 = vpop.permute.xlu0 %5832
      %5834 = vrot.lane.b32.xlu0 %v5033, 4
      %v5835 = vpop.permute.xlu0 %5834
      %5836 = vrot.lane.b32.xlu0 %v5034, 4
      %v5837 = vpop.permute.xlu0 %5836
      %5838 = vrot.lane.b32.xlu0 %v5035, 4
      %v5839 = vpop.permute.xlu0 %5838
      %5840 = vrot.lane.b32.xlu0 %v5036, 4
      %v5841 = vpop.permute.xlu0 %5840
      %5842 = vrot.lane.b32.xlu0 %v5037, 4
      %v5843 = vpop.permute.xlu0 %5842
      %5907 = vrot.lane.b32.xlu0 %v5591, 8
      %v5908 = vpop.permute.xlu0 %5907
      %5909 = vrot.lane.b32.xlu0 %v5593, 8
      %v5910 = vpop.permute.xlu0 %5909
      %5911 = vrot.lane.b32.xlu0 %v5595, 8
      %v5912 = vpop.permute.xlu0 %5911
      %5913 = vrot.lane.b32.xlu0 %v5597, 8
      %v5914 = vpop.permute.xlu0 %5913
      %5915 = vrot.lane.b32.xlu0 %v5599, 8
      %v5916 = vpop.permute.xlu0 %5915
      %5917 = vrot.lane.b32.xlu0 %v5601, 8
      %v5918 = vpop.permute.xlu0 %5917
      %5919 = vrot.lane.b32.xlu0 %v5603, 8
      %v5920 = vpop.permute.xlu0 %5919
      %5921 = vrot.lane.b32.xlu0 %v5605, 8
      %v5922 = vpop.permute.xlu0 %5921
      %5923 = vrot.lane.b32.xlu0 %v5607, 8
      %v5924 = vpop.permute.xlu0 %5923
      %5925 = vrot.lane.b32.xlu0 %v5609, 8
      %v5926 = vpop.permute.xlu0 %5925
      %5927 = vrot.lane.b32.xlu0 %v5611, 8
      %v5928 = vpop.permute.xlu0 %5927
      %5929 = vrot.lane.b32.xlu0 %v5613, 8
      %v5930 = vpop.permute.xlu0 %5929
      %5931 = vrot.lane.b32.xlu0 %v5615, 8
      %v5932 = vpop.permute.xlu0 %5931
      %5933 = vrot.lane.b32.xlu0 %v5617, 8
      %v5934 = vpop.permute.xlu0 %5933
      %5935 = vrot.lane.b32.xlu0 %v5619, 8
      %v5936 = vpop.permute.xlu0 %5935
      %5937 = vrot.lane.b32.xlu0 %v5621, 8
      %v5938 = vpop.permute.xlu0 %5937
      %5939 = vrot.lane.b32.xlu0 %v5623, 8
      %v5940 = vpop.permute.xlu0 %5939
      %5941 = vrot.lane.b32.xlu0 %v5625, 8
      %v5942 = vpop.permute.xlu0 %5941
      %5943 = vrot.lane.b32.xlu0 %v5627, 8
      %v5944 = vpop.permute.xlu0 %5943
      %5945 = vrot.lane.b32.xlu0 %v5629, 8
      %v5946 = vpop.permute.xlu0 %5945
      %5947 = vrot.lane.b32.xlu0 %v5631, 8
      %v5948 = vpop.permute.xlu0 %5947
      %5949 = vrot.lane.b32.xlu0 %v5633, 8
      %v5950 = vpop.permute.xlu0 %5949
      %5951 = vrot.lane.b32.xlu0 %v5635, 8
      %v5952 = vpop.permute.xlu0 %5951
      %5953 = vrot.lane.b32.xlu0 %v5637, 8
      %v5954 = vpop.permute.xlu0 %5953
      %5955 = vrot.lane.b32.xlu0 %v5639, 8
      %v5956 = vpop.permute.xlu0 %5955
      %5957 = vrot.lane.b32.xlu0 %v5641, 8
      %v5958 = vpop.permute.xlu0 %5957
      %5959 = vrot.lane.b32.xlu0 %v5643, 8
      %v5960 = vpop.permute.xlu0 %5959
      %5961 = vrot.lane.b32.xlu0 %v5645, 8
      %v5962 = vpop.permute.xlu0 %5961
      %5963 = vrot.lane.b32.xlu0 %v5647, 8
      %v5964 = vpop.permute.xlu0 %5963
      %5965 = vrot.lane.b32.xlu0 %v5649, 8
      %v5966 = vpop.permute.xlu0 %5965
      %5967 = vrot.lane.b32.xlu0 %v5651, 8
      %v5968 = vpop.permute.xlu0 %5967
      %5969 = vrot.lane.b32.xlu0 %v5653, 8
      %v5970 = vpop.permute.xlu0 %5969
      %5971 = vrot.lane.b32.xlu0 %v5655, 8
      %v5972 = vpop.permute.xlu0 %5971
      %5973 = vrot.lane.b32.xlu0 %v5657, 8
      %v5974 = vpop.permute.xlu0 %5973
      %5975 = vrot.lane.b32.xlu0 %v5659, 8
      %v5976 = vpop.permute.xlu0 %5975
      %5977 = vrot.lane.b32.xlu0 %v5661, 8
      %v5978 = vpop.permute.xlu0 %5977
      %5979 = vrot.lane.b32.xlu0 %v5663, 8
      %v5980 = vpop.permute.xlu0 %5979
      %5981 = vrot.lane.b32.xlu0 %v5665, 8
      %v5982 = vpop.permute.xlu0 %5981
      %5983 = vrot.lane.b32.xlu0 %v5667, 8
      %v5984 = vpop.permute.xlu0 %5983
      %5985 = vrot.lane.b32.xlu0 %v5669, 8
      %v5986 = vpop.permute.xlu0 %5985
      %5987 = vrot.lane.b32.xlu0 %v5671, 8
      %v5988 = vpop.permute.xlu0 %5987
      %5989 = vrot.lane.b32.xlu0 %v5673, 8
      %v5990 = vpop.permute.xlu0 %5989
      %5991 = vrot.lane.b32.xlu0 %v5675, 8
      %v5992 = vpop.permute.xlu0 %5991
      %5993 = vrot.lane.b32.xlu0 %v5677, 8
      %v5994 = vpop.permute.xlu0 %5993
      %5995 = vrot.lane.b32.xlu0 %v5679, 8
      %v5996 = vpop.permute.xlu0 %5995
      %5997 = vrot.lane.b32.xlu0 %v5681, 8
      %v5998 = vpop.permute.xlu0 %5997
      %5999 = vrot.lane.b32.xlu0 %v5683, 8
      %v6000 = vpop.permute.xlu0 %5999
      %6001 = vrot.lane.b32.xlu0 %v5685, 8
      %v6002 = vpop.permute.xlu0 %6001
      %6003 = vrot.lane.b32.xlu0 %v5687, 8
      %v6004 = vpop.permute.xlu0 %6003
      %6005 = vrot.lane.b32.xlu0 %v5689, 8
      %v6006 = vpop.permute.xlu0 %6005
      %6007 = vrot.lane.b32.xlu0 %v5691, 8
      %v6008 = vpop.permute.xlu0 %6007
      %6009 = vrot.lane.b32.xlu0 %v5693, 8
      %v6010 = vpop.permute.xlu0 %6009
      %6011 = vrot.lane.b32.xlu0 %v5695, 8
      %v6012 = vpop.permute.xlu0 %6011
      %6013 = vrot.lane.b32.xlu0 %v5697, 8
      %v6014 = vpop.permute.xlu0 %6013
      %6015 = vrot.lane.b32.xlu0 %v5699, 8
      %v6016 = vpop.permute.xlu0 %6015
      %6017 = vrot.lane.b32.xlu0 %v5701, 8
      %v6018 = vpop.permute.xlu0 %6017
      %6019 = vrot.lane.b32.xlu0 %v5703, 8
      %v6020 = vpop.permute.xlu0 %6019
      %6021 = vrot.lane.b32.xlu0 %v5705, 8
      %v6022 = vpop.permute.xlu0 %6021
      %6023 = vrot.lane.b32.xlu0 %v5707, 8
      %v6024 = vpop.permute.xlu0 %6023
      %6025 = vrot.lane.b32.xlu0 %v5709, 8
      %v6026 = vpop.permute.xlu0 %6025
      %6027 = vrot.lane.b32.xlu0 %v5711, 8
      %v6028 = vpop.permute.xlu0 %6027
      %6029 = vrot.lane.b32.xlu0 %v5713, 8
      %v6030 = vpop.permute.xlu0 %6029
      %6124 = vrot.lane.b32.xlu0 0.0, 12
      %v6125 = vpop.permute.xlu0 %6124
      %6126 = vrot.lane.b32.xlu0 %v5432, 12
      %v6127 = vpop.permute.xlu0 %6126
      %6128 = vrot.lane.b32.xlu0 %v5558, 12
      %v6129 = vpop.permute.xlu0 %6128
      %6130 = vrot.lane.b32.xlu0 %v5435, 12
      %v6131 = vpop.permute.xlu0 %6130
      %6132 = vrot.lane.b32.xlu0 %v5559, 12
      %v6133 = vpop.permute.xlu0 %6132
      %6134 = vrot.lane.b32.xlu0 %v5438, 12
      %v6135 = vpop.permute.xlu0 %6134
      %6136 = vrot.lane.b32.xlu0 %v5560, 12
      %v6137 = vpop.permute.xlu0 %6136
      %6138 = vrot.lane.b32.xlu0 %v5441, 12
      %v6139 = vpop.permute.xlu0 %6138
      %6140 = vrot.lane.b32.xlu0 %v5561, 12
      %v6141 = vpop.permute.xlu0 %6140
      %6142 = vrot.lane.b32.xlu0 %v5444, 12
      %v6143 = vpop.permute.xlu0 %6142
      %6144 = vrot.lane.b32.xlu0 %v5562, 12
      %v6145 = vpop.permute.xlu0 %6144
      %6146 = vrot.lane.b32.xlu0 %v5447, 12
      %v6147 = vpop.permute.xlu0 %6146
      %6148 = vrot.lane.b32.xlu0 %v5563, 12
      %v6149 = vpop.permute.xlu0 %6148
      %6150 = vrot.lane.b32.xlu0 %v5450, 12
      %v6151 = vpop.permute.xlu0 %6150
      %6152 = vrot.lane.b32.xlu0 %v5564, 12
      %v6153 = vpop.permute.xlu0 %6152
      %6154 = vrot.lane.b32.xlu0 %v5453, 12
      %v6155 = vpop.permute.xlu0 %6154
      %6156 = vrot.lane.b32.xlu0 %v5565, 12
      %v6157 = vpop.permute.xlu0 %6156
      %6158 = vrot.lane.b32.xlu0 %v5456, 12
      %v6159 = vpop.permute.xlu0 %6158
      %6160 = vrot.lane.b32.xlu0 %v5566, 12
      %v6161 = vpop.permute.xlu0 %6160
      %6162 = vrot.lane.b32.xlu0 %v5459, 12
      %v6163 = vpop.permute.xlu0 %6162
      %6164 = vrot.lane.b32.xlu0 %v5567, 12
      %v6165 = vpop.permute.xlu0 %6164
      %6166 = vrot.lane.b32.xlu0 %v5462, 12
      %v6167 = vpop.permute.xlu0 %6166
      %6168 = vrot.lane.b32.xlu0 %v5568, 12
      %v6169 = vpop.permute.xlu0 %6168
      %6170 = vrot.lane.b32.xlu0 %v5465, 12
      %v6171 = vpop.permute.xlu0 %6170
      %6172 = vrot.lane.b32.xlu0 %v5569, 12
      %v6173 = vpop.permute.xlu0 %6172
      %6174 = vrot.lane.b32.xlu0 %v5468, 12
      %v6175 = vpop.permute.xlu0 %6174
      %6176 = vrot.lane.b32.xlu0 %v5570, 12
      %v6177 = vpop.permute.xlu0 %6176
      %6178 = vrot.lane.b32.xlu0 %v5471, 12
      %v6179 = vpop.permute.xlu0 %6178
      %6180 = vrot.lane.b32.xlu0 %v5571, 12
      %v6181 = vpop.permute.xlu0 %6180
      %6182 = vrot.lane.b32.xlu0 %v5474, 12
      %v6183 = vpop.permute.xlu0 %6182
      %6184 = vrot.lane.b32.xlu0 %v5572, 12
      %v6185 = vpop.permute.xlu0 %6184
      %6186 = vrot.lane.b32.xlu0 %v5477, 12
      %v6187 = vpop.permute.xlu0 %6186
      %6188 = vrot.lane.b32.xlu0 %v5573, 12
      %v6189 = vpop.permute.xlu0 %6188
      %6190 = vrot.lane.b32.xlu0 %v5480, 12
      %v6191 = vpop.permute.xlu0 %6190
      %6192 = vrot.lane.b32.xlu0 %v5574, 12
      %v6193 = vpop.permute.xlu0 %6192
      %6194 = vrot.lane.b32.xlu0 %v5483, 12
      %v6195 = vpop.permute.xlu0 %6194
      %6196 = vrot.lane.b32.xlu0 %v5575, 12
      %v6197 = vpop.permute.xlu0 %6196
      %6198 = vrot.lane.b32.xlu0 %v5486, 12
      %v6199 = vpop.permute.xlu0 %6198
      %6200 = vrot.lane.b32.xlu0 %v5576, 12
      %v6201 = vpop.permute.xlu0 %6200
      %6202 = vrot.lane.b32.xlu0 %v5489, 12
      %v6203 = vpop.permute.xlu0 %6202
      %6204 = vrot.lane.b32.xlu0 %v5577, 12
      %v6205 = vpop.permute.xlu0 %6204
      %6206 = vrot.lane.b32.xlu0 %v5492, 12
      %v6207 = vpop.permute.xlu0 %6206
      %6208 = vrot.lane.b32.xlu0 %v5578, 12
      %v6209 = vpop.permute.xlu0 %6208
      %6210 = vrot.lane.b32.xlu0 %v5495, 12
      %v6211 = vpop.permute.xlu0 %6210
      %6212 = vrot.lane.b32.xlu0 %v5579, 12
      %v6213 = vpop.permute.xlu0 %6212
      %6214 = vrot.lane.b32.xlu0 %v5498, 12
      %v6215 = vpop.permute.xlu0 %6214
      %6216 = vrot.lane.b32.xlu0 %v5580, 12
      %v6217 = vpop.permute.xlu0 %6216
      %6218 = vrot.lane.b32.xlu0 %v5501, 12
      %v6219 = vpop.permute.xlu0 %6218
      %6220 = vrot.lane.b32.xlu0 %v5581, 12
      %v6221 = vpop.permute.xlu0 %6220
      %6222 = vrot.lane.b32.xlu0 %v5504, 12
      %v6223 = vpop.permute.xlu0 %6222
      %6224 = vrot.lane.b32.xlu0 %v5582, 12
      %v6225 = vpop.permute.xlu0 %6224
      %6226 = vrot.lane.b32.xlu0 %v5507, 12
      %v6227 = vpop.permute.xlu0 %6226
      %6228 = vrot.lane.b32.xlu0 %v5583, 12
      %v6229 = vpop.permute.xlu0 %6228
      %6230 = vrot.lane.b32.xlu0 %v5510, 12
      %v6231 = vpop.permute.xlu0 %6230
      %6232 = vrot.lane.b32.xlu0 %v5584, 12
      %v6233 = vpop.permute.xlu0 %6232
      %6234 = vrot.lane.b32.xlu0 %v5513, 12
      %v6235 = vpop.permute.xlu0 %6234
      %6236 = vrot.lane.b32.xlu0 %v5585, 12
      %v6237 = vpop.permute.xlu0 %6236
      %6238 = vrot.lane.b32.xlu0 %v5516, 12
      %v6239 = vpop.permute.xlu0 %6238
      %6240 = vrot.lane.b32.xlu0 %v5586, 12
      %v6241 = vpop.permute.xlu0 %6240
      %6242 = vrot.lane.b32.xlu0 %v5519, 12
      %v6243 = vpop.permute.xlu0 %6242
      %6244 = vrot.lane.b32.xlu0 %v5587, 12
      %v6245 = vpop.permute.xlu0 %6244
      %6246 = vrot.lane.b32.xlu0 %v5522, 12
      %v6247 = vpop.permute.xlu0 %6246
      %6248 = vrot.lane.b32.xlu0 %v5588, 12
      %v6249 = vpop.permute.xlu0 %6248
      %6345 = vrot.lane.b32.xlu0 %v5398, 16
      %v6346 = vpop.permute.xlu0 %6345
      %6347 = vrot.lane.b32.xlu0 %v5210, 16
      %v6348 = vpop.permute.xlu0 %6347
      %6349 = vrot.lane.b32.xlu0 %v5399, 16
      %v6350 = vpop.permute.xlu0 %6349
      %6351 = vrot.lane.b32.xlu0 %v5214, 16
      %v6352 = vpop.permute.xlu0 %6351
      %6353 = vrot.lane.b32.xlu0 %v5400, 16
      %v6354 = vpop.permute.xlu0 %6353
      %6355 = vrot.lane.b32.xlu0 %v5218, 16
      %v6356 = vpop.permute.xlu0 %6355
      %6357 = vrot.lane.b32.xlu0 %v5401, 16
      %v6358 = vpop.permute.xlu0 %6357
      %6359 = vrot.lane.b32.xlu0 %v5222, 16
      %v6360 = vpop.permute.xlu0 %6359
      %6361 = vrot.lane.b32.xlu0 %v5402, 16
      %v6362 = vpop.permute.xlu0 %6361
      %6363 = vrot.lane.b32.xlu0 %v5226, 16
      %v6364 = vpop.permute.xlu0 %6363
      %6365 = vrot.lane.b32.xlu0 %v5403, 16
      %v6366 = vpop.permute.xlu0 %6365
      %6367 = vrot.lane.b32.xlu0 %v5230, 16
      %v6368 = vpop.permute.xlu0 %6367
      %6369 = vrot.lane.b32.xlu0 %v5404, 16
      %v6370 = vpop.permute.xlu0 %6369
      %6371 = vrot.lane.b32.xlu0 %v5234, 16
      %v6372 = vpop.permute.xlu0 %6371
      %6373 = vrot.lane.b32.xlu0 %v5405, 16
      %v6374 = vpop.permute.xlu0 %6373
      %6375 = vrot.lane.b32.xlu0 %v5238, 16
      %v6376 = vpop.permute.xlu0 %6375
      %6377 = vrot.lane.b32.xlu0 %v5406, 16
      %v6378 = vpop.permute.xlu0 %6377
      %6379 = vrot.lane.b32.xlu0 %v5242, 16
      %v6380 = vpop.permute.xlu0 %6379
      %6381 = vrot.lane.b32.xlu0 %v5407, 16
      %v6382 = vpop.permute.xlu0 %6381
      %6383 = vrot.lane.b32.xlu0 %v5246, 16
      %v6384 = vpop.permute.xlu0 %6383
      %6385 = vrot.lane.b32.xlu0 %v5408, 16
      %v6386 = vpop.permute.xlu0 %6385
      %6387 = vrot.lane.b32.xlu0 %v5250, 16
      %v6388 = vpop.permute.xlu0 %6387
      %6389 = vrot.lane.b32.xlu0 %v5409, 16
      %v6390 = vpop.permute.xlu0 %6389
      %6391 = vrot.lane.b32.xlu0 %v5254, 16
      %v6392 = vpop.permute.xlu0 %6391
      %6393 = vrot.lane.b32.xlu0 %v5410, 16
      %v6394 = vpop.permute.xlu0 %6393
      %6395 = vrot.lane.b32.xlu0 %v5258, 16
      %v6396 = vpop.permute.xlu0 %6395
      %6397 = vrot.lane.b32.xlu0 %v5411, 16
      %v6398 = vpop.permute.xlu0 %6397
      %6399 = vrot.lane.b32.xlu0 %v5262, 16
      %v6400 = vpop.permute.xlu0 %6399
      %6401 = vrot.lane.b32.xlu0 %v5412, 16
      %v6402 = vpop.permute.xlu0 %6401
      %6403 = vrot.lane.b32.xlu0 %v5266, 16
      %v6404 = vpop.permute.xlu0 %6403
      %6405 = vrot.lane.b32.xlu0 %v5413, 16
      %v6406 = vpop.permute.xlu0 %6405
      %6407 = vrot.lane.b32.xlu0 %v5270, 16
      %v6408 = vpop.permute.xlu0 %6407
      %6409 = vrot.lane.b32.xlu0 %v5414, 16
      %v6410 = vpop.permute.xlu0 %6409
      %6411 = vrot.lane.b32.xlu0 %v5274, 16
      %v6412 = vpop.permute.xlu0 %6411
      %6413 = vrot.lane.b32.xlu0 %v5415, 16
      %v6414 = vpop.permute.xlu0 %6413
      %6415 = vrot.lane.b32.xlu0 %v5278, 16
      %v6416 = vpop.permute.xlu0 %6415
      %6417 = vrot.lane.b32.xlu0 %v5416, 16
      %v6418 = vpop.permute.xlu0 %6417
      %6419 = vrot.lane.b32.xlu0 %v5282, 16
      %v6420 = vpop.permute.xlu0 %6419
      %6421 = vrot.lane.b32.xlu0 %v5417, 16
      %v6422 = vpop.permute.xlu0 %6421
      %6423 = vrot.lane.b32.xlu0 %v5286, 16
      %v6424 = vpop.permute.xlu0 %6423
      %6425 = vrot.lane.b32.xlu0 %v5418, 16
      %v6426 = vpop.permute.xlu0 %6425
      %6427 = vrot.lane.b32.xlu0 %v5290, 16
      %v6428 = vpop.permute.xlu0 %6427
      %6429 = vrot.lane.b32.xlu0 %v5419, 16
      %v6430 = vpop.permute.xlu0 %6429
      %6431 = vrot.lane.b32.xlu0 %v5294, 16
      %v6432 = vpop.permute.xlu0 %6431
      %6433 = vrot.lane.b32.xlu0 %v5420, 16
      %v6434 = vpop.permute.xlu0 %6433
      %6435 = vrot.lane.b32.xlu0 %v5298, 16
      %v6436 = vpop.permute.xlu0 %6435
      %6437 = vrot.lane.b32.xlu0 %v5421, 16
      %v6438 = vpop.permute.xlu0 %6437
      %6439 = vrot.lane.b32.xlu0 %v5302, 16
      %v6440 = vpop.permute.xlu0 %6439
      %6441 = vrot.lane.b32.xlu0 %v5422, 16
      %v6442 = vpop.permute.xlu0 %6441
      %6443 = vrot.lane.b32.xlu0 %v5306, 16
      %v6444 = vpop.permute.xlu0 %6443
      %6445 = vrot.lane.b32.xlu0 %v5423, 16
      %v6446 = vpop.permute.xlu0 %6445
      %6447 = vrot.lane.b32.xlu0 %v5310, 16
      %v6448 = vpop.permute.xlu0 %6447
      %6449 = vrot.lane.b32.xlu0 %v5424, 16
      %v6450 = vpop.permute.xlu0 %6449
      %6451 = vrot.lane.b32.xlu0 %v5314, 16
      %v6452 = vpop.permute.xlu0 %6451
      %6453 = vrot.lane.b32.xlu0 %v5425, 16
      %v6454 = vpop.permute.xlu0 %6453
      %6455 = vrot.lane.b32.xlu0 %v5318, 16
      %v6456 = vpop.permute.xlu0 %6455
      %6457 = vrot.lane.b32.xlu0 %v5426, 16
      %v6458 = vpop.permute.xlu0 %6457
      %6459 = vrot.lane.b32.xlu0 %v5322, 16
      %v6460 = vpop.permute.xlu0 %6459
      %6461 = vrot.lane.b32.xlu0 %v5427, 16
      %v6462 = vpop.permute.xlu0 %6461
      %6463 = vrot.lane.b32.xlu0 %v5326, 16
      %v6464 = vpop.permute.xlu0 %6463
      %6465 = vrot.lane.b32.xlu0 %v5428, 16
      %v6466 = vpop.permute.xlu0 %6465
      %6467 = vrot.lane.b32.xlu0 %v5330, 16
      %v6468 = vpop.permute.xlu0 %6467
      %6469 = vrot.lane.b32.xlu0 %v5429, 16
      %v6470 = vpop.permute.xlu0 %6469
      %6471 = vrot.lane.b32.xlu0 %v5334, 16
      %v6472 = vpop.permute.xlu0 %6471
      %6537 = vrot.lane.b32.xlu0 %v4976, 20
      %v6538 = vpop.permute.xlu0 %6537
      %6539 = vrot.lane.b32.xlu0 %v4977, 20
      %v6540 = vpop.permute.xlu0 %6539
      %6541 = vrot.lane.b32.xlu0 %v4978, 20
      %v6542 = vpop.permute.xlu0 %6541
      %6543 = vrot.lane.b32.xlu0 %v4979, 20
      %v6544 = vpop.permute.xlu0 %6543
      %6545 = vrot.lane.b32.xlu0 %v4980, 20
      %v6546 = vpop.permute.xlu0 %6545
      %6547 = vrot.lane.b32.xlu0 %v4981, 20
      %v6548 = vpop.permute.xlu0 %6547
      %6549 = vrot.lane.b32.xlu0 %v4982, 20
      %v6550 = vpop.permute.xlu0 %6549
      %6551 = vrot.lane.b32.xlu0 %v4983, 20
      %v6552 = vpop.permute.xlu0 %6551
      %6553 = vrot.lane.b32.xlu0 %v4984, 20
      %v6554 = vpop.permute.xlu0 %6553
      %6555 = vrot.lane.b32.xlu0 %v4985, 20
      %v6556 = vpop.permute.xlu0 %6555
      %6557 = vrot.lane.b32.xlu0 %v4986, 20
      %v6558 = vpop.permute.xlu0 %6557
      %6559 = vrot.lane.b32.xlu0 %v4987, 20
      %v6560 = vpop.permute.xlu0 %6559
      %6561 = vrot.lane.b32.xlu0 %v4988, 20
      %v6562 = vpop.permute.xlu0 %6561
      %6563 = vrot.lane.b32.xlu0 %v4989, 20
      %v6564 = vpop.permute.xlu0 %6563
      %6565 = vrot.lane.b32.xlu0 %v4990, 20
      %v6566 = vpop.permute.xlu0 %6565
      %6567 = vrot.lane.b32.xlu0 %v4991, 20
      %v6568 = vpop.permute.xlu0 %6567
      %6569 = vrot.lane.b32.xlu0 %v4992, 20
      %v6570 = vpop.permute.xlu0 %6569
      %6571 = vrot.lane.b32.xlu0 %v4993, 20
      %v6572 = vpop.permute.xlu0 %6571
      %6573 = vrot.lane.b32.xlu0 %v4994, 20
      %v6574 = vpop.permute.xlu0 %6573
      %6575 = vrot.lane.b32.xlu0 %v4995, 20
      %v6576 = vpop.permute.xlu0 %6575
      %6577 = vrot.lane.b32.xlu0 %v4996, 20
      %v6578 = vpop.permute.xlu0 %6577
      %6579 = vrot.lane.b32.xlu0 %v4997, 20
      %v6580 = vpop.permute.xlu0 %6579
      %6581 = vrot.lane.b32.xlu0 %v4998, 20
      %v6582 = vpop.permute.xlu0 %6581
      %6583 = vrot.lane.b32.xlu0 %v4999, 20
      %v6584 = vpop.permute.xlu0 %6583
      %6585 = vrot.lane.b32.xlu0 %v5000, 20
      %v6586 = vpop.permute.xlu0 %6585
      %6587 = vrot.lane.b32.xlu0 %v5001, 20
      %v6588 = vpop.permute.xlu0 %6587
      %6589 = vrot.lane.b32.xlu0 %v5002, 20
      %v6590 = vpop.permute.xlu0 %6589
      %6591 = vrot.lane.b32.xlu0 %v5003, 20
      %v6592 = vpop.permute.xlu0 %6591
      %6593 = vrot.lane.b32.xlu0 %v5004, 20
      %v6594 = vpop.permute.xlu0 %6593
      %6595 = vrot.lane.b32.xlu0 %v5005, 20
      %v6596 = vpop.permute.xlu0 %6595
      %6597 = vrot.lane.b32.xlu0 %v5006, 20
      %v6598 = vpop.permute.xlu0 %6597
      %6599 = vrot.lane.b32.xlu0 %v5007, 20
      %v6600 = vpop.permute.xlu0 %6599
      %6601 = vrot.lane.b32.xlu0 %v5008, 20
      %v6602 = vpop.permute.xlu0 %6601
      %6603 = vrot.lane.b32.xlu0 %v5009, 20
      %v6604 = vpop.permute.xlu0 %6603
      %6605 = vrot.lane.b32.xlu0 %v5010, 20
      %v6606 = vpop.permute.xlu0 %6605
      %6607 = vrot.lane.b32.xlu0 %v5011, 20
      %v6608 = vpop.permute.xlu0 %6607
      %6609 = vrot.lane.b32.xlu0 %v5012, 20
      %v6610 = vpop.permute.xlu0 %6609
      %6611 = vrot.lane.b32.xlu0 %v5013, 20
      %v6612 = vpop.permute.xlu0 %6611
      %6613 = vrot.lane.b32.xlu0 %v5014, 20
      %v6614 = vpop.permute.xlu0 %6613
      %6615 = vrot.lane.b32.xlu0 %v5015, 20
      %v6616 = vpop.permute.xlu0 %6615
      %6617 = vrot.lane.b32.xlu0 %v5016, 20
      %v6618 = vpop.permute.xlu0 %6617
      %6619 = vrot.lane.b32.xlu0 %v5017, 20
      %v6620 = vpop.permute.xlu0 %6619
      %6621 = vrot.lane.b32.xlu0 %v5018, 20
      %v6622 = vpop.permute.xlu0 %6621
      %6623 = vrot.lane.b32.xlu0 %v5019, 20
      %v6624 = vpop.permute.xlu0 %6623
      %6625 = vrot.lane.b32.xlu0 %v5020, 20
      %v6626 = vpop.permute.xlu0 %6625
      %6627 = vrot.lane.b32.xlu0 %v5021, 20
      %v6628 = vpop.permute.xlu0 %6627
      %6629 = vrot.lane.b32.xlu0 %v5022, 20
      %v6630 = vpop.permute.xlu0 %6629
      %6631 = vrot.lane.b32.xlu0 %v5023, 20
      %v6632 = vpop.permute.xlu0 %6631
      %6633 = vrot.lane.b32.xlu0 %v5024, 20
      %v6634 = vpop.permute.xlu0 %6633
      %6635 = vrot.lane.b32.xlu0 %v5025, 20
      %v6636 = vpop.permute.xlu0 %6635
      %6637 = vrot.lane.b32.xlu0 %v5026, 20
      %v6638 = vpop.permute.xlu0 %6637
      %6639 = vrot.lane.b32.xlu0 %v5027, 20
      %v6640 = vpop.permute.xlu0 %6639
      %6641 = vrot.lane.b32.xlu0 %v5028, 20
      %v6642 = vpop.permute.xlu0 %6641
      %6643 = vrot.lane.b32.xlu0 %v5029, 20
      %v6644 = vpop.permute.xlu0 %6643
      %6645 = vrot.lane.b32.xlu0 %v5030, 20
      %v6646 = vpop.permute.xlu0 %6645
      %6647 = vrot.lane.b32.xlu0 %v5031, 20
      %v6648 = vpop.permute.xlu0 %6647
      %6649 = vrot.lane.b32.xlu0 %v5032, 20
      %v6650 = vpop.permute.xlu0 %6649
      %6651 = vrot.lane.b32.xlu0 %v5033, 20
      %v6652 = vpop.permute.xlu0 %6651
      %6653 = vrot.lane.b32.xlu0 %v5034, 20
      %v6654 = vpop.permute.xlu0 %6653
      %6655 = vrot.lane.b32.xlu0 %v5035, 20
      %v6656 = vpop.permute.xlu0 %6655
      %6657 = vrot.lane.b32.xlu0 %v5036, 20
      %v6658 = vpop.permute.xlu0 %6657
      %6659 = vrot.lane.b32.xlu0 %v5037, 20
      %v6660 = vpop.permute.xlu0 %6659
      %6661 = vrot.lane.b32.xlu0 %v5038, 20
      %v6662 = vpop.permute.xlu0 %6661
      %6663 = vrot.lane.b32.xlu0 %v5039, 20
      %v6664 = vpop.permute.xlu0 %6663
      %6729 = vrot.lane.b32.xlu0 %v5591, 24
      %v6730 = vpop.permute.xlu0 %6729
      %6731 = vrot.lane.b32.xlu0 %v5593, 24
      %v6732 = vpop.permute.xlu0 %6731
      %6733 = vrot.lane.b32.xlu0 %v5595, 24
      %v6734 = vpop.permute.xlu0 %6733
      %6735 = vrot.lane.b32.xlu0 %v5597, 24
      %v6736 = vpop.permute.xlu0 %6735
      %6737 = vrot.lane.b32.xlu0 %v5599, 24
      %v6738 = vpop.permute.xlu0 %6737
      %6739 = vrot.lane.b32.xlu0 %v5601, 24
      %v6740 = vpop.permute.xlu0 %6739
      %6741 = vrot.lane.b32.xlu0 %v5603, 24
      %v6742 = vpop.permute.xlu0 %6741
      %6743 = vrot.lane.b32.xlu0 %v5605, 24
      %v6744 = vpop.permute.xlu0 %6743
      %6745 = vrot.lane.b32.xlu0 %v5607, 24
      %v6746 = vpop.permute.xlu0 %6745
      %6747 = vrot.lane.b32.xlu0 %v5609, 24
      %v6748 = vpop.permute.xlu0 %6747
      %6749 = vrot.lane.b32.xlu0 %v5611, 24
      %v6750 = vpop.permute.xlu0 %6749
      %6751 = vrot.lane.b32.xlu0 %v5613, 24
      %v6752 = vpop.permute.xlu0 %6751
      %6753 = vrot.lane.b32.xlu0 %v5615, 24
      %v6754 = vpop.permute.xlu0 %6753
      %6755 = vrot.lane.b32.xlu0 %v5617, 24
      %v6756 = vpop.permute.xlu0 %6755
      %6757 = vrot.lane.b32.xlu0 %v5619, 24
      %v6758 = vpop.permute.xlu0 %6757
      %6759 = vrot.lane.b32.xlu0 %v5621, 24
      %v6760 = vpop.permute.xlu0 %6759
      %6761 = vrot.lane.b32.xlu0 %v5623, 24
      %v6762 = vpop.permute.xlu0 %6761
      %6763 = vrot.lane.b32.xlu0 %v5625, 24
      %v6764 = vpop.permute.xlu0 %6763
      %6765 = vrot.lane.b32.xlu0 %v5627, 24
      %v6766 = vpop.permute.xlu0 %6765
      %6767 = vrot.lane.b32.xlu0 %v5629, 24
      %v6768 = vpop.permute.xlu0 %6767
      %6769 = vrot.lane.b32.xlu0 %v5631, 24
      %v6770 = vpop.permute.xlu0 %6769
      %6771 = vrot.lane.b32.xlu0 %v5633, 24
      %v6772 = vpop.permute.xlu0 %6771
      %6773 = vrot.lane.b32.xlu0 %v5635, 24
      %v6774 = vpop.permute.xlu0 %6773
      %6775 = vrot.lane.b32.xlu0 %v5637, 24
      %v6776 = vpop.permute.xlu0 %6775
      %6777 = vrot.lane.b32.xlu0 %v5639, 24
      %v6778 = vpop.permute.xlu0 %6777
      %6779 = vrot.lane.b32.xlu0 %v5641, 24
      %v6780 = vpop.permute.xlu0 %6779
      %6781 = vrot.lane.b32.xlu0 %v5643, 24
      %v6782 = vpop.permute.xlu0 %6781
      %6783 = vrot.lane.b32.xlu0 %v5645, 24
      %v6784 = vpop.permute.xlu0 %6783
      %6785 = vrot.lane.b32.xlu0 %v5647, 24
      %v6786 = vpop.permute.xlu0 %6785
      %6787 = vrot.lane.b32.xlu0 %v5649, 24
      %v6788 = vpop.permute.xlu0 %6787
      %6789 = vrot.lane.b32.xlu0 %v5651, 24
      %v6790 = vpop.permute.xlu0 %6789
      %6791 = vrot.lane.b32.xlu0 %v5653, 24
      %v6792 = vpop.permute.xlu0 %6791
      %6793 = vrot.lane.b32.xlu0 %v5655, 24
      %v6794 = vpop.permute.xlu0 %6793
      %6795 = vrot.lane.b32.xlu0 %v5657, 24
      %v6796 = vpop.permute.xlu0 %6795
      %6797 = vrot.lane.b32.xlu0 %v5659, 24
      %v6798 = vpop.permute.xlu0 %6797
      %6799 = vrot.lane.b32.xlu0 %v5661, 24
      %v6800 = vpop.permute.xlu0 %6799
      %6801 = vrot.lane.b32.xlu0 %v5663, 24
      %v6802 = vpop.permute.xlu0 %6801
      %6803 = vrot.lane.b32.xlu0 %v5665, 24
      %v6804 = vpop.permute.xlu0 %6803
      %6805 = vrot.lane.b32.xlu0 %v5667, 24
      %v6806 = vpop.permute.xlu0 %6805
      %6807 = vrot.lane.b32.xlu0 %v5669, 24
      %v6808 = vpop.permute.xlu0 %6807
      %6809 = vrot.lane.b32.xlu0 %v5671, 24
      %v6810 = vpop.permute.xlu0 %6809
      %6811 = vrot.lane.b32.xlu0 %v5673, 24
      %v6812 = vpop.permute.xlu0 %6811
      %6813 = vrot.lane.b32.xlu0 %v5675, 24
      %v6814 = vpop.permute.xlu0 %6813
      %6815 = vrot.lane.b32.xlu0 %v5677, 24
      %v6816 = vpop.permute.xlu0 %6815
      %6817 = vrot.lane.b32.xlu0 %v5679, 24
      %v6818 = vpop.permute.xlu0 %6817
      %6819 = vrot.lane.b32.xlu0 %v5681, 24
      %v6820 = vpop.permute.xlu0 %6819
      %6821 = vrot.lane.b32.xlu0 %v5683, 24
      %v6822 = vpop.permute.xlu0 %6821
      %6823 = vrot.lane.b32.xlu0 %v5685, 24
      %v6824 = vpop.permute.xlu0 %6823
      %6825 = vrot.lane.b32.xlu0 %v5687, 24
      %v6826 = vpop.permute.xlu0 %6825
      %6827 = vrot.lane.b32.xlu0 %v5689, 24
      %v6828 = vpop.permute.xlu0 %6827
      %6829 = vrot.lane.b32.xlu0 %v5691, 24
      %v6830 = vpop.permute.xlu0 %6829
      %6831 = vrot.lane.b32.xlu0 %v5693, 24
      %v6832 = vpop.permute.xlu0 %6831
      %6833 = vrot.lane.b32.xlu0 %v5695, 24
      %v6834 = vpop.permute.xlu0 %6833
      %6835 = vrot.lane.b32.xlu0 %v5697, 24
      %v6836 = vpop.permute.xlu0 %6835
      %6837 = vrot.lane.b32.xlu0 %v5699, 24
      %v6838 = vpop.permute.xlu0 %6837
      %6839 = vrot.lane.b32.xlu0 %v5701, 24
      %v6840 = vpop.permute.xlu0 %6839
      %6841 = vrot.lane.b32.xlu0 %v5703, 24
      %v6842 = vpop.permute.xlu0 %6841
      %6843 = vrot.lane.b32.xlu0 %v5705, 24
      %v6844 = vpop.permute.xlu0 %6843
      %6845 = vrot.lane.b32.xlu0 %v5707, 24
      %v6846 = vpop.permute.xlu0 %6845
      %6847 = vrot.lane.b32.xlu0 %v5709, 24
      %v6848 = vpop.permute.xlu0 %6847
      %6849 = vrot.lane.b32.xlu0 %v5711, 24
      %v6850 = vpop.permute.xlu0 %6849
      %6851 = vrot.lane.b32.xlu0 %v5713, 24
      %v6852 = vpop.permute.xlu0 %6851
      %6853 = vrot.lane.b32.xlu0 %v5715, 24
      %v6854 = vpop.permute.xlu0 %6853
      %6855 = vrot.lane.b32.xlu0 %v5717, 24
      %v6856 = vpop.permute.xlu0 %6855
      %6922 = vrot.lane.b32.xlu0 %v5432, 28
      %v6923 = vpop.permute.xlu0 %6922
      %6924 = vrot.lane.b32.xlu0 %v5558, 28
      %v6925 = vpop.permute.xlu0 %6924
      %6926 = vrot.lane.b32.xlu0 %v5435, 28
      %v6927 = vpop.permute.xlu0 %6926
      %6928 = vrot.lane.b32.xlu0 %v5559, 28
      %v6929 = vpop.permute.xlu0 %6928
      %6930 = vrot.lane.b32.xlu0 %v5438, 28
      %v6931 = vpop.permute.xlu0 %6930
      %6932 = vrot.lane.b32.xlu0 %v5560, 28
      %v6933 = vpop.permute.xlu0 %6932
      %6934 = vrot.lane.b32.xlu0 %v5441, 28
      %v6935 = vpop.permute.xlu0 %6934
      %6936 = vrot.lane.b32.xlu0 %v5561, 28
      %v6937 = vpop.permute.xlu0 %6936
      %6938 = vrot.lane.b32.xlu0 %v5444, 28
      %v6939 = vpop.permute.xlu0 %6938
      %6940 = vrot.lane.b32.xlu0 %v5562, 28
      %v6941 = vpop.permute.xlu0 %6940
      %6942 = vrot.lane.b32.xlu0 %v5447, 28
      %v6943 = vpop.permute.xlu0 %6942
      %6944 = vrot.lane.b32.xlu0 %v5563, 28
      %v6945 = vpop.permute.xlu0 %6944
      %6946 = vrot.lane.b32.xlu0 %v5450, 28
      %v6947 = vpop.permute.xlu0 %6946
      %6948 = vrot.lane.b32.xlu0 %v5564, 28
      %v6949 = vpop.permute.xlu0 %6948
      %6950 = vrot.lane.b32.xlu0 %v5453, 28
      %v6951 = vpop.permute.xlu0 %6950
      %6952 = vrot.lane.b32.xlu0 %v5565, 28
      %v6953 = vpop.permute.xlu0 %6952
      %6954 = vrot.lane.b32.xlu0 %v5456, 28
      %v6955 = vpop.permute.xlu0 %6954
      %6956 = vrot.lane.b32.xlu0 %v5566, 28
      %v6957 = vpop.permute.xlu0 %6956
      %6958 = vrot.lane.b32.xlu0 %v5459, 28
      %v6959 = vpop.permute.xlu0 %6958
      %6960 = vrot.lane.b32.xlu0 %v5567, 28
      %v6961 = vpop.permute.xlu0 %6960
      %6962 = vrot.lane.b32.xlu0 %v5462, 28
      %v6963 = vpop.permute.xlu0 %6962
      %6964 = vrot.lane.b32.xlu0 %v5568, 28
      %v6965 = vpop.permute.xlu0 %6964
      %6966 = vrot.lane.b32.xlu0 %v5465, 28
      %v6967 = vpop.permute.xlu0 %6966
      %6968 = vrot.lane.b32.xlu0 %v5569, 28
      %v6969 = vpop.permute.xlu0 %6968
      %6970 = vrot.lane.b32.xlu0 %v5468, 28
      %v6971 = vpop.permute.xlu0 %6970
      %6972 = vrot.lane.b32.xlu0 %v5570, 28
      %v6973 = vpop.permute.xlu0 %6972
      %6974 = vrot.lane.b32.xlu0 %v5471, 28
      %v6975 = vpop.permute.xlu0 %6974
      %6976 = vrot.lane.b32.xlu0 %v5571, 28
      %v6977 = vpop.permute.xlu0 %6976
      %6978 = vrot.lane.b32.xlu0 %v5474, 28
      %v6979 = vpop.permute.xlu0 %6978
      %6980 = vrot.lane.b32.xlu0 %v5572, 28
      %v6981 = vpop.permute.xlu0 %6980
      %6982 = vrot.lane.b32.xlu0 %v5477, 28
      %v6983 = vpop.permute.xlu0 %6982
      %6984 = vrot.lane.b32.xlu0 %v5573, 28
      %v6985 = vpop.permute.xlu0 %6984
      %6986 = vrot.lane.b32.xlu0 %v5480, 28
      %v6987 = vpop.permute.xlu0 %6986
      %6988 = vrot.lane.b32.xlu0 %v5574, 28
      %v6989 = vpop.permute.xlu0 %6988
      %6990 = vrot.lane.b32.xlu0 %v5483, 28
      %v6991 = vpop.permute.xlu0 %6990
      %6992 = vrot.lane.b32.xlu0 %v5575, 28
      %v6993 = vpop.permute.xlu0 %6992
      %6994 = vrot.lane.b32.xlu0 %v5486, 28
      %v6995 = vpop.permute.xlu0 %6994
      %6996 = vrot.lane.b32.xlu0 %v5576, 28
      %v6997 = vpop.permute.xlu0 %6996
      %6998 = vrot.lane.b32.xlu0 %v5489, 28
      %v6999 = vpop.permute.xlu0 %6998
      %7000 = vrot.lane.b32.xlu0 %v5577, 28
      %v7001 = vpop.permute.xlu0 %7000
      %7002 = vrot.lane.b32.xlu0 %v5492, 28
      %v7003 = vpop.permute.xlu0 %7002
      %7004 = vrot.lane.b32.xlu0 %v5578, 28
      %v7005 = vpop.permute.xlu0 %7004
      %7006 = vrot.lane.b32.xlu0 %v5495, 28
      %v7007 = vpop.permute.xlu0 %7006
      %7008 = vrot.lane.b32.xlu0 %v5579, 28
      %v7009 = vpop.permute.xlu0 %7008
      %7010 = vrot.lane.b32.xlu0 %v5498, 28
      %v7011 = vpop.permute.xlu0 %7010
      %7012 = vrot.lane.b32.xlu0 %v5580, 28
      %v7013 = vpop.permute.xlu0 %7012
      %7014 = vrot.lane.b32.xlu0 %v5501, 28
      %v7015 = vpop.permute.xlu0 %7014
      %7016 = vrot.lane.b32.xlu0 %v5581, 28
      %v7017 = vpop.permute.xlu0 %7016
      %7018 = vrot.lane.b32.xlu0 %v5504, 28
      %v7019 = vpop.permute.xlu0 %7018
      %7020 = vrot.lane.b32.xlu0 %v5582, 28
      %v7021 = vpop.permute.xlu0 %7020
      %7022 = vrot.lane.b32.xlu0 %v5507, 28
      %v7023 = vpop.permute.xlu0 %7022
      %7024 = vrot.lane.b32.xlu0 %v5583, 28
      %v7025 = vpop.permute.xlu0 %7024
      %7026 = vrot.lane.b32.xlu0 %v5510, 28
      %v7027 = vpop.permute.xlu0 %7026
      %7028 = vrot.lane.b32.xlu0 %v5584, 28
      %v7029 = vpop.permute.xlu0 %7028
      %7030 = vrot.lane.b32.xlu0 %v5513, 28
      %v7031 = vpop.permute.xlu0 %7030
      %7032 = vrot.lane.b32.xlu0 %v5585, 28
      %v7033 = vpop.permute.xlu0 %7032
      %7034 = vrot.lane.b32.xlu0 %v5516, 28
      %v7035 = vpop.permute.xlu0 %7034
      %7036 = vrot.lane.b32.xlu0 %v5586, 28
      %v7037 = vpop.permute.xlu0 %7036
      %7038 = vrot.lane.b32.xlu0 %v5519, 28
      %v7039 = vpop.permute.xlu0 %7038
      %7040 = vrot.lane.b32.xlu0 %v5587, 28
      %v7041 = vpop.permute.xlu0 %7040
      %7042 = vrot.lane.b32.xlu0 %v5522, 28
      %v7043 = vpop.permute.xlu0 %7042
      %7044 = vrot.lane.b32.xlu0 %v5588, 28
      %v7045 = vpop.permute.xlu0 %7044
      %7046 = vrot.lane.b32.xlu0 %v5525, 28
      %v7047 = vpop.permute.xlu0 %7046
      %7048 = vrot.lane.b32.xlu0 %v5589, 28
      %v7049 = vpop.permute.xlu0 %7048
      %7114 = vrot.lane.b32.xlu0 %v5399, 32
      %v7115 = vpop.permute.xlu0 %7114
      %7116 = vrot.lane.b32.xlu0 %v5214, 32
      %v7117 = vpop.permute.xlu0 %7116
      %7118 = vrot.lane.b32.xlu0 %v5400, 32
      %v7119 = vpop.permute.xlu0 %7118
      %7120 = vrot.lane.b32.xlu0 %v5218, 32
      %v7121 = vpop.permute.xlu0 %7120
      %7122 = vrot.lane.b32.xlu0 %v5401, 32
      %v7123 = vpop.permute.xlu0 %7122
      %7124 = vrot.lane.b32.xlu0 %v5222, 32
      %v7125 = vpop.permute.xlu0 %7124
      %7126 = vrot.lane.b32.xlu0 %v5402, 32
      %v7127 = vpop.permute.xlu0 %7126
      %7128 = vrot.lane.b32.xlu0 %v5226, 32
      %v7129 = vpop.permute.xlu0 %7128
      %7130 = vrot.lane.b32.xlu0 %v5403, 32
      %v7131 = vpop.permute.xlu0 %7130
      %7132 = vrot.lane.b32.xlu0 %v5230, 32
      %v7133 = vpop.permute.xlu0 %7132
      %7134 = vrot.lane.b32.xlu0 %v5404, 32
      %v7135 = vpop.permute.xlu0 %7134
      %7136 = vrot.lane.b32.xlu0 %v5234, 32
      %v7137 = vpop.permute.xlu0 %7136
      %7138 = vrot.lane.b32.xlu0 %v5405, 32
      %v7139 = vpop.permute.xlu0 %7138
      %7140 = vrot.lane.b32.xlu0 %v5238, 32
      %v7141 = vpop.permute.xlu0 %7140
      %7142 = vrot.lane.b32.xlu0 %v5406, 32
      %v7143 = vpop.permute.xlu0 %7142
      %7144 = vrot.lane.b32.xlu0 %v5242, 32
      %v7145 = vpop.permute.xlu0 %7144
      %7146 = vrot.lane.b32.xlu0 %v5407, 32
      %v7147 = vpop.permute.xlu0 %7146
      %7148 = vrot.lane.b32.xlu0 %v5246, 32
      %v7149 = vpop.permute.xlu0 %7148
      %7150 = vrot.lane.b32.xlu0 %v5408, 32
      %v7151 = vpop.permute.xlu0 %7150
      %7152 = vrot.lane.b32.xlu0 %v5250, 32
      %v7153 = vpop.permute.xlu0 %7152
      %7154 = vrot.lane.b32.xlu0 %v5409, 32
      %v7155 = vpop.permute.xlu0 %7154
      %7156 = vrot.lane.b32.xlu0 %v5254, 32
      %v7157 = vpop.permute.xlu0 %7156
      %7158 = vrot.lane.b32.xlu0 %v5410, 32
      %v7159 = vpop.permute.xlu0 %7158
      %7160 = vrot.lane.b32.xlu0 %v5258, 32
      %v7161 = vpop.permute.xlu0 %7160
      %7162 = vrot.lane.b32.xlu0 %v5411, 32
      %v7163 = vpop.permute.xlu0 %7162
      %7164 = vrot.lane.b32.xlu0 %v5262, 32
      %v7165 = vpop.permute.xlu0 %7164
      %7166 = vrot.lane.b32.xlu0 %v5412, 32
      %v7167 = vpop.permute.xlu0 %7166
      %7168 = vrot.lane.b32.xlu0 %v5266, 32
      %v7169 = vpop.permute.xlu0 %7168
      %7170 = vrot.lane.b32.xlu0 %v5413, 32
      %v7171 = vpop.permute.xlu0 %7170
      %7172 = vrot.lane.b32.xlu0 %v5270, 32
      %v7173 = vpop.permute.xlu0 %7172
      %7174 = vrot.lane.b32.xlu0 %v5414, 32
      %v7175 = vpop.permute.xlu0 %7174
      %7176 = vrot.lane.b32.xlu0 %v5274, 32
      %v7177 = vpop.permute.xlu0 %7176
      %7178 = vrot.lane.b32.xlu0 %v5415, 32
      %v7179 = vpop.permute.xlu0 %7178
      %7180 = vrot.lane.b32.xlu0 %v5278, 32
      %v7181 = vpop.permute.xlu0 %7180
      %7182 = vrot.lane.b32.xlu0 %v5416, 32
      %v7183 = vpop.permute.xlu0 %7182
      %7184 = vrot.lane.b32.xlu0 %v5282, 32
      %v7185 = vpop.permute.xlu0 %7184
      %7186 = vrot.lane.b32.xlu0 %v5417, 32
      %v7187 = vpop.permute.xlu0 %7186
      %7188 = vrot.lane.b32.xlu0 %v5286, 32
      %v7189 = vpop.permute.xlu0 %7188
      %7190 = vrot.lane.b32.xlu0 %v5418, 32
      %v7191 = vpop.permute.xlu0 %7190
      %7192 = vrot.lane.b32.xlu0 %v5290, 32
      %v7193 = vpop.permute.xlu0 %7192
      %7194 = vrot.lane.b32.xlu0 %v5419, 32
      %v7195 = vpop.permute.xlu0 %7194
      %7196 = vrot.lane.b32.xlu0 %v5294, 32
      %v7197 = vpop.permute.xlu0 %7196
      %7198 = vrot.lane.b32.xlu0 %v5420, 32
      %v7199 = vpop.permute.xlu0 %7198
      %7200 = vrot.lane.b32.xlu0 %v5298, 32
      %v7201 = vpop.permute.xlu0 %7200
      %7202 = vrot.lane.b32.xlu0 %v5421, 32
      %v7203 = vpop.permute.xlu0 %7202
      %7204 = vrot.lane.b32.xlu0 %v5302, 32
      %v7205 = vpop.permute.xlu0 %7204
      %7206 = vrot.lane.b32.xlu0 %v5422, 32
      %v7207 = vpop.permute.xlu0 %7206
      %7208 = vrot.lane.b32.xlu0 %v5306, 32
      %v7209 = vpop.permute.xlu0 %7208
      %7210 = vrot.lane.b32.xlu0 %v5423, 32
      %v7211 = vpop.permute.xlu0 %7210
      %7212 = vrot.lane.b32.xlu0 %v5310, 32
      %v7213 = vpop.permute.xlu0 %7212
      %7214 = vrot.lane.b32.xlu0 %v5424, 32
      %v7215 = vpop.permute.xlu0 %7214
      %7216 = vrot.lane.b32.xlu0 %v5314, 32
      %v7217 = vpop.permute.xlu0 %7216
      %7218 = vrot.lane.b32.xlu0 %v5425, 32
      %v7219 = vpop.permute.xlu0 %7218
      %7220 = vrot.lane.b32.xlu0 %v5318, 32
      %v7221 = vpop.permute.xlu0 %7220
      %7222 = vrot.lane.b32.xlu0 %v5426, 32
      %v7223 = vpop.permute.xlu0 %7222
      %7224 = vrot.lane.b32.xlu0 %v5322, 32
      %v7225 = vpop.permute.xlu0 %7224
      %7226 = vrot.lane.b32.xlu0 %v5427, 32
      %v7227 = vpop.permute.xlu0 %7226
      %7228 = vrot.lane.b32.xlu0 %v5326, 32
      %v7229 = vpop.permute.xlu0 %7228
      %7230 = vrot.lane.b32.xlu0 %v5428, 32
      %v7231 = vpop.permute.xlu0 %7230
      %7232 = vrot.lane.b32.xlu0 %v5330, 32
      %v7233 = vpop.permute.xlu0 %7232
      %7234 = vrot.lane.b32.xlu0 %v5429, 32
      %v7235 = vpop.permute.xlu0 %7234
      %7236 = vrot.lane.b32.xlu0 %v5334, 32
      %v7237 = vpop.permute.xlu0 %7236
      %7238 = vrot.lane.b32.xlu0 0.0, 32
      %v7239 = vpop.permute.xlu0 %7238
      %7303 = vrot.lane.b32.xlu0 %v4978, 36
      %v7304 = vpop.permute.xlu0 %7303
      %7305 = vrot.lane.b32.xlu0 %v4979, 36
      %v7306 = vpop.permute.xlu0 %7305
      %7307 = vrot.lane.b32.xlu0 %v4980, 36
      %v7308 = vpop.permute.xlu0 %7307
      %7309 = vrot.lane.b32.xlu0 %v4981, 36
      %v7310 = vpop.permute.xlu0 %7309
      %7311 = vrot.lane.b32.xlu0 %v4982, 36
      %v7312 = vpop.permute.xlu0 %7311
      %7313 = vrot.lane.b32.xlu0 %v4983, 36
      %v7314 = vpop.permute.xlu0 %7313
      %7315 = vrot.lane.b32.xlu0 %v4984, 36
      %v7316 = vpop.permute.xlu0 %7315
      %7317 = vrot.lane.b32.xlu0 %v4985, 36
      %v7318 = vpop.permute.xlu0 %7317
      %7319 = vrot.lane.b32.xlu0 %v4986, 36
      %v7320 = vpop.permute.xlu0 %7319
      %7321 = vrot.lane.b32.xlu0 %v4987, 36
      %v7322 = vpop.permute.xlu0 %7321
      %7323 = vrot.lane.b32.xlu0 %v4988, 36
      %v7324 = vpop.permute.xlu0 %7323
      %7325 = vrot.lane.b32.xlu0 %v4989, 36
      %v7326 = vpop.permute.xlu0 %7325
      %7327 = vrot.lane.b32.xlu0 %v4990, 36
      %v7328 = vpop.permute.xlu0 %7327
      %7329 = vrot.lane.b32.xlu0 %v4991, 36
      %v7330 = vpop.permute.xlu0 %7329
      %7331 = vrot.lane.b32.xlu0 %v4992, 36
      %v7332 = vpop.permute.xlu0 %7331
      %7333 = vrot.lane.b32.xlu0 %v4993, 36
      %v7334 = vpop.permute.xlu0 %7333
      %7335 = vrot.lane.b32.xlu0 %v4994, 36
      %v7336 = vpop.permute.xlu0 %7335
      %7337 = vrot.lane.b32.xlu0 %v4995, 36
      %v7338 = vpop.permute.xlu0 %7337
      %7339 = vrot.lane.b32.xlu0 %v4996, 36
      %v7340 = vpop.permute.xlu0 %7339
      %7341 = vrot.lane.b32.xlu0 %v4997, 36
      %v7342 = vpop.permute.xlu0 %7341
      %7343 = vrot.lane.b32.xlu0 %v4998, 36
      %v7344 = vpop.permute.xlu0 %7343
      %7345 = vrot.lane.b32.xlu0 %v4999, 36
      %v7346 = vpop.permute.xlu0 %7345
      %7347 = vrot.lane.b32.xlu0 %v5000, 36
      %v7348 = vpop.permute.xlu0 %7347
      %7349 = vrot.lane.b32.xlu0 %v5001, 36
      %v7350 = vpop.permute.xlu0 %7349
      %7351 = vrot.lane.b32.xlu0 %v5002, 36
      %v7352 = vpop.permute.xlu0 %7351
      %7353 = vrot.lane.b32.xlu0 %v5003, 36
      %v7354 = vpop.permute.xlu0 %7353
      %7355 = vrot.lane.b32.xlu0 %v5004, 36
      %v7356 = vpop.permute.xlu0 %7355
      %7357 = vrot.lane.b32.xlu0 %v5005, 36
      %v7358 = vpop.permute.xlu0 %7357
      %7359 = vrot.lane.b32.xlu0 %v5006, 36
      %v7360 = vpop.permute.xlu0 %7359
      %7361 = vrot.lane.b32.xlu0 %v5007, 36
      %v7362 = vpop.permute.xlu0 %7361
      %7363 = vrot.lane.b32.xlu0 %v5008, 36
      %v7364 = vpop.permute.xlu0 %7363
      %7365 = vrot.lane.b32.xlu0 %v5009, 36
      %v7366 = vpop.permute.xlu0 %7365
      %7367 = vrot.lane.b32.xlu0 %v5010, 36
      %v7368 = vpop.permute.xlu0 %7367
      %7369 = vrot.lane.b32.xlu0 %v5011, 36
      %v7370 = vpop.permute.xlu0 %7369
      %7371 = vrot.lane.b32.xlu0 %v5012, 36
      %v7372 = vpop.permute.xlu0 %7371
      %7373 = vrot.lane.b32.xlu0 %v5013, 36
      %v7374 = vpop.permute.xlu0 %7373
      %7375 = vrot.lane.b32.xlu0 %v5014, 36
      %v7376 = vpop.permute.xlu0 %7375
      %7377 = vrot.lane.b32.xlu0 %v5015, 36
      %v7378 = vpop.permute.xlu0 %7377
      %7379 = vrot.lane.b32.xlu0 %v5016, 36
      %v7380 = vpop.permute.xlu0 %7379
      %7381 = vrot.lane.b32.xlu0 %v5017, 36
      %v7382 = vpop.permute.xlu0 %7381
      %7383 = vrot.lane.b32.xlu0 %v5018, 36
      %v7384 = vpop.permute.xlu0 %7383
      %7385 = vrot.lane.b32.xlu0 %v5019, 36
      %v7386 = vpop.permute.xlu0 %7385
      %7387 = vrot.lane.b32.xlu0 %v5020, 36
      %v7388 = vpop.permute.xlu0 %7387
      %7389 = vrot.lane.b32.xlu0 %v5021, 36
      %v7390 = vpop.permute.xlu0 %7389
      %7391 = vrot.lane.b32.xlu0 %v5022, 36
      %v7392 = vpop.permute.xlu0 %7391
      %7393 = vrot.lane.b32.xlu0 %v5023, 36
      %v7394 = vpop.permute.xlu0 %7393
      %7395 = vrot.lane.b32.xlu0 %v5024, 36
      %v7396 = vpop.permute.xlu0 %7395
      %7397 = vrot.lane.b32.xlu0 %v5025, 36
      %v7398 = vpop.permute.xlu0 %7397
      %7399 = vrot.lane.b32.xlu0 %v5026, 36
      %v7400 = vpop.permute.xlu0 %7399
      %7401 = vrot.lane.b32.xlu0 %v5027, 36
      %v7402 = vpop.permute.xlu0 %7401
      %7403 = vrot.lane.b32.xlu0 %v5028, 36
      %v7404 = vpop.permute.xlu0 %7403
      %7405 = vrot.lane.b32.xlu0 %v5029, 36
      %v7406 = vpop.permute.xlu0 %7405
      %7407 = vrot.lane.b32.xlu0 %v5030, 36
      %v7408 = vpop.permute.xlu0 %7407
      %7409 = vrot.lane.b32.xlu0 %v5031, 36
      %v7410 = vpop.permute.xlu0 %7409
      %7411 = vrot.lane.b32.xlu0 %v5032, 36
      %v7412 = vpop.permute.xlu0 %7411
      %7413 = vrot.lane.b32.xlu0 %v5033, 36
      %v7414 = vpop.permute.xlu0 %7413
      %7415 = vrot.lane.b32.xlu0 %v5034, 36
      %v7416 = vpop.permute.xlu0 %7415
      %7417 = vrot.lane.b32.xlu0 %v5035, 36
      %v7418 = vpop.permute.xlu0 %7417
      %7419 = vrot.lane.b32.xlu0 %v5036, 36
      %v7420 = vpop.permute.xlu0 %7419
      %7421 = vrot.lane.b32.xlu0 %v5037, 36
      %v7422 = vpop.permute.xlu0 %7421
      %7423 = vrot.lane.b32.xlu0 %v5038, 36
      %v7424 = vpop.permute.xlu0 %7423
      %7425 = vrot.lane.b32.xlu0 %v5039, 36
      %v7426 = vpop.permute.xlu0 %7425
      %7427 = vrot.lane.b32.xlu0 0.0, 36
      %v7428 = vpop.permute.xlu0 %7427
      %7492 = vrot.lane.b32.xlu0 %v5595, 40
      %v7493 = vpop.permute.xlu0 %7492
      %7494 = vrot.lane.b32.xlu0 %v5597, 40
      %v7495 = vpop.permute.xlu0 %7494
      %7496 = vrot.lane.b32.xlu0 %v5599, 40
      %v7497 = vpop.permute.xlu0 %7496
      %7498 = vrot.lane.b32.xlu0 %v5601, 40
      %v7499 = vpop.permute.xlu0 %7498
      %7500 = vrot.lane.b32.xlu0 %v5603, 40
      %v7501 = vpop.permute.xlu0 %7500
      %7502 = vrot.lane.b32.xlu0 %v5605, 40
      %v7503 = vpop.permute.xlu0 %7502
      %7504 = vrot.lane.b32.xlu0 %v5607, 40
      %v7505 = vpop.permute.xlu0 %7504
      %7506 = vrot.lane.b32.xlu0 %v5609, 40
      %v7507 = vpop.permute.xlu0 %7506
      %7508 = vrot.lane.b32.xlu0 %v5611, 40
      %v7509 = vpop.permute.xlu0 %7508
      %7510 = vrot.lane.b32.xlu0 %v5613, 40
      %v7511 = vpop.permute.xlu0 %7510
      %7512 = vrot.lane.b32.xlu0 %v5615, 40
      %v7513 = vpop.permute.xlu0 %7512
      %7514 = vrot.lane.b32.xlu0 %v5617, 40
      %v7515 = vpop.permute.xlu0 %7514
      %7516 = vrot.lane.b32.xlu0 %v5619, 40
      %v7517 = vpop.permute.xlu0 %7516
      %7518 = vrot.lane.b32.xlu0 %v5621, 40
      %v7519 = vpop.permute.xlu0 %7518
      %7520 = vrot.lane.b32.xlu0 %v5623, 40
      %v7521 = vpop.permute.xlu0 %7520
      %7522 = vrot.lane.b32.xlu0 %v5625, 40
      %v7523 = vpop.permute.xlu0 %7522
      %7524 = vrot.lane.b32.xlu0 %v5627, 40
      %v7525 = vpop.permute.xlu0 %7524
      %7526 = vrot.lane.b32.xlu0 %v5629, 40
      %v7527 = vpop.permute.xlu0 %7526
      %7528 = vrot.lane.b32.xlu0 %v5631, 40
      %v7529 = vpop.permute.xlu0 %7528
      %7530 = vrot.lane.b32.xlu0 %v5633, 40
      %v7531 = vpop.permute.xlu0 %7530
      %7532 = vrot.lane.b32.xlu0 %v5635, 40
      %v7533 = vpop.permute.xlu0 %7532
      %7534 = vrot.lane.b32.xlu0 %v5637, 40
      %v7535 = vpop.permute.xlu0 %7534
      %7536 = vrot.lane.b32.xlu0 %v5639, 40
      %v7537 = vpop.permute.xlu0 %7536
      %7538 = vrot.lane.b32.xlu0 %v5641, 40
      %v7539 = vpop.permute.xlu0 %7538
      %7540 = vrot.lane.b32.xlu0 %v5643, 40
      %v7541 = vpop.permute.xlu0 %7540
      %7542 = vrot.lane.b32.xlu0 %v5645, 40
      %v7543 = vpop.permute.xlu0 %7542
      %7544 = vrot.lane.b32.xlu0 %v5647, 40
      %v7545 = vpop.permute.xlu0 %7544
      %7546 = vrot.lane.b32.xlu0 %v5649, 40
      %v7547 = vpop.permute.xlu0 %7546
      %7548 = vrot.lane.b32.xlu0 %v5651, 40
      %v7549 = vpop.permute.xlu0 %7548
      %7550 = vrot.lane.b32.xlu0 %v5653, 40
      %v7551 = vpop.permute.xlu0 %7550
      %7552 = vrot.lane.b32.xlu0 %v5655, 40
      %v7553 = vpop.permute.xlu0 %7552
      %7554 = vrot.lane.b32.xlu0 %v5657, 40
      %v7555 = vpop.permute.xlu0 %7554
      %7556 = vrot.lane.b32.xlu0 %v5659, 40
      %v7557 = vpop.permute.xlu0 %7556
      %7558 = vrot.lane.b32.xlu0 %v5661, 40
      %v7559 = vpop.permute.xlu0 %7558
      %7560 = vrot.lane.b32.xlu0 %v5663, 40
      %v7561 = vpop.permute.xlu0 %7560
      %7562 = vrot.lane.b32.xlu0 %v5665, 40
      %v7563 = vpop.permute.xlu0 %7562
      %7564 = vrot.lane.b32.xlu0 %v5667, 40
      %v7565 = vpop.permute.xlu0 %7564
      %7566 = vrot.lane.b32.xlu0 %v5669, 40
      %v7567 = vpop.permute.xlu0 %7566
      %7568 = vrot.lane.b32.xlu0 %v5671, 40
      %v7569 = vpop.permute.xlu0 %7568
      %7570 = vrot.lane.b32.xlu0 %v5673, 40
      %v7571 = vpop.permute.xlu0 %7570
      %7572 = vrot.lane.b32.xlu0 %v5675, 40
      %v7573 = vpop.permute.xlu0 %7572
      %7574 = vrot.lane.b32.xlu0 %v5677, 40
      %v7575 = vpop.permute.xlu0 %7574
      %7576 = vrot.lane.b32.xlu0 %v5679, 40
      %v7577 = vpop.permute.xlu0 %7576
      %7578 = vrot.lane.b32.xlu0 %v5681, 40
      %v7579 = vpop.permute.xlu0 %7578
      %7580 = vrot.lane.b32.xlu0 %v5683, 40
      %v7581 = vpop.permute.xlu0 %7580
      %7582 = vrot.lane.b32.xlu0 %v5685, 40
      %v7583 = vpop.permute.xlu0 %7582
      %7584 = vrot.lane.b32.xlu0 %v5687, 40
      %v7585 = vpop.permute.xlu0 %7584
      %7586 = vrot.lane.b32.xlu0 %v5689, 40
      %v7587 = vpop.permute.xlu0 %7586
      %7588 = vrot.lane.b32.xlu0 %v5691, 40
      %v7589 = vpop.permute.xlu0 %7588
      %7590 = vrot.lane.b32.xlu0 %v5693, 40
      %v7591 = vpop.permute.xlu0 %7590
      %7592 = vrot.lane.b32.xlu0 %v5695, 40
      %v7593 = vpop.permute.xlu0 %7592
      %7594 = vrot.lane.b32.xlu0 %v5697, 40
      %v7595 = vpop.permute.xlu0 %7594
      %7596 = vrot.lane.b32.xlu0 %v5699, 40
      %v7597 = vpop.permute.xlu0 %7596
      %7598 = vrot.lane.b32.xlu0 %v5701, 40
      %v7599 = vpop.permute.xlu0 %7598
      %7600 = vrot.lane.b32.xlu0 %v5703, 40
      %v7601 = vpop.permute.xlu0 %7600
      %7602 = vrot.lane.b32.xlu0 %v5705, 40
      %v7603 = vpop.permute.xlu0 %7602
      %7604 = vrot.lane.b32.xlu0 %v5707, 40
      %v7605 = vpop.permute.xlu0 %7604
      %7606 = vrot.lane.b32.xlu0 %v5709, 40
      %v7607 = vpop.permute.xlu0 %7606
      %7608 = vrot.lane.b32.xlu0 %v5711, 40
      %v7609 = vpop.permute.xlu0 %7608
      %7610 = vrot.lane.b32.xlu0 %v5713, 40
      %v7611 = vpop.permute.xlu0 %7610
      %7612 = vrot.lane.b32.xlu0 %v5715, 40
      %v7613 = vpop.permute.xlu0 %7612
      %7614 = vrot.lane.b32.xlu0 %v5717, 40
      %v7615 = vpop.permute.xlu0 %7614
      %7616 = vrot.lane.b32.xlu0 0.0, 40
      %v7617 = vpop.permute.xlu0 %7616
      %7681 = vrot.lane.b32.xlu0 %v5435, 44
      %v7682 = vpop.permute.xlu0 %7681
      %7683 = vrot.lane.b32.xlu0 %v5559, 44
      %v7684 = vpop.permute.xlu0 %7683
      %7685 = vrot.lane.b32.xlu0 %v5438, 44
      %v7686 = vpop.permute.xlu0 %7685
      %7687 = vrot.lane.b32.xlu0 %v5560, 44
      %v7688 = vpop.permute.xlu0 %7687
      %7689 = vrot.lane.b32.xlu0 %v5441, 44
      %v7690 = vpop.permute.xlu0 %7689
      %7691 = vrot.lane.b32.xlu0 %v5561, 44
      %v7692 = vpop.permute.xlu0 %7691
      %7693 = vrot.lane.b32.xlu0 %v5444, 44
      %v7694 = vpop.permute.xlu0 %7693
      %7695 = vrot.lane.b32.xlu0 %v5562, 44
      %v7696 = vpop.permute.xlu0 %7695
      %7697 = vrot.lane.b32.xlu0 %v5447, 44
      %v7698 = vpop.permute.xlu0 %7697
      %7699 = vrot.lane.b32.xlu0 %v5563, 44
      %v7700 = vpop.permute.xlu0 %7699
      %7701 = vrot.lane.b32.xlu0 %v5450, 44
      %v7702 = vpop.permute.xlu0 %7701
      %7703 = vrot.lane.b32.xlu0 %v5564, 44
      %v7704 = vpop.permute.xlu0 %7703
      %7705 = vrot.lane.b32.xlu0 %v5453, 44
      %v7706 = vpop.permute.xlu0 %7705
      %7707 = vrot.lane.b32.xlu0 %v5565, 44
      %v7708 = vpop.permute.xlu0 %7707
      %7709 = vrot.lane.b32.xlu0 %v5456, 44
      %v7710 = vpop.permute.xlu0 %7709
      %7711 = vrot.lane.b32.xlu0 %v5566, 44
      %v7712 = vpop.permute.xlu0 %7711
      %7713 = vrot.lane.b32.xlu0 %v5459, 44
      %v7714 = vpop.permute.xlu0 %7713
      %7715 = vrot.lane.b32.xlu0 %v5567, 44
      %v7716 = vpop.permute.xlu0 %7715
      %7717 = vrot.lane.b32.xlu0 %v5462, 44
      %v7718 = vpop.permute.xlu0 %7717
      %7719 = vrot.lane.b32.xlu0 %v5568, 44
      %v7720 = vpop.permute.xlu0 %7719
      %7721 = vrot.lane.b32.xlu0 %v5465, 44
      %v7722 = vpop.permute.xlu0 %7721
      %7723 = vrot.lane.b32.xlu0 %v5569, 44
      %v7724 = vpop.permute.xlu0 %7723
      %7725 = vrot.lane.b32.xlu0 %v5468, 44
      %v7726 = vpop.permute.xlu0 %7725
      %7727 = vrot.lane.b32.xlu0 %v5570, 44
      %v7728 = vpop.permute.xlu0 %7727
      %7729 = vrot.lane.b32.xlu0 %v5471, 44
      %v7730 = vpop.permute.xlu0 %7729
      %7731 = vrot.lane.b32.xlu0 %v5571, 44
      %v7732 = vpop.permute.xlu0 %7731
      %7733 = vrot.lane.b32.xlu0 %v5474, 44
      %v7734 = vpop.permute.xlu0 %7733
      %7735 = vrot.lane.b32.xlu0 %v5572, 44
      %v7736 = vpop.permute.xlu0 %7735
      %7737 = vrot.lane.b32.xlu0 %v5477, 44
      %v7738 = vpop.permute.xlu0 %7737
      %7739 = vrot.lane.b32.xlu0 %v5573, 44
      %v7740 = vpop.permute.xlu0 %7739
      %7741 = vrot.lane.b32.xlu0 %v5480, 44
      %v7742 = vpop.permute.xlu0 %7741
      %7743 = vrot.lane.b32.xlu0 %v5574, 44
      %v7744 = vpop.permute.xlu0 %7743
      %7745 = vrot.lane.b32.xlu0 %v5483, 44
      %v7746 = vpop.permute.xlu0 %7745
      %7747 = vrot.lane.b32.xlu0 %v5575, 44
      %v7748 = vpop.permute.xlu0 %7747
      %7749 = vrot.lane.b32.xlu0 %v5486, 44
      %v7750 = vpop.permute.xlu0 %7749
      %7751 = vrot.lane.b32.xlu0 %v5576, 44
      %v7752 = vpop.permute.xlu0 %7751
      %7753 = vrot.lane.b32.xlu0 %v5489, 44
      %v7754 = vpop.permute.xlu0 %7753
      %7755 = vrot.lane.b32.xlu0 %v5577, 44
      %v7756 = vpop.permute.xlu0 %7755
      %7757 = vrot.lane.b32.xlu0 %v5492, 44
      %v7758 = vpop.permute.xlu0 %7757
      %7759 = vrot.lane.b32.xlu0 %v5578, 44
      %v7760 = vpop.permute.xlu0 %7759
      %7761 = vrot.lane.b32.xlu0 %v5495, 44
      %v7762 = vpop.permute.xlu0 %7761
      %7763 = vrot.lane.b32.xlu0 %v5579, 44
      %v7764 = vpop.permute.xlu0 %7763
      %7765 = vrot.lane.b32.xlu0 %v5498, 44
      %v7766 = vpop.permute.xlu0 %7765
      %7767 = vrot.lane.b32.xlu0 %v5580, 44
      %v7768 = vpop.permute.xlu0 %7767
      %7769 = vrot.lane.b32.xlu0 %v5501, 44
      %v7770 = vpop.permute.xlu0 %7769
      %7771 = vrot.lane.b32.xlu0 %v5581, 44
      %v7772 = vpop.permute.xlu0 %7771
      %7773 = vrot.lane.b32.xlu0 %v5504, 44
      %v7774 = vpop.permute.xlu0 %7773
      %7775 = vrot.lane.b32.xlu0 %v5582, 44
      %v7776 = vpop.permute.xlu0 %7775
      %7777 = vrot.lane.b32.xlu0 %v5507, 44
      %v7778 = vpop.permute.xlu0 %7777
      %7779 = vrot.lane.b32.xlu0 %v5583, 44
      %v7780 = vpop.permute.xlu0 %7779
      %7781 = vrot.lane.b32.xlu0 %v5510, 44
      %v7782 = vpop.permute.xlu0 %7781
      %7783 = vrot.lane.b32.xlu0 %v5584, 44
      %v7784 = vpop.permute.xlu0 %7783
      %7785 = vrot.lane.b32.xlu0 %v5513, 44
      %v7786 = vpop.permute.xlu0 %7785
      %7787 = vrot.lane.b32.xlu0 %v5585, 44
      %v7788 = vpop.permute.xlu0 %7787
      %7789 = vrot.lane.b32.xlu0 %v5516, 44
      %v7790 = vpop.permute.xlu0 %7789
      %7791 = vrot.lane.b32.xlu0 %v5586, 44
      %v7792 = vpop.permute.xlu0 %7791
      %7793 = vrot.lane.b32.xlu0 %v5519, 44
      %v7794 = vpop.permute.xlu0 %7793
      %7795 = vrot.lane.b32.xlu0 %v5587, 44
      %v7796 = vpop.permute.xlu0 %7795
      %7797 = vrot.lane.b32.xlu0 %v5522, 44
      %v7798 = vpop.permute.xlu0 %7797
      %7799 = vrot.lane.b32.xlu0 %v5588, 44
      %v7800 = vpop.permute.xlu0 %7799
      %7801 = vrot.lane.b32.xlu0 %v5525, 44
      %v7802 = vpop.permute.xlu0 %7801
      %7803 = vrot.lane.b32.xlu0 %v5589, 44
      %v7804 = vpop.permute.xlu0 %7803
      %7805 = vrot.lane.b32.xlu0 0.0, 44
      %v7806 = vpop.permute.xlu0 %7805
      %vm7870 = vcmask 31744
      %v7871 = vsel %vm7870, 0.0, %v5719
      %v7872 = vsel %vm7870, %v5398, %v5721
      %v7873 = vsel %vm7870, %v5210, %v5723
      %v7874 = vsel %vm7870, %v5399, %v5725
      %v7875 = vsel %vm7870, %v5214, %v5727
      %v7876 = vsel %vm7870, %v5400, %v5729
      %v7877 = vsel %vm7870, %v5218, %v5731
      %v7878 = vsel %vm7870, %v5401, %v5733
      %v7879 = vsel %vm7870, %v5222, %v5735
      %v7880 = vsel %vm7870, %v5402, %v5737
      %v7881 = vsel %vm7870, %v5226, %v5739
      %v7882 = vsel %vm7870, %v5403, %v5741
      %v7883 = vsel %vm7870, %v5230, %v5743
      %v7884 = vsel %vm7870, %v5404, %v5745
      %v7885 = vsel %vm7870, %v5234, %v5747
      %v7886 = vsel %vm7870, %v5405, %v5749
      %v7887 = vsel %vm7870, %v5238, %v5751
      %v7888 = vsel %vm7870, %v5406, %v5753
      %v7889 = vsel %vm7870, %v5242, %v5755
      %v7890 = vsel %vm7870, %v5407, %v5757
      %v7891 = vsel %vm7870, %v5246, %v5759
      %v7892 = vsel %vm7870, %v5408, %v5761
      %v7893 = vsel %vm7870, %v5250, %v5763
      %v7894 = vsel %vm7870, %v5409, %v5765
      %v7895 = vsel %vm7870, %v5254, %v5767
      %v7896 = vsel %vm7870, %v5410, %v5769
      %v7897 = vsel %vm7870, %v5258, %v5771
      %v7898 = vsel %vm7870, %v5411, %v5773
      %v7899 = vsel %vm7870, %v5262, %v5775
      %v7900 = vsel %vm7870, %v5412, %v5777
      %v7901 = vsel %vm7870, %v5266, %v5779
      %v7902 = vsel %vm7870, %v5413, %v5781
      %v7903 = vsel %vm7870, %v5270, %v5783
      %v7904 = vsel %vm7870, %v5414, %v5785
      %v7905 = vsel %vm7870, %v5274, %v5787
      %v7906 = vsel %vm7870, %v5415, %v5789
      %v7907 = vsel %vm7870, %v5278, %v5791
      %v7908 = vsel %vm7870, %v5416, %v5793
      %v7909 = vsel %vm7870, %v5282, %v5795
      %v7910 = vsel %vm7870, %v5417, %v5797
      %v7911 = vsel %vm7870, %v5286, %v5799
      %v7912 = vsel %vm7870, %v5418, %v5801
      %v7913 = vsel %vm7870, %v5290, %v5803
      %v7914 = vsel %vm7870, %v5419, %v5805
      %v7915 = vsel %vm7870, %v5294, %v5807
      %v7916 = vsel %vm7870, %v5420, %v5809
      %v7917 = vsel %vm7870, %v5298, %v5811
      %v7918 = vsel %vm7870, %v5421, %v5813
      %v7919 = vsel %vm7870, %v5302, %v5815
      %v7920 = vsel %vm7870, %v5422, %v5817
      %v7921 = vsel %vm7870, %v5306, %v5819
      %v7922 = vsel %vm7870, %v5423, %v5821
      %v7923 = vsel %vm7870, %v5310, %v5823
      %v7924 = vsel %vm7870, %v5424, %v5825
      %v7925 = vsel %vm7870, %v5314, %v5827
      %v7926 = vsel %vm7870, %v5425, %v5829
      %v7927 = vsel %vm7870, %v5318, %v5831
      %v7928 = vsel %vm7870, %v5426, %v5833
      %v7929 = vsel %vm7870, %v5322, %v5835
      %v7930 = vsel %vm7870, %v5427, %v5837
      %v7931 = vsel %vm7870, %v5326, %v5839
      %v7932 = vsel %vm7870, %v5428, %v5841
      %v7933 = vsel %vm7870, %v5330, %v5843
      %v7934 = vsel %vm3804, %v7871, %v1650
      %v7935 = vsel %vm3804, %v7872, %v5908
      %v7936 = vsel %vm3804, %v7873, %v5910
      %v7937 = vsel %vm3804, %v7874, %v5912
      %v7938 = vsel %vm3804, %v7875, %v5914
      %v7939 = vsel %vm3804, %v7876, %v5916
      %v7940 = vsel %vm3804, %v7877, %v5918
      %v7941 = vsel %vm3804, %v7878, %v5920
      %v7942 = vsel %vm3804, %v7879, %v5922
      %v7943 = vsel %vm3804, %v7880, %v5924
      %v7944 = vsel %vm3804, %v7881, %v5926
      %v7945 = vsel %vm3804, %v7882, %v5928
      %v7946 = vsel %vm3804, %v7883, %v5930
      %v7947 = vsel %vm3804, %v7884, %v5932
      %v7948 = vsel %vm3804, %v7885, %v5934
      %v7949 = vsel %vm3804, %v7886, %v5936
      %v7950 = vsel %vm3804, %v7887, %v5938
      %v7951 = vsel %vm3804, %v7888, %v5940
      %v7952 = vsel %vm3804, %v7889, %v5942
      %v7953 = vsel %vm3804, %v7890, %v5944
      %v7954 = vsel %vm3804, %v7891, %v5946
      %v7955 = vsel %vm3804, %v7892, %v5948
      %v7956 = vsel %vm3804, %v7893, %v5950
      %v7957 = vsel %vm3804, %v7894, %v5952
      %v7958 = vsel %vm3804, %v7895, %v5954
      %v7959 = vsel %vm3804, %v7896, %v5956
      %v7960 = vsel %vm3804, %v7897, %v5958
      %v7961 = vsel %vm3804, %v7898, %v5960
      %v7962 = vsel %vm3804, %v7899, %v5962
      %v7963 = vsel %vm3804, %v7900, %v5964
      %v7964 = vsel %vm3804, %v7901, %v5966
      %v7965 = vsel %vm3804, %v7902, %v5968
      %v7966 = vsel %vm3804, %v7903, %v5970
      %v7967 = vsel %vm3804, %v7904, %v5972
      %v7968 = vsel %vm3804, %v7905, %v5974
      %v7969 = vsel %vm3804, %v7906, %v5976
      %v7970 = vsel %vm3804, %v7907, %v5978
      %v7971 = vsel %vm3804, %v7908, %v5980
      %v7972 = vsel %vm3804, %v7909, %v5982
      %v7973 = vsel %vm3804, %v7910, %v5984
      %v7974 = vsel %vm3804, %v7911, %v5986
      %v7975 = vsel %vm3804, %v7912, %v5988
      %v7976 = vsel %vm3804, %v7913, %v5990
      %v7977 = vsel %vm3804, %v7914, %v5992
      %v7978 = vsel %vm3804, %v7915, %v5994
      %v7979 = vsel %vm3804, %v7916, %v5996
      %v7980 = vsel %vm3804, %v7917, %v5998
      %v7981 = vsel %vm3804, %v7918, %v6000
      %v7982 = vsel %vm3804, %v7919, %v6002
      %v7983 = vsel %vm3804, %v7920, %v6004
      %v7984 = vsel %vm3804, %v7921, %v6006
      %v7985 = vsel %vm3804, %v7922, %v6008
      %v7986 = vsel %vm3804, %v7923, %v6010
      %v7987 = vsel %vm3804, %v7924, %v6012
      %v7988 = vsel %vm3804, %v7925, %v6014
      %v7989 = vsel %vm3804, %v7926, %v6016
      %v7990 = vsel %vm3804, %v7927, %v6018
      %v7991 = vsel %vm3804, %v7928, %v6020
      %v7992 = vsel %vm3804, %v7929, %v6022
      %v7993 = vsel %vm3804, %v7930, %v6024
      %v7994 = vsel %vm3804, %v7931, %v6026
      %v7995 = vsel %vm3804, %v7932, %v6028
      %v7996 = vsel %vm3804, %v7933, %v6030
      %vm7997 = vcmask 97280
      %v7998 = vsel %vm7997, %v7934, %v6125
      %v7999 = vsel %vm7997, %v7935, %v6127
      %v8000 = vsel %vm7997, %v7936, %v6129
      %v8001 = vsel %vm7997, %v7937, %v6131
      %v8002 = vsel %vm7997, %v7938, %v6133
      %v8003 = vsel %vm7997, %v7939, %v6135
      %v8004 = vsel %vm7997, %v7940, %v6137
      %v8005 = vsel %vm7997, %v7941, %v6139
      %v8006 = vsel %vm7997, %v7942, %v6141
      %v8007 = vsel %vm7997, %v7943, %v6143
      %v8008 = vsel %vm7997, %v7944, %v6145
      %v8009 = vsel %vm7997, %v7945, %v6147
      %v8010 = vsel %vm7997, %v7946, %v6149
      %v8011 = vsel %vm7997, %v7947, %v6151
      %v8012 = vsel %vm7997, %v7948, %v6153
      %v8013 = vsel %vm7997, %v7949, %v6155
      %v8014 = vsel %vm7997, %v7950, %v6157
      %v8015 = vsel %vm7997, %v7951, %v6159
      %v8016 = vsel %vm7997, %v7952, %v6161
      %v8017 = vsel %vm7997, %v7953, %v6163
      %v8018 = vsel %vm7997, %v7954, %v6165
      %v8019 = vsel %vm7997, %v7955, %v6167
      %v8020 = vsel %vm7997, %v7956, %v6169
      %v8021 = vsel %vm7997, %v7957, %v6171
      %v8022 = vsel %vm7997, %v7958, %v6173
      %v8023 = vsel %vm7997, %v7959, %v6175
      %v8024 = vsel %vm7997, %v7960, %v6177
      %v8025 = vsel %vm7997, %v7961, %v6179
      %v8026 = vsel %vm7997, %v7962, %v6181
      %v8027 = vsel %vm7997, %v7963, %v6183
      %v8028 = vsel %vm7997, %v7964, %v6185
      %v8029 = vsel %vm7997, %v7965, %v6187
      %v8030 = vsel %vm7997, %v7966, %v6189
      %v8031 = vsel %vm7997, %v7967, %v6191
      %v8032 = vsel %vm7997, %v7968, %v6193
      %v8033 = vsel %vm7997, %v7969, %v6195
      %v8034 = vsel %vm7997, %v7970, %v6197
      %v8035 = vsel %vm7997, %v7971, %v6199
      %v8036 = vsel %vm7997, %v7972, %v6201
      %v8037 = vsel %vm7997, %v7973, %v6203
      %v8038 = vsel %vm7997, %v7974, %v6205
      %v8039 = vsel %vm7997, %v7975, %v6207
      %v8040 = vsel %vm7997, %v7976, %v6209
      %v8041 = vsel %vm7997, %v7977, %v6211
      %v8042 = vsel %vm7997, %v7978, %v6213
      %v8043 = vsel %vm7997, %v7979, %v6215
      %v8044 = vsel %vm7997, %v7980, %v6217
      %v8045 = vsel %vm7997, %v7981, %v6219
      %v8046 = vsel %vm7997, %v7982, %v6221
      %v8047 = vsel %vm7997, %v7983, %v6223
      %v8048 = vsel %vm7997, %v7984, %v6225
      %v8049 = vsel %vm7997, %v7985, %v6227
      %v8050 = vsel %vm7997, %v7986, %v6229
      %v8051 = vsel %vm7997, %v7987, %v6231
      %v8052 = vsel %vm7997, %v7988, %v6233
      %v8053 = vsel %vm7997, %v7989, %v6235
      %v8054 = vsel %vm7997, %v7990, %v6237
      %v8055 = vsel %vm7997, %v7991, %v6239
      %v8056 = vsel %vm7997, %v7992, %v6241
      %v8057 = vsel %vm7997, %v7993, %v6243
      %v8058 = vsel %vm7997, %v7994, %v6245
      %v8059 = vsel %vm7997, %v7995, %v6247
      %v8060 = vsel %vm7997, %v7996, %v6249
      %v8061 = vsel %vm3868, %v7998, %v6346
      %v8062 = vsel %vm3868, %v7998, %v6348
      %v8063 = vsel %vm3868, %v7999, %v6350
      %v8064 = vsel %vm3868, %v8000, %v6352
      %v8065 = vsel %vm3868, %v8001, %v6354
      %v8066 = vsel %vm3868, %v8002, %v6356
      %v8067 = vsel %vm3868, %v8003, %v6358
      %v8068 = vsel %vm3868, %v8004, %v6360
      %v8069 = vsel %vm3868, %v8005, %v6362
      %v8070 = vsel %vm3868, %v8006, %v6364
      %v8071 = vsel %vm3868, %v8007, %v6366
      %v8072 = vsel %vm3868, %v8008, %v6368
      %v8073 = vsel %vm3868, %v8009, %v6370
      %v8074 = vsel %vm3868, %v8010, %v6372
      %v8075 = vsel %vm3868, %v8011, %v6374
      %v8076 = vsel %vm3868, %v8012, %v6376
      %v8077 = vsel %vm3868, %v8013, %v6378
      %v8078 = vsel %vm3868, %v8014, %v6380
      %v8079 = vsel %vm3868, %v8015, %v6382
      %v8080 = vsel %vm3868, %v8016, %v6384
      %v8081 = vsel %vm3868, %v8017, %v6386
      %v8082 = vsel %vm3868, %v8018, %v6388
      %v8083 = vsel %vm3868, %v8019, %v6390
      %v8084 = vsel %vm3868, %v8020, %v6392
      %v8085 = vsel %vm3868, %v8021, %v6394
      %v8086 = vsel %vm3868, %v8022, %v6396
      %v8087 = vsel %vm3868, %v8023, %v6398
      %v8088 = vsel %vm3868, %v8024, %v6400
      %v8089 = vsel %vm3868, %v8025, %v6402
      %v8090 = vsel %vm3868, %v8026, %v6404
      %v8091 = vsel %vm3868, %v8027, %v6406
      %v8092 = vsel %vm3868, %v8028, %v6408
      %v8093 = vsel %vm3868, %v8029, %v6410
      %v8094 = vsel %vm3868, %v8030, %v6412
      %v8095 = vsel %vm3868, %v8031, %v6414
      %v8096 = vsel %vm3868, %v8032, %v6416
      %v8097 = vsel %vm3868, %v8033, %v6418
      %v8098 = vsel %vm3868, %v8034, %v6420
      %v8099 = vsel %vm3868, %v8035, %v6422
      %v8100 = vsel %vm3868, %v8036, %v6424
      %v8101 = vsel %vm3868, %v8037, %v6426
      %v8102 = vsel %vm3868, %v8038, %v6428
      %v8103 = vsel %vm3868, %v8039, %v6430
      %v8104 = vsel %vm3868, %v8040, %v6432
      %v8105 = vsel %vm3868, %v8041, %v6434
      %v8106 = vsel %vm3868, %v8042, %v6436
      %v8107 = vsel %vm3868, %v8043, %v6438
      %v8108 = vsel %vm3868, %v8044, %v6440
      %v8109 = vsel %vm3868, %v8045, %v6442
      %v8110 = vsel %vm3868, %v8046, %v6444
      %v8111 = vsel %vm3868, %v8047, %v6446
      %v8112 = vsel %vm3868, %v8048, %v6448
      %v8113 = vsel %vm3868, %v8049, %v6450
      %v8114 = vsel %vm3868, %v8050, %v6452
      %v8115 = vsel %vm3868, %v8051, %v6454
      %v8116 = vsel %vm3868, %v8052, %v6456
      %v8117 = vsel %vm3868, %v8053, %v6458
      %v8118 = vsel %vm3868, %v8054, %v6460
      %v8119 = vsel %vm3868, %v8055, %v6462
      %v8120 = vsel %vm3868, %v8056, %v6464
      %v8121 = vsel %vm3868, %v8057, %v6466
      %v8122 = vsel %vm3868, %v8058, %v6468
      %v8123 = vsel %vm3868, %v8059, %v6470
      %v8124 = vsel %vm3868, %v8060, %v6472
      %vm8125 = vcmask 162816
      %v8126 = vsel %vm8125, %v8061, %v6538
      %v8127 = vsel %vm8125, %v8062, %v6540
      %v8128 = vsel %vm8125, %v8063, %v6542
      %v8129 = vsel %vm8125, %v8064, %v6544
      %v8130 = vsel %vm8125, %v8065, %v6546
      %v8131 = vsel %vm8125, %v8066, %v6548
      %v8132 = vsel %vm8125, %v8067, %v6550
      %v8133 = vsel %vm8125, %v8068, %v6552
      %v8134 = vsel %vm8125, %v8069, %v6554
      %v8135 = vsel %vm8125, %v8070, %v6556
      %v8136 = vsel %vm8125, %v8071, %v6558
      %v8137 = vsel %vm8125, %v8072, %v6560
      %v8138 = vsel %vm8125, %v8073, %v6562
      %v8139 = vsel %vm8125, %v8074, %v6564
      %v8140 = vsel %vm8125, %v8075, %v6566
      %v8141 = vsel %vm8125, %v8076, %v6568
      %v8142 = vsel %vm8125, %v8077, %v6570
      %v8143 = vsel %vm8125, %v8078, %v6572
      %v8144 = vsel %vm8125, %v8079, %v6574
      %v8145 = vsel %vm8125, %v8080, %v6576
      %v8146 = vsel %vm8125, %v8081, %v6578
      %v8147 = vsel %vm8125, %v8082, %v6580
      %v8148 = vsel %vm8125, %v8083, %v6582
      %v8149 = vsel %vm8125, %v8084, %v6584
      %v8150 = vsel %vm8125, %v8085, %v6586
      %v8151 = vsel %vm8125, %v8086, %v6588
      %v8152 = vsel %vm8125, %v8087, %v6590
      %v8153 = vsel %vm8125, %v8088, %v6592
      %v8154 = vsel %vm8125, %v8089, %v6594
      %v8155 = vsel %vm8125, %v8090, %v6596
      %v8156 = vsel %vm8125, %v8091, %v6598
      %v8157 = vsel %vm8125, %v8092, %v6600
      %v8158 = vsel %vm8125, %v8093, %v6602
      %v8159 = vsel %vm8125, %v8094, %v6604
      %v8160 = vsel %vm8125, %v8095, %v6606
      %v8161 = vsel %vm8125, %v8096, %v6608
      %v8162 = vsel %vm8125, %v8097, %v6610
      %v8163 = vsel %vm8125, %v8098, %v6612
      %v8164 = vsel %vm8125, %v8099, %v6614
      %v8165 = vsel %vm8125, %v8100, %v6616
      %v8166 = vsel %vm8125, %v8101, %v6618
      %v8167 = vsel %vm8125, %v8102, %v6620
      %v8168 = vsel %vm8125, %v8103, %v6622
      %v8169 = vsel %vm8125, %v8104, %v6624
      %v8170 = vsel %vm8125, %v8105, %v6626
      %v8171 = vsel %vm8125, %v8106, %v6628
      %v8172 = vsel %vm8125, %v8107, %v6630
      %v8173 = vsel %vm8125, %v8108, %v6632
      %v8174 = vsel %vm8125, %v8109, %v6634
      %v8175 = vsel %vm8125, %v8110, %v6636
      %v8176 = vsel %vm8125, %v8111, %v6638
      %v8177 = vsel %vm8125, %v8112, %v6640
      %v8178 = vsel %vm8125, %v8113, %v6642
      %v8179 = vsel %vm8125, %v8114, %v6644
      %v8180 = vsel %vm8125, %v8115, %v6646
      %v8181 = vsel %vm8125, %v8116, %v6648
      %v8182 = vsel %vm8125, %v8117, %v6650
      %v8183 = vsel %vm8125, %v8118, %v6652
      %v8184 = vsel %vm8125, %v8119, %v6654
      %v8185 = vsel %vm8125, %v8120, %v6656
      %v8186 = vsel %vm8125, %v8121, %v6658
      %v8187 = vsel %vm8125, %v8122, %v6660
      %v8188 = vsel %vm8125, %v8123, %v6662
      %v8189 = vsel %vm8125, %v8124, %v6664
      %v8190 = vsel %vm3932, %v8126, %v6730
      %v8191 = vsel %vm3932, %v8127, %v6732
      %v8192 = vsel %vm3932, %v8128, %v6734
      %v8193 = vsel %vm3932, %v8129, %v6736
      %v8194 = vsel %vm3932, %v8130, %v6738
      %v8195 = vsel %vm3932, %v8131, %v6740
      %v8196 = vsel %vm3932, %v8132, %v6742
      %v8197 = vsel %vm3932, %v8133, %v6744
      %v8198 = vsel %vm3932, %v8134, %v6746
      %v8199 = vsel %vm3932, %v8135, %v6748
      %v8200 = vsel %vm3932, %v8136, %v6750
      %v8201 = vsel %vm3932, %v8137, %v6752
      %v8202 = vsel %vm3932, %v8138, %v6754
      %v8203 = vsel %vm3932, %v8139, %v6756
      %v8204 = vsel %vm3932, %v8140, %v6758
      %v8205 = vsel %vm3932, %v8141, %v6760
      %v8206 = vsel %vm3932, %v8142, %v6762
      %v8207 = vsel %vm3932, %v8143, %v6764
      %v8208 = vsel %vm3932, %v8144, %v6766
      %v8209 = vsel %vm3932, %v8145, %v6768
      %v8210 = vsel %vm3932, %v8146, %v6770
      %v8211 = vsel %vm3932, %v8147, %v6772
      %v8212 = vsel %vm3932, %v8148, %v6774
      %v8213 = vsel %vm3932, %v8149, %v6776
      %v8214 = vsel %vm3932, %v8150, %v6778
      %v8215 = vsel %vm3932, %v8151, %v6780
      %v8216 = vsel %vm3932, %v8152, %v6782
      %v8217 = vsel %vm3932, %v8153, %v6784
      %v8218 = vsel %vm3932, %v8154, %v6786
      %v8219 = vsel %vm3932, %v8155, %v6788
      %v8220 = vsel %vm3932, %v8156, %v6790
      %v8221 = vsel %vm3932, %v8157, %v6792
      %v8222 = vsel %vm3932, %v8158, %v6794
      %v8223 = vsel %vm3932, %v8159, %v6796
      %v8224 = vsel %vm3932, %v8160, %v6798
      %v8225 = vsel %vm3932, %v8161, %v6800
      %v8226 = vsel %vm3932, %v8162, %v6802
      %v8227 = vsel %vm3932, %v8163, %v6804
      %v8228 = vsel %vm3932, %v8164, %v6806
      %v8229 = vsel %vm3932, %v8165, %v6808
      %v8230 = vsel %vm3932, %v8166, %v6810
      %v8231 = vsel %vm3932, %v8167, %v6812
      %v8232 = vsel %vm3932, %v8168, %v6814
      %v8233 = vsel %vm3932, %v8169, %v6816
      %v8234 = vsel %vm3932, %v8170, %v6818
      %v8235 = vsel %vm3932, %v8171, %v6820
      %v8236 = vsel %vm3932, %v8172, %v6822
      %v8237 = vsel %vm3932, %v8173, %v6824
      %v8238 = vsel %vm3932, %v8174, %v6826
      %v8239 = vsel %vm3932, %v8175, %v6828
      %v8240 = vsel %vm3932, %v8176, %v6830
      %v8241 = vsel %vm3932, %v8177, %v6832
      %v8242 = vsel %vm3932, %v8178, %v6834
      %v8243 = vsel %vm3932, %v8179, %v6836
      %v8244 = vsel %vm3932, %v8180, %v6838
      %v8245 = vsel %vm3932, %v8181, %v6840
      %v8246 = vsel %vm3932, %v8182, %v6842
      %v8247 = vsel %vm3932, %v8183, %v6844
      %v8248 = vsel %vm3932, %v8184, %v6846
      %v8249 = vsel %vm3932, %v8185, %v6848
      %v8250 = vsel %vm3932, %v8186, %v6850
      %v8251 = vsel %vm3932, %v8187, %v6852
      %v8252 = vsel %vm3932, %v8188, %v6854
      %v8253 = vsel %vm3932, %v8189, %v6856
      %vm8254 = vcmask 228352
      %v8255 = vsel %vm8254, %v8190, %v6923
      %v8256 = vsel %vm8254, %v8191, %v6925
      %v8257 = vsel %vm8254, %v8192, %v6927
      %v8258 = vsel %vm8254, %v8193, %v6929
      %v8259 = vsel %vm8254, %v8194, %v6931
      %v8260 = vsel %vm8254, %v8195, %v6933
      %v8261 = vsel %vm8254, %v8196, %v6935
      %v8262 = vsel %vm8254, %v8197, %v6937
      %v8263 = vsel %vm8254, %v8198, %v6939
      %v8264 = vsel %vm8254, %v8199, %v6941
      %v8265 = vsel %vm8254, %v8200, %v6943
      %v8266 = vsel %vm8254, %v8201, %v6945
      %v8267 = vsel %vm8254, %v8202, %v6947
      %v8268 = vsel %vm8254, %v8203, %v6949
      %v8269 = vsel %vm8254, %v8204, %v6951
      %v8270 = vsel %vm8254, %v8205, %v6953
      %v8271 = vsel %vm8254, %v8206, %v6955
      %v8272 = vsel %vm8254, %v8207, %v6957
      %v8273 = vsel %vm8254, %v8208, %v6959
      %v8274 = vsel %vm8254, %v8209, %v6961
      %v8275 = vsel %vm8254, %v8210, %v6963
      %v8276 = vsel %vm8254, %v8211, %v6965
      %v8277 = vsel %vm8254, %v8212, %v6967
      %v8278 = vsel %vm8254, %v8213, %v6969
      %v8279 = vsel %vm8254, %v8214, %v6971
      %v8280 = vsel %vm8254, %v8215, %v6973
      %v8281 = vsel %vm8254, %v8216, %v6975
      %v8282 = vsel %vm8254, %v8217, %v6977
      %v8283 = vsel %vm8254, %v8218, %v6979
      %v8284 = vsel %vm8254, %v8219, %v6981
      %v8285 = vsel %vm8254, %v8220, %v6983
      %v8286 = vsel %vm8254, %v8221, %v6985
      %v8287 = vsel %vm8254, %v8222, %v6987
      %v8288 = vsel %vm8254, %v8223, %v6989
      %v8289 = vsel %vm8254, %v8224, %v6991
      %v8290 = vsel %vm8254, %v8225, %v6993
      %v8291 = vsel %vm8254, %v8226, %v6995
      %v8292 = vsel %vm8254, %v8227, %v6997
      %v8293 = vsel %vm8254, %v8228, %v6999
      %v8294 = vsel %vm8254, %v8229, %v7001
      %v8295 = vsel %vm8254, %v8230, %v7003
      %v8296 = vsel %vm8254, %v8231, %v7005
      %v8297 = vsel %vm8254, %v8232, %v7007
      %v8298 = vsel %vm8254, %v8233, %v7009
      %v8299 = vsel %vm8254, %v8234, %v7011
      %v8300 = vsel %vm8254, %v8235, %v7013
      %v8301 = vsel %vm8254, %v8236, %v7015
      %v8302 = vsel %vm8254, %v8237, %v7017
      %v8303 = vsel %vm8254, %v8238, %v7019
      %v8304 = vsel %vm8254, %v8239, %v7021
      %v8305 = vsel %vm8254, %v8240, %v7023
      %v8306 = vsel %vm8254, %v8241, %v7025
      %v8307 = vsel %vm8254, %v8242, %v7027
      %v8308 = vsel %vm8254, %v8243, %v7029
      %v8309 = vsel %vm8254, %v8244, %v7031
      %v8310 = vsel %vm8254, %v8245, %v7033
      %v8311 = vsel %vm8254, %v8246, %v7035
      %v8312 = vsel %vm8254, %v8247, %v7037
      %v8313 = vsel %vm8254, %v8248, %v7039
      %v8314 = vsel %vm8254, %v8249, %v7041
      %v8315 = vsel %vm8254, %v8250, %v7043
      %v8316 = vsel %vm8254, %v8251, %v7045
      %v8317 = vsel %vm8254, %v8252, %v7047
      %v8318 = vsel %vm8254, %v8253, %v7049
      %v8319 = vsel %vm3996, %v8255, %v7115
      %v8320 = vsel %vm3996, %v8256, %v7117
      %v8321 = vsel %vm3996, %v8257, %v7119
      %v8322 = vsel %vm3996, %v8258, %v7121
      %v8323 = vsel %vm3996, %v8259, %v7123
      %v8324 = vsel %vm3996, %v8260, %v7125
      %v8325 = vsel %vm3996, %v8261, %v7127
      %v8326 = vsel %vm3996, %v8262, %v7129
      %v8327 = vsel %vm3996, %v8263, %v7131
      %v8328 = vsel %vm3996, %v8264, %v7133
      %v8329 = vsel %vm3996, %v8265, %v7135
      %v8330 = vsel %vm3996, %v8266, %v7137
      %v8331 = vsel %vm3996, %v8267, %v7139
      %v8332 = vsel %vm3996, %v8268, %v7141
      %v8333 = vsel %vm3996, %v8269, %v7143
      %v8334 = vsel %vm3996, %v8270, %v7145
      %v8335 = vsel %vm3996, %v8271, %v7147
      %v8336 = vsel %vm3996, %v8272, %v7149
      %v8337 = vsel %vm3996, %v8273, %v7151
      %v8338 = vsel %vm3996, %v8274, %v7153
      %v8339 = vsel %vm3996, %v8275, %v7155
      %v8340 = vsel %vm3996, %v8276, %v7157
      %v8341 = vsel %vm3996, %v8277, %v7159
      %v8342 = vsel %vm3996, %v8278, %v7161
      %v8343 = vsel %vm3996, %v8279, %v7163
      %v8344 = vsel %vm3996, %v8280, %v7165
      %v8345 = vsel %vm3996, %v8281, %v7167
      %v8346 = vsel %vm3996, %v8282, %v7169
      %v8347 = vsel %vm3996, %v8283, %v7171
      %v8348 = vsel %vm3996, %v8284, %v7173
      %v8349 = vsel %vm3996, %v8285, %v7175
      %v8350 = vsel %vm3996, %v8286, %v7177
      %v8351 = vsel %vm3996, %v8287, %v7179
      %v8352 = vsel %vm3996, %v8288, %v7181
      %v8353 = vsel %vm3996, %v8289, %v7183
      %v8354 = vsel %vm3996, %v8290, %v7185
      %v8355 = vsel %vm3996, %v8291, %v7187
      %v8356 = vsel %vm3996, %v8292, %v7189
      %v8357 = vsel %vm3996, %v8293, %v7191
      %v8358 = vsel %vm3996, %v8294, %v7193
      %v8359 = vsel %vm3996, %v8295, %v7195
      %v8360 = vsel %vm3996, %v8296, %v7197
      %v8361 = vsel %vm3996, %v8297, %v7199
      %v8362 = vsel %vm3996, %v8298, %v7201
      %v8363 = vsel %vm3996, %v8299, %v7203
      %v8364 = vsel %vm3996, %v8300, %v7205
      %v8365 = vsel %vm3996, %v8301, %v7207
      %v8366 = vsel %vm3996, %v8302, %v7209
      %v8367 = vsel %vm3996, %v8303, %v7211
      %v8368 = vsel %vm3996, %v8304, %v7213
      %v8369 = vsel %vm3996, %v8305, %v7215
      %v8370 = vsel %vm3996, %v8306, %v7217
      %v8371 = vsel %vm3996, %v8307, %v7219
      %v8372 = vsel %vm3996, %v8308, %v7221
      %v8373 = vsel %vm3996, %v8309, %v7223
      %v8374 = vsel %vm3996, %v8310, %v7225
      %v8375 = vsel %vm3996, %v8311, %v7227
      %v8376 = vsel %vm3996, %v8312, %v7229
      %v8377 = vsel %vm3996, %v8313, %v7231
      %v8378 = vsel %vm3996, %v8314, %v7233
      %v8379 = vsel %vm3996, %v8315, %v7235
      %v8380 = vsel %vm3996, %v8316, %v7237
      %v8381 = vsel %vm3996, %v8317, %v7239
      %v8382 = vsel %vm3996, %v8318, %v7239
      %vm8383 = vcmask 293888
      %v8384 = vsel %vm8383, %v8319, %v7304
      %v8385 = vsel %vm8383, %v8320, %v7306
      %v8386 = vsel %vm8383, %v8321, %v7308
      %v8387 = vsel %vm8383, %v8322, %v7310
      %v8388 = vsel %vm8383, %v8323, %v7312
      %v8389 = vsel %vm8383, %v8324, %v7314
      %v8390 = vsel %vm8383, %v8325, %v7316
      %v8391 = vsel %vm8383, %v8326, %v7318
      %v8392 = vsel %vm8383, %v8327, %v7320
      %v8393 = vsel %vm8383, %v8328, %v7322
      %v8394 = vsel %vm8383, %v8329, %v7324
      %v8395 = vsel %vm8383, %v8330, %v7326
      %v8396 = vsel %vm8383, %v8331, %v7328
      %v8397 = vsel %vm8383, %v8332, %v7330
      %v8398 = vsel %vm8383, %v8333, %v7332
      %v8399 = vsel %vm8383, %v8334, %v7334
      %v8400 = vsel %vm8383, %v8335, %v7336
      %v8401 = vsel %vm8383, %v8336, %v7338
      %v8402 = vsel %vm8383, %v8337, %v7340
      %v8403 = vsel %vm8383, %v8338, %v7342
      %v8404 = vsel %vm8383, %v8339, %v7344
      %v8405 = vsel %vm8383, %v8340, %v7346
      %v8406 = vsel %vm8383, %v8341, %v7348
      %v8407 = vsel %vm8383, %v8342, %v7350
      %v8408 = vsel %vm8383, %v8343, %v7352
      %v8409 = vsel %vm8383, %v8344, %v7354
      %v8410 = vsel %vm8383, %v8345, %v7356
      %v8411 = vsel %vm8383, %v8346, %v7358
      %v8412 = vsel %vm8383, %v8347, %v7360
      %v8413 = vsel %vm8383, %v8348, %v7362
      %v8414 = vsel %vm8383, %v8349, %v7364
      %v8415 = vsel %vm8383, %v8350, %v7366
      %v8416 = vsel %vm8383, %v8351, %v7368
      %v8417 = vsel %vm8383, %v8352, %v7370
      %v8418 = vsel %vm8383, %v8353, %v7372
      %v8419 = vsel %vm8383, %v8354, %v7374
      %v8420 = vsel %vm8383, %v8355, %v7376
      %v8421 = vsel %vm8383, %v8356, %v7378
      %v8422 = vsel %vm8383, %v8357, %v7380
      %v8423 = vsel %vm8383, %v8358, %v7382
      %v8424 = vsel %vm8383, %v8359, %v7384
      %v8425 = vsel %vm8383, %v8360, %v7386
      %v8426 = vsel %vm8383, %v8361, %v7388
      %v8427 = vsel %vm8383, %v8362, %v7390
      %v8428 = vsel %vm8383, %v8363, %v7392
      %v8429 = vsel %vm8383, %v8364, %v7394
      %v8430 = vsel %vm8383, %v8365, %v7396
      %v8431 = vsel %vm8383, %v8366, %v7398
      %v8432 = vsel %vm8383, %v8367, %v7400
      %v8433 = vsel %vm8383, %v8368, %v7402
      %v8434 = vsel %vm8383, %v8369, %v7404
      %v8435 = vsel %vm8383, %v8370, %v7406
      %v8436 = vsel %vm8383, %v8371, %v7408
      %v8437 = vsel %vm8383, %v8372, %v7410
      %v8438 = vsel %vm8383, %v8373, %v7412
      %v8439 = vsel %vm8383, %v8374, %v7414
      %v8440 = vsel %vm8383, %v8375, %v7416
      %v8441 = vsel %vm8383, %v8376, %v7418
      %v8442 = vsel %vm8383, %v8377, %v7420
      %v8443 = vsel %vm8383, %v8378, %v7422
      %v8444 = vsel %vm8383, %v8379, %v7424
      %v8445 = vsel %vm8383, %v8380, %v7426
      %v8446 = vsel %vm8383, %v8381, %v7428
      %v8447 = vsel %vm8383, %v8382, %v7428
      %v8448 = vsel %vm4061, %v8384, %v7493
      %v8449 = vsel %vm4061, %v8385, %v7495
      %v8450 = vsel %vm4061, %v8386, %v7497
      %v8451 = vsel %vm4061, %v8387, %v7499
      %v8452 = vsel %vm4061, %v8388, %v7501
      %v8453 = vsel %vm4061, %v8389, %v7503
      %v8454 = vsel %vm4061, %v8390, %v7505
      %v8455 = vsel %vm4061, %v8391, %v7507
      %v8456 = vsel %vm4061, %v8392, %v7509
      %v8457 = vsel %vm4061, %v8393, %v7511
      %v8458 = vsel %vm4061, %v8394, %v7513
      %v8459 = vsel %vm4061, %v8395, %v7515
      %v8460 = vsel %vm4061, %v8396, %v7517
      %v8461 = vsel %vm4061, %v8397, %v7519
      %v8462 = vsel %vm4061, %v8398, %v7521
      %v8463 = vsel %vm4061, %v8399, %v7523
      %v8464 = vsel %vm4061, %v8400, %v7525
      %v8465 = vsel %vm4061, %v8401, %v7527
      %v8466 = vsel %vm4061, %v8402, %v7529
      %v8467 = vsel %vm4061, %v8403, %v7531
      %v8468 = vsel %vm4061, %v8404, %v7533
      %v8469 = vsel %vm4061, %v8405, %v7535
      %v8470 = vsel %vm4061, %v8406, %v7537
      %v8471 = vsel %vm4061, %v8407, %v7539
      %v8472 = vsel %vm4061, %v8408, %v7541
      %v8473 = vsel %vm4061, %v8409, %v7543
      %v8474 = vsel %vm4061, %v8410, %v7545
      %v8475 = vsel %vm4061, %v8411, %v7547
      %v8476 = vsel %vm4061, %v8412, %v7549
      %v8477 = vsel %vm4061, %v8413, %v7551
      %v8478 = vsel %vm4061, %v8414, %v7553
      %v8479 = vsel %vm4061, %v8415, %v7555
      %v8480 = vsel %vm4061, %v8416, %v7557
      %v8481 = vsel %vm4061, %v8417, %v7559
      %v8482 = vsel %vm4061, %v8418, %v7561
      %v8483 = vsel %vm4061, %v8419, %v7563
      %v8484 = vsel %vm4061, %v8420, %v7565
      %v8485 = vsel %vm4061, %v8421, %v7567
      %v8486 = vsel %vm4061, %v8422, %v7569
      %v8487 = vsel %vm4061, %v8423, %v7571
      %v8488 = vsel %vm4061, %v8424, %v7573
      %v8489 = vsel %vm4061, %v8425, %v7575
      %v8490 = vsel %vm4061, %v8426, %v7577
      %v8491 = vsel %vm4061, %v8427, %v7579
      %v8492 = vsel %vm4061, %v8428, %v7581
      %v8493 = vsel %vm4061, %v8429, %v7583
      %v8494 = vsel %vm4061, %v8430, %v7585
      %v8495 = vsel %vm4061, %v8431, %v7587
      %v8496 = vsel %vm4061, %v8432, %v7589
      %v8497 = vsel %vm4061, %v8433, %v7591
      %v8498 = vsel %vm4061, %v8434, %v7593
      %v8499 = vsel %vm4061, %v8435, %v7595
      %v8500 = vsel %vm4061, %v8436, %v7597
      %v8501 = vsel %vm4061, %v8437, %v7599
      %v8502 = vsel %vm4061, %v8438, %v7601
      %v8503 = vsel %vm4061, %v8439, %v7603
      %v8504 = vsel %vm4061, %v8440, %v7605
      %v8505 = vsel %vm4061, %v8441, %v7607
      %v8506 = vsel %vm4061, %v8442, %v7609
      %v8507 = vsel %vm4061, %v8443, %v7611
      %v8508 = vsel %vm4061, %v8444, %v7613
      %v8509 = vsel %vm4061, %v8445, %v7615
      %v8510 = vsel %vm4061, %v8446, %v7617
      %v8511 = vsel %vm4061, %v8447, %v7617
      %vm8512 = vcmask 359424
      %v8513 = vsel %vm8512, %v8448, %v7682
      %v8514 = vsel %vm8512, %v8449, %v7684
      %v8515 = vsel %vm8512, %v8450, %v7686
      %v8516 = vsel %vm8512, %v8451, %v7688
      %v8517 = vsel %vm8512, %v8452, %v7690
      %v8518 = vsel %vm8512, %v8453, %v7692
      %v8519 = vsel %vm8512, %v8454, %v7694
      %v8520 = vsel %vm8512, %v8455, %v7696
      %v8521 = vsel %vm8512, %v8456, %v7698
      %v8522 = vsel %vm8512, %v8457, %v7700
      %v8523 = vsel %vm8512, %v8458, %v7702
      %v8524 = vsel %vm8512, %v8459, %v7704
      %v8525 = vsel %vm8512, %v8460, %v7706
      %v8526 = vsel %vm8512, %v8461, %v7708
      %v8527 = vsel %vm8512, %v8462, %v7710
      %v8528 = vsel %vm8512, %v8463, %v7712
      %v8529 = vsel %vm8512, %v8464, %v7714
      %v8530 = vsel %vm8512, %v8465, %v7716
      %v8531 = vsel %vm8512, %v8466, %v7718
      %v8532 = vsel %vm8512, %v8467, %v7720
      %v8533 = vsel %vm8512, %v8468, %v7722
      %v8534 = vsel %vm8512, %v8469, %v7724
      %v8535 = vsel %vm8512, %v8470, %v7726
      %v8536 = vsel %vm8512, %v8471, %v7728
      %v8537 = vsel %vm8512, %v8472, %v7730
      %v8538 = vsel %vm8512, %v8473, %v7732
      %v8539 = vsel %vm8512, %v8474, %v7734
      %v8540 = vsel %vm8512, %v8475, %v7736
      %v8541 = vsel %vm8512, %v8476, %v7738
      %v8542 = vsel %vm8512, %v8477, %v7740
      %v8543 = vsel %vm8512, %v8478, %v7742
      %v8544 = vsel %vm8512, %v8479, %v7744
      %v8545 = vsel %vm8512, %v8480, %v7746
      %v8546 = vsel %vm8512, %v8481, %v7748
      %v8547 = vsel %vm8512, %v8482, %v7750
      %v8548 = vsel %vm8512, %v8483, %v7752
      %v8549 = vsel %vm8512, %v8484, %v7754
      %v8550 = vsel %vm8512, %v8485, %v7756
      %v8551 = vsel %vm8512, %v8486, %v7758
      %v8552 = vsel %vm8512, %v8487, %v7760
      %v8553 = vsel %vm8512, %v8488, %v7762
      %v8554 = vsel %vm8512, %v8489, %v7764
      %v8555 = vsel %vm8512, %v8490, %v7766
      %v8556 = vsel %vm8512, %v8491, %v7768
      %v8557 = vsel %vm8512, %v8492, %v7770
      %v8558 = vsel %vm8512, %v8493, %v7772
      %v8559 = vsel %vm8512, %v8494, %v7774
      %v8560 = vsel %vm8512, %v8495, %v7776
      %v8561 = vsel %vm8512, %v8496, %v7778
      %v8562 = vsel %vm8512, %v8497, %v7780
      %v8563 = vsel %vm8512, %v8498, %v7782
      %v8564 = vsel %vm8512, %v8499, %v7784
      %v8565 = vsel %vm8512, %v8500, %v7786
      %v8566 = vsel %vm8512, %v8501, %v7788
      %v8567 = vsel %vm8512, %v8502, %v7790
      %v8568 = vsel %vm8512, %v8503, %v7792
      %v8569 = vsel %vm8512, %v8504, %v7794
      %v8570 = vsel %vm8512, %v8505, %v7796
      %v8571 = vsel %vm8512, %v8506, %v7798
      %v8572 = vsel %vm8512, %v8507, %v7800
      %v8573 = vsel %vm8512, %v8508, %v7802
      %v8574 = vsel %vm8512, %v8509, %v7804
      %v8575 = vsel %vm8512, %v8510, %v7806
      %v8576 = vsel %vm8512, %v8511, %v7806
      %v8577 = vpack.c.bf16 %v8514, %v8513
      %v8578 = vpack.c.bf16 %v8516, %v8515
      %v8579 = vpack.c.bf16 %v8518, %v8517
      %v8580 = vpack.c.bf16 %v8520, %v8519
      %v8581 = vpack.c.bf16 %v8522, %v8521
      %v8582 = vpack.c.bf16 %v8524, %v8523
      %v8583 = vpack.c.bf16 %v8526, %v8525
      %v8584 = vpack.c.bf16 %v8528, %v8527
      %v8585 = vpack.c.bf16 %v8530, %v8529
      %v8586 = vpack.c.bf16 %v8532, %v8531
      %v8587 = vpack.c.bf16 %v8534, %v8533
      %v8588 = vpack.c.bf16 %v8536, %v8535
      %v8589 = vpack.c.bf16 %v8538, %v8537
      %v8590 = vpack.c.bf16 %v8540, %v8539
      %v8591 = vpack.c.bf16 %v8542, %v8541
      %v8592 = vpack.c.bf16 %v8544, %v8543
      %v8593 = vpack.c.bf16 %v8546, %v8545
      %v8594 = vpack.c.bf16 %v8548, %v8547
      %v8595 = vpack.c.bf16 %v8550, %v8549
      %v8596 = vpack.c.bf16 %v8552, %v8551
      %v8597 = vpack.c.bf16 %v8554, %v8553
      %v8598 = vpack.c.bf16 %v8556, %v8555
      %v8599 = vpack.c.bf16 %v8558, %v8557
      %v8600 = vpack.c.bf16 %v8560, %v8559
      %v8601 = vpack.c.bf16 %v8562, %v8561
      %v8602 = vpack.c.bf16 %v8564, %v8563
      %v8603 = vpack.c.bf16 %v8566, %v8565
      %v8604 = vpack.c.bf16 %v8568, %v8567
      %v8605 = vpack.c.bf16 %v8570, %v8569
      %v8606 = vpack.c.bf16 %v8572, %v8571
      %v8607 = vpack.c.bf16 %v8574, %v8573
      %v8608 = vpack.c.bf16 %v8576, %v8575
      %v8610 = vlaneseq
      %v8611 = vshrl.u32 %v8610, 7
      %v8612 = vsub.s32 0, %v8611
      %v8613 = vrot.slane %v5046, %v8612
      %v8621 = vunpack.c.l.b16 %v5040
      %v8622 = vunpack.c.l.b16 %v5041
      %v8623 = vunpack.c.l.b16 %v5042
      %v8624 = vunpack.c.l.b16 %v5043
      %v8625 = vunpack.c.l.b16 %v5044
      %v8626 = vunpack.c.l.b16 %v5045
      %v8627 = vpack.c.b16 %v8622, %v8621
      %v8628 = vpack.c.b16 %v8624, %v8623
      %v8629 = vpack.c.b16 %v8626, %v8625
      %v8634 = vsel %vm4126, %v8577, 0
      %v8637 = vsel %vm4126, %v8578, 0
      %v8640 = vsel %vm4126, %v8579, 0
      %v8643 = vsel %vm4126, %v8580, 0
      %v8646 = vsel %vm4126, %v8581, 0
      %v8649 = vsel %vm4126, %v8582, 0
      %v8652 = vsel %vm4126, %v8583, 0
      %v8655 = vsel %vm4126, %v8584, 0
      %v8658 = vsel %vm4126, %v8585, 0
      %v8661 = vsel %vm4126, %v8586, 0
      %v8664 = vsel %vm4126, %v8587, 0
      %v8667 = vsel %vm4126, %v8588, 0
      %v8670 = vsel %vm4126, %v8589, 0
      %v8673 = vsel %vm4126, %v8590, 0
      %v8676 = vsel %vm4126, %v8591, 0
      %v8679 = vsel %vm4126, %v8592, 0
      %v8682 = vsel %vm4126, %v8593, 0
      %v8685 = vsel %vm4126, %v8594, 0
      %v8688 = vsel %vm4126, %v8595, 0
      %v8691 = vsel %vm4126, %v8596, 0
      %v8694 = vsel %vm4126, %v8597, 0
      %v8697 = vsel %vm4126, %v8598, 0
      %v8700 = vsel %vm4126, %v8599, 0
      %v8703 = vsel %vm4126, %v8600, 0
      %v8706 = vsel %vm4126, %v8601, 0
      %v8709 = vsel %vm4126, %v8602, 0
      %v8712 = vsel %vm4126, %v8603, 0
      %v8715 = vsel %vm4126, %v8604, 0
      %v8718 = vsel %vm4126, %v8605, 0
      %v8721 = vsel %vm4126, %v8606, 0
      %v8724 = vsel %vm4126, %v8607, 0
      %v8727 = vsel %vm4126, %v8608, 0
      %8729 = vmatprep.subr.bf16.mxu0 0
      %8730 = vmatpush1.bf16.msra.mxu0 0
      %8731 = vmatprep.subr.bf16.mxu0 0
      %8732 = vmatpush1.bf16.msra.mxu0 0
      %8733 = vmatprep.subr.bf16.mxu0 0
      %8734 = vmatpush1.bf16.msra.mxu0 0
      %8735 = vmatprep.subr.bf16.mxu0 0
      %8736 = vmatpush1.bf16.msra.mxu0 0
      %8737 = vmatprep.subr.bf16.mxu0 0
      %8738 = vmatpush1.bf16.msra.mxu0 0
      %8739 = vmatprep.subr.bf16.mxu0 0
      %8740 = vmatpush1.bf16.msra.mxu0 %v8629
      %8741 = vmatprep.subr.bf16.mxu0 0
      %8742 = vmatpush1.bf16.msra.mxu0 %v8628
      %8743 = vmatprep.subr.bf16.mxu0 0
      %8744 = vmatpush1.bf16.msra.mxu0 %v8627
      %8745 = vmatprep.subr.bf16.mxu0 0
      %8746 = vmatpush2.bf16.msra.mxu0 0
      %8747 = vmatprep.subr.bf16.mxu0 0
      %8748 = vmatpush2.bf16.msra.mxu0 0
      %8749 = vmatprep.subr.bf16.mxu0 0
      %8750 = vmatpush2.bf16.msra.mxu0 0
      %8751 = vmatprep.subr.bf16.mxu0 0
      %8752 = vmatpush2.bf16.msra.mxu0 0
      %8753 = vmatprep.subr.bf16.mxu0 0
      %8754 = vmatpush2.bf16.msra.mxu0 0
      %8755 = vmatprep.subr.bf16.mxu0 0
      %8756 = vmatpush2.bf16.msra.mxu0 0
      %8757 = vmatprep.subr.bf16.mxu0 0
      %8758 = vmatpush2.bf16.msra.mxu0 0
      %8759 = vmatprep.subr.bf16.mxu0 0
      %8760 = vmatpush2.bf16.msra.mxu0 0
      %8761 = vmatprep.mubr.bf16.mxu0 0
      %8762 = vmatmul.mubr.bf16.gmra.mxu0 %v8634
      %v8763 = vpop.f32.mrf.mxu0
      %v8764 = vadd.f32 %v8613, %v8763
      %v8765 = vpop.f32.mrf.mxu0
      %v8766 = vpop.f32.mrf.mxu0
      %v8767 = vadd.f32 %v8613, %v8766
      %v8768 = vpop.f32.mrf.mxu0
      %8769 = vmatprep.mubr.bf16.mxu0 0
      %8770 = vmatmul.mubr.bf16.gmra.mxu0 %v8637
      %v8771 = vpop.f32.mrf.mxu0
      %v8772 = vadd.f32 %v8613, %v8771
      %v8773 = vpop.f32.mrf.mxu0
      %v8774 = vpop.f32.mrf.mxu0
      %v8775 = vadd.f32 %v8613, %v8774
      %v8776 = vpop.f32.mrf.mxu0
      %8777 = vmatprep.mubr.bf16.mxu0 0
      %8778 = vmatmul.mubr.bf16.gmra.mxu0 %v8640
      %v8779 = vpop.f32.mrf.mxu0
      %v8780 = vadd.f32 %v8613, %v8779
      %v8781 = vpop.f32.mrf.mxu0
      %v8782 = vpop.f32.mrf.mxu0
      %v8783 = vadd.f32 %v8613, %v8782
      %v8784 = vpop.f32.mrf.mxu0
      %8785 = vmatprep.mubr.bf16.mxu0 0
      %8786 = vmatmul.mubr.bf16.gmra.mxu0 %v8643
      %v8787 = vpop.f32.mrf.mxu0
      %v8788 = vadd.f32 %v8613, %v8787
      %v8789 = vpop.f32.mrf.mxu0
      %v8790 = vpop.f32.mrf.mxu0
      %v8791 = vadd.f32 %v8613, %v8790
      %v8792 = vpop.f32.mrf.mxu0
      %8793 = vmatprep.mubr.bf16.mxu0 0
      %8794 = vmatmul.mubr.bf16.gmra.mxu0 %v8646
      %v8795 = vpop.f32.mrf.mxu0
      %v8796 = vadd.f32 %v8613, %v8795
      %v8797 = vpop.f32.mrf.mxu0
      %v8798 = vpop.f32.mrf.mxu0
      %v8799 = vadd.f32 %v8613, %v8798
      %v8800 = vpop.f32.mrf.mxu0
      %8801 = vmatprep.mubr.bf16.mxu0 0
      %8802 = vmatmul.mubr.bf16.gmra.mxu0 %v8649
      %v8803 = vpop.f32.mrf.mxu0
      %v8804 = vadd.f32 %v8613, %v8803
      %v8805 = vpop.f32.mrf.mxu0
      %v8806 = vpop.f32.mrf.mxu0
      %v8807 = vadd.f32 %v8613, %v8806
      %v8808 = vpop.f32.mrf.mxu0
      %8809 = vmatprep.mubr.bf16.mxu0 0
      %8810 = vmatmul.mubr.bf16.gmra.mxu0 %v8652
      %v8811 = vpop.f32.mrf.mxu0
      %v8812 = vadd.f32 %v8613, %v8811
      %v8813 = vpop.f32.mrf.mxu0
      %v8814 = vpop.f32.mrf.mxu0
      %v8815 = vadd.f32 %v8613, %v8814
      %v8816 = vpop.f32.mrf.mxu0
      %8817 = vmatprep.mubr.bf16.mxu0 0
      %8818 = vmatmul.mubr.bf16.gmra.mxu0 %v8655
      %v8819 = vpop.f32.mrf.mxu0
      %v8820 = vadd.f32 %v8613, %v8819
      %v8821 = vpop.f32.mrf.mxu0
      %v8822 = vpop.f32.mrf.mxu0
      %v8823 = vadd.f32 %v8613, %v8822
      %v8824 = vpop.f32.mrf.mxu0
      %8825 = vmatprep.mubr.bf16.mxu0 0
      %8826 = vmatmul.mubr.bf16.gmra.mxu0 %v8658
      %v8827 = vpop.f32.mrf.mxu0
      %v8828 = vadd.f32 %v8613, %v8827
      %v8829 = vpop.f32.mrf.mxu0
      %v8830 = vpop.f32.mrf.mxu0
      %v8831 = vadd.f32 %v8613, %v8830
      %v8832 = vpop.f32.mrf.mxu0
      %8833 = vmatprep.mubr.bf16.mxu0 0
      %8834 = vmatmul.mubr.bf16.gmra.mxu0 %v8661
      %v8835 = vpop.f32.mrf.mxu0
      %v8836 = vadd.f32 %v8613, %v8835
      %v8837 = vpop.f32.mrf.mxu0
      %v8838 = vpop.f32.mrf.mxu0
      %v8839 = vadd.f32 %v8613, %v8838
      %v8840 = vpop.f32.mrf.mxu0
      %8841 = vmatprep.mubr.bf16.mxu0 0
      %8842 = vmatmul.mubr.bf16.gmra.mxu0 %v8664
      %v8843 = vpop.f32.mrf.mxu0
      %v8844 = vadd.f32 %v8613, %v8843
      %v8845 = vpop.f32.mrf.mxu0
      %v8846 = vpop.f32.mrf.mxu0
      %v8847 = vadd.f32 %v8613, %v8846
      %v8848 = vpop.f32.mrf.mxu0
      %8849 = vmatprep.mubr.bf16.mxu0 0
      %8850 = vmatmul.mubr.bf16.gmra.mxu0 %v8667
      %v8851 = vpop.f32.mrf.mxu0
      %v8852 = vadd.f32 %v8613, %v8851
      %v8853 = vpop.f32.mrf.mxu0
      %v8854 = vpop.f32.mrf.mxu0
      %v8855 = vadd.f32 %v8613, %v8854
      %v8856 = vpop.f32.mrf.mxu0
      %8857 = vmatprep.mubr.bf16.mxu0 0
      %8858 = vmatmul.mubr.bf16.gmra.mxu0 %v8670
      %v8859 = vpop.f32.mrf.mxu0
      %v8860 = vadd.f32 %v8613, %v8859
      %v8861 = vpop.f32.mrf.mxu0
      %v8862 = vpop.f32.mrf.mxu0
      %v8863 = vadd.f32 %v8613, %v8862
      %v8864 = vpop.f32.mrf.mxu0
      %8865 = vmatprep.mubr.bf16.mxu0 0
      %8866 = vmatmul.mubr.bf16.gmra.mxu0 %v8673
      %v8867 = vpop.f32.mrf.mxu0
      %v8868 = vadd.f32 %v8613, %v8867
      %v8869 = vpop.f32.mrf.mxu0
      %v8870 = vpop.f32.mrf.mxu0
      %v8871 = vadd.f32 %v8613, %v8870
      %v8872 = vpop.f32.mrf.mxu0
      %8873 = vmatprep.mubr.bf16.mxu0 0
      %8874 = vmatmul.mubr.bf16.gmra.mxu0 %v8676
      %v8875 = vpop.f32.mrf.mxu0
      %v8876 = vadd.f32 %v8613, %v8875
      %v8877 = vpop.f32.mrf.mxu0
      %v8878 = vpop.f32.mrf.mxu0
      %v8879 = vadd.f32 %v8613, %v8878
      %v8880 = vpop.f32.mrf.mxu0
      %8881 = vmatprep.mubr.bf16.mxu0 0
      %8882 = vmatmul.mubr.bf16.gmra.mxu0 %v8679
      %v8883 = vpop.f32.mrf.mxu0
      %v8884 = vadd.f32 %v8613, %v8883
      %v8885 = vpop.f32.mrf.mxu0
      %v8886 = vpop.f32.mrf.mxu0
      %v8887 = vadd.f32 %v8613, %v8886
      %v8888 = vpop.f32.mrf.mxu0
      %8889 = vmatprep.mubr.bf16.mxu0 0
      %8890 = vmatmul.mubr.bf16.gmra.mxu0 %v8682
      %v8891 = vpop.f32.mrf.mxu0
      %v8892 = vadd.f32 %v8613, %v8891
      %v8893 = vpop.f32.mrf.mxu0
      %v8894 = vpop.f32.mrf.mxu0
      %v8895 = vadd.f32 %v8613, %v8894
      %v8896 = vpop.f32.mrf.mxu0
      %8897 = vmatprep.mubr.bf16.mxu0 0
      %8898 = vmatmul.mubr.bf16.gmra.mxu0 %v8685
      %v8899 = vpop.f32.mrf.mxu0
      %v8900 = vadd.f32 %v8613, %v8899
      %v8901 = vpop.f32.mrf.mxu0
      %v8902 = vpop.f32.mrf.mxu0
      %v8903 = vadd.f32 %v8613, %v8902
      %v8904 = vpop.f32.mrf.mxu0
      %8905 = vmatprep.mubr.bf16.mxu0 0
      %8906 = vmatmul.mubr.bf16.gmra.mxu0 %v8688
      %v8907 = vpop.f32.mrf.mxu0
      %v8908 = vadd.f32 %v8613, %v8907
      %v8909 = vpop.f32.mrf.mxu0
      %v8910 = vpop.f32.mrf.mxu0
      %v8911 = vadd.f32 %v8613, %v8910
      %v8912 = vpop.f32.mrf.mxu0
      %8913 = vmatprep.mubr.bf16.mxu0 0
      %8914 = vmatmul.mubr.bf16.gmra.mxu0 %v8691
      %v8915 = vpop.f32.mrf.mxu0
      %v8916 = vadd.f32 %v8613, %v8915
      %v8917 = vpop.f32.mrf.mxu0
      %v8918 = vpop.f32.mrf.mxu0
      %v8919 = vadd.f32 %v8613, %v8918
      %v8920 = vpop.f32.mrf.mxu0
      %8921 = vmatprep.mubr.bf16.mxu0 0
      %8922 = vmatmul.mubr.bf16.gmra.mxu0 %v8694
      %v8923 = vpop.f32.mrf.mxu0
      %v8924 = vadd.f32 %v8613, %v8923
      %v8925 = vpop.f32.mrf.mxu0
      %v8926 = vpop.f32.mrf.mxu0
      %v8927 = vadd.f32 %v8613, %v8926
      %v8928 = vpop.f32.mrf.mxu0
      %8929 = vmatprep.mubr.bf16.mxu0 0
      %8930 = vmatmul.mubr.bf16.gmra.mxu0 %v8697
      %v8931 = vpop.f32.mrf.mxu0
      %v8932 = vadd.f32 %v8613, %v8931
      %v8933 = vpop.f32.mrf.mxu0
      %v8934 = vpop.f32.mrf.mxu0
      %v8935 = vadd.f32 %v8613, %v8934
      %v8936 = vpop.f32.mrf.mxu0
      %8937 = vmatprep.mubr.bf16.mxu0 0
      %8938 = vmatmul.mubr.bf16.gmra.mxu0 %v8700
      %v8939 = vpop.f32.mrf.mxu0
      %v8940 = vadd.f32 %v8613, %v8939
      %v8941 = vpop.f32.mrf.mxu0
      %v8942 = vpop.f32.mrf.mxu0
      %v8943 = vadd.f32 %v8613, %v8942
      %v8944 = vpop.f32.mrf.mxu0
      %8945 = vmatprep.mubr.bf16.mxu0 0
      %8946 = vmatmul.mubr.bf16.gmra.mxu0 %v8703
      %v8947 = vpop.f32.mrf.mxu0
      %v8948 = vadd.f32 %v8613, %v8947
      %v8949 = vpop.f32.mrf.mxu0
      %v8950 = vpop.f32.mrf.mxu0
      %v8951 = vadd.f32 %v8613, %v8950
      %v8952 = vpop.f32.mrf.mxu0
      %8953 = vmatprep.mubr.bf16.mxu0 0
      %8954 = vmatmul.mubr.bf16.gmra.mxu0 %v8706
      %v8955 = vpop.f32.mrf.mxu0
      %v8956 = vadd.f32 %v8613, %v8955
      %v8957 = vpop.f32.mrf.mxu0
      %v8958 = vpop.f32.mrf.mxu0
      %v8959 = vadd.f32 %v8613, %v8958
      %v8960 = vpop.f32.mrf.mxu0
      %8961 = vmatprep.mubr.bf16.mxu0 0
      %8962 = vmatmul.mubr.bf16.gmra.mxu0 %v8709
      %v8963 = vpop.f32.mrf.mxu0
      %v8964 = vadd.f32 %v8613, %v8963
      %v8965 = vpop.f32.mrf.mxu0
      %v8966 = vpop.f32.mrf.mxu0
      %v8967 = vadd.f32 %v8613, %v8966
      %v8968 = vpop.f32.mrf.mxu0
      %8969 = vmatprep.mubr.bf16.mxu0 0
      %8970 = vmatmul.mubr.bf16.gmra.mxu0 %v8712
      %v8971 = vpop.f32.mrf.mxu0
      %v8972 = vadd.f32 %v8613, %v8971
      %v8973 = vpop.f32.mrf.mxu0
      %v8974 = vpop.f32.mrf.mxu0
      %v8975 = vadd.f32 %v8613, %v8974
      %v8976 = vpop.f32.mrf.mxu0
      %8977 = vmatprep.mubr.bf16.mxu0 0
      %8978 = vmatmul.mubr.bf16.gmra.mxu0 %v8715
      %v8979 = vpop.f32.mrf.mxu0
      %v8980 = vadd.f32 %v8613, %v8979
      %v8981 = vpop.f32.mrf.mxu0
      %v8982 = vpop.f32.mrf.mxu0
      %v8983 = vadd.f32 %v8613, %v8982
      %v8984 = vpop.f32.mrf.mxu0
      %8985 = vmatprep.mubr.bf16.mxu0 0
      %8986 = vmatmul.mubr.bf16.gmra.mxu0 %v8718
      %v8987 = vpop.f32.mrf.mxu0
      %v8988 = vadd.f32 %v8613, %v8987
      %v8989 = vpop.f32.mrf.mxu0
      %v8990 = vpop.f32.mrf.mxu0
      %v8991 = vadd.f32 %v8613, %v8990
      %v8992 = vpop.f32.mrf.mxu0
      %8993 = vmatprep.mubr.bf16.mxu0 0
      %8994 = vmatmul.mubr.bf16.gmra.mxu0 %v8721
      %v8995 = vpop.f32.mrf.mxu0
      %v8996 = vadd.f32 %v8613, %v8995
      %v8997 = vpop.f32.mrf.mxu0
      %v8998 = vpop.f32.mrf.mxu0
      %v8999 = vadd.f32 %v8613, %v8998
      %v9000 = vpop.f32.mrf.mxu0
      %9001 = vmatprep.mubr.bf16.mxu0 0
      %9002 = vmatmul.mubr.bf16.gmra.mxu0 %v8724
      %v9003 = vpop.f32.mrf.mxu0
      %v9004 = vadd.f32 %v8613, %v9003
      %v9005 = vpop.f32.mrf.mxu0
      %v9006 = vpop.f32.mrf.mxu0
      %v9007 = vadd.f32 %v8613, %v9006
      %v9008 = vpop.f32.mrf.mxu0
      %9009 = vmatprep.mubr.bf16.mxu0 0
      %9010 = vmatmul.mubr.bf16.gmra.mxu0 %v8727
      %v9011 = vpop.f32.mrf.mxu0
      %v9012 = vadd.f32 %v8613, %v9011
      %v9013 = vpop.f32.mrf.mxu0
      %v9014 = vpop.f32.mrf.mxu0
      %v9015 = vadd.f32 %v8613, %v9014
      %v9016 = vpop.f32.mrf.mxu0
      %9017 = vdwg.mxu0
      %v9018 = vmax.f32 %v8764, 0.0
      %v9019 = vmax.f32 %v8767, 0.0
      %v9020 = vmax.f32 %v8772, 0.0
      %v9021 = vmax.f32 %v8775, 0.0
      %v9022 = vmax.f32 %v8780, 0.0
      %v9023 = vmax.f32 %v8783, 0.0
      %v9024 = vmax.f32 %v8788, 0.0
      %v9025 = vmax.f32 %v8791, 0.0
      %v9026 = vmax.f32 %v8796, 0.0
      %v9027 = vmax.f32 %v8799, 0.0
      %v9028 = vmax.f32 %v8804, 0.0
      %v9029 = vmax.f32 %v8807, 0.0
      %v9030 = vmax.f32 %v8812, 0.0
      %v9031 = vmax.f32 %v8815, 0.0
      %v9032 = vmax.f32 %v8820, 0.0
      %v9033 = vmax.f32 %v8823, 0.0
      %v9034 = vmax.f32 %v8828, 0.0
      %v9035 = vmax.f32 %v8831, 0.0
      %v9036 = vmax.f32 %v8836, 0.0
      %v9037 = vmax.f32 %v8839, 0.0
      %v9038 = vmax.f32 %v8844, 0.0
      %v9039 = vmax.f32 %v8847, 0.0
      %v9040 = vmax.f32 %v8852, 0.0
      %v9041 = vmax.f32 %v8855, 0.0
      %v9042 = vmax.f32 %v8860, 0.0
      %v9043 = vmax.f32 %v8863, 0.0
      %v9044 = vmax.f32 %v8868, 0.0
      %v9045 = vmax.f32 %v8871, 0.0
      %v9046 = vmax.f32 %v8876, 0.0
      %v9047 = vmax.f32 %v8879, 0.0
      %v9048 = vmax.f32 %v8884, 0.0
      %v9049 = vmax.f32 %v8887, 0.0
      %v9050 = vmax.f32 %v8892, 0.0
      %v9051 = vmax.f32 %v8895, 0.0
      %v9052 = vmax.f32 %v8900, 0.0
      %v9053 = vmax.f32 %v8903, 0.0
      %v9054 = vmax.f32 %v8908, 0.0
      %v9055 = vmax.f32 %v8911, 0.0
      %v9056 = vmax.f32 %v8916, 0.0
      %v9057 = vmax.f32 %v8919, 0.0
      %v9058 = vmax.f32 %v8924, 0.0
      %v9059 = vmax.f32 %v8927, 0.0
      %v9060 = vmax.f32 %v8932, 0.0
      %v9061 = vmax.f32 %v8935, 0.0
      %v9062 = vmax.f32 %v8940, 0.0
      %v9063 = vmax.f32 %v8943, 0.0
      %v9064 = vmax.f32 %v8948, 0.0
      %v9065 = vmax.f32 %v8951, 0.0
      %v9066 = vmax.f32 %v8956, 0.0
      %v9067 = vmax.f32 %v8959, 0.0
      %v9068 = vmax.f32 %v8964, 0.0
      %v9069 = vmax.f32 %v8967, 0.0
      %v9070 = vmax.f32 %v8972, 0.0
      %v9071 = vmax.f32 %v8975, 0.0
      %v9072 = vmax.f32 %v8980, 0.0
      %v9073 = vmax.f32 %v8983, 0.0
      %v9074 = vmax.f32 %v8988, 0.0
      %v9075 = vmax.f32 %v8991, 0.0
      %v9076 = vmax.f32 %v8996, 0.0
      %v9077 = vmax.f32 %v8999, 0.0
      %v9078 = vmax.f32 %v9004, 0.0
      %v9079 = vmax.f32 %v9007, 0.0
      %v9080 = vmax.f32 %v9012, 0.0
      %v9081 = vmax.f32 %v9015, 0.0
      %9082 = vst.msk [vmem:[%s224] sm:$0xff] %vm3804, %v9018
      %9083 = vst.msk [vmem:[%s224 + $0x8] sm:$0xff] %vm3804, %v9019
      %9084 = vst.msk [vmem:[%s224 + $0x10] sm:$0xff] %vm3804, %v9020
      %9085 = vst.msk [vmem:[%s224 + $0x18] sm:$0xff] %vm3804, %v9021
      %9086 = vst.msk [vmem:[%s224 + $0x20] sm:$0xff] %vm3804, %v9022
      %9087 = vst.msk [vmem:[%s224 + $0x28] sm:$0xff] %vm3804, %v9023
      %9088 = vst.msk [vmem:[%s224 + $0x30] sm:$0xff] %vm3804, %v9024
      %9089 = vst.msk [vmem:[%s224 + $0x38] sm:$0xff] %vm3804, %v9025
      %9090 = vst.msk [vmem:[%s224 + $0x40] sm:$0xff] %vm3804, %v9026
      %9091 = vst.msk [vmem:[%s224 + $0x48] sm:$0xff] %vm3804, %v9027
      %9092 = vst.msk [vmem:[%s224 + $0x50] sm:$0xff] %vm3804, %v9028
      %9093 = vst.msk [vmem:[%s224 + $0x58] sm:$0xff] %vm3804, %v9029
      %9094 = vst.msk [vmem:[%s224 + $0x60] sm:$0xff] %vm3804, %v9030
      %9095 = vst.msk [vmem:[%s224 + $0x68] sm:$0xff] %vm3804, %v9031
      %9096 = vst.msk [vmem:[%s224 + $0x70] sm:$0xff] %vm3804, %v9032
      %9097 = vst.msk [vmem:[%s224 + $0x78] sm:$0xff] %vm3804, %v9033
      %9098 = vst.msk [vmem:[%s224 + $0x80] sm:$0xff] %vm3804, %v9034
      %9099 = vst.msk [vmem:[%s224 + $0x88] sm:$0xff] %vm3804, %v9035
      %9100 = vst.msk [vmem:[%s224 + $0x90] sm:$0xff] %vm3804, %v9036
      %9101 = vst.msk [vmem:[%s224 + $0x98] sm:$0xff] %vm3804, %v9037
      %9102 = vst.msk [vmem:[%s224 + $0xa0] sm:$0xff] %vm3804, %v9038
      %9103 = vst.msk [vmem:[%s224 + $0xa8] sm:$0xff] %vm3804, %v9039
      %9104 = vst.msk [vmem:[%s224 + $0xb0] sm:$0xff] %vm3804, %v9040
      %9105 = vst.msk [vmem:[%s224 + $0xb8] sm:$0xff] %vm3804, %v9041
      %9106 = vst.msk [vmem:[%s224 + $0xc0] sm:$0xff] %vm3804, %v9042
      %9107 = vst.msk [vmem:[%s224 + $0xc8] sm:$0xff] %vm3804, %v9043
      %9108 = vst.msk [vmem:[%s224 + $0xd0] sm:$0xff] %vm3804, %v9044
      %9109 = vst.msk [vmem:[%s224 + $0xd8] sm:$0xff] %vm3804, %v9045
      %9110 = vst.msk [vmem:[%s224 + $0xe0] sm:$0xff] %vm3804, %v9046
      %9111 = vst.msk [vmem:[%s224 + $0xe8] sm:$0xff] %vm3804, %v9047
      %9112 = vst.msk [vmem:[%s224 + $0xf0] sm:$0xff] %vm3804, %v9048
      %9113 = vst.msk [vmem:[%s224 + $0xf8] sm:$0xff] %vm3804, %v9049
      %9114 = vst.msk [vmem:[%s224 + $0x100] sm:$0xff] %vm3804, %v9050
      %9115 = vst.msk [vmem:[%s224 + $0x108] sm:$0xff] %vm3804, %v9051
      %9116 = vst.msk [vmem:[%s224 + $0x110] sm:$0xff] %vm3804, %v9052
      %9117 = vst.msk [vmem:[%s224 + $0x118] sm:$0xff] %vm3804, %v9053
      %9118 = vst.msk [vmem:[%s224 + $0x120] sm:$0xff] %vm3804, %v9054
      %9119 = vst.msk [vmem:[%s224 + $0x128] sm:$0xff] %vm3804, %v9055
      %9120 = vst.msk [vmem:[%s224 + $0x130] sm:$0xff] %vm3804, %v9056
      %9121 = vst.msk [vmem:[%s224 + $0x138] sm:$0xff] %vm3804, %v9057
      %9122 = vst.msk [vmem:[%s224 + $0x140] sm:$0xff] %vm3804, %v9058
      %9123 = vst.msk [vmem:[%s224 + $0x148] sm:$0xff] %vm3804, %v9059
      %9124 = vst.msk [vmem:[%s224 + $0x150] sm:$0xff] %vm3804, %v9060
      %9125 = vst.msk [vmem:[%s224 + $0x158] sm:$0xff] %vm3804, %v9061
      %9126 = vst.msk [vmem:[%s224 + $0x160] sm:$0xff] %vm3804, %v9062
      %9127 = vst.msk [vmem:[%s224 + $0x168] sm:$0xff] %vm3804, %v9063
      %9128 = vst.msk [vmem:[%s224 + $0x170] sm:$0xff] %vm3804, %v9064
      %9129 = vst.msk [vmem:[%s224 + $0x178] sm:$0xff] %vm3804, %v9065
      %9130 = vst.msk [vmem:[%s224 + $0x180] sm:$0xff] %vm3804, %v9066
      %9131 = vst.msk [vmem:[%s224 + $0x188] sm:$0xff] %vm3804, %v9067
      %9132 = vst.msk [vmem:[%s224 + $0x190] sm:$0xff] %vm3804, %v9068
      %9133 = vst.msk [vmem:[%s224 + $0x198] sm:$0xff] %vm3804, %v9069
      %9134 = vst.msk [vmem:[%s224 + $0x1a0] sm:$0xff] %vm3804, %v9070
      %9135 = vst.msk [vmem:[%s224 + $0x1a8] sm:$0xff] %vm3804, %v9071
      %9136 = vst.msk [vmem:[%s224 + $0x1b0] sm:$0xff] %vm3804, %v9072
      %9137 = vst.msk [vmem:[%s224 + $0x1b8] sm:$0xff] %vm3804, %v9073
      %9138 = vst.msk [vmem:[%s224 + $0x1c0] sm:$0xff] %vm3804, %v9074
      %9139 = vst.msk [vmem:[%s224 + $0x1c8] sm:$0xff] %vm3804, %v9075
      %9140 = vst.msk [vmem:[%s224 + $0x1d0] sm:$0xff] %vm3804, %v9076
      %9141 = vst.msk [vmem:[%s224 + $0x1d8] sm:$0xff] %vm3804, %v9077
      %9142 = vst.msk [vmem:[%s224 + $0x1e0] sm:$0xff] %vm3804, %v9078
      %9143 = vst.msk [vmem:[%s224 + $0x1e8] sm:$0xff] %vm3804, %v9079
      %9144 = vst.msk [vmem:[%s224 + $0x1f0] sm:$0xff] %vm3804, %v9080
      %9145 = vst.msk [vmem:[%s224 + $0x1f8] sm:$0xff] %vm3804, %v9081
      %p9146 = scmp.lt.s32.totalorder %s16, 1
      %s9147 = scalar_select %p9146, %s16, 1
      %s9148 = smul.addr %s9147, 64
      %s9149 = smul.addr %s9148, 8
      %s9150 = scalar_lea.vmem %s5, %s9149
      // Predicated region
      $region41: #{tpu_custom_call.1} parent=39 // pred_check
        %p9151 = pneg %p144
      $region42: #{tpu_custom_call.1} parent=39 // pred_check_branch
        %9153 = sbr.rel (%p9151) target = $region44
      $region43: #{tpu_custom_call.1} parent=39 // pred_region
        _
      $region44: #{tpu_custom_call.1} parent=39 // pred_fallthru
        _
    $region40: #{tpu_custom_call.1} parent=5 // pred_fallthru
      _
    %p9154 = scmp.le.s32.totalorder 2, %s11
    // Predicated region
    $region45: #{tpu_custom_call.1} parent=5 // pred_check
      %p9155 = pneg %p9154
    $region46: #{tpu_custom_call.1} parent=5 // pred_check_branch
      %9157 = sbr.rel (%p9155) target = $region48
    $region47: #{tpu_custom_call.1} parent=5 // pred_region
      %s9158 = ssub.s32 %s11, 2
      // Predicated region
      $region49: #{tpu_custom_call.1} parent=47 // pred_check
        %p9159 = pneg %p150
      $region50: #{tpu_custom_call.1} parent=47 // pred_check_branch
        %9161 = sbr.rel (%p9159) target = $region52
      $region51: #{tpu_custom_call.1} parent=47 // pred_region
        %p9162 = scmp.lt.s32.totalorder %s17, 1
        %s9163 = scalar_select %p9162, %s17, 1
        %s9164 = smul.addr %s9163, 64
        %s9165 = smul.addr %s9164, 8
        %s9166 = scalar_lea.vmem %s5, %s9165
      $region52: #{tpu_custom_call.1} parent=47 // pred_fallthru
        _
    $region48: #{tpu_custom_call.1} parent=5 // pred_fallthru
      _
  $region6: #{tpu_custom_call.1} parent=0 // loop_footer
    %s15 = sadd.s32 1, %s11
  $region7: #{tpu_custom_call.1} parent=0 // loop_footer_branch
    %10 = sbr.rel target = $region3
  $region8: #{tpu_custom_call.1} parent=0 // loop_exit
    _

</llo_original>
